<compile_context>
chip_gen: v5e
topology: v5e:2x2
jax: 0.10.0
libtpu: 0.0.40
codegen_flags: <defaults>
</compile_context>

<pallas_src>
import random

import jax
import jax.numpy as jnp
from jax.experimental import pallas as pl
from jax.experimental.pallas import tpu as pltpu

EMB = 32    # embedding_size
HID = 64    # hidden_size (logical, as in the PyTorch module)
HP = 128    # hidden size padded to the 128-lane boundary (lane-aligned gates)


def _gru_fused(g, h):
    """Fused-layout GRU update. g = [x|h] @ W_fused + b_fused with columns
    [r | z | n_i | n_h] (each HP wide). Padded lanes stay exactly zero:
    sigmoid(0)=0.5, tanh(0 + 0.5*0)=0, h' = 0.5*0 + 0.5*0 = 0."""
    r = jax.nn.sigmoid(g[:, 0:HP])
    z = jax.nn.sigmoid(g[:, HP:2 * HP])
    n = jnp.tanh(g[:, 2 * HP:3 * HP] + r * g[:, 3 * HP:4 * HP])
    return (1.0 - z) * n + z * h


def seq2seq_kernel(
    # data
    x_ref,        # (Tin*B, Fin)    f32  time-major, batch-padded, flattened
    y_ref,        # (Tout, B, Fout) f32  time-major targets (teacher forcing inputs)
    tf_ref,       # (Tout,) int32   SMEM teacher-forcing mask
    # parameters (consolidated slabs)
    wf_ref,       # (3, 2*HP, 4*HP) bf16 : fused [enc_l1, dec_l0, dec_l1]
    bf_ref,       # (3, 4*HP) f32        : fused biases [r: bi+bh | z: bi+bh | n_i: bi | n_h: bh]
    e_wh0_ref,    # (HP, 3*HP) bf16      : encoder layer-0 hidden weights (r|z|n)
    e_wi0_ref,    # (EMB, 3*HP) bf16     : encoder layer-0 input weights (r|z|n)
    e_b0_ref,     # (2, 3*HP) f32        : row0 = bi0 with r/z pre-summed with bh0; row1 = [0|0|bh0_n]
    e_emb_w_ref,  # (Fin, EMB) bf16
    e_emb_b_ref,  # (1, EMB) f32
    dvec_ref,     # (4, HP) f32          : [d_emb_w row | d_emb_b | fc_w row | fc_b(lane0)]
    # output
    out_ref,      # (B, W_out) f32       : lane-dense (W_out multiple of 128)
):
    f32, bf16 = jnp.float32, jnp.bfloat16
    Tout, B, Fout = y_ref.shape
    Tin = x_ref.shape[0] // B
    W_out = out_ref.shape[1]

    # ---- hoisted weight slabs (loaded once, reused by every unrolled step) ----
    e_wh0 = e_wh0_ref[...]
    wf_e1 = wf_ref[0]
    wf_d0 = wf_ref[1]
    wf_d1 = wf_ref[2]

    # ---- hoisted biases (broadcast ONCE; JAX does not CSE broadcast_in_dim) ----
    bf_e1 = jnp.broadcast_to(bf_ref[0:1, :], (B, 4 * HP))
    bf_d0 = jnp.broadcast_to(bf_ref[1:2, :], (B, 4 * HP))
    bf_d1 = jnp.broadcast_to(bf_ref[2:3, :], (B, 4 * HP))
    bh0_n = jnp.broadcast_to(e_b0_ref[1:2, 2 * HP:3 * HP], (B, HP))
    d_emb_row = jnp.broadcast_to(dvec_ref[0:1, :], (B, HP))   # padded lanes are zero
    d_emb_b = jnp.broadcast_to(dvec_ref[1:2, :], (B, HP))     # padded lanes are zero
    fc_row = jnp.broadcast_to(dvec_ref[2:3, :], (B, HP))      # padded lanes are zero
    fc_b = jnp.broadcast_to(dvec_ref[3:4, 0:1], (B, 1))

    # ---- encoder: hoist all input-side projections off the serial h->h chain ----
    xf = x_ref[...]                                            # (Tin*B, Fin) f32
    emb_all = jnp.maximum(
        jnp.dot(xf.astype(bf16), e_emb_w_ref[...],
                preferred_element_type=f32) + e_emb_b_ref[...], 0.0)       # (Tin*B, EMB)
    # r/z parts of bh0 are pre-summed into this bias row at init time.
    gi0_all = jnp.dot(emb_all.astype(bf16), e_wi0_ref[...],
                      preferred_element_type=f32) + e_b0_ref[0:1, :]       # (Tin*B, 3*HP)

    h0 = jnp.zeros((B, HP), f32)
    h1 = jnp.zeros((B, HP), f32)
    for t in range(Tin):                      # fully unrolled (Tin is static)
        gi0 = gi0_all[t * B:(t + 1) * B, :]
        gh0 = jnp.dot(h0.astype(bf16), e_wh0, preferred_element_type=f32)  # no bias here
        r0 = jax.nn.sigmoid(gi0[:, 0:HP] + gh0[:, 0:HP])
        z0 = jax.nn.sigmoid(gi0[:, HP:2 * HP] + gh0[:, HP:2 * HP])
        n0 = jnp.tanh(gi0[:, 2 * HP:3 * HP] + r0 * (gh0[:, 2 * HP:3 * HP] + bh0_n))
        h0 = (1.0 - z0) * n0 + z0 * h0
        # layer 1: ONE fused matmul over [h0 | h1]  (K=256, lane-aligned concat)
        g1 = jnp.dot(jnp.concatenate([h0, h1], axis=1).astype(bf16), wf_e1,
                     preferred_element_type=f32) + bf_e1
        h1 = _gru_fused(g1, h1)

    # ---- decoder (autoregressive, fully unrolled) ----
    # decoder_input = x[:, -1, 0:1]  (requires output_size == 1, same as the PyTorch module)
    dec_in = xf[(Tin - 1) * B:Tin * B, 0:1]                    # (B, 1) f32
    preds = []
    for i in range(Tout):
        # embedding Linear(Fout=1, EMB)+ReLU on the VPU; result already HP-wide (padded lanes 0)
        emb = jnp.maximum(dec_in * d_emb_row + d_emb_b, 0.0)   # (B, HP)
        g0 = jnp.dot(jnp.concatenate([emb, h0], axis=1).astype(bf16), wf_d0,
                     preferred_element_type=f32) + bf_d0
        h0 = _gru_fused(g0, h0)
        g1 = jnp.dot(jnp.concatenate([h0, h1], axis=1).astype(bf16), wf_d1,
                     preferred_element_type=f32) + bf_d1
        h1 = _gru_fused(g1, h1)
        # final FC (N=1) as VPU multiply + XLU lane reduce -- no MXU round-trip
        pred = jnp.sum(h1 * fc_row, axis=-1, keepdims=True) + fc_b        # (B, 1)
        preds.append(pred)
        dec_in = jnp.where(tf_ref[i] == 1, y_ref[i], pred)     # teacher forcing choice

    # single, lane-dense (multiple-of-128) unmasked store
    tail = W_out - Tout * Fout
    pieces = preds if tail == 0 else preds + [jnp.zeros((B, tail), f32)]
    out_ref[...] = jnp.concatenate(pieces, axis=1)             # (B, W_out)


def init_params(key, input_size, output_size, emb=EMB, hid=HID, hp=HP):
    """Deterministic init (uniform +-1/sqrt(fan_in)), weights stored transposed (x @ W),
    gates zero-padded from `hid` to `hp` lanes, consolidated into fused slabs."""
    ks = iter(jax.random.split(key, 32))
    f32, bf16 = jnp.float32, jnp.bfloat16

    def u(shape, fan_in):
        b = float(fan_in) ** -0.5
        return jax.random.uniform(next(ks), shape, f32, -b, b)

    def pad_gates(w):
        # (..., 3*hid) -> (..., 3*hp): each of the r|z|n gate blocks zero-padded hid->hp.
        lead = w.shape[:-1]
        w = w.reshape(lead + (3, hid))
        w = jnp.pad(w, [(0, 0)] * len(lead) + [(0, 0), (0, hp - hid)])
        return w.reshape(lead + (3 * hp,))

    def pad_rows(w):
        return jnp.pad(w, ((0, hp - w.shape[0]), (0, 0)))

    def fuse(wi, wh, bi, bh):
        """Build fused (2*hp, 4*hp) weight and (1, 4*hp) bias for [x|h] @ W layout.
        Columns: [r | z | n_i | n_h]; r/z stack Wi over Wh (so the matmul pre-sums them),
        n keeps Wi / Wh in separate column blocks."""
        wi_p = pad_rows(pad_gates(wi))                  # (hp, 3*hp)
        wh_p = pad_rows(pad_gates(wh))                  # (hp, 3*hp)
        bi_p = pad_gates(bi)                            # (1, 3*hp)
        bh_p = pad_gates(bh)                            # (1, 3*hp)
        zeros = jnp.zeros((hp, hp), f32)
        top = jnp.concatenate([wi_p[:, 0:hp], wi_p[:, hp:2 * hp],
                               wi_p[:, 2 * hp:3 * hp], zeros], axis=1)
        bot = jnp.concatenate([wh_p[:, 0:hp], wh_p[:, hp:2 * hp],
                               zeros, wh_p[:, 2 * hp:3 * hp]], axis=1)
        w_f = jnp.concatenate([top, bot], axis=0)       # (2*hp, 4*hp)
        b_f = jnp.concatenate([bi_p[:, 0:hp] + bh_p[:, 0:hp],
                               bi_p[:, hp:2 * hp] + bh_p[:, hp:2 * hp],
                               bi_p[:, 2 * hp:3 * hp],
                               bh_p[:, 2 * hp:3 * hp]], axis=1)   # (1, 4*hp)
        return w_f, b_f

    # encoder
    e_emb_w = u((input_size, emb), input_size)
    e_emb_b = u((1, emb), input_size)
    e_wi0 = u((emb, 3 * hid), hid); e_wh0 = u((hid, 3 * hid), hid)
    e_bi0 = u((1, 3 * hid), hid);   e_bh0 = u((1, 3 * hid), hid)
    e_wi1 = u((hid, 3 * hid), hid); e_wh1 = u((hid, 3 * hid), hid)
    e_bi1 = u((1, 3 * hid), hid);   e_bh1 = u((1, 3 * hid), hid)
    # decoder
    d_emb_w = u((output_size, emb), output_size)
    d_emb_b = u((1, emb), output_size)
    d_wi0 = u((emb, 3 * hid), hid); d_wh0 = u((hid, 3 * hid), hid)
    d_bi0 = u((1, 3 * hid), hid);   d_bh0 = u((1, 3 * hid), hid)
    d_wi1 = u((hid, 3 * hid), hid); d_wh1 = u((hid, 3 * hid), hid)
    d_bi1 = u((1, 3 * hid), hid);   d_bh1 = u((1, 3 * hid), hid)
    fc_w = u((hid, output_size), hid)
    fc_b = u((1, output_size), hid)

    # fused slabs for encoder layer 1, decoder layer 0, decoder layer 1
    wf_e1, bf_e1 = fuse(e_wi1, e_wh1, e_bi1, e_bh1)
    wf_d0, bf_d0 = fuse(d_wi0, d_wh0, d_bi0, d_bh0)
    wf_d1, bf_d1 = fuse(d_wi1, d_wh1, d_bi1, d_bh1)
    wf = jnp.stack([wf_e1, wf_d0, wf_d1]).astype(bf16)            # (3, 2*hp, 4*hp)
    bf = jnp.concatenate([bf_e1, bf_d0, bf_d1], axis=0)           # (3, 4*hp) f32

    # encoder layer 0 (input-side hoisted in the kernel; hidden-side per step)
    e_wh0_p = pad_rows(pad_gates(e_wh0)).astype(bf16)             # (hp, 3*hp)
    e_wi0_p = pad_gates(e_wi0).astype(bf16)                       # (emb, 3*hp)
    e_bi0_p = pad_gates(e_bi0); e_bh0_p = pad_gates(e_bh0)
    gi0_bias = jnp.concatenate([e_bi0_p[:, 0:hp] + e_bh0_p[:, 0:hp],
                                e_bi0_p[:, hp:2 * hp] + e_bh0_p[:, hp:2 * hp],
                                e_bi0_p[:, 2 * hp:3 * hp]], axis=1)          # (1, 3*hp)
    gh0_nbias = jnp.concatenate([jnp.zeros((1, 2 * hp), f32),
                                 e_bh0_p[:, 2 * hp:3 * hp]], axis=1)         # (1, 3*hp)
    e_b0 = jnp.concatenate([gi0_bias, gh0_nbias], axis=0)         # (2, 3*hp) f32

    # small decoder vectors (VPU path), padded to hp lanes with zeros
    d_emb_row_p = jnp.pad(d_emb_w, ((0, 0), (0, hp - emb)))       # (1, hp)
    d_emb_b_p = jnp.pad(d_emb_b, ((0, 0), (0, hp - emb)))         # (1, hp)
    fc_row = jnp.pad(fc_w.T, ((0, 0), (0, hp - hid)))             # (1, hp)
    fc_b_row = jnp.pad(fc_b, ((0, 0), (0, hp - output_size)))     # (1, hp), fc_b at lane 0
    dvec = jnp.concatenate([d_emb_row_p, d_emb_b_p, fc_row, fc_b_row], axis=0)  # (4, hp) f32

    return (wf, bf, e_wh0_p, e_wi0_p, e_b0,
            e_emb_w.astype(bf16), e_emb_b, dvec)


def seq2seq_forward(params, x, y, tf_mask):
    """x: (B, Tin, Fin), y: (B, Tout, Fout), tf_mask: (Tout,) int32.
    Returns (B, Tout, Fout) float32."""
    B, Tin, Fin = x.shape
    _, Tout, Fout = y.shape
    assert Fout == 1, "decoder is seeded from x[:, -1, 0:1]; requires output_size == 1"

    B_pad = max(8, ((B + 7) // 8) * 8)                            # sublane-aligned batch
    W_out = max(128, ((Tout * Fout + 127) // 128) * 128)          # lane-dense output slab

    x_t = jnp.transpose(x, (1, 0, 2)).astype(jnp.float32)         # (Tin, B, Fin) time-major
    x_t = jnp.pad(x_t, ((0, 0), (0, B_pad - B), (0, 0)))
    x_flat = x_t.reshape(Tin * B_pad, Fin)
    y_t = jnp.transpose(y, (1, 0, 2)).astype(jnp.float32)         # (Tout, B, Fout)
    y_t = jnp.pad(y_t, ((0, 0), (0, B_pad - B), (0, 0)))

    vmem = pl.BlockSpec(memory_space=pltpu.MemorySpace.VMEM)
    smem = pl.BlockSpec(memory_space=pltpu.MemorySpace.SMEM)

    out = pl.pallas_call(
        seq2seq_kernel,
        out_shape=jax.ShapeDtypeStruct((B_pad, W_out), jnp.float32),
        in_specs=[vmem, vmem, smem] + [vmem] * len(params),
        out_specs=vmem,
        compiler_params=pltpu.CompilerParams(vmem_limit_bytes=16 * 1024 * 1024),
    )(x_flat, y_t, tf_mask.astype(jnp.int32), *params)

    return out[:B, :Tout * Fout].reshape(B, Tout, Fout)


if __name__ == "__main__":
    B, Tin, Fin = 2, 8, 4          # batch, input seq len, n_in_feat
    Tout, Fout = 6, 1              # output seq len, n_out_feat (output_size=1)

    key = jax.random.PRNGKey(0)
    kx, ky, kp = jax.random.split(key, 3)
    x = jax.random.normal(kx, (B, Tin, Fin), jnp.float32)
    y = jax.random.normal(ky, (B, Tout, Fout), jnp.float32)

    params = init_params(kp, input_size=Fin, output_size=Fout)

    # deterministic per-step teacher-forcing decisions (host-side, seeded)
    random.seed(0)
    teacher_forcing_ratio = 0.5
    tf_mask = jnp.array(
        [1 if random.random() < teacher_forcing_ratio else 0 for _ in range(Tout)],
        dtype=jnp.int32)

    out = seq2seq_forward(params, x, y, tf_mask)
    jax.block_until_ready(out)
    assert out.shape == (B, Tout, Fout) and out.dtype == jnp.float32
    assert bool(jnp.all(jnp.isfinite(out)))
    print("KERNEL_OK")
</pallas_src>

<mosaic_0001>
module attributes {stable_mosaic.version = 11 : i64} {
  func.func @seq2seq_kernel(%arg0: memref<64x4xf32, #tpu.memory_space<vmem>>, %arg1: memref<6x8x1xf32, #tpu.memory_space<vmem>>, %arg2: memref<6xi32, #tpu.memory_space<smem>>, %arg3: memref<3x256x512xbf16, #tpu.memory_space<vmem>>, %arg4: memref<3x512xf32, #tpu.memory_space<vmem>>, %arg5: memref<128x384xbf16, #tpu.memory_space<vmem>>, %arg6: memref<32x384xbf16, #tpu.memory_space<vmem>>, %arg7: memref<2x384xf32, #tpu.memory_space<vmem>>, %arg8: memref<4x32xbf16, #tpu.memory_space<vmem>>, %arg9: memref<1x32xf32, #tpu.memory_space<vmem>>, %arg10: memref<4x128xf32, #tpu.memory_space<vmem>>, %arg11: memref<8x128xf32, #tpu.memory_space<vmem>>) attributes {dimension_semantics = [], scalar_prefetch = 0 : i64, scratch_operands = 0 : i64, tpu.core_type = #tpu.core_type<tc>} {
    %c0 = arith.constant 0 : index
    %c0_0 = arith.constant 0 : index
    %0 = vector.load %arg5[%c0, %c0_0] : memref<128x384xbf16, #tpu.memory_space<vmem>>, vector<128x384xbf16>
    %c0_1 = arith.constant 0 : index
    %c0_2 = arith.constant 0 : index
    %c0_3 = arith.constant 0 : index
    %1 = vector.load %arg3[%c0_1, %c0_2, %c0_3] : memref<3x256x512xbf16, #tpu.memory_space<vmem>>, vector<1x256x512xbf16>
    %2 = vector.shape_cast %1 : vector<1x256x512xbf16> to vector<256x512xbf16>
    %c1 = arith.constant 1 : index
    %c0_4 = arith.constant 0 : index
    %c0_5 = arith.constant 0 : index
    %3 = vector.load %arg3[%c1, %c0_4, %c0_5] : memref<3x256x512xbf16, #tpu.memory_space<vmem>>, vector<1x256x512xbf16>
    %4 = vector.shape_cast %3 : vector<1x256x512xbf16> to vector<256x512xbf16>
    %c2 = arith.constant 2 : index
    %c0_6 = arith.constant 0 : index
    %c0_7 = arith.constant 0 : index
    %5 = vector.load %arg3[%c2, %c0_6, %c0_7] : memref<3x256x512xbf16, #tpu.memory_space<vmem>>, vector<1x256x512xbf16>
    %6 = vector.shape_cast %5 : vector<1x256x512xbf16> to vector<256x512xbf16>
    %c0_8 = arith.constant 0 : index
    %c0_9 = arith.constant 0 : index
    %7 = vector.load %arg4[%c0_8, %c0_9] : memref<3x512xf32, #tpu.memory_space<vmem>>, vector<1x512xf32>
    %8 = vector.shape_cast %7 : vector<1x512xf32> to vector<1x512xf32>
    %9 = vector.broadcast %8 : vector<1x512xf32> to vector<8x512xf32>
    %c1_10 = arith.constant 1 : index
    %c0_11 = arith.constant 0 : index
    %10 = vector.load %arg4[%c1_10, %c0_11] : memref<3x512xf32, #tpu.memory_space<vmem>>, vector<1x512xf32>
    %11 = vector.shape_cast %10 : vector<1x512xf32> to vector<1x512xf32>
    %12 = vector.broadcast %11 : vector<1x512xf32> to vector<8x512xf32>
    %c2_12 = arith.constant 2 : index
    %c0_13 = arith.constant 0 : index
    %13 = vector.load %arg4[%c2_12, %c0_13] : memref<3x512xf32, #tpu.memory_space<vmem>>, vector<1x512xf32>
    %14 = vector.shape_cast %13 : vector<1x512xf32> to vector<1x512xf32>
    %15 = vector.broadcast %14 : vector<1x512xf32> to vector<8x512xf32>
    %c1_14 = arith.constant 1 : index
    %c256 = arith.constant 256 : index
    %16 = vector.load %arg7[%c1_14, %c256] : memref<2x384xf32, #tpu.memory_space<vmem>>, vector<1x128xf32>
    %17 = vector.shape_cast %16 : vector<1x128xf32> to vector<1x128xf32>
    %18 = vector.broadcast %17 : vector<1x128xf32> to vector<8x128xf32>
    %c0_15 = arith.constant 0 : index
    %c0_16 = arith.constant 0 : index
    %19 = vector.load %arg10[%c0_15, %c0_16] : memref<4x128xf32, #tpu.memory_space<vmem>>, vector<1x128xf32>
    %20 = vector.shape_cast %19 : vector<1x128xf32> to vector<1x128xf32>
    %21 = vector.broadcast %20 : vector<1x128xf32> to vector<8x128xf32>
    %c1_17 = arith.constant 1 : index
    %c0_18 = arith.constant 0 : index
    %22 = vector.load %arg10[%c1_17, %c0_18] : memref<4x128xf32, #tpu.memory_space<vmem>>, vector<1x128xf32>
    %23 = vector.shape_cast %22 : vector<1x128xf32> to vector<1x128xf32>
    %24 = vector.broadcast %23 : vector<1x128xf32> to vector<8x128xf32>
    %c2_19 = arith.constant 2 : index
    %c0_20 = arith.constant 0 : index
    %25 = vector.load %arg10[%c2_19, %c0_20] : memref<4x128xf32, #tpu.memory_space<vmem>>, vector<1x128xf32>
    %26 = vector.shape_cast %25 : vector<1x128xf32> to vector<1x128xf32>
    %27 = vector.broadcast %26 : vector<1x128xf32> to vector<8x128xf32>
    %c3 = arith.constant 3 : index
    %c0_21 = arith.constant 0 : index
    %28 = vector.load %arg10[%c3, %c0_21] : memref<4x128xf32, #tpu.memory_space<vmem>>, vector<1x1xf32>
    %29 = vector.shape_cast %28 : vector<1x1xf32> to vector<1x1xf32>
    %30 = vector.broadcast %29 : vector<1x1xf32> to vector<8x1xf32>
    %c0_22 = arith.constant 0 : index
    %c0_23 = arith.constant 0 : index
    %31 = vector.load %arg0[%c0_22, %c0_23] : memref<64x4xf32, #tpu.memory_space<vmem>>, vector<64x4xf32>
    %32 = arith.truncf %31 : vector<64x4xf32> to vector<64x4xbf16>
    %c0_24 = arith.constant 0 : index
    %c0_25 = arith.constant 0 : index
    %33 = vector.load %arg8[%c0_24, %c0_25] : memref<4x32xbf16, #tpu.memory_space<vmem>>, vector<4x32xbf16>
    %cst = arith.constant dense<0.000000e+00> : vector<64x32xf32>
    %34 = tpu.matmul %32, %33, %cst {dimension_numbers = #tpu.dot_dimension_numbers<[1], [0], [0], [1], [0, 0, 1, 1], [], []>} : vector<64x4xbf16>, vector<4x32xbf16>, vector<64x32xf32> -> vector<64x32xf32>
    %c0_26 = arith.constant 0 : index
    %c0_27 = arith.constant 0 : index
    %35 = vector.load %arg9[%c0_26, %c0_27] : memref<1x32xf32, #tpu.memory_space<vmem>>, vector<1x32xf32>
    %36 = vector.broadcast %35 : vector<1x32xf32> to vector<64x32xf32>
    %37 = arith.addf %34, %36 : vector<64x32xf32>
    %cst_28 = arith.constant 0.000000e+00 : f32
    %38 = vector.broadcast %cst_28 : f32 to vector<64x32xf32>
    %39 = arith.maximumf %37, %38 : vector<64x32xf32>
    %40 = arith.truncf %39 : vector<64x32xf32> to vector<64x32xbf16>
    %c0_29 = arith.constant 0 : index
    %c0_30 = arith.constant 0 : index
    %41 = vector.load %arg6[%c0_29, %c0_30] : memref<32x384xbf16, #tpu.memory_space<vmem>>, vector<32x384xbf16>
    %cst_31 = arith.constant dense<0.000000e+00> : vector<64x384xf32>
    %42 = tpu.matmul %40, %41, %cst_31 {dimension_numbers = #tpu.dot_dimension_numbers<[1], [0], [0], [1], [0, 0, 1, 1], [], []>} : vector<64x32xbf16>, vector<32x384xbf16>, vector<64x384xf32> -> vector<64x384xf32>
    %c0_32 = arith.constant 0 : index
    %c0_33 = arith.constant 0 : index
    %43 = vector.load %arg7[%c0_32, %c0_33] : memref<2x384xf32, #tpu.memory_space<vmem>>, vector<1x384xf32>
    %44 = vector.broadcast %43 : vector<1x384xf32> to vector<64x384xf32>
    %45 = arith.addf %42, %44 : vector<64x384xf32>
    %cst_34 = arith.constant 0.000000e+00 : f32
    %46 = vector.broadcast %cst_34 : f32 to vector<8x128xf32>
    %cst_35 = arith.constant 0.000000e+00 : f32
    %47 = vector.broadcast %cst_35 : f32 to vector<8x128xf32>
    %48 = vector.extract_strided_slice %45 {offsets = [0, 0], sizes = [8, 384], strides = [1, 1]} : vector<64x384xf32> to vector<8x384xf32>
    %49 = arith.truncf %46 : vector<8x128xf32> to vector<8x128xbf16>
    %cst_36 = arith.constant dense<0.000000e+00> : vector<8x384xf32>
    %50 = tpu.matmul %49, %0, %cst_36 {dimension_numbers = #tpu.dot_dimension_numbers<[1], [0], [0], [1], [0, 0, 1, 1], [], []>} : vector<8x128xbf16>, vector<128x384xbf16>, vector<8x384xf32> -> vector<8x384xf32>
    %51 = vector.extract_strided_slice %48 {offsets = [0, 0], sizes = [8, 128], strides = [1, 1]} : vector<8x384xf32> to vector<8x128xf32>
    %52 = vector.extract_strided_slice %50 {offsets = [0, 0], sizes = [8, 128], strides = [1, 1]} : vector<8x384xf32> to vector<8x128xf32>
    %53 = arith.addf %51, %52 : vector<8x128xf32>
    %54 = arith.negf %53 : vector<8x128xf32>
    %55 = math.exp %54 : vector<8x128xf32>
    %cst_37 = arith.constant 1.000000e+00 : f32
    %56 = vector.broadcast %cst_37 : f32 to vector<8x128xf32>
    %57 = arith.addf %56, %55 : vector<8x128xf32>
    %58 = arith.divf %56, %57 : vector<8x128xf32>
    %59 = vector.extract_strided_slice %48 {offsets = [0, 128], sizes = [8, 128], strides = [1, 1]} : vector<8x384xf32> to vector<8x128xf32>
    %60 = vector.extract_strided_slice %50 {offsets = [0, 128], sizes = [8, 128], strides = [1, 1]} : vector<8x384xf32> to vector<8x128xf32>
    %61 = arith.addf %59, %60 : vector<8x128xf32>
    %62 = arith.negf %61 : vector<8x128xf32>
    %63 = math.exp %62 : vector<8x128xf32>
    %cst_38 = arith.constant 1.000000e+00 : f32
    %64 = vector.broadcast %cst_38 : f32 to vector<8x128xf32>
    %65 = arith.addf %64, %63 : vector<8x128xf32>
    %66 = arith.divf %64, %65 : vector<8x128xf32>
    %67 = vector.extract_strided_slice %48 {offsets = [0, 256], sizes = [8, 128], strides = [1, 1]} : vector<8x384xf32> to vector<8x128xf32>
    %68 = vector.extract_strided_slice %50 {offsets = [0, 256], sizes = [8, 128], strides = [1, 1]} : vector<8x384xf32> to vector<8x128xf32>
    %69 = arith.addf %68, %18 : vector<8x128xf32>
    %70 = arith.mulf %58, %69 : vector<8x128xf32>
    %71 = arith.addf %67, %70 : vector<8x128xf32>
    %72 = math.tanh %71 : vector<8x128xf32>
    %cst_39 = arith.constant 1.000000e+00 : f32
    %73 = vector.broadcast %cst_39 : f32 to vector<8x128xf32>
    %74 = arith.subf %73, %66 : vector<8x128xf32>
    %75 = arith.mulf %74, %72 : vector<8x128xf32>
    %76 = arith.mulf %66, %46 : vector<8x128xf32>
    %77 = arith.addf %75, %76 : vector<8x128xf32>
    %78 = tpu.concatenate %77, %47 in 1 : vector<8x128xf32>, vector<8x128xf32> -> vector<8x256xf32>
    %79 = arith.truncf %78 : vector<8x256xf32> to vector<8x256xbf16>
    %cst_40 = arith.constant dense<0.000000e+00> : vector<8x512xf32>
    %80 = tpu.matmul %79, %2, %cst_40 {dimension_numbers = #tpu.dot_dimension_numbers<[1], [0], [0], [1], [0, 0, 1, 1], [], []>} : vector<8x256xbf16>, vector<256x512xbf16>, vector<8x512xf32> -> vector<8x512xf32>
    %81 = arith.addf %80, %9 : vector<8x512xf32>
    %82 = vector.extract_strided_slice %81 {offsets = [0, 0], sizes = [8, 128], strides = [1, 1]} : vector<8x512xf32> to vector<8x128xf32>
    %83 = arith.negf %82 : vector<8x128xf32>
    %84 = math.exp %83 : vector<8x128xf32>
    %cst_41 = arith.constant 1.000000e+00 : f32
    %85 = vector.broadcast %cst_41 : f32 to vector<8x128xf32>
    %86 = arith.addf %85, %84 : vector<8x128xf32>
    %87 = arith.divf %85, %86 : vector<8x128xf32>
    %88 = vector.extract_strided_slice %81 {offsets = [0, 128], sizes = [8, 128], strides = [1, 1]} : vector<8x512xf32> to vector<8x128xf32>
    %89 = arith.negf %88 : vector<8x128xf32>
    %90 = math.exp %89 : vector<8x128xf32>
    %cst_42 = arith.constant 1.000000e+00 : f32
    %91 = vector.broadcast %cst_42 : f32 to vector<8x128xf32>
    %92 = arith.addf %91, %90 : vector<8x128xf32>
    %93 = arith.divf %91, %92 : vector<8x128xf32>
    %94 = vector.extract_strided_slice %81 {offsets = [0, 256], sizes = [8, 128], strides = [1, 1]} : vector<8x512xf32> to vector<8x128xf32>
    %95 = vector.extract_strided_slice %81 {offsets = [0, 384], sizes = [8, 128], strides = [1, 1]} : vector<8x512xf32> to vector<8x128xf32>
    %96 = arith.mulf %87, %95 : vector<8x128xf32>
    %97 = arith.addf %94, %96 : vector<8x128xf32>
    %98 = math.tanh %97 : vector<8x128xf32>
    %cst_43 = arith.constant 1.000000e+00 : f32
    %99 = vector.broadcast %cst_43 : f32 to vector<8x128xf32>
    %100 = arith.subf %99, %93 : vector<8x128xf32>
    %101 = arith.mulf %100, %98 : vector<8x128xf32>
    %102 = arith.mulf %93, %47 : vector<8x128xf32>
    %103 = arith.addf %101, %102 : vector<8x128xf32>
    %104 = vector.extract_strided_slice %45 {offsets = [8, 0], sizes = [8, 384], strides = [1, 1]} : vector<64x384xf32> to vector<8x384xf32>
    %105 = arith.truncf %77 : vector<8x128xf32> to vector<8x128xbf16>
    %cst_44 = arith.constant dense<0.000000e+00> : vector<8x384xf32>
    %106 = tpu.matmul %105, %0, %cst_44 {dimension_numbers = #tpu.dot_dimension_numbers<[1], [0], [0], [1], [0, 0, 1, 1], [], []>} : vector<8x128xbf16>, vector<128x384xbf16>, vector<8x384xf32> -> vector<8x384xf32>
    %107 = vector.extract_strided_slice %104 {offsets = [0, 0], sizes = [8, 128], strides = [1, 1]} : vector<8x384xf32> to vector<8x128xf32>
    %108 = vector.extract_strided_slice %106 {offsets = [0, 0], sizes = [8, 128], strides = [1, 1]} : vector<8x384xf32> to vector<8x128xf32>
    %109 = arith.addf %107, %108 : vector<8x128xf32>
    %110 = arith.negf %109 : vector<8x128xf32>
    %111 = math.exp %110 : vector<8x128xf32>
    %cst_45 = arith.constant 1.000000e+00 : f32
    %112 = vector.broadcast %cst_45 : f32 to vector<8x128xf32>
    %113 = arith.addf %112, %111 : vector<8x128xf32>
    %114 = arith.divf %112, %113 : vector<8x128xf32>
    %115 = vector.extract_strided_slice %104 {offsets = [0, 128], sizes = [8, 128], strides = [1, 1]} : vector<8x384xf32> to vector<8x128xf32>
    %116 = vector.extract_strided_slice %106 {offsets = [0, 128], sizes = [8, 128], strides = [1, 1]} : vector<8x384xf32> to vector<8x128xf32>
    %117 = arith.addf %115, %116 : vector<8x128xf32>
    %118 = arith.negf %117 : vector<8x128xf32>
    %119 = math.exp %118 : vector<8x128xf32>
    %cst_46 = arith.constant 1.000000e+00 : f32
    %120 = vector.broadcast %cst_46 : f32 to vector<8x128xf32>
    %121 = arith.addf %120, %119 : vector<8x128xf32>
    %122 = arith.divf %120, %121 : vector<8x128xf32>
    %123 = vector.extract_strided_slice %104 {offsets = [0, 256], sizes = [8, 128], strides = [1, 1]} : vector<8x384xf32> to vector<8x128xf32>
    %124 = vector.extract_strided_slice %106 {offsets = [0, 256], sizes = [8, 128], strides = [1, 1]} : vector<8x384xf32> to vector<8x128xf32>
    %125 = arith.addf %124, %18 : vector<8x128xf32>
    %126 = arith.mulf %114, %125 : vector<8x128xf32>
    %127 = arith.addf %123, %126 : vector<8x128xf32>
    %128 = math.tanh %127 : vector<8x128xf32>
    %cst_47 = arith.constant 1.000000e+00 : f32
    %129 = vector.broadcast %cst_47 : f32 to vector<8x128xf32>
    %130 = arith.subf %129, %122 : vector<8x128xf32>
    %131 = arith.mulf %130, %128 : vector<8x128xf32>
    %132 = arith.mulf %122, %77 : vector<8x128xf32>
    %133 = arith.addf %131, %132 : vector<8x128xf32>
    %134 = tpu.concatenate %133, %103 in 1 : vector<8x128xf32>, vector<8x128xf32> -> vector<8x256xf32>
    %135 = arith.truncf %134 : vector<8x256xf32> to vector<8x256xbf16>
    %cst_48 = arith.constant dense<0.000000e+00> : vector<8x512xf32>
    %136 = tpu.matmul %135, %2, %cst_48 {dimension_numbers = #tpu.dot_dimension_numbers<[1], [0], [0], [1], [0, 0, 1, 1], [], []>} : vector<8x256xbf16>, vector<256x512xbf16>, vector<8x512xf32> -> vector<8x512xf32>
    %137 = arith.addf %136, %9 : vector<8x512xf32>
    %138 = vector.extract_strided_slice %137 {offsets = [0, 0], sizes = [8, 128], strides = [1, 1]} : vector<8x512xf32> to vector<8x128xf32>
    %139 = arith.negf %138 : vector<8x128xf32>
    %140 = math.exp %139 : vector<8x128xf32>
    %cst_49 = arith.constant 1.000000e+00 : f32
    %141 = vector.broadcast %cst_49 : f32 to vector<8x128xf32>
    %142 = arith.addf %141, %140 : vector<8x128xf32>
    %143 = arith.divf %141, %142 : vector<8x128xf32>
    %144 = vector.extract_strided_slice %137 {offsets = [0, 128], sizes = [8, 128], strides = [1, 1]} : vector<8x512xf32> to vector<8x128xf32>
    %145 = arith.negf %144 : vector<8x128xf32>
    %146 = math.exp %145 : vector<8x128xf32>
    %cst_50 = arith.constant 1.000000e+00 : f32
    %147 = vector.broadcast %cst_50 : f32 to vector<8x128xf32>
    %148 = arith.addf %147, %146 : vector<8x128xf32>
    %149 = arith.divf %147, %148 : vector<8x128xf32>
    %150 = vector.extract_strided_slice %137 {offsets = [0, 256], sizes = [8, 128], strides = [1, 1]} : vector<8x512xf32> to vector<8x128xf32>
    %151 = vector.extract_strided_slice %137 {offsets = [0, 384], sizes = [8, 128], strides = [1, 1]} : vector<8x512xf32> to vector<8x128xf32>
    %152 = arith.mulf %143, %151 : vector<8x128xf32>
    %153 = arith.addf %150, %152 : vector<8x128xf32>
    %154 = math.tanh %153 : vector<8x128xf32>
    %cst_51 = arith.constant 1.000000e+00 : f32
    %155 = vector.broadcast %cst_51 : f32 to vector<8x128xf32>
    %156 = arith.subf %155, %149 : vector<8x128xf32>
    %157 = arith.mulf %156, %154 : vector<8x128xf32>
    %158 = arith.mulf %149, %103 : vector<8x128xf32>
    %159 = arith.addf %157, %158 : vector<8x128xf32>
    %160 = vector.extract_strided_slice %45 {offsets = [16, 0], sizes = [8, 384], strides = [1, 1]} : vector<64x384xf32> to vector<8x384xf32>
    %161 = arith.truncf %133 : vector<8x128xf32> to vector<8x128xbf16>
    %cst_52 = arith.constant dense<0.000000e+00> : vector<8x384xf32>
    %162 = tpu.matmul %161, %0, %cst_52 {dimension_numbers = #tpu.dot_dimension_numbers<[1], [0], [0], [1], [0, 0, 1, 1], [], []>} : vector<8x128xbf16>, vector<128x384xbf16>, vector<8x384xf32> -> vector<8x384xf32>
    %163 = vector.extract_strided_slice %160 {offsets = [0, 0], sizes = [8, 128], strides = [1, 1]} : vector<8x384xf32> to vector<8x128xf32>
    %164 = vector.extract_strided_slice %162 {offsets = [0, 0], sizes = [8, 128], strides = [1, 1]} : vector<8x384xf32> to vector<8x128xf32>
    %165 = arith.addf %163, %164 : vector<8x128xf32>
    %166 = arith.negf %165 : vector<8x128xf32>
    %167 = math.exp %166 : vector<8x128xf32>
    %cst_53 = arith.constant 1.000000e+00 : f32
    %168 = vector.broadcast %cst_53 : f32 to vector<8x128xf32>
    %169 = arith.addf %168, %167 : vector<8x128xf32>
    %170 = arith.divf %168, %169 : vector<8x128xf32>
    %171 = vector.extract_strided_slice %160 {offsets = [0, 128], sizes = [8, 128], strides = [1, 1]} : vector<8x384xf32> to vector<8x128xf32>
    %172 = vector.extract_strided_slice %162 {offsets = [0, 128], sizes = [8, 128], strides = [1, 1]} : vector<8x384xf32> to vector<8x128xf32>
    %173 = arith.addf %171, %172 : vector<8x128xf32>
    %174 = arith.negf %173 : vector<8x128xf32>
    %175 = math.exp %174 : vector<8x128xf32>
    %cst_54 = arith.constant 1.000000e+00 : f32
    %176 = vector.broadcast %cst_54 : f32 to vector<8x128xf32>
    %177 = arith.addf %176, %175 : vector<8x128xf32>
    %178 = arith.divf %176, %177 : vector<8x128xf32>
    %179 = vector.extract_strided_slice %160 {offsets = [0, 256], sizes = [8, 128], strides = [1, 1]} : vector<8x384xf32> to vector<8x128xf32>
    %180 = vector.extract_strided_slice %162 {offsets = [0, 256], sizes = [8, 128], strides = [1, 1]} : vector<8x384xf32> to vector<8x128xf32>
    %181 = arith.addf %180, %18 : vector<8x128xf32>
    %182 = arith.mulf %170, %181 : vector<8x128xf32>
    %183 = arith.addf %179, %182 : vector<8x128xf32>
    %184 = math.tanh %183 : vector<8x128xf32>
    %cst_55 = arith.constant 1.000000e+00 : f32
    %185 = vector.broadcast %cst_55 : f32 to vector<8x128xf32>
    %186 = arith.subf %185, %178 : vector<8x128xf32>
    %187 = arith.mulf %186, %184 : vector<8x128xf32>
    %188 = arith.mulf %178, %133 : vector<8x128xf32>
    %189 = arith.addf %187, %188 : vector<8x128xf32>
    %190 = tpu.concatenate %189, %159 in 1 : vector<8x128xf32>, vector<8x128xf32> -> vector<8x256xf32>
    %191 = arith.truncf %190 : vector<8x256xf32> to vector<8x256xbf16>
    %cst_56 = arith.constant dense<0.000000e+00> : vector<8x512xf32>
    %192 = tpu.matmul %191, %2, %cst_56 {dimension_numbers = #tpu.dot_dimension_numbers<[1], [0], [0], [1], [0, 0, 1, 1], [], []>} : vector<8x256xbf16>, vector<256x512xbf16>, vector<8x512xf32> -> vector<8x512xf32>
    %193 = arith.addf %192, %9 : vector<8x512xf32>
    %194 = vector.extract_strided_slice %193 {offsets = [0, 0], sizes = [8, 128], strides = [1, 1]} : vector<8x512xf32> to vector<8x128xf32>
    %195 = arith.negf %194 : vector<8x128xf32>
    %196 = math.exp %195 : vector<8x128xf32>
    %cst_57 = arith.constant 1.000000e+00 : f32
    %197 = vector.broadcast %cst_57 : f32 to vector<8x128xf32>
    %198 = arith.addf %197, %196 : vector<8x128xf32>
    %199 = arith.divf %197, %198 : vector<8x128xf32>
    %200 = vector.extract_strided_slice %193 {offsets = [0, 128], sizes = [8, 128], strides = [1, 1]} : vector<8x512xf32> to vector<8x128xf32>
    %201 = arith.negf %200 : vector<8x128xf32>
    %202 = math.exp %201 : vector<8x128xf32>
    %cst_58 = arith.constant 1.000000e+00 : f32
    %203 = vector.broadcast %cst_58 : f32 to vector<8x128xf32>
    %204 = arith.addf %203, %202 : vector<8x128xf32>
    %205 = arith.divf %203, %204 : vector<8x128xf32>
    %206 = vector.extract_strided_slice %193 {offsets = [0, 256], sizes = [8, 128], strides = [1, 1]} : vector<8x512xf32> to vector<8x128xf32>
    %207 = vector.extract_strided_slice %193 {offsets = [0, 384], sizes = [8, 128], strides = [1, 1]} : vector<8x512xf32> to vector<8x128xf32>
    %208 = arith.mulf %199, %207 : vector<8x128xf32>
    %209 = arith.addf %206, %208 : vector<8x128xf32>
    %210 = math.tanh %209 : vector<8x128xf32>
    %cst_59 = arith.constant 1.000000e+00 : f32
    %211 = vector.broadcast %cst_59 : f32 to vector<8x128xf32>
    %212 = arith.subf %211, %205 : vector<8x128xf32>
    %213 = arith.mulf %212, %210 : vector<8x128xf32>
    %214 = arith.mulf %205, %159 : vector<8x128xf32>
    %215 = arith.addf %213, %214 : vector<8x128xf32>
    %216 = vector.extract_strided_slice %45 {offsets = [24, 0], sizes = [8, 384], strides = [1, 1]} : vector<64x384xf32> to vector<8x384xf32>
    %217 = arith.truncf %189 : vector<8x128xf32> to vector<8x128xbf16>
    %cst_60 = arith.constant dense<0.000000e+00> : vector<8x384xf32>
    %218 = tpu.matmul %217, %0, %cst_60 {dimension_numbers = #tpu.dot_dimension_numbers<[1], [0], [0], [1], [0, 0, 1, 1], [], []>} : vector<8x128xbf16>, vector<128x384xbf16>, vector<8x384xf32> -> vector<8x384xf32>
    %219 = vector.extract_strided_slice %216 {offsets = [0, 0], sizes = [8, 128], strides = [1, 1]} : vector<8x384xf32> to vector<8x128xf32>
    %220 = vector.extract_strided_slice %218 {offsets = [0, 0], sizes = [8, 128], strides = [1, 1]} : vector<8x384xf32> to vector<8x128xf32>
    %221 = arith.addf %219, %220 : vector<8x128xf32>
    %222 = arith.negf %221 : vector<8x128xf32>
    %223 = math.exp %222 : vector<8x128xf32>
    %cst_61 = arith.constant 1.000000e+00 : f32
    %224 = vector.broadcast %cst_61 : f32 to vector<8x128xf32>
    %225 = arith.addf %224, %223 : vector<8x128xf32>
    %226 = arith.divf %224, %225 : vector<8x128xf32>
    %227 = vector.extract_strided_slice %216 {offsets = [0, 128], sizes = [8, 128], strides = [1, 1]} : vector<8x384xf32> to vector<8x128xf32>
    %228 = vector.extract_strided_slice %218 {offsets = [0, 128], sizes = [8, 128], strides = [1, 1]} : vector<8x384xf32> to vector<8x128xf32>
    %229 = arith.addf %227, %228 : vector<8x128xf32>
    %230 = arith.negf %229 : vector<8x128xf32>
    %231 = math.exp %230 : vector<8x128xf32>
    %cst_62 = arith.constant 1.000000e+00 : f32
    %232 = vector.broadcast %cst_62 : f32 to vector<8x128xf32>
    %233 = arith.addf %232, %231 : vector<8x128xf32>
    %234 = arith.divf %232, %233 : vector<8x128xf32>
    %235 = vector.extract_strided_slice %216 {offsets = [0, 256], sizes = [8, 128], strides = [1, 1]} : vector<8x384xf32> to vector<8x128xf32>
    %236 = vector.extract_strided_slice %218 {offsets = [0, 256], sizes = [8, 128], strides = [1, 1]} : vector<8x384xf32> to vector<8x128xf32>
    %237 = arith.addf %236, %18 : vector<8x128xf32>
    %238 = arith.mulf %226, %237 : vector<8x128xf32>
    %239 = arith.addf %235, %238 : vector<8x128xf32>
    %240 = math.tanh %239 : vector<8x128xf32>
    %cst_63 = arith.constant 1.000000e+00 : f32
    %241 = vector.broadcast %cst_63 : f32 to vector<8x128xf32>
    %242 = arith.subf %241, %234 : vector<8x128xf32>
    %243 = arith.mulf %242, %240 : vector<8x128xf32>
    %244 = arith.mulf %234, %189 : vector<8x128xf32>
    %245 = arith.addf %243, %244 : vector<8x128xf32>
    %246 = tpu.concatenate %245, %215 in 1 : vector<8x128xf32>, vector<8x128xf32> -> vector<8x256xf32>
    %247 = arith.truncf %246 : vector<8x256xf32> to vector<8x256xbf16>
    %cst_64 = arith.constant dense<0.000000e+00> : vector<8x512xf32>
    %248 = tpu.matmul %247, %2, %cst_64 {dimension_numbers = #tpu.dot_dimension_numbers<[1], [0], [0], [1], [0, 0, 1, 1], [], []>} : vector<8x256xbf16>, vector<256x512xbf16>, vector<8x512xf32> -> vector<8x512xf32>
    %249 = arith.addf %248, %9 : vector<8x512xf32>
    %250 = vector.extract_strided_slice %249 {offsets = [0, 0], sizes = [8, 128], strides = [1, 1]} : vector<8x512xf32> to vector<8x128xf32>
    %251 = arith.negf %250 : vector<8x128xf32>
    %252 = math.exp %251 : vector<8x128xf32>
    %cst_65 = arith.constant 1.000000e+00 : f32
    %253 = vector.broadcast %cst_65 : f32 to vector<8x128xf32>
    %254 = arith.addf %253, %252 : vector<8x128xf32>
    %255 = arith.divf %253, %254 : vector<8x128xf32>
    %256 = vector.extract_strided_slice %249 {offsets = [0, 128], sizes = [8, 128], strides = [1, 1]} : vector<8x512xf32> to vector<8x128xf32>
    %257 = arith.negf %256 : vector<8x128xf32>
    %258 = math.exp %257 : vector<8x128xf32>
    %cst_66 = arith.constant 1.000000e+00 : f32
    %259 = vector.broadcast %cst_66 : f32 to vector<8x128xf32>
    %260 = arith.addf %259, %258 : vector<8x128xf32>
    %261 = arith.divf %259, %260 : vector<8x128xf32>
    %262 = vector.extract_strided_slice %249 {offsets = [0, 256], sizes = [8, 128], strides = [1, 1]} : vector<8x512xf32> to vector<8x128xf32>
    %263 = vector.extract_strided_slice %249 {offsets = [0, 384], sizes = [8, 128], strides = [1, 1]} : vector<8x512xf32> to vector<8x128xf32>
    %264 = arith.mulf %255, %263 : vector<8x128xf32>
    %265 = arith.addf %262, %264 : vector<8x128xf32>
    %266 = math.tanh %265 : vector<8x128xf32>
    %cst_67 = arith.constant 1.000000e+00 : f32
    %267 = vector.broadcast %cst_67 : f32 to vector<8x128xf32>
    %268 = arith.subf %267, %261 : vector<8x128xf32>
    %269 = arith.mulf %268, %266 : vector<8x128xf32>
    %270 = arith.mulf %261, %215 : vector<8x128xf32>
    %271 = arith.addf %269, %270 : vector<8x128xf32>
    %272 = vector.extract_strided_slice %45 {offsets = [32, 0], sizes = [8, 384], strides = [1, 1]} : vector<64x384xf32> to vector<8x384xf32>
    %273 = arith.truncf %245 : vector<8x128xf32> to vector<8x128xbf16>
    %cst_68 = arith.constant dense<0.000000e+00> : vector<8x384xf32>
    %274 = tpu.matmul %273, %0, %cst_68 {dimension_numbers = #tpu.dot_dimension_numbers<[1], [0], [0], [1], [0, 0, 1, 1], [], []>} : vector<8x128xbf16>, vector<128x384xbf16>, vector<8x384xf32> -> vector<8x384xf32>
    %275 = vector.extract_strided_slice %272 {offsets = [0, 0], sizes = [8, 128], strides = [1, 1]} : vector<8x384xf32> to vector<8x128xf32>
    %276 = vector.extract_strided_slice %274 {offsets = [0, 0], sizes = [8, 128], strides = [1, 1]} : vector<8x384xf32> to vector<8x128xf32>
    %277 = arith.addf %275, %276 : vector<8x128xf32>
    %278 = arith.negf %277 : vector<8x128xf32>
    %279 = math.exp %278 : vector<8x128xf32>
    %cst_69 = arith.constant 1.000000e+00 : f32
    %280 = vector.broadcast %cst_69 : f32 to vector<8x128xf32>
    %281 = arith.addf %280, %279 : vector<8x128xf32>
    %282 = arith.divf %280, %281 : vector<8x128xf32>
    %283 = vector.extract_strided_slice %272 {offsets = [0, 128], sizes = [8, 128], strides = [1, 1]} : vector<8x384xf32> to vector<8x128xf32>
    %284 = vector.extract_strided_slice %274 {offsets = [0, 128], sizes = [8, 128], strides = [1, 1]} : vector<8x384xf32> to vector<8x128xf32>
    %285 = arith.addf %283, %284 : vector<8x128xf32>
    %286 = arith.negf %285 : vector<8x128xf32>
    %287 = math.exp %286 : vector<8x128xf32>
    %cst_70 = arith.constant 1.000000e+00 : f32
    %288 = vector.broadcast %cst_70 : f32 to vector<8x128xf32>
    %289 = arith.addf %288, %287 : vector<8x128xf32>
    %290 = arith.divf %288, %289 : vector<8x128xf32>
    %291 = vector.extract_strided_slice %272 {offsets = [0, 256], sizes = [8, 128], strides = [1, 1]} : vector<8x384xf32> to vector<8x128xf32>
    %292 = vector.extract_strided_slice %274 {offsets = [0, 256], sizes = [8, 128], strides = [1, 1]} : vector<8x384xf32> to vector<8x128xf32>
    %293 = arith.addf %292, %18 : vector<8x128xf32>
    %294 = arith.mulf %282, %293 : vector<8x128xf32>
    %295 = arith.addf %291, %294 : vector<8x128xf32>
    %296 = math.tanh %295 : vector<8x128xf32>
    %cst_71 = arith.constant 1.000000e+00 : f32
    %297 = vector.broadcast %cst_71 : f32 to vector<8x128xf32>
    %298 = arith.subf %297, %290 : vector<8x128xf32>
    %299 = arith.mulf %298, %296 : vector<8x128xf32>
    %300 = arith.mulf %290, %245 : vector<8x128xf32>
    %301 = arith.addf %299, %300 : vector<8x128xf32>
    %302 = tpu.concatenate %301, %271 in 1 : vector<8x128xf32>, vector<8x128xf32> -> vector<8x256xf32>
    %303 = arith.truncf %302 : vector<8x256xf32> to vector<8x256xbf16>
    %cst_72 = arith.constant dense<0.000000e+00> : vector<8x512xf32>
    %304 = tpu.matmul %303, %2, %cst_72 {dimension_numbers = #tpu.dot_dimension_numbers<[1], [0], [0], [1], [0, 0, 1, 1], [], []>} : vector<8x256xbf16>, vector<256x512xbf16>, vector<8x512xf32> -> vector<8x512xf32>
    %305 = arith.addf %304, %9 : vector<8x512xf32>
    %306 = vector.extract_strided_slice %305 {offsets = [0, 0], sizes = [8, 128], strides = [1, 1]} : vector<8x512xf32> to vector<8x128xf32>
    %307 = arith.negf %306 : vector<8x128xf32>
    %308 = math.exp %307 : vector<8x128xf32>
    %cst_73 = arith.constant 1.000000e+00 : f32
    %309 = vector.broadcast %cst_73 : f32 to vector<8x128xf32>
    %310 = arith.addf %309, %308 : vector<8x128xf32>
    %311 = arith.divf %309, %310 : vector<8x128xf32>
    %312 = vector.extract_strided_slice %305 {offsets = [0, 128], sizes = [8, 128], strides = [1, 1]} : vector<8x512xf32> to vector<8x128xf32>
    %313 = arith.negf %312 : vector<8x128xf32>
    %314 = math.exp %313 : vector<8x128xf32>
    %cst_74 = arith.constant 1.000000e+00 : f32
    %315 = vector.broadcast %cst_74 : f32 to vector<8x128xf32>
    %316 = arith.addf %315, %314 : vector<8x128xf32>
    %317 = arith.divf %315, %316 : vector<8x128xf32>
    %318 = vector.extract_strided_slice %305 {offsets = [0, 256], sizes = [8, 128], strides = [1, 1]} : vector<8x512xf32> to vector<8x128xf32>
    %319 = vector.extract_strided_slice %305 {offsets = [0, 384], sizes = [8, 128], strides = [1, 1]} : vector<8x512xf32> to vector<8x128xf32>
    %320 = arith.mulf %311, %319 : vector<8x128xf32>
    %321 = arith.addf %318, %320 : vector<8x128xf32>
    %322 = math.tanh %321 : vector<8x128xf32>
    %cst_75 = arith.constant 1.000000e+00 : f32
    %323 = vector.broadcast %cst_75 : f32 to vector<8x128xf32>
    %324 = arith.subf %323, %317 : vector<8x128xf32>
    %325 = arith.mulf %324, %322 : vector<8x128xf32>
    %326 = arith.mulf %317, %271 : vector<8x128xf32>
    %327 = arith.addf %325, %326 : vector<8x128xf32>
    %328 = vector.extract_strided_slice %45 {offsets = [40, 0], sizes = [8, 384], strides = [1, 1]} : vector<64x384xf32> to vector<8x384xf32>
    %329 = arith.truncf %301 : vector<8x128xf32> to vector<8x128xbf16>
    %cst_76 = arith.constant dense<0.000000e+00> : vector<8x384xf32>
    %330 = tpu.matmul %329, %0, %cst_76 {dimension_numbers = #tpu.dot_dimension_numbers<[1], [0], [0], [1], [0, 0, 1, 1], [], []>} : vector<8x128xbf16>, vector<128x384xbf16>, vector<8x384xf32> -> vector<8x384xf32>
    %331 = vector.extract_strided_slice %328 {offsets = [0, 0], sizes = [8, 128], strides = [1, 1]} : vector<8x384xf32> to vector<8x128xf32>
    %332 = vector.extract_strided_slice %330 {offsets = [0, 0], sizes = [8, 128], strides = [1, 1]} : vector<8x384xf32> to vector<8x128xf32>
    %333 = arith.addf %331, %332 : vector<8x128xf32>
    %334 = arith.negf %333 : vector<8x128xf32>
    %335 = math.exp %334 : vector<8x128xf32>
    %cst_77 = arith.constant 1.000000e+00 : f32
    %336 = vector.broadcast %cst_77 : f32 to vector<8x128xf32>
    %337 = arith.addf %336, %335 : vector<8x128xf32>
    %338 = arith.divf %336, %337 : vector<8x128xf32>
    %339 = vector.extract_strided_slice %328 {offsets = [0, 128], sizes = [8, 128], strides = [1, 1]} : vector<8x384xf32> to vector<8x128xf32>
    %340 = vector.extract_strided_slice %330 {offsets = [0, 128], sizes = [8, 128], strides = [1, 1]} : vector<8x384xf32> to vector<8x128xf32>
    %341 = arith.addf %339, %340 : vector<8x128xf32>
    %342 = arith.negf %341 : vector<8x128xf32>
    %343 = math.exp %342 : vector<8x128xf32>
    %cst_78 = arith.constant 1.000000e+00 : f32
    %344 = vector.broadcast %cst_78 : f32 to vector<8x128xf32>
    %345 = arith.addf %344, %343 : vector<8x128xf32>
    %346 = arith.divf %344, %345 : vector<8x128xf32>
    %347 = vector.extract_strided_slice %328 {offsets = [0, 256], sizes = [8, 128], strides = [1, 1]} : vector<8x384xf32> to vector<8x128xf32>
    %348 = vector.extract_strided_slice %330 {offsets = [0, 256], sizes = [8, 128], strides = [1, 1]} : vector<8x384xf32> to vector<8x128xf32>
    %349 = arith.addf %348, %18 : vector<8x128xf32>
    %350 = arith.mulf %338, %349 : vector<8x128xf32>
    %351 = arith.addf %347, %350 : vector<8x128xf32>
    %352 = math.tanh %351 : vector<8x128xf32>
    %cst_79 = arith.constant 1.000000e+00 : f32
    %353 = vector.broadcast %cst_79 : f32 to vector<8x128xf32>
    %354 = arith.subf %353, %346 : vector<8x128xf32>
    %355 = arith.mulf %354, %352 : vector<8x128xf32>
    %356 = arith.mulf %346, %301 : vector<8x128xf32>
    %357 = arith.addf %355, %356 : vector<8x128xf32>
    %358 = tpu.concatenate %357, %327 in 1 : vector<8x128xf32>, vector<8x128xf32> -> vector<8x256xf32>
    %359 = arith.truncf %358 : vector<8x256xf32> to vector<8x256xbf16>
    %cst_80 = arith.constant dense<0.000000e+00> : vector<8x512xf32>
    %360 = tpu.matmul %359, %2, %cst_80 {dimension_numbers = #tpu.dot_dimension_numbers<[1], [0], [0], [1], [0, 0, 1, 1], [], []>} : vector<8x256xbf16>, vector<256x512xbf16>, vector<8x512xf32> -> vector<8x512xf32>
    %361 = arith.addf %360, %9 : vector<8x512xf32>
    %362 = vector.extract_strided_slice %361 {offsets = [0, 0], sizes = [8, 128], strides = [1, 1]} : vector<8x512xf32> to vector<8x128xf32>
    %363 = arith.negf %362 : vector<8x128xf32>
    %364 = math.exp %363 : vector<8x128xf32>
    %cst_81 = arith.constant 1.000000e+00 : f32
    %365 = vector.broadcast %cst_81 : f32 to vector<8x128xf32>
    %366 = arith.addf %365, %364 : vector<8x128xf32>
    %367 = arith.divf %365, %366 : vector<8x128xf32>
    %368 = vector.extract_strided_slice %361 {offsets = [0, 128], sizes = [8, 128], strides = [1, 1]} : vector<8x512xf32> to vector<8x128xf32>
    %369 = arith.negf %368 : vector<8x128xf32>
    %370 = math.exp %369 : vector<8x128xf32>
    %cst_82 = arith.constant 1.000000e+00 : f32
    %371 = vector.broadcast %cst_82 : f32 to vector<8x128xf32>
    %372 = arith.addf %371, %370 : vector<8x128xf32>
    %373 = arith.divf %371, %372 : vector<8x128xf32>
    %374 = vector.extract_strided_slice %361 {offsets = [0, 256], sizes = [8, 128], strides = [1, 1]} : vector<8x512xf32> to vector<8x128xf32>
    %375 = vector.extract_strided_slice %361 {offsets = [0, 384], sizes = [8, 128], strides = [1, 1]} : vector<8x512xf32> to vector<8x128xf32>
    %376 = arith.mulf %367, %375 : vector<8x128xf32>
    %377 = arith.addf %374, %376 : vector<8x128xf32>
    %378 = math.tanh %377 : vector<8x128xf32>
    %cst_83 = arith.constant 1.000000e+00 : f32
    %379 = vector.broadcast %cst_83 : f32 to vector<8x128xf32>
    %380 = arith.subf %379, %373 : vector<8x128xf32>
    %381 = arith.mulf %380, %378 : vector<8x128xf32>
    %382 = arith.mulf %373, %327 : vector<8x128xf32>
    %383 = arith.addf %381, %382 : vector<8x128xf32>
    %384 = vector.extract_strided_slice %45 {offsets = [48, 0], sizes = [8, 384], strides = [1, 1]} : vector<64x384xf32> to vector<8x384xf32>
    %385 = arith.truncf %357 : vector<8x128xf32> to vector<8x128xbf16>
    %cst_84 = arith.constant dense<0.000000e+00> : vector<8x384xf32>
    %386 = tpu.matmul %385, %0, %cst_84 {dimension_numbers = #tpu.dot_dimension_numbers<[1], [0], [0], [1], [0, 0, 1, 1], [], []>} : vector<8x128xbf16>, vector<128x384xbf16>, vector<8x384xf32> -> vector<8x384xf32>
    %387 = vector.extract_strided_slice %384 {offsets = [0, 0], sizes = [8, 128], strides = [1, 1]} : vector<8x384xf32> to vector<8x128xf32>
    %388 = vector.extract_strided_slice %386 {offsets = [0, 0], sizes = [8, 128], strides = [1, 1]} : vector<8x384xf32> to vector<8x128xf32>
    %389 = arith.addf %387, %388 : vector<8x128xf32>
    %390 = arith.negf %389 : vector<8x128xf32>
    %391 = math.exp %390 : vector<8x128xf32>
    %cst_85 = arith.constant 1.000000e+00 : f32
    %392 = vector.broadcast %cst_85 : f32 to vector<8x128xf32>
    %393 = arith.addf %392, %391 : vector<8x128xf32>
    %394 = arith.divf %392, %393 : vector<8x128xf32>
    %395 = vector.extract_strided_slice %384 {offsets = [0, 128], sizes = [8, 128], strides = [1, 1]} : vector<8x384xf32> to vector<8x128xf32>
    %396 = vector.extract_strided_slice %386 {offsets = [0, 128], sizes = [8, 128], strides = [1, 1]} : vector<8x384xf32> to vector<8x128xf32>
    %397 = arith.addf %395, %396 : vector<8x128xf32>
    %398 = arith.negf %397 : vector<8x128xf32>
    %399 = math.exp %398 : vector<8x128xf32>
    %cst_86 = arith.constant 1.000000e+00 : f32
    %400 = vector.broadcast %cst_86 : f32 to vector<8x128xf32>
    %401 = arith.addf %400, %399 : vector<8x128xf32>
    %402 = arith.divf %400, %401 : vector<8x128xf32>
    %403 = vector.extract_strided_slice %384 {offsets = [0, 256], sizes = [8, 128], strides = [1, 1]} : vector<8x384xf32> to vector<8x128xf32>
    %404 = vector.extract_strided_slice %386 {offsets = [0, 256], sizes = [8, 128], strides = [1, 1]} : vector<8x384xf32> to vector<8x128xf32>
    %405 = arith.addf %404, %18 : vector<8x128xf32>
    %406 = arith.mulf %394, %405 : vector<8x128xf32>
    %407 = arith.addf %403, %406 : vector<8x128xf32>
    %408 = math.tanh %407 : vector<8x128xf32>
    %cst_87 = arith.constant 1.000000e+00 : f32
    %409 = vector.broadcast %cst_87 : f32 to vector<8x128xf32>
    %410 = arith.subf %409, %402 : vector<8x128xf32>
    %411 = arith.mulf %410, %408 : vector<8x128xf32>
    %412 = arith.mulf %402, %357 : vector<8x128xf32>
    %413 = arith.addf %411, %412 : vector<8x128xf32>
    %414 = tpu.concatenate %413, %383 in 1 : vector<8x128xf32>, vector<8x128xf32> -> vector<8x256xf32>
    %415 = arith.truncf %414 : vector<8x256xf32> to vector<8x256xbf16>
    %cst_88 = arith.constant dense<0.000000e+00> : vector<8x512xf32>
    %416 = tpu.matmul %415, %2, %cst_88 {dimension_numbers = #tpu.dot_dimension_numbers<[1], [0], [0], [1], [0, 0, 1, 1], [], []>} : vector<8x256xbf16>, vector<256x512xbf16>, vector<8x512xf32> -> vector<8x512xf32>
    %417 = arith.addf %416, %9 : vector<8x512xf32>
    %418 = vector.extract_strided_slice %417 {offsets = [0, 0], sizes = [8, 128], strides = [1, 1]} : vector<8x512xf32> to vector<8x128xf32>
    %419 = arith.negf %418 : vector<8x128xf32>
    %420 = math.exp %419 : vector<8x128xf32>
    %cst_89 = arith.constant 1.000000e+00 : f32
    %421 = vector.broadcast %cst_89 : f32 to vector<8x128xf32>
    %422 = arith.addf %421, %420 : vector<8x128xf32>
    %423 = arith.divf %421, %422 : vector<8x128xf32>
    %424 = vector.extract_strided_slice %417 {offsets = [0, 128], sizes = [8, 128], strides = [1, 1]} : vector<8x512xf32> to vector<8x128xf32>
    %425 = arith.negf %424 : vector<8x128xf32>
    %426 = math.exp %425 : vector<8x128xf32>
    %cst_90 = arith.constant 1.000000e+00 : f32
    %427 = vector.broadcast %cst_90 : f32 to vector<8x128xf32>
    %428 = arith.addf %427, %426 : vector<8x128xf32>
    %429 = arith.divf %427, %428 : vector<8x128xf32>
    %430 = vector.extract_strided_slice %417 {offsets = [0, 256], sizes = [8, 128], strides = [1, 1]} : vector<8x512xf32> to vector<8x128xf32>
    %431 = vector.extract_strided_slice %417 {offsets = [0, 384], sizes = [8, 128], strides = [1, 1]} : vector<8x512xf32> to vector<8x128xf32>
    %432 = arith.mulf %423, %431 : vector<8x128xf32>
    %433 = arith.addf %430, %432 : vector<8x128xf32>
    %434 = math.tanh %433 : vector<8x128xf32>
    %cst_91 = arith.constant 1.000000e+00 : f32
    %435 = vector.broadcast %cst_91 : f32 to vector<8x128xf32>
    %436 = arith.subf %435, %429 : vector<8x128xf32>
    %437 = arith.mulf %436, %434 : vector<8x128xf32>
    %438 = arith.mulf %429, %383 : vector<8x128xf32>
    %439 = arith.addf %437, %438 : vector<8x128xf32>
    %440 = vector.extract_strided_slice %45 {offsets = [56, 0], sizes = [8, 384], strides = [1, 1]} : vector<64x384xf32> to vector<8x384xf32>
    %441 = arith.truncf %413 : vector<8x128xf32> to vector<8x128xbf16>
    %cst_92 = arith.constant dense<0.000000e+00> : vector<8x384xf32>
    %442 = tpu.matmul %441, %0, %cst_92 {dimension_numbers = #tpu.dot_dimension_numbers<[1], [0], [0], [1], [0, 0, 1, 1], [], []>} : vector<8x128xbf16>, vector<128x384xbf16>, vector<8x384xf32> -> vector<8x384xf32>
    %443 = vector.extract_strided_slice %440 {offsets = [0, 0], sizes = [8, 128], strides = [1, 1]} : vector<8x384xf32> to vector<8x128xf32>
    %444 = vector.extract_strided_slice %442 {offsets = [0, 0], sizes = [8, 128], strides = [1, 1]} : vector<8x384xf32> to vector<8x128xf32>
    %445 = arith.addf %443, %444 : vector<8x128xf32>
    %446 = arith.negf %445 : vector<8x128xf32>
    %447 = math.exp %446 : vector<8x128xf32>
    %cst_93 = arith.constant 1.000000e+00 : f32
    %448 = vector.broadcast %cst_93 : f32 to vector<8x128xf32>
    %449 = arith.addf %448, %447 : vector<8x128xf32>
    %450 = arith.divf %448, %449 : vector<8x128xf32>
    %451 = vector.extract_strided_slice %440 {offsets = [0, 128], sizes = [8, 128], strides = [1, 1]} : vector<8x384xf32> to vector<8x128xf32>
    %452 = vector.extract_strided_slice %442 {offsets = [0, 128], sizes = [8, 128], strides = [1, 1]} : vector<8x384xf32> to vector<8x128xf32>
    %453 = arith.addf %451, %452 : vector<8x128xf32>
    %454 = arith.negf %453 : vector<8x128xf32>
    %455 = math.exp %454 : vector<8x128xf32>
    %cst_94 = arith.constant 1.000000e+00 : f32
    %456 = vector.broadcast %cst_94 : f32 to vector<8x128xf32>
    %457 = arith.addf %456, %455 : vector<8x128xf32>
    %458 = arith.divf %456, %457 : vector<8x128xf32>
    %459 = vector.extract_strided_slice %440 {offsets = [0, 256], sizes = [8, 128], strides = [1, 1]} : vector<8x384xf32> to vector<8x128xf32>
    %460 = vector.extract_strided_slice %442 {offsets = [0, 256], sizes = [8, 128], strides = [1, 1]} : vector<8x384xf32> to vector<8x128xf32>
    %461 = arith.addf %460, %18 : vector<8x128xf32>
    %462 = arith.mulf %450, %461 : vector<8x128xf32>
    %463 = arith.addf %459, %462 : vector<8x128xf32>
    %464 = math.tanh %463 : vector<8x128xf32>
    %cst_95 = arith.constant 1.000000e+00 : f32
    %465 = vector.broadcast %cst_95 : f32 to vector<8x128xf32>
    %466 = arith.subf %465, %458 : vector<8x128xf32>
    %467 = arith.mulf %466, %464 : vector<8x128xf32>
    %468 = arith.mulf %458, %413 : vector<8x128xf32>
    %469 = arith.addf %467, %468 : vector<8x128xf32>
    %470 = tpu.concatenate %469, %439 in 1 : vector<8x128xf32>, vector<8x128xf32> -> vector<8x256xf32>
    %471 = arith.truncf %470 : vector<8x256xf32> to vector<8x256xbf16>
    %cst_96 = arith.constant dense<0.000000e+00> : vector<8x512xf32>
    %472 = tpu.matmul %471, %2, %cst_96 {dimension_numbers = #tpu.dot_dimension_numbers<[1], [0], [0], [1], [0, 0, 1, 1], [], []>} : vector<8x256xbf16>, vector<256x512xbf16>, vector<8x512xf32> -> vector<8x512xf32>
    %473 = arith.addf %472, %9 : vector<8x512xf32>
    %474 = vector.extract_strided_slice %473 {offsets = [0, 0], sizes = [8, 128], strides = [1, 1]} : vector<8x512xf32> to vector<8x128xf32>
    %475 = arith.negf %474 : vector<8x128xf32>
    %476 = math.exp %475 : vector<8x128xf32>
    %cst_97 = arith.constant 1.000000e+00 : f32
    %477 = vector.broadcast %cst_97 : f32 to vector<8x128xf32>
    %478 = arith.addf %477, %476 : vector<8x128xf32>
    %479 = arith.divf %477, %478 : vector<8x128xf32>
    %480 = vector.extract_strided_slice %473 {offsets = [0, 128], sizes = [8, 128], strides = [1, 1]} : vector<8x512xf32> to vector<8x128xf32>
    %481 = arith.negf %480 : vector<8x128xf32>
    %482 = math.exp %481 : vector<8x128xf32>
    %cst_98 = arith.constant 1.000000e+00 : f32
    %483 = vector.broadcast %cst_98 : f32 to vector<8x128xf32>
    %484 = arith.addf %483, %482 : vector<8x128xf32>
    %485 = arith.divf %483, %484 : vector<8x128xf32>
    %486 = vector.extract_strided_slice %473 {offsets = [0, 256], sizes = [8, 128], strides = [1, 1]} : vector<8x512xf32> to vector<8x128xf32>
    %487 = vector.extract_strided_slice %473 {offsets = [0, 384], sizes = [8, 128], strides = [1, 1]} : vector<8x512xf32> to vector<8x128xf32>
    %488 = arith.mulf %479, %487 : vector<8x128xf32>
    %489 = arith.addf %486, %488 : vector<8x128xf32>
    %490 = math.tanh %489 : vector<8x128xf32>
    %cst_99 = arith.constant 1.000000e+00 : f32
    %491 = vector.broadcast %cst_99 : f32 to vector<8x128xf32>
    %492 = arith.subf %491, %485 : vector<8x128xf32>
    %493 = arith.mulf %492, %490 : vector<8x128xf32>
    %494 = arith.mulf %485, %439 : vector<8x128xf32>
    %495 = arith.addf %493, %494 : vector<8x128xf32>
    %496 = vector.extract_strided_slice %31 {offsets = [56, 0], sizes = [8, 1], strides = [1, 1]} : vector<64x4xf32> to vector<8x1xf32>
    %497 = vector.broadcast %496 : vector<8x1xf32> to vector<8x128xf32>
    %498 = arith.mulf %497, %21 : vector<8x128xf32>
    %499 = arith.addf %498, %24 : vector<8x128xf32>
    %cst_100 = arith.constant 0.000000e+00 : f32
    %500 = vector.broadcast %cst_100 : f32 to vector<8x128xf32>
    %501 = arith.maximumf %499, %500 : vector<8x128xf32>
    %502 = tpu.concatenate %501, %469 in 1 : vector<8x128xf32>, vector<8x128xf32> -> vector<8x256xf32>
    %503 = arith.truncf %502 : vector<8x256xf32> to vector<8x256xbf16>
    %cst_101 = arith.constant dense<0.000000e+00> : vector<8x512xf32>
    %504 = tpu.matmul %503, %4, %cst_101 {dimension_numbers = #tpu.dot_dimension_numbers<[1], [0], [0], [1], [0, 0, 1, 1], [], []>} : vector<8x256xbf16>, vector<256x512xbf16>, vector<8x512xf32> -> vector<8x512xf32>
    %505 = arith.addf %504, %12 : vector<8x512xf32>
    %506 = vector.extract_strided_slice %505 {offsets = [0, 0], sizes = [8, 128], strides = [1, 1]} : vector<8x512xf32> to vector<8x128xf32>
    %507 = arith.negf %506 : vector<8x128xf32>
    %508 = math.exp %507 : vector<8x128xf32>
    %cst_102 = arith.constant 1.000000e+00 : f32
    %509 = vector.broadcast %cst_102 : f32 to vector<8x128xf32>
    %510 = arith.addf %509, %508 : vector<8x128xf32>
    %511 = arith.divf %509, %510 : vector<8x128xf32>
    %512 = vector.extract_strided_slice %505 {offsets = [0, 128], sizes = [8, 128], strides = [1, 1]} : vector<8x512xf32> to vector<8x128xf32>
    %513 = arith.negf %512 : vector<8x128xf32>
    %514 = math.exp %513 : vector<8x128xf32>
    %cst_103 = arith.constant 1.000000e+00 : f32
    %515 = vector.broadcast %cst_103 : f32 to vector<8x128xf32>
    %516 = arith.addf %515, %514 : vector<8x128xf32>
    %517 = arith.divf %515, %516 : vector<8x128xf32>
    %518 = vector.extract_strided_slice %505 {offsets = [0, 256], sizes = [8, 128], strides = [1, 1]} : vector<8x512xf32> to vector<8x128xf32>
    %519 = vector.extract_strided_slice %505 {offsets = [0, 384], sizes = [8, 128], strides = [1, 1]} : vector<8x512xf32> to vector<8x128xf32>
    %520 = arith.mulf %511, %519 : vector<8x128xf32>
    %521 = arith.addf %518, %520 : vector<8x128xf32>
    %522 = math.tanh %521 : vector<8x128xf32>
    %cst_104 = arith.constant 1.000000e+00 : f32
    %523 = vector.broadcast %cst_104 : f32 to vector<8x128xf32>
    %524 = arith.subf %523, %517 : vector<8x128xf32>
    %525 = arith.mulf %524, %522 : vector<8x128xf32>
    %526 = arith.mulf %517, %469 : vector<8x128xf32>
    %527 = arith.addf %525, %526 : vector<8x128xf32>
    %528 = tpu.concatenate %527, %495 in 1 : vector<8x128xf32>, vector<8x128xf32> -> vector<8x256xf32>
    %529 = arith.truncf %528 : vector<8x256xf32> to vector<8x256xbf16>
    %cst_105 = arith.constant dense<0.000000e+00> : vector<8x512xf32>
    %530 = tpu.matmul %529, %6, %cst_105 {dimension_numbers = #tpu.dot_dimension_numbers<[1], [0], [0], [1], [0, 0, 1, 1], [], []>} : vector<8x256xbf16>, vector<256x512xbf16>, vector<8x512xf32> -> vector<8x512xf32>
    %531 = arith.addf %530, %15 : vector<8x512xf32>
    %532 = vector.extract_strided_slice %531 {offsets = [0, 0], sizes = [8, 128], strides = [1, 1]} : vector<8x512xf32> to vector<8x128xf32>
    %533 = arith.negf %532 : vector<8x128xf32>
    %534 = math.exp %533 : vector<8x128xf32>
    %cst_106 = arith.constant 1.000000e+00 : f32
    %535 = vector.broadcast %cst_106 : f32 to vector<8x128xf32>
    %536 = arith.addf %535, %534 : vector<8x128xf32>
    %537 = arith.divf %535, %536 : vector<8x128xf32>
    %538 = vector.extract_strided_slice %531 {offsets = [0, 128], sizes = [8, 128], strides = [1, 1]} : vector<8x512xf32> to vector<8x128xf32>
    %539 = arith.negf %538 : vector<8x128xf32>
    %540 = math.exp %539 : vector<8x128xf32>
    %cst_107 = arith.constant 1.000000e+00 : f32
    %541 = vector.broadcast %cst_107 : f32 to vector<8x128xf32>
    %542 = arith.addf %541, %540 : vector<8x128xf32>
    %543 = arith.divf %541, %542 : vector<8x128xf32>
    %544 = vector.extract_strided_slice %531 {offsets = [0, 256], sizes = [8, 128], strides = [1, 1]} : vector<8x512xf32> to vector<8x128xf32>
    %545 = vector.extract_strided_slice %531 {offsets = [0, 384], sizes = [8, 128], strides = [1, 1]} : vector<8x512xf32> to vector<8x128xf32>
    %546 = arith.mulf %537, %545 : vector<8x128xf32>
    %547 = arith.addf %544, %546 : vector<8x128xf32>
    %548 = math.tanh %547 : vector<8x128xf32>
    %cst_108 = arith.constant 1.000000e+00 : f32
    %549 = vector.broadcast %cst_108 : f32 to vector<8x128xf32>
    %550 = arith.subf %549, %543 : vector<8x128xf32>
    %551 = arith.mulf %550, %548 : vector<8x128xf32>
    %552 = arith.mulf %543, %495 : vector<8x128xf32>
    %553 = arith.addf %551, %552 : vector<8x128xf32>
    %554 = arith.mulf %553, %27 : vector<8x128xf32>
    %cst_109 = arith.constant dense<0.000000e+00> : vector<8xf32>
    %555 = vector.multi_reduction <add>, %554, %cst_109 [1] : vector<8x128xf32> to vector<8xf32>
    %556 = vector.shape_cast %555 : vector<8xf32> to vector<8x1xf32>
    %557 = arith.addf %556, %30 : vector<8x1xf32>
    %c0_110 = arith.constant 0 : index
    %558 = memref.load %arg2[%c0_110] : memref<6xi32, #tpu.memory_space<smem>>
    %c1_i32 = arith.constant 1 : i32
    %559 = arith.cmpi eq, %558, %c1_i32 : i32
    %c0_111 = arith.constant 0 : index
    %c0_112 = arith.constant 0 : index
    %c0_113 = arith.constant 0 : index
    %560 = vector.load %arg1[%c0_111, %c0_112, %c0_113] : memref<6x8x1xf32, #tpu.memory_space<vmem>>, vector<1x8x1xf32>
    %561 = vector.shape_cast %560 : vector<1x8x1xf32> to vector<8x1xf32>
    %562 = arith.select %559, %561, %557 : vector<8x1xf32>
    %563 = vector.broadcast %562 : vector<8x1xf32> to vector<8x128xf32>
    %564 = arith.mulf %563, %21 : vector<8x128xf32>
    %565 = arith.addf %564, %24 : vector<8x128xf32>
    %cst_114 = arith.constant 0.000000e+00 : f32
    %566 = vector.broadcast %cst_114 : f32 to vector<8x128xf32>
    %567 = arith.maximumf %565, %566 : vector<8x128xf32>
    %568 = tpu.concatenate %567, %527 in 1 : vector<8x128xf32>, vector<8x128xf32> -> vector<8x256xf32>
    %569 = arith.truncf %568 : vector<8x256xf32> to vector<8x256xbf16>
    %cst_115 = arith.constant dense<0.000000e+00> : vector<8x512xf32>
    %570 = tpu.matmul %569, %4, %cst_115 {dimension_numbers = #tpu.dot_dimension_numbers<[1], [0], [0], [1], [0, 0, 1, 1], [], []>} : vector<8x256xbf16>, vector<256x512xbf16>, vector<8x512xf32> -> vector<8x512xf32>
    %571 = arith.addf %570, %12 : vector<8x512xf32>
    %572 = vector.extract_strided_slice %571 {offsets = [0, 0], sizes = [8, 128], strides = [1, 1]} : vector<8x512xf32> to vector<8x128xf32>
    %573 = arith.negf %572 : vector<8x128xf32>
    %574 = math.exp %573 : vector<8x128xf32>
    %cst_116 = arith.constant 1.000000e+00 : f32
    %575 = vector.broadcast %cst_116 : f32 to vector<8x128xf32>
    %576 = arith.addf %575, %574 : vector<8x128xf32>
    %577 = arith.divf %575, %576 : vector<8x128xf32>
    %578 = vector.extract_strided_slice %571 {offsets = [0, 128], sizes = [8, 128], strides = [1, 1]} : vector<8x512xf32> to vector<8x128xf32>
    %579 = arith.negf %578 : vector<8x128xf32>
    %580 = math.exp %579 : vector<8x128xf32>
    %cst_117 = arith.constant 1.000000e+00 : f32
    %581 = vector.broadcast %cst_117 : f32 to vector<8x128xf32>
    %582 = arith.addf %581, %580 : vector<8x128xf32>
    %583 = arith.divf %581, %582 : vector<8x128xf32>
    %584 = vector.extract_strided_slice %571 {offsets = [0, 256], sizes = [8, 128], strides = [1, 1]} : vector<8x512xf32> to vector<8x128xf32>
    %585 = vector.extract_strided_slice %571 {offsets = [0, 384], sizes = [8, 128], strides = [1, 1]} : vector<8x512xf32> to vector<8x128xf32>
    %586 = arith.mulf %577, %585 : vector<8x128xf32>
    %587 = arith.addf %584, %586 : vector<8x128xf32>
    %588 = math.tanh %587 : vector<8x128xf32>
    %cst_118 = arith.constant 1.000000e+00 : f32
    %589 = vector.broadcast %cst_118 : f32 to vector<8x128xf32>
    %590 = arith.subf %589, %583 : vector<8x128xf32>
    %591 = arith.mulf %590, %588 : vector<8x128xf32>
    %592 = arith.mulf %583, %527 : vector<8x128xf32>
    %593 = arith.addf %591, %592 : vector<8x128xf32>
    %594 = tpu.concatenate %593, %553 in 1 : vector<8x128xf32>, vector<8x128xf32> -> vector<8x256xf32>
    %595 = arith.truncf %594 : vector<8x256xf32> to vector<8x256xbf16>
    %cst_119 = arith.constant dense<0.000000e+00> : vector<8x512xf32>
    %596 = tpu.matmul %595, %6, %cst_119 {dimension_numbers = #tpu.dot_dimension_numbers<[1], [0], [0], [1], [0, 0, 1, 1], [], []>} : vector<8x256xbf16>, vector<256x512xbf16>, vector<8x512xf32> -> vector<8x512xf32>
    %597 = arith.addf %596, %15 : vector<8x512xf32>
    %598 = vector.extract_strided_slice %597 {offsets = [0, 0], sizes = [8, 128], strides = [1, 1]} : vector<8x512xf32> to vector<8x128xf32>
    %599 = arith.negf %598 : vector<8x128xf32>
    %600 = math.exp %599 : vector<8x128xf32>
    %cst_120 = arith.constant 1.000000e+00 : f32
    %601 = vector.broadcast %cst_120 : f32 to vector<8x128xf32>
    %602 = arith.addf %601, %600 : vector<8x128xf32>
    %603 = arith.divf %601, %602 : vector<8x128xf32>
    %604 = vector.extract_strided_slice %597 {offsets = [0, 128], sizes = [8, 128], strides = [1, 1]} : vector<8x512xf32> to vector<8x128xf32>
    %605 = arith.negf %604 : vector<8x128xf32>
    %606 = math.exp %605 : vector<8x128xf32>
    %cst_121 = arith.constant 1.000000e+00 : f32
    %607 = vector.broadcast %cst_121 : f32 to vector<8x128xf32>
    %608 = arith.addf %607, %606 : vector<8x128xf32>
    %609 = arith.divf %607, %608 : vector<8x128xf32>
    %610 = vector.extract_strided_slice %597 {offsets = [0, 256], sizes = [8, 128], strides = [1, 1]} : vector<8x512xf32> to vector<8x128xf32>
    %611 = vector.extract_strided_slice %597 {offsets = [0, 384], sizes = [8, 128], strides = [1, 1]} : vector<8x512xf32> to vector<8x128xf32>
    %612 = arith.mulf %603, %611 : vector<8x128xf32>
    %613 = arith.addf %610, %612 : vector<8x128xf32>
    %614 = math.tanh %613 : vector<8x128xf32>
    %cst_122 = arith.constant 1.000000e+00 : f32
    %615 = vector.broadcast %cst_122 : f32 to vector<8x128xf32>
    %616 = arith.subf %615, %609 : vector<8x128xf32>
    %617 = arith.mulf %616, %614 : vector<8x128xf32>
    %618 = arith.mulf %609, %553 : vector<8x128xf32>
    %619 = arith.addf %617, %618 : vector<8x128xf32>
    %620 = arith.mulf %619, %27 : vector<8x128xf32>
    %cst_123 = arith.constant dense<0.000000e+00> : vector<8xf32>
    %621 = vector.multi_reduction <add>, %620, %cst_123 [1] : vector<8x128xf32> to vector<8xf32>
    %622 = vector.shape_cast %621 : vector<8xf32> to vector<8x1xf32>
    %623 = arith.addf %622, %30 : vector<8x1xf32>
    %c1_124 = arith.constant 1 : index
    %624 = memref.load %arg2[%c1_124] : memref<6xi32, #tpu.memory_space<smem>>
    %c1_i32_125 = arith.constant 1 : i32
    %625 = arith.cmpi eq, %624, %c1_i32_125 : i32
    %c1_126 = arith.constant 1 : index
    %c0_127 = arith.constant 0 : index
    %c0_128 = arith.constant 0 : index
    %626 = vector.load %arg1[%c1_126, %c0_127, %c0_128] : memref<6x8x1xf32, #tpu.memory_space<vmem>>, vector<1x8x1xf32>
    %627 = vector.shape_cast %626 : vector<1x8x1xf32> to vector<8x1xf32>
    %628 = arith.select %625, %627, %623 : vector<8x1xf32>
    %629 = vector.broadcast %628 : vector<8x1xf32> to vector<8x128xf32>
    %630 = arith.mulf %629, %21 : vector<8x128xf32>
    %631 = arith.addf %630, %24 : vector<8x128xf32>
    %cst_129 = arith.constant 0.000000e+00 : f32
    %632 = vector.broadcast %cst_129 : f32 to vector<8x128xf32>
    %633 = arith.maximumf %631, %632 : vector<8x128xf32>
    %634 = tpu.concatenate %633, %593 in 1 : vector<8x128xf32>, vector<8x128xf32> -> vector<8x256xf32>
    %635 = arith.truncf %634 : vector<8x256xf32> to vector<8x256xbf16>
    %cst_130 = arith.constant dense<0.000000e+00> : vector<8x512xf32>
    %636 = tpu.matmul %635, %4, %cst_130 {dimension_numbers = #tpu.dot_dimension_numbers<[1], [0], [0], [1], [0, 0, 1, 1], [], []>} : vector<8x256xbf16>, vector<256x512xbf16>, vector<8x512xf32> -> vector<8x512xf32>
    %637 = arith.addf %636, %12 : vector<8x512xf32>
    %638 = vector.extract_strided_slice %637 {offsets = [0, 0], sizes = [8, 128], strides = [1, 1]} : vector<8x512xf32> to vector<8x128xf32>
    %639 = arith.negf %638 : vector<8x128xf32>
    %640 = math.exp %639 : vector<8x128xf32>
    %cst_131 = arith.constant 1.000000e+00 : f32
    %641 = vector.broadcast %cst_131 : f32 to vector<8x128xf32>
    %642 = arith.addf %641, %640 : vector<8x128xf32>
    %643 = arith.divf %641, %642 : vector<8x128xf32>
    %644 = vector.extract_strided_slice %637 {offsets = [0, 128], sizes = [8, 128], strides = [1, 1]} : vector<8x512xf32> to vector<8x128xf32>
    %645 = arith.negf %644 : vector<8x128xf32>
    %646 = math.exp %645 : vector<8x128xf32>
    %cst_132 = arith.constant 1.000000e+00 : f32
    %647 = vector.broadcast %cst_132 : f32 to vector<8x128xf32>
    %648 = arith.addf %647, %646 : vector<8x128xf32>
    %649 = arith.divf %647, %648 : vector<8x128xf32>
    %650 = vector.extract_strided_slice %637 {offsets = [0, 256], sizes = [8, 128], strides = [1, 1]} : vector<8x512xf32> to vector<8x128xf32>
    %651 = vector.extract_strided_slice %637 {offsets = [0, 384], sizes = [8, 128], strides = [1, 1]} : vector<8x512xf32> to vector<8x128xf32>
    %652 = arith.mulf %643, %651 : vector<8x128xf32>
    %653 = arith.addf %650, %652 : vector<8x128xf32>
    %654 = math.tanh %653 : vector<8x128xf32>
    %cst_133 = arith.constant 1.000000e+00 : f32
    %655 = vector.broadcast %cst_133 : f32 to vector<8x128xf32>
    %656 = arith.subf %655, %649 : vector<8x128xf32>
    %657 = arith.mulf %656, %654 : vector<8x128xf32>
    %658 = arith.mulf %649, %593 : vector<8x128xf32>
    %659 = arith.addf %657, %658 : vector<8x128xf32>
    %660 = tpu.concatenate %659, %619 in 1 : vector<8x128xf32>, vector<8x128xf32> -> vector<8x256xf32>
    %661 = arith.truncf %660 : vector<8x256xf32> to vector<8x256xbf16>
    %cst_134 = arith.constant dense<0.000000e+00> : vector<8x512xf32>
    %662 = tpu.matmul %661, %6, %cst_134 {dimension_numbers = #tpu.dot_dimension_numbers<[1], [0], [0], [1], [0, 0, 1, 1], [], []>} : vector<8x256xbf16>, vector<256x512xbf16>, vector<8x512xf32> -> vector<8x512xf32>
    %663 = arith.addf %662, %15 : vector<8x512xf32>
    %664 = vector.extract_strided_slice %663 {offsets = [0, 0], sizes = [8, 128], strides = [1, 1]} : vector<8x512xf32> to vector<8x128xf32>
    %665 = arith.negf %664 : vector<8x128xf32>
    %666 = math.exp %665 : vector<8x128xf32>
    %cst_135 = arith.constant 1.000000e+00 : f32
    %667 = vector.broadcast %cst_135 : f32 to vector<8x128xf32>
    %668 = arith.addf %667, %666 : vector<8x128xf32>
    %669 = arith.divf %667, %668 : vector<8x128xf32>
    %670 = vector.extract_strided_slice %663 {offsets = [0, 128], sizes = [8, 128], strides = [1, 1]} : vector<8x512xf32> to vector<8x128xf32>
    %671 = arith.negf %670 : vector<8x128xf32>
    %672 = math.exp %671 : vector<8x128xf32>
    %cst_136 = arith.constant 1.000000e+00 : f32
    %673 = vector.broadcast %cst_136 : f32 to vector<8x128xf32>
    %674 = arith.addf %673, %672 : vector<8x128xf32>
    %675 = arith.divf %673, %674 : vector<8x128xf32>
    %676 = vector.extract_strided_slice %663 {offsets = [0, 256], sizes = [8, 128], strides = [1, 1]} : vector<8x512xf32> to vector<8x128xf32>
    %677 = vector.extract_strided_slice %663 {offsets = [0, 384], sizes = [8, 128], strides = [1, 1]} : vector<8x512xf32> to vector<8x128xf32>
    %678 = arith.mulf %669, %677 : vector<8x128xf32>
    %679 = arith.addf %676, %678 : vector<8x128xf32>
    %680 = math.tanh %679 : vector<8x128xf32>
    %cst_137 = arith.constant 1.000000e+00 : f32
    %681 = vector.broadcast %cst_137 : f32 to vector<8x128xf32>
    %682 = arith.subf %681, %675 : vector<8x128xf32>
    %683 = arith.mulf %682, %680 : vector<8x128xf32>
    %684 = arith.mulf %675, %619 : vector<8x128xf32>
    %685 = arith.addf %683, %684 : vector<8x128xf32>
    %686 = arith.mulf %685, %27 : vector<8x128xf32>
    %cst_138 = arith.constant dense<0.000000e+00> : vector<8xf32>
    %687 = vector.multi_reduction <add>, %686, %cst_138 [1] : vector<8x128xf32> to vector<8xf32>
    %688 = vector.shape_cast %687 : vector<8xf32> to vector<8x1xf32>
    %689 = arith.addf %688, %30 : vector<8x1xf32>
    %c2_139 = arith.constant 2 : index
    %690 = memref.load %arg2[%c2_139] : memref<6xi32, #tpu.memory_space<smem>>
    %c1_i32_140 = arith.constant 1 : i32
    %691 = arith.cmpi eq, %690, %c1_i32_140 : i32
    %c2_141 = arith.constant 2 : index
    %c0_142 = arith.constant 0 : index
    %c0_143 = arith.constant 0 : index
    %692 = vector.load %arg1[%c2_141, %c0_142, %c0_143] : memref<6x8x1xf32, #tpu.memory_space<vmem>>, vector<1x8x1xf32>
    %693 = vector.shape_cast %692 : vector<1x8x1xf32> to vector<8x1xf32>
    %694 = arith.select %691, %693, %689 : vector<8x1xf32>
    %695 = vector.broadcast %694 : vector<8x1xf32> to vector<8x128xf32>
    %696 = arith.mulf %695, %21 : vector<8x128xf32>
    %697 = arith.addf %696, %24 : vector<8x128xf32>
    %cst_144 = arith.constant 0.000000e+00 : f32
    %698 = vector.broadcast %cst_144 : f32 to vector<8x128xf32>
    %699 = arith.maximumf %697, %698 : vector<8x128xf32>
    %700 = tpu.concatenate %699, %659 in 1 : vector<8x128xf32>, vector<8x128xf32> -> vector<8x256xf32>
    %701 = arith.truncf %700 : vector<8x256xf32> to vector<8x256xbf16>
    %cst_145 = arith.constant dense<0.000000e+00> : vector<8x512xf32>
    %702 = tpu.matmul %701, %4, %cst_145 {dimension_numbers = #tpu.dot_dimension_numbers<[1], [0], [0], [1], [0, 0, 1, 1], [], []>} : vector<8x256xbf16>, vector<256x512xbf16>, vector<8x512xf32> -> vector<8x512xf32>
    %703 = arith.addf %702, %12 : vector<8x512xf32>
    %704 = vector.extract_strided_slice %703 {offsets = [0, 0], sizes = [8, 128], strides = [1, 1]} : vector<8x512xf32> to vector<8x128xf32>
    %705 = arith.negf %704 : vector<8x128xf32>
    %706 = math.exp %705 : vector<8x128xf32>
    %cst_146 = arith.constant 1.000000e+00 : f32
    %707 = vector.broadcast %cst_146 : f32 to vector<8x128xf32>
    %708 = arith.addf %707, %706 : vector<8x128xf32>
    %709 = arith.divf %707, %708 : vector<8x128xf32>
    %710 = vector.extract_strided_slice %703 {offsets = [0, 128], sizes = [8, 128], strides = [1, 1]} : vector<8x512xf32> to vector<8x128xf32>
    %711 = arith.negf %710 : vector<8x128xf32>
    %712 = math.exp %711 : vector<8x128xf32>
    %cst_147 = arith.constant 1.000000e+00 : f32
    %713 = vector.broadcast %cst_147 : f32 to vector<8x128xf32>
    %714 = arith.addf %713, %712 : vector<8x128xf32>
    %715 = arith.divf %713, %714 : vector<8x128xf32>
    %716 = vector.extract_strided_slice %703 {offsets = [0, 256], sizes = [8, 128], strides = [1, 1]} : vector<8x512xf32> to vector<8x128xf32>
    %717 = vector.extract_strided_slice %703 {offsets = [0, 384], sizes = [8, 128], strides = [1, 1]} : vector<8x512xf32> to vector<8x128xf32>
    %718 = arith.mulf %709, %717 : vector<8x128xf32>
    %719 = arith.addf %716, %718 : vector<8x128xf32>
    %720 = math.tanh %719 : vector<8x128xf32>
    %cst_148 = arith.constant 1.000000e+00 : f32
    %721 = vector.broadcast %cst_148 : f32 to vector<8x128xf32>
    %722 = arith.subf %721, %715 : vector<8x128xf32>
    %723 = arith.mulf %722, %720 : vector<8x128xf32>
    %724 = arith.mulf %715, %659 : vector<8x128xf32>
    %725 = arith.addf %723, %724 : vector<8x128xf32>
    %726 = tpu.concatenate %725, %685 in 1 : vector<8x128xf32>, vector<8x128xf32> -> vector<8x256xf32>
    %727 = arith.truncf %726 : vector<8x256xf32> to vector<8x256xbf16>
    %cst_149 = arith.constant dense<0.000000e+00> : vector<8x512xf32>
    %728 = tpu.matmul %727, %6, %cst_149 {dimension_numbers = #tpu.dot_dimension_numbers<[1], [0], [0], [1], [0, 0, 1, 1], [], []>} : vector<8x256xbf16>, vector<256x512xbf16>, vector<8x512xf32> -> vector<8x512xf32>
    %729 = arith.addf %728, %15 : vector<8x512xf32>
    %730 = vector.extract_strided_slice %729 {offsets = [0, 0], sizes = [8, 128], strides = [1, 1]} : vector<8x512xf32> to vector<8x128xf32>
    %731 = arith.negf %730 : vector<8x128xf32>
    %732 = math.exp %731 : vector<8x128xf32>
    %cst_150 = arith.constant 1.000000e+00 : f32
    %733 = vector.broadcast %cst_150 : f32 to vector<8x128xf32>
    %734 = arith.addf %733, %732 : vector<8x128xf32>
    %735 = arith.divf %733, %734 : vector<8x128xf32>
    %736 = vector.extract_strided_slice %729 {offsets = [0, 128], sizes = [8, 128], strides = [1, 1]} : vector<8x512xf32> to vector<8x128xf32>
    %737 = arith.negf %736 : vector<8x128xf32>
    %738 = math.exp %737 : vector<8x128xf32>
    %cst_151 = arith.constant 1.000000e+00 : f32
    %739 = vector.broadcast %cst_151 : f32 to vector<8x128xf32>
    %740 = arith.addf %739, %738 : vector<8x128xf32>
    %741 = arith.divf %739, %740 : vector<8x128xf32>
    %742 = vector.extract_strided_slice %729 {offsets = [0, 256], sizes = [8, 128], strides = [1, 1]} : vector<8x512xf32> to vector<8x128xf32>
    %743 = vector.extract_strided_slice %729 {offsets = [0, 384], sizes = [8, 128], strides = [1, 1]} : vector<8x512xf32> to vector<8x128xf32>
    %744 = arith.mulf %735, %743 : vector<8x128xf32>
    %745 = arith.addf %742, %744 : vector<8x128xf32>
    %746 = math.tanh %745 : vector<8x128xf32>
    %cst_152 = arith.constant 1.000000e+00 : f32
    %747 = vector.broadcast %cst_152 : f32 to vector<8x128xf32>
    %748 = arith.subf %747, %741 : vector<8x128xf32>
    %749 = arith.mulf %748, %746 : vector<8x128xf32>
    %750 = arith.mulf %741, %685 : vector<8x128xf32>
    %751 = arith.addf %749, %750 : vector<8x128xf32>
    %752 = arith.mulf %751, %27 : vector<8x128xf32>
    %cst_153 = arith.constant dense<0.000000e+00> : vector<8xf32>
    %753 = vector.multi_reduction <add>, %752, %cst_153 [1] : vector<8x128xf32> to vector<8xf32>
    %754 = vector.shape_cast %753 : vector<8xf32> to vector<8x1xf32>
    %755 = arith.addf %754, %30 : vector<8x1xf32>
    %c3_154 = arith.constant 3 : index
    %756 = memref.load %arg2[%c3_154] : memref<6xi32, #tpu.memory_space<smem>>
    %c1_i32_155 = arith.constant 1 : i32
    %757 = arith.cmpi eq, %756, %c1_i32_155 : i32
    %c3_156 = arith.constant 3 : index
    %c0_157 = arith.constant 0 : index
    %c0_158 = arith.constant 0 : index
    %758 = vector.load %arg1[%c3_156, %c0_157, %c0_158] : memref<6x8x1xf32, #tpu.memory_space<vmem>>, vector<1x8x1xf32>
    %759 = vector.shape_cast %758 : vector<1x8x1xf32> to vector<8x1xf32>
    %760 = arith.select %757, %759, %755 : vector<8x1xf32>
    %761 = vector.broadcast %760 : vector<8x1xf32> to vector<8x128xf32>
    %762 = arith.mulf %761, %21 : vector<8x128xf32>
    %763 = arith.addf %762, %24 : vector<8x128xf32>
    %cst_159 = arith.constant 0.000000e+00 : f32
    %764 = vector.broadcast %cst_159 : f32 to vector<8x128xf32>
    %765 = arith.maximumf %763, %764 : vector<8x128xf32>
    %766 = tpu.concatenate %765, %725 in 1 : vector<8x128xf32>, vector<8x128xf32> -> vector<8x256xf32>
    %767 = arith.truncf %766 : vector<8x256xf32> to vector<8x256xbf16>
    %cst_160 = arith.constant dense<0.000000e+00> : vector<8x512xf32>
    %768 = tpu.matmul %767, %4, %cst_160 {dimension_numbers = #tpu.dot_dimension_numbers<[1], [0], [0], [1], [0, 0, 1, 1], [], []>} : vector<8x256xbf16>, vector<256x512xbf16>, vector<8x512xf32> -> vector<8x512xf32>
    %769 = arith.addf %768, %12 : vector<8x512xf32>
    %770 = vector.extract_strided_slice %769 {offsets = [0, 0], sizes = [8, 128], strides = [1, 1]} : vector<8x512xf32> to vector<8x128xf32>
    %771 = arith.negf %770 : vector<8x128xf32>
    %772 = math.exp %771 : vector<8x128xf32>
    %cst_161 = arith.constant 1.000000e+00 : f32
    %773 = vector.broadcast %cst_161 : f32 to vector<8x128xf32>
    %774 = arith.addf %773, %772 : vector<8x128xf32>
    %775 = arith.divf %773, %774 : vector<8x128xf32>
    %776 = vector.extract_strided_slice %769 {offsets = [0, 128], sizes = [8, 128], strides = [1, 1]} : vector<8x512xf32> to vector<8x128xf32>
    %777 = arith.negf %776 : vector<8x128xf32>
    %778 = math.exp %777 : vector<8x128xf32>
    %cst_162 = arith.constant 1.000000e+00 : f32
    %779 = vector.broadcast %cst_162 : f32 to vector<8x128xf32>
    %780 = arith.addf %779, %778 : vector<8x128xf32>
    %781 = arith.divf %779, %780 : vector<8x128xf32>
    %782 = vector.extract_strided_slice %769 {offsets = [0, 256], sizes = [8, 128], strides = [1, 1]} : vector<8x512xf32> to vector<8x128xf32>
    %783 = vector.extract_strided_slice %769 {offsets = [0, 384], sizes = [8, 128], strides = [1, 1]} : vector<8x512xf32> to vector<8x128xf32>
    %784 = arith.mulf %775, %783 : vector<8x128xf32>
    %785 = arith.addf %782, %784 : vector<8x128xf32>
    %786 = math.tanh %785 : vector<8x128xf32>
    %cst_163 = arith.constant 1.000000e+00 : f32
    %787 = vector.broadcast %cst_163 : f32 to vector<8x128xf32>
    %788 = arith.subf %787, %781 : vector<8x128xf32>
    %789 = arith.mulf %788, %786 : vector<8x128xf32>
    %790 = arith.mulf %781, %725 : vector<8x128xf32>
    %791 = arith.addf %789, %790 : vector<8x128xf32>
    %792 = tpu.concatenate %791, %751 in 1 : vector<8x128xf32>, vector<8x128xf32> -> vector<8x256xf32>
    %793 = arith.truncf %792 : vector<8x256xf32> to vector<8x256xbf16>
    %cst_164 = arith.constant dense<0.000000e+00> : vector<8x512xf32>
    %794 = tpu.matmul %793, %6, %cst_164 {dimension_numbers = #tpu.dot_dimension_numbers<[1], [0], [0], [1], [0, 0, 1, 1], [], []>} : vector<8x256xbf16>, vector<256x512xbf16>, vector<8x512xf32> -> vector<8x512xf32>
    %795 = arith.addf %794, %15 : vector<8x512xf32>
    %796 = vector.extract_strided_slice %795 {offsets = [0, 0], sizes = [8, 128], strides = [1, 1]} : vector<8x512xf32> to vector<8x128xf32>
    %797 = arith.negf %796 : vector<8x128xf32>
    %798 = math.exp %797 : vector<8x128xf32>
    %cst_165 = arith.constant 1.000000e+00 : f32
    %799 = vector.broadcast %cst_165 : f32 to vector<8x128xf32>
    %800 = arith.addf %799, %798 : vector<8x128xf32>
    %801 = arith.divf %799, %800 : vector<8x128xf32>
    %802 = vector.extract_strided_slice %795 {offsets = [0, 128], sizes = [8, 128], strides = [1, 1]} : vector<8x512xf32> to vector<8x128xf32>
    %803 = arith.negf %802 : vector<8x128xf32>
    %804 = math.exp %803 : vector<8x128xf32>
    %cst_166 = arith.constant 1.000000e+00 : f32
    %805 = vector.broadcast %cst_166 : f32 to vector<8x128xf32>
    %806 = arith.addf %805, %804 : vector<8x128xf32>
    %807 = arith.divf %805, %806 : vector<8x128xf32>
    %808 = vector.extract_strided_slice %795 {offsets = [0, 256], sizes = [8, 128], strides = [1, 1]} : vector<8x512xf32> to vector<8x128xf32>
    %809 = vector.extract_strided_slice %795 {offsets = [0, 384], sizes = [8, 128], strides = [1, 1]} : vector<8x512xf32> to vector<8x128xf32>
    %810 = arith.mulf %801, %809 : vector<8x128xf32>
    %811 = arith.addf %808, %810 : vector<8x128xf32>
    %812 = math.tanh %811 : vector<8x128xf32>
    %cst_167 = arith.constant 1.000000e+00 : f32
    %813 = vector.broadcast %cst_167 : f32 to vector<8x128xf32>
    %814 = arith.subf %813, %807 : vector<8x128xf32>
    %815 = arith.mulf %814, %812 : vector<8x128xf32>
    %816 = arith.mulf %807, %751 : vector<8x128xf32>
    %817 = arith.addf %815, %816 : vector<8x128xf32>
    %818 = arith.mulf %817, %27 : vector<8x128xf32>
    %cst_168 = arith.constant dense<0.000000e+00> : vector<8xf32>
    %819 = vector.multi_reduction <add>, %818, %cst_168 [1] : vector<8x128xf32> to vector<8xf32>
    %820 = vector.shape_cast %819 : vector<8xf32> to vector<8x1xf32>
    %821 = arith.addf %820, %30 : vector<8x1xf32>
    %c4 = arith.constant 4 : index
    %822 = memref.load %arg2[%c4] : memref<6xi32, #tpu.memory_space<smem>>
    %c1_i32_169 = arith.constant 1 : i32
    %823 = arith.cmpi eq, %822, %c1_i32_169 : i32
    %c4_170 = arith.constant 4 : index
    %c0_171 = arith.constant 0 : index
    %c0_172 = arith.constant 0 : index
    %824 = vector.load %arg1[%c4_170, %c0_171, %c0_172] : memref<6x8x1xf32, #tpu.memory_space<vmem>>, vector<1x8x1xf32>
    %825 = vector.shape_cast %824 : vector<1x8x1xf32> to vector<8x1xf32>
    %826 = arith.select %823, %825, %821 : vector<8x1xf32>
    %827 = vector.broadcast %826 : vector<8x1xf32> to vector<8x128xf32>
    %828 = arith.mulf %827, %21 : vector<8x128xf32>
    %829 = arith.addf %828, %24 : vector<8x128xf32>
    %cst_173 = arith.constant 0.000000e+00 : f32
    %830 = vector.broadcast %cst_173 : f32 to vector<8x128xf32>
    %831 = arith.maximumf %829, %830 : vector<8x128xf32>
    %832 = tpu.concatenate %831, %791 in 1 : vector<8x128xf32>, vector<8x128xf32> -> vector<8x256xf32>
    %833 = arith.truncf %832 : vector<8x256xf32> to vector<8x256xbf16>
    %cst_174 = arith.constant dense<0.000000e+00> : vector<8x512xf32>
    %834 = tpu.matmul %833, %4, %cst_174 {dimension_numbers = #tpu.dot_dimension_numbers<[1], [0], [0], [1], [0, 0, 1, 1], [], []>} : vector<8x256xbf16>, vector<256x512xbf16>, vector<8x512xf32> -> vector<8x512xf32>
    %835 = arith.addf %834, %12 : vector<8x512xf32>
    %836 = vector.extract_strided_slice %835 {offsets = [0, 0], sizes = [8, 128], strides = [1, 1]} : vector<8x512xf32> to vector<8x128xf32>
    %837 = arith.negf %836 : vector<8x128xf32>
    %838 = math.exp %837 : vector<8x128xf32>
    %cst_175 = arith.constant 1.000000e+00 : f32
    %839 = vector.broadcast %cst_175 : f32 to vector<8x128xf32>
    %840 = arith.addf %839, %838 : vector<8x128xf32>
    %841 = arith.divf %839, %840 : vector<8x128xf32>
    %842 = vector.extract_strided_slice %835 {offsets = [0, 128], sizes = [8, 128], strides = [1, 1]} : vector<8x512xf32> to vector<8x128xf32>
    %843 = arith.negf %842 : vector<8x128xf32>
    %844 = math.exp %843 : vector<8x128xf32>
    %cst_176 = arith.constant 1.000000e+00 : f32
    %845 = vector.broadcast %cst_176 : f32 to vector<8x128xf32>
    %846 = arith.addf %845, %844 : vector<8x128xf32>
    %847 = arith.divf %845, %846 : vector<8x128xf32>
    %848 = vector.extract_strided_slice %835 {offsets = [0, 256], sizes = [8, 128], strides = [1, 1]} : vector<8x512xf32> to vector<8x128xf32>
    %849 = vector.extract_strided_slice %835 {offsets = [0, 384], sizes = [8, 128], strides = [1, 1]} : vector<8x512xf32> to vector<8x128xf32>
    %850 = arith.mulf %841, %849 : vector<8x128xf32>
    %851 = arith.addf %848, %850 : vector<8x128xf32>
    %852 = math.tanh %851 : vector<8x128xf32>
    %cst_177 = arith.constant 1.000000e+00 : f32
    %853 = vector.broadcast %cst_177 : f32 to vector<8x128xf32>
    %854 = arith.subf %853, %847 : vector<8x128xf32>
    %855 = arith.mulf %854, %852 : vector<8x128xf32>
    %856 = arith.mulf %847, %791 : vector<8x128xf32>
    %857 = arith.addf %855, %856 : vector<8x128xf32>
    %858 = tpu.concatenate %857, %817 in 1 : vector<8x128xf32>, vector<8x128xf32> -> vector<8x256xf32>
    %859 = arith.truncf %858 : vector<8x256xf32> to vector<8x256xbf16>
    %cst_178 = arith.constant dense<0.000000e+00> : vector<8x512xf32>
    %860 = tpu.matmul %859, %6, %cst_178 {dimension_numbers = #tpu.dot_dimension_numbers<[1], [0], [0], [1], [0, 0, 1, 1], [], []>} : vector<8x256xbf16>, vector<256x512xbf16>, vector<8x512xf32> -> vector<8x512xf32>
    %861 = arith.addf %860, %15 : vector<8x512xf32>
    %862 = vector.extract_strided_slice %861 {offsets = [0, 0], sizes = [8, 128], strides = [1, 1]} : vector<8x512xf32> to vector<8x128xf32>
    %863 = arith.negf %862 : vector<8x128xf32>
    %864 = math.exp %863 : vector<8x128xf32>
    %cst_179 = arith.constant 1.000000e+00 : f32
    %865 = vector.broadcast %cst_179 : f32 to vector<8x128xf32>
    %866 = arith.addf %865, %864 : vector<8x128xf32>
    %867 = arith.divf %865, %866 : vector<8x128xf32>
    %868 = vector.extract_strided_slice %861 {offsets = [0, 128], sizes = [8, 128], strides = [1, 1]} : vector<8x512xf32> to vector<8x128xf32>
    %869 = arith.negf %868 : vector<8x128xf32>
    %870 = math.exp %869 : vector<8x128xf32>
    %cst_180 = arith.constant 1.000000e+00 : f32
    %871 = vector.broadcast %cst_180 : f32 to vector<8x128xf32>
    %872 = arith.addf %871, %870 : vector<8x128xf32>
    %873 = arith.divf %871, %872 : vector<8x128xf32>
    %874 = vector.extract_strided_slice %861 {offsets = [0, 256], sizes = [8, 128], strides = [1, 1]} : vector<8x512xf32> to vector<8x128xf32>
    %875 = vector.extract_strided_slice %861 {offsets = [0, 384], sizes = [8, 128], strides = [1, 1]} : vector<8x512xf32> to vector<8x128xf32>
    %876 = arith.mulf %867, %875 : vector<8x128xf32>
    %877 = arith.addf %874, %876 : vector<8x128xf32>
    %878 = math.tanh %877 : vector<8x128xf32>
    %cst_181 = arith.constant 1.000000e+00 : f32
    %879 = vector.broadcast %cst_181 : f32 to vector<8x128xf32>
    %880 = arith.subf %879, %873 : vector<8x128xf32>
    %881 = arith.mulf %880, %878 : vector<8x128xf32>
    %882 = arith.mulf %873, %817 : vector<8x128xf32>
    %883 = arith.addf %881, %882 : vector<8x128xf32>
    %884 = arith.mulf %883, %27 : vector<8x128xf32>
    %cst_182 = arith.constant dense<0.000000e+00> : vector<8xf32>
    %885 = vector.multi_reduction <add>, %884, %cst_182 [1] : vector<8x128xf32> to vector<8xf32>
    %886 = vector.shape_cast %885 : vector<8xf32> to vector<8x1xf32>
    %887 = arith.addf %886, %30 : vector<8x1xf32>
    %cst_183 = arith.constant 0.000000e+00 : f32
    %888 = vector.broadcast %cst_183 : f32 to vector<8x122xf32>
    %889 = tpu.concatenate %557, %623, %689, %755, %821, %887, %888 in 1 : vector<8x1xf32>, vector<8x1xf32>, vector<8x1xf32>, vector<8x1xf32>, vector<8x1xf32>, vector<8x1xf32>, vector<8x122xf32> -> vector<8x128xf32>
    %c0_184 = arith.constant 0 : index
    %c0_185 = arith.constant 0 : index
    %890 = vector.load %arg11[%c0_184, %c0_185] : memref<8x128xf32, #tpu.memory_space<vmem>>, vector<8x128xf32>
    tpu.vector_store %arg11[%c0_184, %c0_185], %889 {strides = array<i32>} : memref<8x128xf32, #tpu.memory_space<vmem>>, vector<8x128xf32>,
    return
  }
}

</mosaic_0001>

<llo_original>
// kernel: tpu_custom_call.1
$region0: #{tpu_custom_call.1}
  #allocation0 [shape = 'u32[]', space=smem, size = 0x4, offset = 0x4, fixed_abs, tag = 'smem constant byte address 0x4 - core index']
  #allocation1 [shape = 'u32[72,128]{1,0:T(1,128)}', space=vmem, size = 0x9000, scoped, tag = 'internal scratch']
  %s0 = inlined_call_operand.vmem [shape: f32[64,4], index: 0, kind: input, shape index: {}]
  %s1 = inlined_call_operand.vmem [shape: f32[6,8,1], index: 1, kind: input, shape index: {}]
  %s2 = inlined_call_operand.vmem [shape: s32[6], index: 2, kind: input, shape index: {}]
  %s3 = inlined_call_operand.hbm [shape: bf16[3,256,512], index: 3, kind: input, shape index: {}]
  %s4 = inlined_call_operand.vmem [shape: f32[3,512], index: 4, kind: input, shape index: {}]
  %s5 = inlined_call_operand.hbm [shape: bf16[128,384], index: 5, kind: input, shape index: {}]
  %s6 = inlined_call_operand.vmem [shape: bf16[32,384], index: 6, kind: input, shape index: {}]
  %s7 = inlined_call_operand.vmem [shape: f32[2,384], index: 7, kind: input, shape index: {}]
  %s8 = inlined_call_operand.vmem [shape: bf16[4,32], index: 8, kind: input, shape index: {}]
  %s9 = inlined_call_operand.vmem [shape: f32[1,32], index: 9, kind: input, shape index: {}]
  %s10 = inlined_call_operand.vmem [shape: f32[4,128], index: 10, kind: input, shape index: {}]
  %s11 = inlined_call_operand.hbm [shape: f32[8,128], index: 11, kind: output, shape index: {}]
  %s12 = sld [smem:[#allocation0]]
  $region66: #{tpu_custom_call.1} parent=0
    _
  %s14 = ssub.s32 1, %s12
  %s15 = scalar_select 0, %s14, %s12
  $region1: #{tpu_custom_call.1} parent=0
    #allocation2 [shape = 'u8[512]{0}', space=smem, size = 0x200, scoped, tag = 'input window, operand 2, single buffered']
    #allocation3 [shape = 's32[1]{0}', space=sflag, size = 0x4, scoped, tag = 'scoped memory for tpu_custom_call.1']
    #allocation4 [shape = 's32[1]{0}', space=sflag, size = 0x4, scoped, tag = 'scoped memory for tpu_custom_call.1']
    #allocation5 [shape = 's32[1]{0}', space=sflag, size = 0x4, scoped, tag = 'scoped memory for tpu_custom_call.1']
    #allocation6 [shape = 'u8[786432]{0}', space=vmem, size = 0xc0000, scoped, tag = 'input window, operand 3, single buffered']
    #allocation7 [shape = 'u8[98304]{0}', space=vmem, size = 0x18000, scoped, tag = 'input window, operand 5, single buffered']
    #allocation8 [shape = 's32[1]{0}', space=sflag, size = 0x4, scoped, tag = 'scoped memory for tpu_custom_call.1']
    #allocation9 [shape = 'u8[4096]{0}', space=vmem, size = 0x1000, scoped, tag = 'output window, operand 0, single buffered']
    %16 = vsyncpa [#allocation5], 0
    %17 = vsyncpa [#allocation3], 0
    %18 = vsyncpa [#allocation8], 0
    %19 = vsyncpa [#allocation4], 0
    // Predicated region
    $region2: #{tpu_custom_call.1} parent=1 // pred_check
      _
    $region3: #{tpu_custom_call.1} parent=1 // pred_check_branch
      %21 = sbr.rel (0) target = $region5
    $region4: #{tpu_custom_call.1} parent=1 // pred_region
      _
    $region5: #{tpu_custom_call.1} parent=1 // pred_fallthru
      _
    // Predicated region
    $region6: #{tpu_custom_call.1} parent=1 // pred_check
      _
    $region7: #{tpu_custom_call.1} parent=1 // pred_check_branch
      %23 = sbr.rel (0) target = $region9
    $region8: #{tpu_custom_call.1} parent=1 // pred_region
      _
    $region9: #{tpu_custom_call.1} parent=1 // pred_fallthru
      _
    // Predicated region
    $region10: #{tpu_custom_call.1} parent=1 // pred_check
      _
    $region11: #{tpu_custom_call.1} parent=1 // pred_check_branch
      %25 = sbr.rel (0) target = $region13
    $region12: #{tpu_custom_call.1} parent=1 // pred_region
      %27 = vsyncadd [#allocation5], 0
      %s29 = sshll.u32 %s2, 4
      %s30 = int_to_ptr.vmem [resolvable:$true] %s29
      %32 = dma.vmem_to_smem %s30, 16, [#allocation2], [#allocation5]
    $region13: #{tpu_custom_call.1} parent=1 // pred_fallthru
      _
    // Predicated region
    $region14: #{tpu_custom_call.1} parent=1 // pred_check
      _
    $region15: #{tpu_custom_call.1} parent=1 // pred_check_branch
      %34 = sbr.rel (0) target = $region17
    $region16: #{tpu_custom_call.1} parent=1 // pred_region
      %36 = vsyncadd [#allocation3], 0
      %s37 = sshll.u32 %s3, 4
      %s38 = int_to_ptr.hbm [resolvable:$true] %s37
      %s39 = sshll.u32 [#allocation6], 4
      %s40 = int_to_ptr.vmem [resolvable:$true] %s39
      %45 = dma.hbm_to_vmem [thread:$0]  %s38, 24576, %s40, [#allocation3], 256, 256, 16
    $region17: #{tpu_custom_call.1} parent=1 // pred_fallthru
      _
    // Predicated region
    $region18: #{tpu_custom_call.1} parent=1 // pred_check
      _
    $region19: #{tpu_custom_call.1} parent=1 // pred_check_branch
      %47 = sbr.rel (0) target = $region21
    $region20: #{tpu_custom_call.1} parent=1 // pred_region
      _
    $region21: #{tpu_custom_call.1} parent=1 // pred_fallthru
      _
    // Predicated region
    $region22: #{tpu_custom_call.1} parent=1 // pred_check
      _
    $region23: #{tpu_custom_call.1} parent=1 // pred_check_branch
      %49 = sbr.rel (0) target = $region25
    $region24: #{tpu_custom_call.1} parent=1 // pred_region
      %51 = vsyncadd [#allocation8], 0
      %s52 = sshll.u32 %s5, 4
      %s53 = int_to_ptr.hbm [resolvable:$true] %s52
      %s54 = sshll.u32 [#allocation7], 4
      %s55 = int_to_ptr.vmem [resolvable:$true] %s54
      %60 = dma.hbm_to_vmem [thread:$0]  %s53, 3072, %s55, [#allocation8], 192, 192, 12
    $region25: #{tpu_custom_call.1} parent=1 // pred_fallthru
      _
    // Predicated region
    $region26: #{tpu_custom_call.1} parent=1 // pred_check
      _
    $region27: #{tpu_custom_call.1} parent=1 // pred_check_branch
      %62 = sbr.rel (0) target = $region29
    $region28: #{tpu_custom_call.1} parent=1 // pred_region
      _
    $region29: #{tpu_custom_call.1} parent=1 // pred_fallthru
      _
    // Predicated region
    $region30: #{tpu_custom_call.1} parent=1 // pred_check
      _
    $region31: #{tpu_custom_call.1} parent=1 // pred_check_branch
      %64 = sbr.rel (0) target = $region33
    $region32: #{tpu_custom_call.1} parent=1 // pred_region
      _
    $region33: #{tpu_custom_call.1} parent=1 // pred_fallthru
      _
    // Predicated region
    $region34: #{tpu_custom_call.1} parent=1 // pred_check
      _
    $region35: #{tpu_custom_call.1} parent=1 // pred_check_branch
      %66 = sbr.rel (0) target = $region37
    $region36: #{tpu_custom_call.1} parent=1 // pred_region
      _
    $region37: #{tpu_custom_call.1} parent=1 // pred_fallthru
      _
    // Predicated region
    $region38: #{tpu_custom_call.1} parent=1 // pred_check
      _
    $region39: #{tpu_custom_call.1} parent=1 // pred_check_branch
      %68 = sbr.rel (0) target = $region41
    $region40: #{tpu_custom_call.1} parent=1 // pred_region
      _
    $region41: #{tpu_custom_call.1} parent=1 // pred_fallthru
      _
    // Predicated region
    $region42: #{tpu_custom_call.1} parent=1 // pred_check
      _
    $region43: #{tpu_custom_call.1} parent=1 // pred_check_branch
      %70 = sbr.rel (0) target = $region45
    $region44: #{tpu_custom_call.1} parent=1 // pred_region
      _
    $region45: #{tpu_custom_call.1} parent=1 // pred_fallthru
      _
    // Predicated region
    $region46: #{tpu_custom_call.1} parent=1 // pred_check
      _
    $region47: #{tpu_custom_call.1} parent=1 // pred_check_branch
      %72 = sbr.rel (0) target = $region49
    $region48: #{tpu_custom_call.1} parent=1 // pred_region
      %74 = dma.done [#allocation5], 16
    $region49: #{tpu_custom_call.1} parent=1 // pred_fallthru
      _
    // Predicated region
    $region50: #{tpu_custom_call.1} parent=1 // pred_check
      _
    $region51: #{tpu_custom_call.1} parent=1 // pred_check_branch
      %76 = sbr.rel (0) target = $region53
    $region52: #{tpu_custom_call.1} parent=1 // pred_region
      %78 = dma.done [#allocation3], 24576
    $region53: #{tpu_custom_call.1} parent=1 // pred_fallthru
      _
    // Predicated region
    $region54: #{tpu_custom_call.1} parent=1 // pred_check
      _
    $region55: #{tpu_custom_call.1} parent=1 // pred_check_branch
      %80 = sbr.rel (0) target = $region57
    $region56: #{tpu_custom_call.1} parent=1 // pred_region
      %82 = dma.done [#allocation8], 3072
    $region57: #{tpu_custom_call.1} parent=1 // pred_fallthru
      _
    %83 = sfence
    %v85 = vld [vmem:[#allocation7] sm:$0xff]
    %v86 = vld [vmem:[#allocation7 + $0x8] sm:$0xf]
    %v87 = vld [vmem:[#allocation7 + $0xc] sm:$0xff]
    %v88 = vld [vmem:[#allocation7 + $0x14] sm:$0xf]
    %v89 = vld [vmem:[#allocation7 + $0x18] sm:$0xff]
    %v90 = vld [vmem:[#allocation7 + $0x20] sm:$0xf]
    %v91 = vld [vmem:[#allocation7 + $0x24] sm:$0xff]
    %v92 = vld [vmem:[#allocation7 + $0x2c] sm:$0xf]
    %v93 = vld [vmem:[#allocation7 + $0x30] sm:$0xff]
    %v94 = vld [vmem:[#allocation7 + $0x38] sm:$0xf]
    %v95 = vld [vmem:[#allocation7 + $0x3c] sm:$0xff]
    %v96 = vld [vmem:[#allocation7 + $0x44] sm:$0xf]
    %v97 = vld [vmem:[#allocation7 + $0x48] sm:$0xff]
    %v98 = vld [vmem:[#allocation7 + $0x50] sm:$0xf]
    %v99 = vld [vmem:[#allocation7 + $0x54] sm:$0xff]
    %v100 = vld [vmem:[#allocation7 + $0x5c] sm:$0xf]
    %v101 = vld [vmem:[#allocation7 + $0x60] sm:$0xff]
    %v102 = vld [vmem:[#allocation7 + $0x68] sm:$0xf]
    %v103 = vld [vmem:[#allocation7 + $0x6c] sm:$0xff]
    %v104 = vld [vmem:[#allocation7 + $0x74] sm:$0xf]
    %v105 = vld [vmem:[#allocation7 + $0x78] sm:$0xff]
    %v106 = vld [vmem:[#allocation7 + $0x80] sm:$0xf]
    %v107 = vld [vmem:[#allocation7 + $0x84] sm:$0xff]
    %v108 = vld [vmem:[#allocation7 + $0x8c] sm:$0xf]
    %v109 = vld [vmem:[#allocation7 + $0x90] sm:$0xff]
    %v110 = vld [vmem:[#allocation7 + $0x98] sm:$0xf]
    %v111 = vld [vmem:[#allocation7 + $0x9c] sm:$0xff]
    %v112 = vld [vmem:[#allocation7 + $0xa4] sm:$0xf]
    %v113 = vld [vmem:[#allocation7 + $0xa8] sm:$0xff]
    %v114 = vld [vmem:[#allocation7 + $0xb0] sm:$0xf]
    %v115 = vld [vmem:[#allocation7 + $0xb4] sm:$0xff]
    %v116 = vld [vmem:[#allocation7 + $0xbc] sm:$0xf]
    %v117 = vld [vmem:[#allocation6] sm:$0xff]
    %v118 = vld [vmem:[#allocation6 + $0x8] sm:$0xff]
    %v119 = vld [vmem:[#allocation6 + $0x10] sm:$0xff]
    %v120 = vld [vmem:[#allocation6 + $0x18] sm:$0xff]
    %v121 = vld [vmem:[#allocation6 + $0x20] sm:$0xff]
    %v122 = vld [vmem:[#allocation6 + $0x28] sm:$0xff]
    %v123 = vld [vmem:[#allocation6 + $0x30] sm:$0xff]
    %v124 = vld [vmem:[#allocation6 + $0x38] sm:$0xff]
    %v125 = vld [vmem:[#allocation6 + $0x40] sm:$0xff]
    %v126 = vld [vmem:[#allocation6 + $0x48] sm:$0xff]
    %v127 = vld [vmem:[#allocation6 + $0x50] sm:$0xff]
    %v128 = vld [vmem:[#allocation6 + $0x58] sm:$0xff]
    %v129 = vld [vmem:[#allocation6 + $0x60] sm:$0xff]
    %v130 = vld [vmem:[#allocation6 + $0x68] sm:$0xff]
    %v131 = vld [vmem:[#allocation6 + $0x70] sm:$0xff]
    %v132 = vld [vmem:[#allocation6 + $0x78] sm:$0xff]
    %v133 = vld [vmem:[#allocation6 + $0x80] sm:$0xff]
    %v134 = vld [vmem:[#allocation6 + $0x88] sm:$0xff]
    %v135 = vld [vmem:[#allocation6 + $0x90] sm:$0xff]
    %v136 = vld [vmem:[#allocation6 + $0x98] sm:$0xff]
    %v137 = vld [vmem:[#allocation6 + $0xa0] sm:$0xff]
    %v138 = vld [vmem:[#allocation6 + $0xa8] sm:$0xff]
    %v139 = vld [vmem:[#allocation6 + $0xb0] sm:$0xff]
    %v140 = vld [vmem:[#allocation6 + $0xb8] sm:$0xff]
    %v141 = vld [vmem:[#allocation6 + $0xc0] sm:$0xff]
    %v142 = vld [vmem:[#allocation6 + $0xc8] sm:$0xff]
    %v143 = vld [vmem:[#allocation6 + $0xd0] sm:$0xff]
    %v144 = vld [vmem:[#allocation6 + $0xd8] sm:$0xff]
    %v145 = vld [vmem:[#allocation6 + $0xe0] sm:$0xff]
    %v146 = vld [vmem:[#allocation6 + $0xe8] sm:$0xff]
    %v147 = vld [vmem:[#allocation6 + $0xf0] sm:$0xff]
    %v148 = vld [vmem:[#allocation6 + $0xf8] sm:$0xff]
    %v149 = vld [vmem:[#allocation6 + $0x100] sm:$0xff]
    %v150 = vld [vmem:[#allocation6 + $0x108] sm:$0xff]
    %v151 = vld [vmem:[#allocation6 + $0x110] sm:$0xff]
    %v152 = vld [vmem:[#allocation6 + $0x118] sm:$0xff]
    %v153 = vld [vmem:[#allocation6 + $0x120] sm:$0xff]
    %v154 = vld [vmem:[#allocation6 + $0x128] sm:$0xff]
    %v155 = vld [vmem:[#allocation6 + $0x130] sm:$0xff]
    %v156 = vld [vmem:[#allocation6 + $0x138] sm:$0xff]
    %v157 = vld [vmem:[#allocation6 + $0x140] sm:$0xff]
    %v158 = vld [vmem:[#allocation6 + $0x148] sm:$0xff]
    %v159 = vld [vmem:[#allocation6 + $0x150] sm:$0xff]
    %v160 = vld [vmem:[#allocation6 + $0x158] sm:$0xff]
    %v161 = vld [vmem:[#allocation6 + $0x160] sm:$0xff]
    %v162 = vld [vmem:[#allocation6 + $0x168] sm:$0xff]
    %v163 = vld [vmem:[#allocation6 + $0x170] sm:$0xff]
    %v164 = vld [vmem:[#allocation6 + $0x178] sm:$0xff]
    %v165 = vld [vmem:[#allocation6 + $0x180] sm:$0xff]
    %v166 = vld [vmem:[#allocation6 + $0x188] sm:$0xff]
    %v167 = vld [vmem:[#allocation6 + $0x190] sm:$0xff]
    %v168 = vld [vmem:[#allocation6 + $0x198] sm:$0xff]
    %v169 = vld [vmem:[#allocation6 + $0x1a0] sm:$0xff]
    %v170 = vld [vmem:[#allocation6 + $0x1a8] sm:$0xff]
    %v171 = vld [vmem:[#allocation6 + $0x1b0] sm:$0xff]
    %v172 = vld [vmem:[#allocation6 + $0x1b8] sm:$0xff]
    %v173 = vld [vmem:[#allocation6 + $0x1c0] sm:$0xff]
    %v174 = vld [vmem:[#allocation6 + $0x1c8] sm:$0xff]
    %v175 = vld [vmem:[#allocation6 + $0x1d0] sm:$0xff]
    %v176 = vld [vmem:[#allocation6 + $0x1d8] sm:$0xff]
    %v177 = vld [vmem:[#allocation6 + $0x1e0] sm:$0xff]
    %v178 = vld [vmem:[#allocation6 + $0x1e8] sm:$0xff]
    %v179 = vld [vmem:[#allocation6 + $0x1f0] sm:$0xff]
    %v180 = vld [vmem:[#allocation6 + $0x1f8] sm:$0xff]
    %s181 = scalar_lea.vmem [#allocation6], 512
    %v182 = vld [vmem:[%s181] sm:$0xff]
    %v183 = vld [vmem:[%s181 + $0x8] sm:$0xff]
    %v184 = vld [vmem:[%s181 + $0x10] sm:$0xff]
    %v185 = vld [vmem:[%s181 + $0x18] sm:$0xff]
    %v186 = vld [vmem:[%s181 + $0x20] sm:$0xff]
    %v187 = vld [vmem:[%s181 + $0x28] sm:$0xff]
    %v188 = vld [vmem:[%s181 + $0x30] sm:$0xff]
    %v189 = vld [vmem:[%s181 + $0x38] sm:$0xff]
    %v190 = vld [vmem:[%s181 + $0x40] sm:$0xff]
    %v191 = vld [vmem:[%s181 + $0x48] sm:$0xff]
    %v192 = vld [vmem:[%s181 + $0x50] sm:$0xff]
    %v193 = vld [vmem:[%s181 + $0x58] sm:$0xff]
    %v194 = vld [vmem:[%s181 + $0x60] sm:$0xff]
    %v195 = vld [vmem:[%s181 + $0x68] sm:$0xff]
    %v196 = vld [vmem:[%s181 + $0x70] sm:$0xff]
    %v197 = vld [vmem:[%s181 + $0x78] sm:$0xff]
    %v198 = vld [vmem:[%s181 + $0x80] sm:$0xff]
    %v199 = vld [vmem:[%s181 + $0x88] sm:$0xff]
    %v200 = vld [vmem:[%s181 + $0x90] sm:$0xff]
    %v201 = vld [vmem:[%s181 + $0x98] sm:$0xff]
    %v202 = vld [vmem:[%s181 + $0xa0] sm:$0xff]
    %v203 = vld [vmem:[%s181 + $0xa8] sm:$0xff]
    %v204 = vld [vmem:[%s181 + $0xb0] sm:$0xff]
    %v205 = vld [vmem:[%s181 + $0xb8] sm:$0xff]
    %v206 = vld [vmem:[%s181 + $0xc0] sm:$0xff]
    %v207 = vld [vmem:[%s181 + $0xc8] sm:$0xff]
    %v208 = vld [vmem:[%s181 + $0xd0] sm:$0xff]
    %v209 = vld [vmem:[%s181 + $0xd8] sm:$0xff]
    %v210 = vld [vmem:[%s181 + $0xe0] sm:$0xff]
    %v211 = vld [vmem:[%s181 + $0xe8] sm:$0xff]
    %v212 = vld [vmem:[%s181 + $0xf0] sm:$0xff]
    %v213 = vld [vmem:[%s181 + $0xf8] sm:$0xff]
    %v214 = vld [vmem:[%s181 + $0x100] sm:$0xff]
    %v215 = vld [vmem:[%s181 + $0x108] sm:$0xff]
    %v216 = vld [vmem:[%s181 + $0x110] sm:$0xff]
    %v217 = vld [vmem:[%s181 + $0x118] sm:$0xff]
    %v218 = vld [vmem:[%s181 + $0x120] sm:$0xff]
    %v219 = vld [vmem:[%s181 + $0x128] sm:$0xff]
    %v220 = vld [vmem:[%s181 + $0x130] sm:$0xff]
    %v221 = vld [vmem:[%s181 + $0x138] sm:$0xff]
    %v222 = vld [vmem:[%s181 + $0x140] sm:$0xff]
    %v223 = vld [vmem:[%s181 + $0x148] sm:$0xff]
    %v224 = vld [vmem:[%s181 + $0x150] sm:$0xff]
    %v225 = vld [vmem:[%s181 + $0x158] sm:$0xff]
    %v226 = vld [vmem:[%s181 + $0x160] sm:$0xff]
    %v227 = vld [vmem:[%s181 + $0x168] sm:$0xff]
    %v228 = vld [vmem:[%s181 + $0x170] sm:$0xff]
    %v229 = vld [vmem:[%s181 + $0x178] sm:$0xff]
    %v230 = vld [vmem:[%s181 + $0x180] sm:$0xff]
    %v231 = vld [vmem:[%s181 + $0x188] sm:$0xff]
    %v232 = vld [vmem:[%s181 + $0x190] sm:$0xff]
    %v233 = vld [vmem:[%s181 + $0x198] sm:$0xff]
    %v234 = vld [vmem:[%s181 + $0x1a0] sm:$0xff]
    %v235 = vld [vmem:[%s181 + $0x1a8] sm:$0xff]
    %v236 = vld [vmem:[%s181 + $0x1b0] sm:$0xff]
    %v237 = vld [vmem:[%s181 + $0x1b8] sm:$0xff]
    %v238 = vld [vmem:[%s181 + $0x1c0] sm:$0xff]
    %v239 = vld [vmem:[%s181 + $0x1c8] sm:$0xff]
    %v240 = vld [vmem:[%s181 + $0x1d0] sm:$0xff]
    %v241 = vld [vmem:[%s181 + $0x1d8] sm:$0xff]
    %v242 = vld [vmem:[%s181 + $0x1e0] sm:$0xff]
    %v243 = vld [vmem:[%s181 + $0x1e8] sm:$0xff]
    %v244 = vld [vmem:[%s181 + $0x1f0] sm:$0xff]
    %v245 = vld [vmem:[%s181 + $0x1f8] sm:$0xff]
    %s246 = scalar_lea.vmem [#allocation6], 1024
    %v247 = vld [vmem:[%s246] sm:$0xff]
    %v248 = vld [vmem:[%s246 + $0x8] sm:$0xff]
    %v249 = vld [vmem:[%s246 + $0x10] sm:$0xff]
    %v250 = vld [vmem:[%s246 + $0x18] sm:$0xff]
    %v251 = vld [vmem:[%s246 + $0x20] sm:$0xff]
    %v252 = vld [vmem:[%s246 + $0x28] sm:$0xff]
    %v253 = vld [vmem:[%s246 + $0x30] sm:$0xff]
    %v254 = vld [vmem:[%s246 + $0x38] sm:$0xff]
    %v255 = vld [vmem:[%s246 + $0x40] sm:$0xff]
    %v256 = vld [vmem:[%s246 + $0x48] sm:$0xff]
    %v257 = vld [vmem:[%s246 + $0x50] sm:$0xff]
    %v258 = vld [vmem:[%s246 + $0x58] sm:$0xff]
    %v259 = vld [vmem:[%s246 + $0x60] sm:$0xff]
    %v260 = vld [vmem:[%s246 + $0x68] sm:$0xff]
    %v261 = vld [vmem:[%s246 + $0x70] sm:$0xff]
    %v262 = vld [vmem:[%s246 + $0x78] sm:$0xff]
    %v263 = vld [vmem:[%s246 + $0x80] sm:$0xff]
    %v264 = vld [vmem:[%s246 + $0x88] sm:$0xff]
    %v265 = vld [vmem:[%s246 + $0x90] sm:$0xff]
    %v266 = vld [vmem:[%s246 + $0x98] sm:$0xff]
    %v267 = vld [vmem:[%s246 + $0xa0] sm:$0xff]
    %v268 = vld [vmem:[%s246 + $0xa8] sm:$0xff]
    %v269 = vld [vmem:[%s246 + $0xb0] sm:$0xff]
    %v270 = vld [vmem:[%s246 + $0xb8] sm:$0xff]
    %v271 = vld [vmem:[%s246 + $0xc0] sm:$0xff]
    %v272 = vld [vmem:[%s246 + $0xc8] sm:$0xff]
    %v273 = vld [vmem:[%s246 + $0xd0] sm:$0xff]
    %v274 = vld [vmem:[%s246 + $0xd8] sm:$0xff]
    %v275 = vld [vmem:[%s246 + $0xe0] sm:$0xff]
    %v276 = vld [vmem:[%s246 + $0xe8] sm:$0xff]
    %v277 = vld [vmem:[%s246 + $0xf0] sm:$0xff]
    %v278 = vld [vmem:[%s246 + $0xf8] sm:$0xff]
    %v279 = vld [vmem:[%s246 + $0x100] sm:$0xff]
    %v280 = vld [vmem:[%s246 + $0x108] sm:$0xff]
    %v281 = vld [vmem:[%s246 + $0x110] sm:$0xff]
    %v282 = vld [vmem:[%s246 + $0x118] sm:$0xff]
    %v283 = vld [vmem:[%s246 + $0x120] sm:$0xff]
    %v284 = vld [vmem:[%s246 + $0x128] sm:$0xff]
    %v285 = vld [vmem:[%s246 + $0x130] sm:$0xff]
    %v286 = vld [vmem:[%s246 + $0x138] sm:$0xff]
    %v287 = vld [vmem:[%s246 + $0x140] sm:$0xff]
    %v288 = vld [vmem:[%s246 + $0x148] sm:$0xff]
    %v289 = vld [vmem:[%s246 + $0x150] sm:$0xff]
    %v290 = vld [vmem:[%s246 + $0x158] sm:$0xff]
    %v291 = vld [vmem:[%s246 + $0x160] sm:$0xff]
    %v292 = vld [vmem:[%s246 + $0x168] sm:$0xff]
    %v293 = vld [vmem:[%s246 + $0x170] sm:$0xff]
    %v294 = vld [vmem:[%s246 + $0x178] sm:$0xff]
    %v295 = vld [vmem:[%s246 + $0x180] sm:$0xff]
    %v296 = vld [vmem:[%s246 + $0x188] sm:$0xff]
    %v297 = vld [vmem:[%s246 + $0x190] sm:$0xff]
    %v298 = vld [vmem:[%s246 + $0x198] sm:$0xff]
    %v299 = vld [vmem:[%s246 + $0x1a0] sm:$0xff]
    %v300 = vld [vmem:[%s246 + $0x1a8] sm:$0xff]
    %v301 = vld [vmem:[%s246 + $0x1b0] sm:$0xff]
    %v302 = vld [vmem:[%s246 + $0x1b8] sm:$0xff]
    %v303 = vld [vmem:[%s246 + $0x1c0] sm:$0xff]
    %v304 = vld [vmem:[%s246 + $0x1c8] sm:$0xff]
    %v305 = vld [vmem:[%s246 + $0x1d0] sm:$0xff]
    %v306 = vld [vmem:[%s246 + $0x1d8] sm:$0xff]
    %v307 = vld [vmem:[%s246 + $0x1e0] sm:$0xff]
    %v308 = vld [vmem:[%s246 + $0x1e8] sm:$0xff]
    %v309 = vld [vmem:[%s246 + $0x1f0] sm:$0xff]
    %v310 = vld [vmem:[%s246 + $0x1f8] sm:$0xff]
    %v311 = vld [vmem:[%s4] ss:$4 sm:$0xf]
    %v313 = vperm.slane %v311, 0
    %v314 = vperm.slane %v311, 1
    %v315 = vperm.slane %v311, 2
    %v316 = vperm.slane %v311, 3
    %s321 = scalar_lea.vmem %s4, 1
    %v322 = vld [vmem:[%s321] ss:$4 sm:$0xf]
    %v324 = vperm.slane %v322, 0
    %v325 = vperm.slane %v322, 1
    %v326 = vperm.slane %v322, 2
    %v327 = vperm.slane %v322, 3
    %s332 = scalar_lea.vmem %s4, 2
    %v333 = vld [vmem:[%s332] ss:$4 sm:$0xf]
    %v335 = vperm.slane %v333, 0
    %v336 = vperm.slane %v333, 1
    %v337 = vperm.slane %v333, 2
    %v338 = vperm.slane %v333, 3
    %v343 = vld [vmem:[%s7 + $0x5] sm:$0x1]
    %v344 = vperm.slane %v343, 0
    %v345 = vld [vmem:[%s10] sm:$0x1]
    %v346 = vperm.slane %v345, 0
    %v347 = vld [vmem:[%s10 + $0x1] sm:$0x1]
    %v348 = vperm.slane %v347, 0
    %v349 = vld [vmem:[%s10 + $0x2] sm:$0x1]
    %v350 = vperm.slane %v349, 0
    %v351 = vld [vmem:[%s10 + $0x3] sm:$0x1]
    %v352 = vperm.slane %v351, 0
    %v353 = vld [vmem:[%s0] sm:$0xff]
    %v354 = vld [vmem:[%s0 + $0x8] sm:$0xff]
    %v355 = vld [vmem:[%s0 + $0x10] sm:$0xff]
    %v356 = vld [vmem:[%s0 + $0x18] sm:$0xff]
    %v357 = vld [vmem:[%s0 + $0x20] sm:$0xff]
    %v358 = vld [vmem:[%s0 + $0x28] sm:$0xff]
    %v359 = vld [vmem:[%s0 + $0x30] sm:$0xff]
    %v360 = vld [vmem:[%s0 + $0x38] sm:$0xff]
    %v361 = vpack.c.bf16 %v354, %v353
    %v362 = vpack.c.bf16 %v356, %v355
    %v363 = vpack.c.bf16 %v358, %v357
    %v364 = vpack.c.bf16 %v360, %v359
    %v365 = vld [vmem:[%s8] sm:$0x3]
    %v366 = vld [vmem:[%s9] sm:$0x1]
    %v368 = vperm.slane %v366, 0
    %vm370 = vcmask 31744
    %v372 = vsel %vm370, %v361, 0
    %v375 = vsel %vm370, %v362, 0
    %v378 = vsel %vm370, %v363, 0
    %v381 = vsel %vm370, %v364, 0
    %vm383 = vcmask 1041408
    %v385 = vsel %vm383, %v365, 0
    %387 = vmatpush.bf16.msra.mxu0 0
    %388 = vmatpush.bf16.msra.mxu0 0
    %389 = vmatpush.bf16.msra.mxu0 0
    %390 = vmatpush.bf16.msra.mxu0 0
    %391 = vmatpush.bf16.msra.mxu0 0
    %392 = vmatpush.bf16.msra.mxu0 0
    %393 = vmatpush.bf16.msra.mxu0 0
    %394 = vmatpush.bf16.msra.mxu0 %v385
    %395 = vmatmul.bf16.gmra.mxu0 %v372
    %v396 = vpop.f32.mrf.mxu0
    %v397 = vadd.f32 %v368, %v396
    %v398 = vpop.f32.mrf.mxu0
    %v399 = vadd.f32 %v368, %v398
    %400 = vmatmul.bf16.gmra.mxu0 %v375
    %v401 = vpop.f32.mrf.mxu0
    %v402 = vadd.f32 %v368, %v401
    %v403 = vpop.f32.mrf.mxu0
    %v404 = vadd.f32 %v368, %v403
    %405 = vmatmul.bf16.gmra.mxu0 %v378
    %v406 = vpop.f32.mrf.mxu0
    %v407 = vadd.f32 %v368, %v406
    %v408 = vpop.f32.mrf.mxu0
    %v409 = vadd.f32 %v368, %v408
    %410 = vmatmul.bf16.gmra.mxu0 %v381
    %v411 = vpop.f32.mrf.mxu0
    %v412 = vadd.f32 %v368, %v411
    %v413 = vpop.f32.mrf.mxu0
    %v414 = vadd.f32 %v368, %v413
    %415 = vdwg.mxu0
    %v416 = vmax.f32 %v397, 0.0
    %v417 = vmax.f32 %v399, 0.0
    %v418 = vmax.f32 %v402, 0.0
    %v419 = vmax.f32 %v404, 0.0
    %v420 = vmax.f32 %v407, 0.0
    %v421 = vmax.f32 %v409, 0.0
    %v422 = vmax.f32 %v412, 0.0
    %v423 = vmax.f32 %v414, 0.0
    %v424 = vpack.c.bf16 %v417, %v416
    %v425 = vpack.c.bf16 %v419, %v418
    %v426 = vpack.c.bf16 %v421, %v420
    %v427 = vpack.c.bf16 %v423, %v422
    %v428 = vld [vmem:[%s6] sm:$0xff]
    %v429 = vld [vmem:[%s6 + $0x8] sm:$0xf]
    %v430 = vld [vmem:[%s6 + $0xc] sm:$0xff]
    %v431 = vld [vmem:[%s6 + $0x14] sm:$0xf]
    %v432 = vld [vmem:[%s6 + $0x18] sm:$0xff]
    %v433 = vld [vmem:[%s6 + $0x20] sm:$0xf]
    %v434 = vld [vmem:[%s6 + $0x24] sm:$0xff]
    %v435 = vld [vmem:[%s6 + $0x2c] sm:$0xf]
    %v436 = vld [vmem:[%s7] ss:$2 sm:$0x7]
    %v438 = vperm.slane %v436, 0
    %v439 = vperm.slane %v436, 1
    %v440 = vperm.slane %v436, 2
    %v452 = vunpack.c.l.b16 %v428
    %v453 = vunpack.c.h.b16 %v428
    %v454 = vunpack.c.l.b16 %v429
    %v455 = vunpack.c.l.b16 %v430
    %v456 = vunpack.c.h.b16 %v430
    %v457 = vunpack.c.l.b16 %v431
    %v458 = vunpack.c.l.b16 %v432
    %v459 = vunpack.c.h.b16 %v432
    %v460 = vunpack.c.l.b16 %v433
    %v461 = vunpack.c.l.b16 %v434
    %v462 = vunpack.c.h.b16 %v434
    %v463 = vunpack.c.l.b16 %v435
    %v464 = vpack.c.b16 %v455, %v452
    %v465 = vpack.c.b16 %v456, %v453
    %v466 = vpack.c.b16 %v457, %v454
    %v467 = vpack.c.b16 %v461, %v458
    %v468 = vpack.c.b16 %v462, %v459
    %v469 = vpack.c.b16 %v463, %v460
    %vm476 = vcmask 261120
    %v478 = vsel %vm476, %v424, 0
    %v481 = vsel %vm476, %v425, 0
    %v484 = vsel %vm476, %v426, 0
    %v487 = vsel %vm476, %v427, 0
    %489 = vmatpush.bf16.msra.mxu0 0
    %490 = vmatpush.bf16.msra.mxu0 0
    %491 = vmatpush.bf16.msra.mxu0 0
    %492 = vmatpush.bf16.msra.mxu0 0
    %493 = vmatpush.bf16.msra.mxu0 0
    %494 = vmatpush.bf16.msra.mxu0 0
    %495 = vmatpush.bf16.msra.mxu0 %v467
    %496 = vmatpush.bf16.msra.mxu0 %v464
    %497 = vmatmul.bf16.gmra.mxu0 %v478
    %v498 = vpop.f32.mrf.mxu0
    %v499 = vadd.f32 %v438, %v498
    %v500 = vpop.f32.mrf.mxu0
    %v501 = vadd.f32 %v438, %v500
    %502 = vmatmul.bf16.gmra.mxu0 %v481
    %v503 = vpop.f32.mrf.mxu0
    %v504 = vadd.f32 %v438, %v503
    %v505 = vpop.f32.mrf.mxu0
    %v506 = vadd.f32 %v438, %v505
    %507 = vmatmul.bf16.gmra.mxu0 %v484
    %v508 = vpop.f32.mrf.mxu0
    %v509 = vadd.f32 %v438, %v508
    %v510 = vpop.f32.mrf.mxu0
    %v511 = vadd.f32 %v438, %v510
    %512 = vmatmul.bf16.gmra.mxu0 %v487
    %v513 = vpop.f32.mrf.mxu0
    %v514 = vadd.f32 %v438, %v513
    %v515 = vpop.f32.mrf.mxu0
    %v516 = vadd.f32 %v438, %v515
    %517 = vdwg.mxu0
    %518 = vmatpush.bf16.msra.mxu0 0
    %519 = vmatpush.bf16.msra.mxu0 0
    %520 = vmatpush.bf16.msra.mxu0 0
    %521 = vmatpush.bf16.msra.mxu0 0
    %522 = vmatpush.bf16.msra.mxu0 0
    %523 = vmatpush.bf16.msra.mxu0 0
    %524 = vmatpush.bf16.msra.mxu0 %v468
    %525 = vmatpush.bf16.msra.mxu0 %v465
    %526 = vmatmul.bf16.gmra.mxu0 %v478
    %v527 = vpop.f32.mrf.mxu0
    %v528 = vadd.f32 %v439, %v527
    %v529 = vpop.f32.mrf.mxu0
    %v530 = vadd.f32 %v439, %v529
    %531 = vmatmul.bf16.gmra.mxu0 %v481
    %v532 = vpop.f32.mrf.mxu0
    %v533 = vadd.f32 %v439, %v532
    %v534 = vpop.f32.mrf.mxu0
    %v535 = vadd.f32 %v439, %v534
    %536 = vmatmul.bf16.gmra.mxu0 %v484
    %v537 = vpop.f32.mrf.mxu0
    %v538 = vadd.f32 %v439, %v537
    %v539 = vpop.f32.mrf.mxu0
    %v540 = vadd.f32 %v439, %v539
    %541 = vmatmul.bf16.gmra.mxu0 %v487
    %v542 = vpop.f32.mrf.mxu0
    %v543 = vadd.f32 %v439, %v542
    %v544 = vpop.f32.mrf.mxu0
    %v545 = vadd.f32 %v439, %v544
    %546 = vdwg.mxu0
    %547 = vmatpush.bf16.msra.mxu0 0
    %548 = vmatpush.bf16.msra.mxu0 0
    %549 = vmatpush.bf16.msra.mxu0 0
    %550 = vmatpush.bf16.msra.mxu0 0
    %551 = vmatpush.bf16.msra.mxu0 0
    %552 = vmatpush.bf16.msra.mxu0 0
    %553 = vmatpush.bf16.msra.mxu0 %v469
    %554 = vmatpush.bf16.msra.mxu0 %v466
    %555 = vmatmul.bf16.gmra.mxu0 %v478
    %v556 = vpop.f32.mrf.mxu0
    %v557 = vadd.f32 %v440, %v556
    %v558 = vpop.f32.mrf.mxu0
    %v559 = vadd.f32 %v440, %v558
    %560 = vmatmul.bf16.gmra.mxu0 %v481
    %v561 = vpop.f32.mrf.mxu0
    %v562 = vadd.f32 %v440, %v561
    %v563 = vpop.f32.mrf.mxu0
    %v564 = vadd.f32 %v440, %v563
    %565 = vmatmul.bf16.gmra.mxu0 %v484
    %v566 = vpop.f32.mrf.mxu0
    %v567 = vadd.f32 %v440, %v566
    %v568 = vpop.f32.mrf.mxu0
    %v569 = vadd.f32 %v440, %v568
    %570 = vmatmul.bf16.gmra.mxu0 %v487
    %v571 = vpop.f32.mrf.mxu0
    %v572 = vadd.f32 %v440, %v571
    %v573 = vpop.f32.mrf.mxu0
    %v574 = vadd.f32 %v440, %v573
    %575 = vdwg.mxu0
    %v608 = vunpack.c.l.b16 %v85
    %v609 = vunpack.c.h.b16 %v85
    %v610 = vunpack.c.l.b16 %v86
    %v611 = vunpack.c.l.b16 %v87
    %v612 = vunpack.c.h.b16 %v87
    %v613 = vunpack.c.l.b16 %v88
    %v614 = vunpack.c.l.b16 %v89
    %v615 = vunpack.c.h.b16 %v89
    %v616 = vunpack.c.l.b16 %v90
    %v617 = vunpack.c.l.b16 %v91
    %v618 = vunpack.c.h.b16 %v91
    %v619 = vunpack.c.l.b16 %v92
    %v620 = vunpack.c.l.b16 %v93
    %v621 = vunpack.c.h.b16 %v93
    %v622 = vunpack.c.l.b16 %v94
    %v623 = vunpack.c.l.b16 %v95
    %v624 = vunpack.c.h.b16 %v95
    %v625 = vunpack.c.l.b16 %v96
    %v626 = vunpack.c.l.b16 %v97
    %v627 = vunpack.c.h.b16 %v97
    %v628 = vunpack.c.l.b16 %v98
    %v629 = vunpack.c.l.b16 %v99
    %v630 = vunpack.c.h.b16 %v99
    %v631 = vunpack.c.l.b16 %v100
    %v632 = vunpack.c.l.b16 %v101
    %v633 = vunpack.c.h.b16 %v101
    %v634 = vunpack.c.l.b16 %v102
    %v635 = vunpack.c.l.b16 %v103
    %v636 = vunpack.c.h.b16 %v103
    %v637 = vunpack.c.l.b16 %v104
    %v638 = vunpack.c.l.b16 %v105
    %v639 = vunpack.c.h.b16 %v105
    %v640 = vunpack.c.l.b16 %v106
    %v641 = vunpack.c.l.b16 %v107
    %v642 = vunpack.c.h.b16 %v107
    %v643 = vunpack.c.l.b16 %v108
    %v644 = vunpack.c.l.b16 %v109
    %v645 = vunpack.c.h.b16 %v109
    %v646 = vunpack.c.l.b16 %v110
    %v647 = vunpack.c.l.b16 %v111
    %v648 = vunpack.c.h.b16 %v111
    %v649 = vunpack.c.l.b16 %v112
    %v650 = vunpack.c.l.b16 %v113
    %v651 = vunpack.c.h.b16 %v113
    %v652 = vunpack.c.l.b16 %v114
    %v653 = vunpack.c.l.b16 %v115
    %v654 = vunpack.c.h.b16 %v115
    %v655 = vunpack.c.l.b16 %v116
    %v656 = vpack.c.b16 %v611, %v608
    %v657 = vpack.c.b16 %v612, %v609
    %v658 = vpack.c.b16 %v613, %v610
    %v659 = vpack.c.b16 %v617, %v614
    %v660 = vpack.c.b16 %v618, %v615
    %v661 = vpack.c.b16 %v619, %v616
    %v662 = vpack.c.b16 %v623, %v620
    %v663 = vpack.c.b16 %v624, %v621
    %v664 = vpack.c.b16 %v625, %v622
    %v665 = vpack.c.b16 %v629, %v626
    %v666 = vpack.c.b16 %v630, %v627
    %v667 = vpack.c.b16 %v631, %v628
    %v668 = vpack.c.b16 %v635, %v632
    %v669 = vpack.c.b16 %v636, %v633
    %v670 = vpack.c.b16 %v637, %v634
    %v671 = vpack.c.b16 %v641, %v638
    %v672 = vpack.c.b16 %v642, %v639
    %v673 = vpack.c.b16 %v643, %v640
    %v674 = vpack.c.b16 %v647, %v644
    %v675 = vpack.c.b16 %v648, %v645
    %v676 = vpack.c.b16 %v649, %v646
    %v677 = vpack.c.b16 %v653, %v650
    %v678 = vpack.c.b16 %v654, %v651
    %v679 = vpack.c.b16 %v655, %v652
    %704 = vmatpush.bf16.msra.mxu0 %v677
    %705 = vmatpush.bf16.msra.mxu0 %v674
    %706 = vmatpush.bf16.msra.mxu0 %v671
    %707 = vmatpush.bf16.msra.mxu0 %v668
    %708 = vmatpush.bf16.msra.mxu0 %v665
    %709 = vmatpush.bf16.msra.mxu0 %v662
    %710 = vmatpush.bf16.msra.mxu0 %v659
    %711 = vmatpush.bf16.msra.mxu0 %v656
    %712 = vmatmul.bf16.gmra.mxu0 0
    %v713 = vpop.f32.mrf.mxu0
    %v714 = vadd.f32 0.0, %v713
    %v715 = vpop.f32.mrf.mxu0
    %716 = vdwg.mxu0
    %717 = vmatpush.bf16.msra.mxu0 %v678
    %718 = vmatpush.bf16.msra.mxu0 %v675
    %719 = vmatpush.bf16.msra.mxu0 %v672
    %720 = vmatpush.bf16.msra.mxu0 %v669
    %721 = vmatpush.bf16.msra.mxu0 %v666
    %722 = vmatpush.bf16.msra.mxu0 %v663
    %723 = vmatpush.bf16.msra.mxu0 %v660
    %724 = vmatpush.bf16.msra.mxu0 %v657
    %725 = vmatmul.bf16.gmra.mxu0 0
    %v726 = vpop.f32.mrf.mxu0
    %v727 = vadd.f32 0.0, %v726
    %v728 = vpop.f32.mrf.mxu0
    %729 = vdwg.mxu0
    %730 = vmatpush.bf16.msra.mxu0 %v679
    %731 = vmatpush.bf16.msra.mxu0 %v676
    %732 = vmatpush.bf16.msra.mxu0 %v673
    %733 = vmatpush.bf16.msra.mxu0 %v670
    %734 = vmatpush.bf16.msra.mxu0 %v667
    %735 = vmatpush.bf16.msra.mxu0 %v664
    %736 = vmatpush.bf16.msra.mxu0 %v661
    %737 = vmatpush.bf16.msra.mxu0 %v658
    %738 = vmatmul.bf16.gmra.mxu0 0
    %v739 = vpop.f32.mrf.mxu0
    %v740 = vadd.f32 0.0, %v739
    %v741 = vpop.f32.mrf.mxu0
    %742 = vdwg.mxu0
    %v743 = vadd.f32 %v499, %v714
    %v744 = vxor.u32 %v743, 2147483648
    %v745 = vmul.f32 %v744, 1.442695
    %v746 = vpow.pop %v745
    %v747 = vadd.f32 %v746, 1.0
    %v748 = vrcp.pop %v747
    %v749 = vmul.f32 %v747, %v748
    %v750 = vsub.f32 1.0, %v749
    %v751 = vmul.f32 %v748, %v750
    %v752 = vadd.f32 %v748, %v751
    %vm753 = vweird.f32 %v747
    %vm754 = vweird.f32 %v748
    %vm755 = vmor %vm753, %vm754
    %v756 = vsel %vm755, %v748, %v752
    %v757 = vand.u32 2147483647, %v747
    %vm758 = vcmp.eq.f32.partialorder %v757, 8.507059e+37
    %v759 = vand.u32 %v747, 2147483648
    %v760 = vor.u32 1.1754944e-38, %v759
    %v761 = vsel %vm758, %v760, %v756
    %v762 = vmul.f32 1.0, %v761
    %v763 = vadd.f32 %v528, %v727
    %v764 = vxor.u32 %v763, 2147483648
    %v765 = vmul.f32 %v764, 1.442695
    %v766 = vpow.pop %v765
    %v767 = vadd.f32 %v766, 1.0
    %v768 = vrcp.pop %v767
    %v769 = vmul.f32 %v767, %v768
    %v770 = vsub.f32 1.0, %v769
    %v771 = vmul.f32 %v768, %v770
    %v772 = vadd.f32 %v768, %v771
    %vm773 = vweird.f32 %v767
    %vm774 = vweird.f32 %v768
    %vm775 = vmor %vm773, %vm774
    %v776 = vsel %vm775, %v768, %v772
    %v777 = vand.u32 2147483647, %v767
    %vm778 = vcmp.eq.f32.partialorder %v777, 8.507059e+37
    %v779 = vand.u32 %v767, 2147483648
    %v780 = vor.u32 1.1754944e-38, %v779
    %v781 = vsel %vm778, %v780, %v776
    %v782 = vmul.f32 1.0, %v781
    %v783 = vadd.f32 %v740, %v344
    %v784 = vmul.f32 %v762, %v783
    %v785 = vadd.f32 %v557, %v784
    %v786 = vtanh.pop %v785
    %v787 = vsub.f32 1.0, %v782
    %v788 = vmul.f32 %v787, %v786
    %v789 = vmul.f32 %v782, 0.0
    %v790 = vadd.f32 %v788, %v789
    %v791 = vpack.c.bf16 %v790, %v790
    %v792 = vpack.c.bf16 0.0, 0.0
    %v857 = vunpack.c.l.b16 %v117
    %v858 = vunpack.c.h.b16 %v117
    %v859 = vunpack.c.l.b16 %v118
    %v860 = vunpack.c.h.b16 %v118
    %v861 = vunpack.c.l.b16 %v119
    %v862 = vunpack.c.h.b16 %v119
    %v863 = vunpack.c.l.b16 %v120
    %v864 = vunpack.c.h.b16 %v120
    %v865 = vunpack.c.l.b16 %v121
    %v866 = vunpack.c.h.b16 %v121
    %v867 = vunpack.c.l.b16 %v122
    %v868 = vunpack.c.h.b16 %v122
    %v869 = vunpack.c.l.b16 %v123
    %v870 = vunpack.c.h.b16 %v123
    %v871 = vunpack.c.l.b16 %v124
    %v872 = vunpack.c.h.b16 %v124
    %v873 = vunpack.c.l.b16 %v125
    %v874 = vunpack.c.h.b16 %v125
    %v875 = vunpack.c.l.b16 %v126
    %v876 = vunpack.c.h.b16 %v126
    %v877 = vunpack.c.l.b16 %v127
    %v878 = vunpack.c.h.b16 %v127
    %v879 = vunpack.c.l.b16 %v128
    %v880 = vunpack.c.h.b16 %v128
    %v881 = vunpack.c.l.b16 %v129
    %v882 = vunpack.c.h.b16 %v129
    %v883 = vunpack.c.l.b16 %v130
    %v884 = vunpack.c.h.b16 %v130
    %v885 = vunpack.c.l.b16 %v131
    %v886 = vunpack.c.h.b16 %v131
    %v887 = vunpack.c.l.b16 %v132
    %v888 = vunpack.c.h.b16 %v132
    %v889 = vunpack.c.l.b16 %v133
    %v890 = vunpack.c.h.b16 %v133
    %v891 = vunpack.c.l.b16 %v134
    %v892 = vunpack.c.h.b16 %v134
    %v893 = vunpack.c.l.b16 %v135
    %v894 = vunpack.c.h.b16 %v135
    %v895 = vunpack.c.l.b16 %v136
    %v896 = vunpack.c.h.b16 %v136
    %v897 = vunpack.c.l.b16 %v137
    %v898 = vunpack.c.h.b16 %v137
    %v899 = vunpack.c.l.b16 %v138
    %v900 = vunpack.c.h.b16 %v138
    %v901 = vunpack.c.l.b16 %v139
    %v902 = vunpack.c.h.b16 %v139
    %v903 = vunpack.c.l.b16 %v140
    %v904 = vunpack.c.h.b16 %v140
    %v905 = vunpack.c.l.b16 %v141
    %v906 = vunpack.c.h.b16 %v141
    %v907 = vunpack.c.l.b16 %v142
    %v908 = vunpack.c.h.b16 %v142
    %v909 = vunpack.c.l.b16 %v143
    %v910 = vunpack.c.h.b16 %v143
    %v911 = vunpack.c.l.b16 %v144
    %v912 = vunpack.c.h.b16 %v144
    %v913 = vunpack.c.l.b16 %v145
    %v914 = vunpack.c.h.b16 %v145
    %v915 = vunpack.c.l.b16 %v146
    %v916 = vunpack.c.h.b16 %v146
    %v917 = vunpack.c.l.b16 %v147
    %v918 = vunpack.c.h.b16 %v147
    %v919 = vunpack.c.l.b16 %v148
    %v920 = vunpack.c.h.b16 %v148
    %v921 = vunpack.c.l.b16 %v149
    %v922 = vunpack.c.h.b16 %v149
    %v923 = vunpack.c.l.b16 %v150
    %v924 = vunpack.c.h.b16 %v150
    %v925 = vunpack.c.l.b16 %v151
    %v926 = vunpack.c.h.b16 %v151
    %v927 = vunpack.c.l.b16 %v152
    %v928 = vunpack.c.h.b16 %v152
    %v929 = vunpack.c.l.b16 %v153
    %v930 = vunpack.c.h.b16 %v153
    %v931 = vunpack.c.l.b16 %v154
    %v932 = vunpack.c.h.b16 %v154
    %v933 = vunpack.c.l.b16 %v155
    %v934 = vunpack.c.h.b16 %v155
    %v935 = vunpack.c.l.b16 %v156
    %v936 = vunpack.c.h.b16 %v156
    %v937 = vunpack.c.l.b16 %v157
    %v938 = vunpack.c.h.b16 %v157
    %v939 = vunpack.c.l.b16 %v158
    %v940 = vunpack.c.h.b16 %v158
    %v941 = vunpack.c.l.b16 %v159
    %v942 = vunpack.c.h.b16 %v159
    %v943 = vunpack.c.l.b16 %v160
    %v944 = vunpack.c.h.b16 %v160
    %v945 = vunpack.c.l.b16 %v161
    %v946 = vunpack.c.h.b16 %v161
    %v947 = vunpack.c.l.b16 %v162
    %v948 = vunpack.c.h.b16 %v162
    %v949 = vunpack.c.l.b16 %v163
    %v950 = vunpack.c.h.b16 %v163
    %v951 = vunpack.c.l.b16 %v164
    %v952 = vunpack.c.h.b16 %v164
    %v953 = vunpack.c.l.b16 %v165
    %v954 = vunpack.c.h.b16 %v165
    %v955 = vunpack.c.l.b16 %v166
    %v956 = vunpack.c.h.b16 %v166
    %v957 = vunpack.c.l.b16 %v167
    %v958 = vunpack.c.h.b16 %v167
    %v959 = vunpack.c.l.b16 %v168
    %v960 = vunpack.c.h.b16 %v168
    %v961 = vunpack.c.l.b16 %v169
    %v962 = vunpack.c.h.b16 %v169
    %v963 = vunpack.c.l.b16 %v170
    %v964 = vunpack.c.h.b16 %v170
    %v965 = vunpack.c.l.b16 %v171
    %v966 = vunpack.c.h.b16 %v171
    %v967 = vunpack.c.l.b16 %v172
    %v968 = vunpack.c.h.b16 %v172
    %v969 = vunpack.c.l.b16 %v173
    %v970 = vunpack.c.h.b16 %v173
    %v971 = vunpack.c.l.b16 %v174
    %v972 = vunpack.c.h.b16 %v174
    %v973 = vunpack.c.l.b16 %v175
    %v974 = vunpack.c.h.b16 %v175
    %v975 = vunpack.c.l.b16 %v176
    %v976 = vunpack.c.h.b16 %v176
    %v977 = vunpack.c.l.b16 %v177
    %v978 = vunpack.c.h.b16 %v177
    %v979 = vunpack.c.l.b16 %v178
    %v980 = vunpack.c.h.b16 %v178
    %v981 = vunpack.c.l.b16 %v179
    %v982 = vunpack.c.h.b16 %v179
    %v983 = vunpack.c.l.b16 %v180
    %v984 = vunpack.c.h.b16 %v180
    %v985 = vpack.c.b16 %v861, %v857
    %v986 = vpack.c.b16 %v862, %v858
    %v987 = vpack.c.b16 %v863, %v859
    %v988 = vpack.c.b16 %v864, %v860
    %v989 = vpack.c.b16 %v869, %v865
    %v990 = vpack.c.b16 %v870, %v866
    %v991 = vpack.c.b16 %v871, %v867
    %v992 = vpack.c.b16 %v872, %v868
    %v993 = vpack.c.b16 %v877, %v873
    %v994 = vpack.c.b16 %v878, %v874
    %v995 = vpack.c.b16 %v879, %v875
    %v996 = vpack.c.b16 %v880, %v876
    %v997 = vpack.c.b16 %v885, %v881
    %v998 = vpack.c.b16 %v886, %v882
    %v999 = vpack.c.b16 %v887, %v883
    %v1000 = vpack.c.b16 %v888, %v884
    %v1001 = vpack.c.b16 %v893, %v889
    %v1002 = vpack.c.b16 %v894, %v890
    %v1003 = vpack.c.b16 %v895, %v891
    %v1004 = vpack.c.b16 %v896, %v892
    %v1005 = vpack.c.b16 %v901, %v897
    %v1006 = vpack.c.b16 %v902, %v898
    %v1007 = vpack.c.b16 %v903, %v899
    %v1008 = vpack.c.b16 %v904, %v900
    %v1009 = vpack.c.b16 %v909, %v905
    %v1010 = vpack.c.b16 %v910, %v906
    %v1011 = vpack.c.b16 %v911, %v907
    %v1012 = vpack.c.b16 %v912, %v908
    %v1013 = vpack.c.b16 %v917, %v913
    %v1014 = vpack.c.b16 %v918, %v914
    %v1015 = vpack.c.b16 %v919, %v915
    %v1016 = vpack.c.b16 %v920, %v916
    %v1017 = vpack.c.b16 %v925, %v921
    %v1018 = vpack.c.b16 %v926, %v922
    %v1019 = vpack.c.b16 %v927, %v923
    %v1020 = vpack.c.b16 %v928, %v924
    %v1021 = vpack.c.b16 %v933, %v929
    %v1022 = vpack.c.b16 %v934, %v930
    %v1023 = vpack.c.b16 %v935, %v931
    %v1024 = vpack.c.b16 %v936, %v932
    %v1025 = vpack.c.b16 %v941, %v937
    %v1026 = vpack.c.b16 %v942, %v938
    %v1027 = vpack.c.b16 %v943, %v939
    %v1028 = vpack.c.b16 %v944, %v940
    %v1029 = vpack.c.b16 %v949, %v945
    %v1030 = vpack.c.b16 %v950, %v946
    %v1031 = vpack.c.b16 %v951, %v947
    %v1032 = vpack.c.b16 %v952, %v948
    %v1033 = vpack.c.b16 %v957, %v953
    %v1034 = vpack.c.b16 %v958, %v954
    %v1035 = vpack.c.b16 %v959, %v955
    %v1036 = vpack.c.b16 %v960, %v956
    %v1037 = vpack.c.b16 %v965, %v961
    %v1038 = vpack.c.b16 %v966, %v962
    %v1039 = vpack.c.b16 %v967, %v963
    %v1040 = vpack.c.b16 %v968, %v964
    %v1041 = vpack.c.b16 %v973, %v969
    %v1042 = vpack.c.b16 %v974, %v970
    %v1043 = vpack.c.b16 %v975, %v971
    %v1044 = vpack.c.b16 %v976, %v972
    %v1045 = vpack.c.b16 %v981, %v977
    %v1046 = vpack.c.b16 %v982, %v978
    %v1047 = vpack.c.b16 %v983, %v979
    %v1048 = vpack.c.b16 %v984, %v980
    %1113 = vmatpush.bf16.msra.mxu0 %v1013
    %1114 = vmatpush.bf16.msra.mxu0 %v1009
    %1115 = vmatpush.bf16.msra.mxu0 %v1005
    %1116 = vmatpush.bf16.msra.mxu0 %v1001
    %1117 = vmatpush.bf16.msra.mxu0 %v997
    %1118 = vmatpush.bf16.msra.mxu0 %v993
    %1119 = vmatpush.bf16.msra.mxu0 %v989
    %1120 = vmatpush.bf16.msra.mxu0 %v985
    %1121 = vmatmul.bf16.gmra.mxu0 %v791
    %v1122 = vpop.f32.mrf.mxu0
    %v1123 = vadd.f32 %v313, %v1122
    %v1124 = vpop.f32.mrf.mxu0
    %1125 = vdwg.mxu0
    %1126 = vmatpush.bf16.msra.mxu0 %v1045
    %1127 = vmatpush.bf16.msra.mxu0 %v1041
    %1128 = vmatpush.bf16.msra.mxu0 %v1037
    %1129 = vmatpush.bf16.msra.mxu0 %v1033
    %1130 = vmatpush.bf16.msra.mxu0 %v1029
    %1131 = vmatpush.bf16.msra.mxu0 %v1025
    %1132 = vmatpush.bf16.msra.mxu0 %v1021
    %1133 = vmatpush.bf16.msra.mxu0 %v1017
    %1134 = vmatmul.bf16.gmra.mxu0 %v792
    %v1135 = vpop.f32.mrf.mxu0
    %v1136 = vadd.f32 %v1123, %v1135
    %v1137 = vpop.f32.mrf.mxu0
    %1138 = vdwg.mxu0
    %1139 = vmatpush.bf16.msra.mxu0 %v1014
    %1140 = vmatpush.bf16.msra.mxu0 %v1010
    %1141 = vmatpush.bf16.msra.mxu0 %v1006
    %1142 = vmatpush.bf16.msra.mxu0 %v1002
    %1143 = vmatpush.bf16.msra.mxu0 %v998
    %1144 = vmatpush.bf16.msra.mxu0 %v994
    %1145 = vmatpush.bf16.msra.mxu0 %v990
    %1146 = vmatpush.bf16.msra.mxu0 %v986
    %1147 = vmatmul.bf16.gmra.mxu0 %v791
    %v1148 = vpop.f32.mrf.mxu0
    %v1149 = vadd.f32 %v314, %v1148
    %v1150 = vpop.f32.mrf.mxu0
    %1151 = vdwg.mxu0
    %1152 = vmatpush.bf16.msra.mxu0 %v1046
    %1153 = vmatpush.bf16.msra.mxu0 %v1042
    %1154 = vmatpush.bf16.msra.mxu0 %v1038
    %1155 = vmatpush.bf16.msra.mxu0 %v1034
    %1156 = vmatpush.bf16.msra.mxu0 %v1030
    %1157 = vmatpush.bf16.msra.mxu0 %v1026
    %1158 = vmatpush.bf16.msra.mxu0 %v1022
    %1159 = vmatpush.bf16.msra.mxu0 %v1018
    %1160 = vmatmul.bf16.gmra.mxu0 %v792
    %v1161 = vpop.f32.mrf.mxu0
    %v1162 = vadd.f32 %v1149, %v1161
    %v1163 = vpop.f32.mrf.mxu0
    %1164 = vdwg.mxu0
    %1165 = vmatpush.bf16.msra.mxu0 %v1015
    %1166 = vmatpush.bf16.msra.mxu0 %v1011
    %1167 = vmatpush.bf16.msra.mxu0 %v1007
    %1168 = vmatpush.bf16.msra.mxu0 %v1003
    %1169 = vmatpush.bf16.msra.mxu0 %v999
    %1170 = vmatpush.bf16.msra.mxu0 %v995
    %1171 = vmatpush.bf16.msra.mxu0 %v991
    %1172 = vmatpush.bf16.msra.mxu0 %v987
    %1173 = vmatmul.bf16.gmra.mxu0 %v791
    %v1174 = vpop.f32.mrf.mxu0
    %v1175 = vadd.f32 %v315, %v1174
    %v1176 = vpop.f32.mrf.mxu0
    %1177 = vdwg.mxu0
    %1178 = vmatpush.bf16.msra.mxu0 %v1047
    %1179 = vmatpush.bf16.msra.mxu0 %v1043
    %1180 = vmatpush.bf16.msra.mxu0 %v1039
    %1181 = vmatpush.bf16.msra.mxu0 %v1035
    %1182 = vmatpush.bf16.msra.mxu0 %v1031
    %1183 = vmatpush.bf16.msra.mxu0 %v1027
    %1184 = vmatpush.bf16.msra.mxu0 %v1023
    %1185 = vmatpush.bf16.msra.mxu0 %v1019
    %1186 = vmatmul.bf16.gmra.mxu0 %v792
    %v1187 = vpop.f32.mrf.mxu0
    %v1188 = vadd.f32 %v1175, %v1187
    %v1189 = vpop.f32.mrf.mxu0
    %1190 = vdwg.mxu0
    %1191 = vmatpush.bf16.msra.mxu0 %v1016
    %1192 = vmatpush.bf16.msra.mxu0 %v1012
    %1193 = vmatpush.bf16.msra.mxu0 %v1008
    %1194 = vmatpush.bf16.msra.mxu0 %v1004
    %1195 = vmatpush.bf16.msra.mxu0 %v1000
    %1196 = vmatpush.bf16.msra.mxu0 %v996
    %1197 = vmatpush.bf16.msra.mxu0 %v992
    %1198 = vmatpush.bf16.msra.mxu0 %v988
    %1199 = vmatmul.bf16.gmra.mxu0 %v791
    %v1200 = vpop.f32.mrf.mxu0
    %v1201 = vadd.f32 %v316, %v1200
    %v1202 = vpop.f32.mrf.mxu0
    %1203 = vdwg.mxu0
    %1204 = vmatpush.bf16.msra.mxu0 %v1048
    %1205 = vmatpush.bf16.msra.mxu0 %v1044
    %1206 = vmatpush.bf16.msra.mxu0 %v1040
    %1207 = vmatpush.bf16.msra.mxu0 %v1036
    %1208 = vmatpush.bf16.msra.mxu0 %v1032
    %1209 = vmatpush.bf16.msra.mxu0 %v1028
    %1210 = vmatpush.bf16.msra.mxu0 %v1024
    %1211 = vmatpush.bf16.msra.mxu0 %v1020
    %1212 = vmatmul.bf16.gmra.mxu0 %v792
    %v1213 = vpop.f32.mrf.mxu0
    %v1214 = vadd.f32 %v1201, %v1213
    %v1215 = vpop.f32.mrf.mxu0
    %1216 = vdwg.mxu0
    %v1217 = vxor.u32 %v1136, 2147483648
    %v1218 = vmul.f32 %v1217, 1.442695
    %v1219 = vpow.pop %v1218
    %v1220 = vadd.f32 %v1219, 1.0
    %v1221 = vrcp.pop %v1220
    %v1222 = vmul.f32 %v1220, %v1221
    %v1223 = vsub.f32 1.0, %v1222
    %v1224 = vmul.f32 %v1221, %v1223
    %v1225 = vadd.f32 %v1221, %v1224
    %vm1226 = vweird.f32 %v1220
    %vm1227 = vweird.f32 %v1221
    %vm1228 = vmor %vm1226, %vm1227
    %v1229 = vsel %vm1228, %v1221, %v1225
    %v1230 = vand.u32 2147483647, %v1220
    %vm1231 = vcmp.eq.f32.partialorder %v1230, 8.507059e+37
    %v1232 = vand.u32 %v1220, 2147483648
    %v1233 = vor.u32 1.1754944e-38, %v1232
    %v1234 = vsel %vm1231, %v1233, %v1229
    %v1235 = vmul.f32 1.0, %v1234
    %v1236 = vxor.u32 %v1162, 2147483648
    %v1237 = vmul.f32 %v1236, 1.442695
    %v1238 = vpow.pop %v1237
    %v1239 = vadd.f32 %v1238, 1.0
    %v1240 = vrcp.pop %v1239
    %v1241 = vmul.f32 %v1239, %v1240
    %v1242 = vsub.f32 1.0, %v1241
    %v1243 = vmul.f32 %v1240, %v1242
    %v1244 = vadd.f32 %v1240, %v1243
    %vm1245 = vweird.f32 %v1239
    %vm1246 = vweird.f32 %v1240
    %vm1247 = vmor %vm1245, %vm1246
    %v1248 = vsel %vm1247, %v1240, %v1244
    %v1249 = vand.u32 2147483647, %v1239
    %vm1250 = vcmp.eq.f32.partialorder %v1249, 8.507059e+37
    %v1251 = vand.u32 %v1239, 2147483648
    %v1252 = vor.u32 1.1754944e-38, %v1251
    %v1253 = vsel %vm1250, %v1252, %v1248
    %v1254 = vmul.f32 1.0, %v1253
    %v1255 = vmul.f32 %v1235, %v1214
    %v1256 = vadd.f32 %v1188, %v1255
    %v1257 = vtanh.pop %v1256
    %v1258 = vsub.f32 1.0, %v1254
    %v1259 = vmul.f32 %v1258, %v1257
    %v1260 = vmul.f32 %v1254, 0.0
    %v1261 = vadd.f32 %v1259, %v1260
    %1262 = vmatpush.bf16.msra.mxu0 %v677
    %1263 = vmatpush.bf16.msra.mxu0 %v674
    %1264 = vmatpush.bf16.msra.mxu0 %v671
    %1265 = vmatpush.bf16.msra.mxu0 %v668
    %1266 = vmatpush.bf16.msra.mxu0 %v665
    %1267 = vmatpush.bf16.msra.mxu0 %v662
    %1268 = vmatpush.bf16.msra.mxu0 %v659
    %1269 = vmatpush.bf16.msra.mxu0 %v656
    %1270 = vmatmul.bf16.gmra.mxu0 %v791
    %v1271 = vpop.f32.mrf.mxu0
    %v1272 = vadd.f32 0.0, %v1271
    %v1273 = vpop.f32.mrf.mxu0
    %1274 = vdwg.mxu0
    %1275 = vmatpush.bf16.msra.mxu0 %v678
    %1276 = vmatpush.bf16.msra.mxu0 %v675
    %1277 = vmatpush.bf16.msra.mxu0 %v672
    %1278 = vmatpush.bf16.msra.mxu0 %v669
    %1279 = vmatpush.bf16.msra.mxu0 %v666
    %1280 = vmatpush.bf16.msra.mxu0 %v663
    %1281 = vmatpush.bf16.msra.mxu0 %v660
    %1282 = vmatpush.bf16.msra.mxu0 %v657
    %1283 = vmatmul.bf16.gmra.mxu0 %v791
    %v1284 = vpop.f32.mrf.mxu0
    %v1285 = vadd.f32 0.0, %v1284
    %v1286 = vpop.f32.mrf.mxu0
    %1287 = vdwg.mxu0
    %1288 = vmatpush.bf16.msra.mxu0 %v679
    %1289 = vmatpush.bf16.msra.mxu0 %v676
    %1290 = vmatpush.bf16.msra.mxu0 %v673
    %1291 = vmatpush.bf16.msra.mxu0 %v670
    %1292 = vmatpush.bf16.msra.mxu0 %v667
    %1293 = vmatpush.bf16.msra.mxu0 %v664
    %1294 = vmatpush.bf16.msra.mxu0 %v661
    %1295 = vmatpush.bf16.msra.mxu0 %v658
    %1296 = vmatmul.bf16.gmra.mxu0 %v791
    %v1297 = vpop.f32.mrf.mxu0
    %v1298 = vadd.f32 0.0, %v1297
    %v1299 = vpop.f32.mrf.mxu0
    %1300 = vdwg.mxu0
    %v1301 = vadd.f32 %v501, %v1272
    %v1302 = vxor.u32 %v1301, 2147483648
    %v1303 = vmul.f32 %v1302, 1.442695
    %v1304 = vpow.pop %v1303
    %v1305 = vadd.f32 %v1304, 1.0
    %v1306 = vrcp.pop %v1305
    %v1307 = vmul.f32 %v1305, %v1306
    %v1308 = vsub.f32 1.0, %v1307
    %v1309 = vmul.f32 %v1306, %v1308
    %v1310 = vadd.f32 %v1306, %v1309
    %vm1311 = vweird.f32 %v1305
    %vm1312 = vweird.f32 %v1306
    %vm1313 = vmor %vm1311, %vm1312
    %v1314 = vsel %vm1313, %v1306, %v1310
    %v1315 = vand.u32 2147483647, %v1305
    %vm1316 = vcmp.eq.f32.partialorder %v1315, 8.507059e+37
    %v1317 = vand.u32 %v1305, 2147483648
    %v1318 = vor.u32 1.1754944e-38, %v1317
    %v1319 = vsel %vm1316, %v1318, %v1314
    %v1320 = vmul.f32 1.0, %v1319
    %v1321 = vadd.f32 %v530, %v1285
    %v1322 = vxor.u32 %v1321, 2147483648
    %v1323 = vmul.f32 %v1322, 1.442695
    %v1324 = vpow.pop %v1323
    %v1325 = vadd.f32 %v1324, 1.0
    %v1326 = vrcp.pop %v1325
    %v1327 = vmul.f32 %v1325, %v1326
    %v1328 = vsub.f32 1.0, %v1327
    %v1329 = vmul.f32 %v1326, %v1328
    %v1330 = vadd.f32 %v1326, %v1329
    %vm1331 = vweird.f32 %v1325
    %vm1332 = vweird.f32 %v1326
    %vm1333 = vmor %vm1331, %vm1332
    %v1334 = vsel %vm1333, %v1326, %v1330
    %v1335 = vand.u32 2147483647, %v1325
    %vm1336 = vcmp.eq.f32.partialorder %v1335, 8.507059e+37
    %v1337 = vand.u32 %v1325, 2147483648
    %v1338 = vor.u32 1.1754944e-38, %v1337
    %v1339 = vsel %vm1336, %v1338, %v1334
    %v1340 = vmul.f32 1.0, %v1339
    %v1341 = vadd.f32 %v1298, %v344
    %v1342 = vmul.f32 %v1320, %v1341
    %v1343 = vadd.f32 %v559, %v1342
    %v1344 = vtanh.pop %v1343
    %v1345 = vsub.f32 1.0, %v1340
    %v1346 = vmul.f32 %v1345, %v1344
    %v1347 = vmul.f32 %v1340, %v790
    %v1348 = vadd.f32 %v1346, %v1347
    %v1349 = vpack.c.bf16 %v1348, %v1348
    %v1350 = vpack.c.bf16 %v1261, %v1261
    %1351 = vmatpush.bf16.msra.mxu0 %v1013
    %1352 = vmatpush.bf16.msra.mxu0 %v1009
    %1353 = vmatpush.bf16.msra.mxu0 %v1005
    %1354 = vmatpush.bf16.msra.mxu0 %v1001
    %1355 = vmatpush.bf16.msra.mxu0 %v997
    %1356 = vmatpush.bf16.msra.mxu0 %v993
    %1357 = vmatpush.bf16.msra.mxu0 %v989
    %1358 = vmatpush.bf16.msra.mxu0 %v985
    %1359 = vmatmul.bf16.gmra.mxu0 %v1349
    %v1360 = vpop.f32.mrf.mxu0
    %v1361 = vadd.f32 %v313, %v1360
    %v1362 = vpop.f32.mrf.mxu0
    %1363 = vdwg.mxu0
    %1364 = vmatpush.bf16.msra.mxu0 %v1045
    %1365 = vmatpush.bf16.msra.mxu0 %v1041
    %1366 = vmatpush.bf16.msra.mxu0 %v1037
    %1367 = vmatpush.bf16.msra.mxu0 %v1033
    %1368 = vmatpush.bf16.msra.mxu0 %v1029
    %1369 = vmatpush.bf16.msra.mxu0 %v1025
    %1370 = vmatpush.bf16.msra.mxu0 %v1021
    %1371 = vmatpush.bf16.msra.mxu0 %v1017
    %1372 = vmatmul.bf16.gmra.mxu0 %v1350
    %v1373 = vpop.f32.mrf.mxu0
    %v1374 = vadd.f32 %v1361, %v1373
    %v1375 = vpop.f32.mrf.mxu0
    %1376 = vdwg.mxu0
    %1377 = vmatpush.bf16.msra.mxu0 %v1014
    %1378 = vmatpush.bf16.msra.mxu0 %v1010
    %1379 = vmatpush.bf16.msra.mxu0 %v1006
    %1380 = vmatpush.bf16.msra.mxu0 %v1002
    %1381 = vmatpush.bf16.msra.mxu0 %v998
    %1382 = vmatpush.bf16.msra.mxu0 %v994
    %1383 = vmatpush.bf16.msra.mxu0 %v990
    %1384 = vmatpush.bf16.msra.mxu0 %v986
    %1385 = vmatmul.bf16.gmra.mxu0 %v1349
    %v1386 = vpop.f32.mrf.mxu0
    %v1387 = vadd.f32 %v314, %v1386
    %v1388 = vpop.f32.mrf.mxu0
    %1389 = vdwg.mxu0
    %1390 = vmatpush.bf16.msra.mxu0 %v1046
    %1391 = vmatpush.bf16.msra.mxu0 %v1042
    %1392 = vmatpush.bf16.msra.mxu0 %v1038
    %1393 = vmatpush.bf16.msra.mxu0 %v1034
    %1394 = vmatpush.bf16.msra.mxu0 %v1030
    %1395 = vmatpush.bf16.msra.mxu0 %v1026
    %1396 = vmatpush.bf16.msra.mxu0 %v1022
    %1397 = vmatpush.bf16.msra.mxu0 %v1018
    %1398 = vmatmul.bf16.gmra.mxu0 %v1350
    %v1399 = vpop.f32.mrf.mxu0
    %v1400 = vadd.f32 %v1387, %v1399
    %v1401 = vpop.f32.mrf.mxu0
    %1402 = vdwg.mxu0
    %1403 = vmatpush.bf16.msra.mxu0 %v1015
    %1404 = vmatpush.bf16.msra.mxu0 %v1011
    %1405 = vmatpush.bf16.msra.mxu0 %v1007
    %1406 = vmatpush.bf16.msra.mxu0 %v1003
    %1407 = vmatpush.bf16.msra.mxu0 %v999
    %1408 = vmatpush.bf16.msra.mxu0 %v995
    %1409 = vmatpush.bf16.msra.mxu0 %v991
    %1410 = vmatpush.bf16.msra.mxu0 %v987
    %1411 = vmatmul.bf16.gmra.mxu0 %v1349
    %v1412 = vpop.f32.mrf.mxu0
    %v1413 = vadd.f32 %v315, %v1412
    %v1414 = vpop.f32.mrf.mxu0
    %1415 = vdwg.mxu0
    %1416 = vmatpush.bf16.msra.mxu0 %v1047
    %1417 = vmatpush.bf16.msra.mxu0 %v1043
    %1418 = vmatpush.bf16.msra.mxu0 %v1039
    %1419 = vmatpush.bf16.msra.mxu0 %v1035
    %1420 = vmatpush.bf16.msra.mxu0 %v1031
    %1421 = vmatpush.bf16.msra.mxu0 %v1027
    %1422 = vmatpush.bf16.msra.mxu0 %v1023
    %1423 = vmatpush.bf16.msra.mxu0 %v1019
    %1424 = vmatmul.bf16.gmra.mxu0 %v1350
    %v1425 = vpop.f32.mrf.mxu0
    %v1426 = vadd.f32 %v1413, %v1425
    %v1427 = vpop.f32.mrf.mxu0
    %1428 = vdwg.mxu0
    %1429 = vmatpush.bf16.msra.mxu0 %v1016
    %1430 = vmatpush.bf16.msra.mxu0 %v1012
    %1431 = vmatpush.bf16.msra.mxu0 %v1008
    %1432 = vmatpush.bf16.msra.mxu0 %v1004
    %1433 = vmatpush.bf16.msra.mxu0 %v1000
    %1434 = vmatpush.bf16.msra.mxu0 %v996
    %1435 = vmatpush.bf16.msra.mxu0 %v992
    %1436 = vmatpush.bf16.msra.mxu0 %v988
    %1437 = vmatmul.bf16.gmra.mxu0 %v1349
    %v1438 = vpop.f32.mrf.mxu0
    %v1439 = vadd.f32 %v316, %v1438
    %v1440 = vpop.f32.mrf.mxu0
    %1441 = vdwg.mxu0
    %1442 = vmatpush.bf16.msra.mxu0 %v1048
    %1443 = vmatpush.bf16.msra.mxu0 %v1044
    %1444 = vmatpush.bf16.msra.mxu0 %v1040
    %1445 = vmatpush.bf16.msra.mxu0 %v1036
    %1446 = vmatpush.bf16.msra.mxu0 %v1032
    %1447 = vmatpush.bf16.msra.mxu0 %v1028
    %1448 = vmatpush.bf16.msra.mxu0 %v1024
    %1449 = vmatpush.bf16.msra.mxu0 %v1020
    %1450 = vmatmul.bf16.gmra.mxu0 %v1350
    %v1451 = vpop.f32.mrf.mxu0
    %v1452 = vadd.f32 %v1439, %v1451
    %v1453 = vpop.f32.mrf.mxu0
    %1454 = vdwg.mxu0
    %v1455 = vxor.u32 %v1374, 2147483648
    %v1456 = vmul.f32 %v1455, 1.442695
    %v1457 = vpow.pop %v1456
    %v1458 = vadd.f32 %v1457, 1.0
    %v1459 = vrcp.pop %v1458
    %v1460 = vmul.f32 %v1458, %v1459
    %v1461 = vsub.f32 1.0, %v1460
    %v1462 = vmul.f32 %v1459, %v1461
    %v1463 = vadd.f32 %v1459, %v1462
    %vm1464 = vweird.f32 %v1458
    %vm1465 = vweird.f32 %v1459
    %vm1466 = vmor %vm1464, %vm1465
    %v1467 = vsel %vm1466, %v1459, %v1463
    %v1468 = vand.u32 2147483647, %v1458
    %vm1469 = vcmp.eq.f32.partialorder %v1468, 8.507059e+37
    %v1470 = vand.u32 %v1458, 2147483648
    %v1471 = vor.u32 1.1754944e-38, %v1470
    %v1472 = vsel %vm1469, %v1471, %v1467
    %v1473 = vmul.f32 1.0, %v1472
    %v1474 = vxor.u32 %v1400, 2147483648
    %v1475 = vmul.f32 %v1474, 1.442695
    %v1476 = vpow.pop %v1475
    %v1477 = vadd.f32 %v1476, 1.0
    %v1478 = vrcp.pop %v1477
    %v1479 = vmul.f32 %v1477, %v1478
    %v1480 = vsub.f32 1.0, %v1479
    %v1481 = vmul.f32 %v1478, %v1480
    %v1482 = vadd.f32 %v1478, %v1481
    %vm1483 = vweird.f32 %v1477
    %vm1484 = vweird.f32 %v1478
    %vm1485 = vmor %vm1483, %vm1484
    %v1486 = vsel %vm1485, %v1478, %v1482
    %v1487 = vand.u32 2147483647, %v1477
    %vm1488 = vcmp.eq.f32.partialorder %v1487, 8.507059e+37
    %v1489 = vand.u32 %v1477, 2147483648
    %v1490 = vor.u32 1.1754944e-38, %v1489
    %v1491 = vsel %vm1488, %v1490, %v1486
    %v1492 = vmul.f32 1.0, %v1491
    %v1493 = vmul.f32 %v1473, %v1452
    %v1494 = vadd.f32 %v1426, %v1493
    %v1495 = vtanh.pop %v1494
    %v1496 = vsub.f32 1.0, %v1492
    %v1497 = vmul.f32 %v1496, %v1495
    %v1498 = vmul.f32 %v1492, %v1261
    %v1499 = vadd.f32 %v1497, %v1498
    %1500 = vmatpush.bf16.msra.mxu0 %v677
    %1501 = vmatpush.bf16.msra.mxu0 %v674
    %1502 = vmatpush.bf16.msra.mxu0 %v671
    %1503 = vmatpush.bf16.msra.mxu0 %v668
    %1504 = vmatpush.bf16.msra.mxu0 %v665
    %1505 = vmatpush.bf16.msra.mxu0 %v662
    %1506 = vmatpush.bf16.msra.mxu0 %v659
    %1507 = vmatpush.bf16.msra.mxu0 %v656
    %1508 = vmatmul.bf16.gmra.mxu0 %v1349
    %v1509 = vpop.f32.mrf.mxu0
    %v1510 = vadd.f32 0.0, %v1509
    %v1511 = vpop.f32.mrf.mxu0
    %1512 = vdwg.mxu0
    %1513 = vmatpush.bf16.msra.mxu0 %v678
    %1514 = vmatpush.bf16.msra.mxu0 %v675
    %1515 = vmatpush.bf16.msra.mxu0 %v672
    %1516 = vmatpush.bf16.msra.mxu0 %v669
    %1517 = vmatpush.bf16.msra.mxu0 %v666
    %1518 = vmatpush.bf16.msra.mxu0 %v663
    %1519 = vmatpush.bf16.msra.mxu0 %v660
    %1520 = vmatpush.bf16.msra.mxu0 %v657
    %1521 = vmatmul.bf16.gmra.mxu0 %v1349
    %v1522 = vpop.f32.mrf.mxu0
    %v1523 = vadd.f32 0.0, %v1522
    %v1524 = vpop.f32.mrf.mxu0
    %1525 = vdwg.mxu0
    %1526 = vmatpush.bf16.msra.mxu0 %v679
    %1527 = vmatpush.bf16.msra.mxu0 %v676
    %1528 = vmatpush.bf16.msra.mxu0 %v673
    %1529 = vmatpush.bf16.msra.mxu0 %v670
    %1530 = vmatpush.bf16.msra.mxu0 %v667
    %1531 = vmatpush.bf16.msra.mxu0 %v664
    %1532 = vmatpush.bf16.msra.mxu0 %v661
    %1533 = vmatpush.bf16.msra.mxu0 %v658
    %1534 = vmatmul.bf16.gmra.mxu0 %v1349
    %v1535 = vpop.f32.mrf.mxu0
    %v1536 = vadd.f32 0.0, %v1535
    %v1537 = vpop.f32.mrf.mxu0
    %1538 = vdwg.mxu0
    %v1539 = vadd.f32 %v504, %v1510
    %v1540 = vxor.u32 %v1539, 2147483648
    %v1541 = vmul.f32 %v1540, 1.442695
    %v1542 = vpow.pop %v1541
    %v1543 = vadd.f32 %v1542, 1.0
    %v1544 = vrcp.pop %v1543
    %v1545 = vmul.f32 %v1543, %v1544
    %v1546 = vsub.f32 1.0, %v1545
    %v1547 = vmul.f32 %v1544, %v1546
    %v1548 = vadd.f32 %v1544, %v1547
    %vm1549 = vweird.f32 %v1543
    %vm1550 = vweird.f32 %v1544
    %vm1551 = vmor %vm1549, %vm1550
    %v1552 = vsel %vm1551, %v1544, %v1548
    %v1553 = vand.u32 2147483647, %v1543
    %vm1554 = vcmp.eq.f32.partialorder %v1553, 8.507059e+37
    %v1555 = vand.u32 %v1543, 2147483648
    %v1556 = vor.u32 1.1754944e-38, %v1555
    %v1557 = vsel %vm1554, %v1556, %v1552
    %v1558 = vmul.f32 1.0, %v1557
    %v1559 = vadd.f32 %v533, %v1523
    %v1560 = vxor.u32 %v1559, 2147483648
    %v1561 = vmul.f32 %v1560, 1.442695
    %v1562 = vpow.pop %v1561
    %v1563 = vadd.f32 %v1562, 1.0
    %v1564 = vrcp.pop %v1563
    %v1565 = vmul.f32 %v1563, %v1564
    %v1566 = vsub.f32 1.0, %v1565
    %v1567 = vmul.f32 %v1564, %v1566
    %v1568 = vadd.f32 %v1564, %v1567
    %vm1569 = vweird.f32 %v1563
    %vm1570 = vweird.f32 %v1564
    %vm1571 = vmor %vm1569, %vm1570
    %v1572 = vsel %vm1571, %v1564, %v1568
    %v1573 = vand.u32 2147483647, %v1563
    %vm1574 = vcmp.eq.f32.partialorder %v1573, 8.507059e+37
    %v1575 = vand.u32 %v1563, 2147483648
    %v1576 = vor.u32 1.1754944e-38, %v1575
    %v1577 = vsel %vm1574, %v1576, %v1572
    %v1578 = vmul.f32 1.0, %v1577
    %v1579 = vadd.f32 %v1536, %v344
    %v1580 = vmul.f32 %v1558, %v1579
    %v1581 = vadd.f32 %v562, %v1580
    %v1582 = vtanh.pop %v1581
    %v1583 = vsub.f32 1.0, %v1578
    %v1584 = vmul.f32 %v1583, %v1582
    %v1585 = vmul.f32 %v1578, %v1348
    %v1586 = vadd.f32 %v1584, %v1585
    %v1587 = vpack.c.bf16 %v1586, %v1586
    %v1588 = vpack.c.bf16 %v1499, %v1499
    %1589 = vmatpush.bf16.msra.mxu0 %v1013
    %1590 = vmatpush.bf16.msra.mxu0 %v1009
    %1591 = vmatpush.bf16.msra.mxu0 %v1005
    %1592 = vmatpush.bf16.msra.mxu0 %v1001
    %1593 = vmatpush.bf16.msra.mxu0 %v997
    %1594 = vmatpush.bf16.msra.mxu0 %v993
    %1595 = vmatpush.bf16.msra.mxu0 %v989
    %1596 = vmatpush.bf16.msra.mxu0 %v985
    %1597 = vmatmul.bf16.gmra.mxu0 %v1587
    %v1598 = vpop.f32.mrf.mxu0
    %v1599 = vadd.f32 %v313, %v1598
    %v1600 = vpop.f32.mrf.mxu0
    %1601 = vdwg.mxu0
    %1602 = vmatpush.bf16.msra.mxu0 %v1045
    %1603 = vmatpush.bf16.msra.mxu0 %v1041
    %1604 = vmatpush.bf16.msra.mxu0 %v1037
    %1605 = vmatpush.bf16.msra.mxu0 %v1033
    %1606 = vmatpush.bf16.msra.mxu0 %v1029
    %1607 = vmatpush.bf16.msra.mxu0 %v1025
    %1608 = vmatpush.bf16.msra.mxu0 %v1021
    %1609 = vmatpush.bf16.msra.mxu0 %v1017
    %1610 = vmatmul.bf16.gmra.mxu0 %v1588
    %v1611 = vpop.f32.mrf.mxu0
    %v1612 = vadd.f32 %v1599, %v1611
    %v1613 = vpop.f32.mrf.mxu0
    %1614 = vdwg.mxu0
    %1615 = vmatpush.bf16.msra.mxu0 %v1014
    %1616 = vmatpush.bf16.msra.mxu0 %v1010
    %1617 = vmatpush.bf16.msra.mxu0 %v1006
    %1618 = vmatpush.bf16.msra.mxu0 %v1002
    %1619 = vmatpush.bf16.msra.mxu0 %v998
    %1620 = vmatpush.bf16.msra.mxu0 %v994
    %1621 = vmatpush.bf16.msra.mxu0 %v990
    %1622 = vmatpush.bf16.msra.mxu0 %v986
    %1623 = vmatmul.bf16.gmra.mxu0 %v1587
    %v1624 = vpop.f32.mrf.mxu0
    %v1625 = vadd.f32 %v314, %v1624
    %v1626 = vpop.f32.mrf.mxu0
    %1627 = vdwg.mxu0
    %1628 = vmatpush.bf16.msra.mxu0 %v1046
    %1629 = vmatpush.bf16.msra.mxu0 %v1042
    %1630 = vmatpush.bf16.msra.mxu0 %v1038
    %1631 = vmatpush.bf16.msra.mxu0 %v1034
    %1632 = vmatpush.bf16.msra.mxu0 %v1030
    %1633 = vmatpush.bf16.msra.mxu0 %v1026
    %1634 = vmatpush.bf16.msra.mxu0 %v1022
    %1635 = vmatpush.bf16.msra.mxu0 %v1018
    %1636 = vmatmul.bf16.gmra.mxu0 %v1588
    %v1637 = vpop.f32.mrf.mxu0
    %v1638 = vadd.f32 %v1625, %v1637
    %v1639 = vpop.f32.mrf.mxu0
    %1640 = vdwg.mxu0
    %1641 = vmatpush.bf16.msra.mxu0 %v1015
    %1642 = vmatpush.bf16.msra.mxu0 %v1011
    %1643 = vmatpush.bf16.msra.mxu0 %v1007
    %1644 = vmatpush.bf16.msra.mxu0 %v1003
    %1645 = vmatpush.bf16.msra.mxu0 %v999
    %1646 = vmatpush.bf16.msra.mxu0 %v995
    %1647 = vmatpush.bf16.msra.mxu0 %v991
    %1648 = vmatpush.bf16.msra.mxu0 %v987
    %1649 = vmatmul.bf16.gmra.mxu0 %v1587
    %v1650 = vpop.f32.mrf.mxu0
    %v1651 = vadd.f32 %v315, %v1650
    %v1652 = vpop.f32.mrf.mxu0
    %1653 = vdwg.mxu0
    %1654 = vmatpush.bf16.msra.mxu0 %v1047
    %1655 = vmatpush.bf16.msra.mxu0 %v1043
    %1656 = vmatpush.bf16.msra.mxu0 %v1039
    %1657 = vmatpush.bf16.msra.mxu0 %v1035
    %1658 = vmatpush.bf16.msra.mxu0 %v1031
    %1659 = vmatpush.bf16.msra.mxu0 %v1027
    %1660 = vmatpush.bf16.msra.mxu0 %v1023
    %1661 = vmatpush.bf16.msra.mxu0 %v1019
    %1662 = vmatmul.bf16.gmra.mxu0 %v1588
    %v1663 = vpop.f32.mrf.mxu0
    %v1664 = vadd.f32 %v1651, %v1663
    %v1665 = vpop.f32.mrf.mxu0
    %1666 = vdwg.mxu0
    %1667 = vmatpush.bf16.msra.mxu0 %v1016
    %1668 = vmatpush.bf16.msra.mxu0 %v1012
    %1669 = vmatpush.bf16.msra.mxu0 %v1008
    %1670 = vmatpush.bf16.msra.mxu0 %v1004
    %1671 = vmatpush.bf16.msra.mxu0 %v1000
    %1672 = vmatpush.bf16.msra.mxu0 %v996
    %1673 = vmatpush.bf16.msra.mxu0 %v992
    %1674 = vmatpush.bf16.msra.mxu0 %v988
    %1675 = vmatmul.bf16.gmra.mxu0 %v1587
    %v1676 = vpop.f32.mrf.mxu0
    %v1677 = vadd.f32 %v316, %v1676
    %v1678 = vpop.f32.mrf.mxu0
    %1679 = vdwg.mxu0
    %1680 = vmatpush.bf16.msra.mxu0 %v1048
    %1681 = vmatpush.bf16.msra.mxu0 %v1044
    %1682 = vmatpush.bf16.msra.mxu0 %v1040
    %1683 = vmatpush.bf16.msra.mxu0 %v1036
    %1684 = vmatpush.bf16.msra.mxu0 %v1032
    %1685 = vmatpush.bf16.msra.mxu0 %v1028
    %1686 = vmatpush.bf16.msra.mxu0 %v1024
    %1687 = vmatpush.bf16.msra.mxu0 %v1020
    %1688 = vmatmul.bf16.gmra.mxu0 %v1588
    %v1689 = vpop.f32.mrf.mxu0
    %v1690 = vadd.f32 %v1677, %v1689
    %v1691 = vpop.f32.mrf.mxu0
    %1692 = vdwg.mxu0
    %v1693 = vxor.u32 %v1612, 2147483648
    %v1694 = vmul.f32 %v1693, 1.442695
    %v1695 = vpow.pop %v1694
    %v1696 = vadd.f32 %v1695, 1.0
    %v1697 = vrcp.pop %v1696
    %v1698 = vmul.f32 %v1696, %v1697
    %v1699 = vsub.f32 1.0, %v1698
    %v1700 = vmul.f32 %v1697, %v1699
    %v1701 = vadd.f32 %v1697, %v1700
    %vm1702 = vweird.f32 %v1696
    %vm1703 = vweird.f32 %v1697
    %vm1704 = vmor %vm1702, %vm1703
    %v1705 = vsel %vm1704, %v1697, %v1701
    %v1706 = vand.u32 2147483647, %v1696
    %vm1707 = vcmp.eq.f32.partialorder %v1706, 8.507059e+37
    %v1708 = vand.u32 %v1696, 2147483648
    %v1709 = vor.u32 1.1754944e-38, %v1708
    %v1710 = vsel %vm1707, %v1709, %v1705
    %v1711 = vmul.f32 1.0, %v1710
    %v1712 = vxor.u32 %v1638, 2147483648
    %v1713 = vmul.f32 %v1712, 1.442695
    %v1714 = vpow.pop %v1713
    %v1715 = vadd.f32 %v1714, 1.0
    %v1716 = vrcp.pop %v1715
    %v1717 = vmul.f32 %v1715, %v1716
    %v1718 = vsub.f32 1.0, %v1717
    %v1719 = vmul.f32 %v1716, %v1718
    %v1720 = vadd.f32 %v1716, %v1719
    %vm1721 = vweird.f32 %v1715
    %vm1722 = vweird.f32 %v1716
    %vm1723 = vmor %vm1721, %vm1722
    %v1724 = vsel %vm1723, %v1716, %v1720
    %v1725 = vand.u32 2147483647, %v1715
    %vm1726 = vcmp.eq.f32.partialorder %v1725, 8.507059e+37
    %v1727 = vand.u32 %v1715, 2147483648
    %v1728 = vor.u32 1.1754944e-38, %v1727
    %v1729 = vsel %vm1726, %v1728, %v1724
    %v1730 = vmul.f32 1.0, %v1729
    %v1731 = vmul.f32 %v1711, %v1690
    %v1732 = vadd.f32 %v1664, %v1731
    %v1733 = vtanh.pop %v1732
    %v1734 = vsub.f32 1.0, %v1730
    %v1735 = vmul.f32 %v1734, %v1733
    %v1736 = vmul.f32 %v1730, %v1499
    %v1737 = vadd.f32 %v1735, %v1736
    %1738 = vmatpush.bf16.msra.mxu0 %v677
    %1739 = vmatpush.bf16.msra.mxu0 %v674
    %1740 = vmatpush.bf16.msra.mxu0 %v671
    %1741 = vmatpush.bf16.msra.mxu0 %v668
    %1742 = vmatpush.bf16.msra.mxu0 %v665
    %1743 = vmatpush.bf16.msra.mxu0 %v662
    %1744 = vmatpush.bf16.msra.mxu0 %v659
    %1745 = vmatpush.bf16.msra.mxu0 %v656
    %1746 = vmatmul.bf16.gmra.mxu0 %v1587
    %v1747 = vpop.f32.mrf.mxu0
    %v1748 = vadd.f32 0.0, %v1747
    %v1749 = vpop.f32.mrf.mxu0
    %1750 = vdwg.mxu0
    %1751 = vmatpush.bf16.msra.mxu0 %v678
    %1752 = vmatpush.bf16.msra.mxu0 %v675
    %1753 = vmatpush.bf16.msra.mxu0 %v672
    %1754 = vmatpush.bf16.msra.mxu0 %v669
    %1755 = vmatpush.bf16.msra.mxu0 %v666
    %1756 = vmatpush.bf16.msra.mxu0 %v663
    %1757 = vmatpush.bf16.msra.mxu0 %v660
    %1758 = vmatpush.bf16.msra.mxu0 %v657
    %1759 = vmatmul.bf16.gmra.mxu0 %v1587
    %v1760 = vpop.f32.mrf.mxu0
    %v1761 = vadd.f32 0.0, %v1760
    %v1762 = vpop.f32.mrf.mxu0
    %1763 = vdwg.mxu0
    %1764 = vmatpush.bf16.msra.mxu0 %v679
    %1765 = vmatpush.bf16.msra.mxu0 %v676
    %1766 = vmatpush.bf16.msra.mxu0 %v673
    %1767 = vmatpush.bf16.msra.mxu0 %v670
    %1768 = vmatpush.bf16.msra.mxu0 %v667
    %1769 = vmatpush.bf16.msra.mxu0 %v664
    %1770 = vmatpush.bf16.msra.mxu0 %v661
    %1771 = vmatpush.bf16.msra.mxu0 %v658
    %1772 = vmatmul.bf16.gmra.mxu0 %v1587
    %v1773 = vpop.f32.mrf.mxu0
    %v1774 = vadd.f32 0.0, %v1773
    %v1775 = vpop.f32.mrf.mxu0
    %1776 = vdwg.mxu0
    %v1777 = vadd.f32 %v506, %v1748
    %v1778 = vxor.u32 %v1777, 2147483648
    %v1779 = vmul.f32 %v1778, 1.442695
    %v1780 = vpow.pop %v1779
    %v1781 = vadd.f32 %v1780, 1.0
    %v1782 = vrcp.pop %v1781
    %v1783 = vmul.f32 %v1781, %v1782
    %v1784 = vsub.f32 1.0, %v1783
    %v1785 = vmul.f32 %v1782, %v1784
    %v1786 = vadd.f32 %v1782, %v1785
    %vm1787 = vweird.f32 %v1781
    %vm1788 = vweird.f32 %v1782
    %vm1789 = vmor %vm1787, %vm1788
    %v1790 = vsel %vm1789, %v1782, %v1786
    %v1791 = vand.u32 2147483647, %v1781
    %vm1792 = vcmp.eq.f32.partialorder %v1791, 8.507059e+37
    %v1793 = vand.u32 %v1781, 2147483648
    %v1794 = vor.u32 1.1754944e-38, %v1793
    %v1795 = vsel %vm1792, %v1794, %v1790
    %v1796 = vmul.f32 1.0, %v1795
    %v1797 = vadd.f32 %v535, %v1761
    %v1798 = vxor.u32 %v1797, 2147483648
    %v1799 = vmul.f32 %v1798, 1.442695
    %v1800 = vpow.pop %v1799
    %v1801 = vadd.f32 %v1800, 1.0
    %v1802 = vrcp.pop %v1801
    %v1803 = vmul.f32 %v1801, %v1802
    %v1804 = vsub.f32 1.0, %v1803
    %v1805 = vmul.f32 %v1802, %v1804
    %v1806 = vadd.f32 %v1802, %v1805
    %vm1807 = vweird.f32 %v1801
    %vm1808 = vweird.f32 %v1802
    %vm1809 = vmor %vm1807, %vm1808
    %v1810 = vsel %vm1809, %v1802, %v1806
    %v1811 = vand.u32 2147483647, %v1801
    %vm1812 = vcmp.eq.f32.partialorder %v1811, 8.507059e+37
    %v1813 = vand.u32 %v1801, 2147483648
    %v1814 = vor.u32 1.1754944e-38, %v1813
    %v1815 = vsel %vm1812, %v1814, %v1810
    %v1816 = vmul.f32 1.0, %v1815
    %v1817 = vadd.f32 %v1774, %v344
    %v1818 = vmul.f32 %v1796, %v1817
    %v1819 = vadd.f32 %v564, %v1818
    %v1820 = vtanh.pop %v1819
    %v1821 = vsub.f32 1.0, %v1816
    %v1822 = vmul.f32 %v1821, %v1820
    %v1823 = vmul.f32 %v1816, %v1586
    %v1824 = vadd.f32 %v1822, %v1823
    %v1825 = vpack.c.bf16 %v1824, %v1824
    %v1826 = vpack.c.bf16 %v1737, %v1737
    %1827 = vmatpush.bf16.msra.mxu0 %v1013
    %1828 = vmatpush.bf16.msra.mxu0 %v1009
    %1829 = vmatpush.bf16.msra.mxu0 %v1005
    %1830 = vmatpush.bf16.msra.mxu0 %v1001
    %1831 = vmatpush.bf16.msra.mxu0 %v997
    %1832 = vmatpush.bf16.msra.mxu0 %v993
    %1833 = vmatpush.bf16.msra.mxu0 %v989
    %1834 = vmatpush.bf16.msra.mxu0 %v985
    %1835 = vmatmul.bf16.gmra.mxu0 %v1825
    %v1836 = vpop.f32.mrf.mxu0
    %v1837 = vadd.f32 %v313, %v1836
    %v1838 = vpop.f32.mrf.mxu0
    %1839 = vdwg.mxu0
    %1840 = vmatpush.bf16.msra.mxu0 %v1045
    %1841 = vmatpush.bf16.msra.mxu0 %v1041
    %1842 = vmatpush.bf16.msra.mxu0 %v1037
    %1843 = vmatpush.bf16.msra.mxu0 %v1033
    %1844 = vmatpush.bf16.msra.mxu0 %v1029
    %1845 = vmatpush.bf16.msra.mxu0 %v1025
    %1846 = vmatpush.bf16.msra.mxu0 %v1021
    %1847 = vmatpush.bf16.msra.mxu0 %v1017
    %1848 = vmatmul.bf16.gmra.mxu0 %v1826
    %v1849 = vpop.f32.mrf.mxu0
    %v1850 = vadd.f32 %v1837, %v1849
    %v1851 = vpop.f32.mrf.mxu0
    %1852 = vdwg.mxu0
    %1853 = vmatpush.bf16.msra.mxu0 %v1014
    %1854 = vmatpush.bf16.msra.mxu0 %v1010
    %1855 = vmatpush.bf16.msra.mxu0 %v1006
    %1856 = vmatpush.bf16.msra.mxu0 %v1002
    %1857 = vmatpush.bf16.msra.mxu0 %v998
    %1858 = vmatpush.bf16.msra.mxu0 %v994
    %1859 = vmatpush.bf16.msra.mxu0 %v990
    %1860 = vmatpush.bf16.msra.mxu0 %v986
    %1861 = vmatmul.bf16.gmra.mxu0 %v1825
    %v1862 = vpop.f32.mrf.mxu0
    %v1863 = vadd.f32 %v314, %v1862
    %v1864 = vpop.f32.mrf.mxu0
    %1865 = vdwg.mxu0
    %1866 = vmatpush.bf16.msra.mxu0 %v1046
    %1867 = vmatpush.bf16.msra.mxu0 %v1042
    %1868 = vmatpush.bf16.msra.mxu0 %v1038
    %1869 = vmatpush.bf16.msra.mxu0 %v1034
    %1870 = vmatpush.bf16.msra.mxu0 %v1030
    %1871 = vmatpush.bf16.msra.mxu0 %v1026
    %1872 = vmatpush.bf16.msra.mxu0 %v1022
    %1873 = vmatpush.bf16.msra.mxu0 %v1018
    %1874 = vmatmul.bf16.gmra.mxu0 %v1826
    %v1875 = vpop.f32.mrf.mxu0
    %v1876 = vadd.f32 %v1863, %v1875
    %v1877 = vpop.f32.mrf.mxu0
    %1878 = vdwg.mxu0
    %1879 = vmatpush.bf16.msra.mxu0 %v1015
    %1880 = vmatpush.bf16.msra.mxu0 %v1011
    %1881 = vmatpush.bf16.msra.mxu0 %v1007
    %1882 = vmatpush.bf16.msra.mxu0 %v1003
    %1883 = vmatpush.bf16.msra.mxu0 %v999
    %1884 = vmatpush.bf16.msra.mxu0 %v995
    %1885 = vmatpush.bf16.msra.mxu0 %v991
    %1886 = vmatpush.bf16.msra.mxu0 %v987
    %1887 = vmatmul.bf16.gmra.mxu0 %v1825
    %v1888 = vpop.f32.mrf.mxu0
    %v1889 = vadd.f32 %v315, %v1888
    %v1890 = vpop.f32.mrf.mxu0
    %1891 = vdwg.mxu0
    %1892 = vmatpush.bf16.msra.mxu0 %v1047
    %1893 = vmatpush.bf16.msra.mxu0 %v1043
    %1894 = vmatpush.bf16.msra.mxu0 %v1039
    %1895 = vmatpush.bf16.msra.mxu0 %v1035
    %1896 = vmatpush.bf16.msra.mxu0 %v1031
    %1897 = vmatpush.bf16.msra.mxu0 %v1027
    %1898 = vmatpush.bf16.msra.mxu0 %v1023
    %1899 = vmatpush.bf16.msra.mxu0 %v1019
    %1900 = vmatmul.bf16.gmra.mxu0 %v1826
    %v1901 = vpop.f32.mrf.mxu0
    %v1902 = vadd.f32 %v1889, %v1901
    %v1903 = vpop.f32.mrf.mxu0
    %1904 = vdwg.mxu0
    %1905 = vmatpush.bf16.msra.mxu0 %v1016
    %1906 = vmatpush.bf16.msra.mxu0 %v1012
    %1907 = vmatpush.bf16.msra.mxu0 %v1008
    %1908 = vmatpush.bf16.msra.mxu0 %v1004
    %1909 = vmatpush.bf16.msra.mxu0 %v1000
    %1910 = vmatpush.bf16.msra.mxu0 %v996
    %1911 = vmatpush.bf16.msra.mxu0 %v992
    %1912 = vmatpush.bf16.msra.mxu0 %v988
    %1913 = vmatmul.bf16.gmra.mxu0 %v1825
    %v1914 = vpop.f32.mrf.mxu0
    %v1915 = vadd.f32 %v316, %v1914
    %v1916 = vpop.f32.mrf.mxu0
    %1917 = vdwg.mxu0
    %1918 = vmatpush.bf16.msra.mxu0 %v1048
    %1919 = vmatpush.bf16.msra.mxu0 %v1044
    %1920 = vmatpush.bf16.msra.mxu0 %v1040
    %1921 = vmatpush.bf16.msra.mxu0 %v1036
    %1922 = vmatpush.bf16.msra.mxu0 %v1032
    %1923 = vmatpush.bf16.msra.mxu0 %v1028
    %1924 = vmatpush.bf16.msra.mxu0 %v1024
    %1925 = vmatpush.bf16.msra.mxu0 %v1020
    %1926 = vmatmul.bf16.gmra.mxu0 %v1826
    %v1927 = vpop.f32.mrf.mxu0
    %v1928 = vadd.f32 %v1915, %v1927
    %v1929 = vpop.f32.mrf.mxu0
    %1930 = vdwg.mxu0
    %v1931 = vxor.u32 %v1850, 2147483648
    %v1932 = vmul.f32 %v1931, 1.442695
    %v1933 = vpow.pop %v1932
    %v1934 = vadd.f32 %v1933, 1.0
    %v1935 = vrcp.pop %v1934
    %v1936 = vmul.f32 %v1934, %v1935
    %v1937 = vsub.f32 1.0, %v1936
    %v1938 = vmul.f32 %v1935, %v1937
    %v1939 = vadd.f32 %v1935, %v1938
    %vm1940 = vweird.f32 %v1934
    %vm1941 = vweird.f32 %v1935
    %vm1942 = vmor %vm1940, %vm1941
    %v1943 = vsel %vm1942, %v1935, %v1939
    %v1944 = vand.u32 2147483647, %v1934
    %vm1945 = vcmp.eq.f32.partialorder %v1944, 8.507059e+37
    %v1946 = vand.u32 %v1934, 2147483648
    %v1947 = vor.u32 1.1754944e-38, %v1946
    %v1948 = vsel %vm1945, %v1947, %v1943
    %v1949 = vmul.f32 1.0, %v1948
    %v1950 = vxor.u32 %v1876, 2147483648
    %v1951 = vmul.f32 %v1950, 1.442695
    %v1952 = vpow.pop %v1951
    %v1953 = vadd.f32 %v1952, 1.0
    %v1954 = vrcp.pop %v1953
    %v1955 = vmul.f32 %v1953, %v1954
    %v1956 = vsub.f32 1.0, %v1955
    %v1957 = vmul.f32 %v1954, %v1956
    %v1958 = vadd.f32 %v1954, %v1957
    %vm1959 = vweird.f32 %v1953
    %vm1960 = vweird.f32 %v1954
    %vm1961 = vmor %vm1959, %vm1960
    %v1962 = vsel %vm1961, %v1954, %v1958
    %v1963 = vand.u32 2147483647, %v1953
    %vm1964 = vcmp.eq.f32.partialorder %v1963, 8.507059e+37
    %v1965 = vand.u32 %v1953, 2147483648
    %v1966 = vor.u32 1.1754944e-38, %v1965
    %v1967 = vsel %vm1964, %v1966, %v1962
    %v1968 = vmul.f32 1.0, %v1967
    %v1969 = vmul.f32 %v1949, %v1928
    %v1970 = vadd.f32 %v1902, %v1969
    %v1971 = vtanh.pop %v1970
    %v1972 = vsub.f32 1.0, %v1968
    %v1973 = vmul.f32 %v1972, %v1971
    %v1974 = vmul.f32 %v1968, %v1737
    %v1975 = vadd.f32 %v1973, %v1974
    %1976 = vmatpush.bf16.msra.mxu0 %v677
    %1977 = vmatpush.bf16.msra.mxu0 %v674
    %1978 = vmatpush.bf16.msra.mxu0 %v671
    %1979 = vmatpush.bf16.msra.mxu0 %v668
    %1980 = vmatpush.bf16.msra.mxu0 %v665
    %1981 = vmatpush.bf16.msra.mxu0 %v662
    %1982 = vmatpush.bf16.msra.mxu0 %v659
    %1983 = vmatpush.bf16.msra.mxu0 %v656
    %1984 = vmatmul.bf16.gmra.mxu0 %v1825
    %v1985 = vpop.f32.mrf.mxu0
    %v1986 = vadd.f32 0.0, %v1985
    %v1987 = vpop.f32.mrf.mxu0
    %1988 = vdwg.mxu0
    %1989 = vmatpush.bf16.msra.mxu0 %v678
    %1990 = vmatpush.bf16.msra.mxu0 %v675
    %1991 = vmatpush.bf16.msra.mxu0 %v672
    %1992 = vmatpush.bf16.msra.mxu0 %v669
    %1993 = vmatpush.bf16.msra.mxu0 %v666
    %1994 = vmatpush.bf16.msra.mxu0 %v663
    %1995 = vmatpush.bf16.msra.mxu0 %v660
    %1996 = vmatpush.bf16.msra.mxu0 %v657
    %1997 = vmatmul.bf16.gmra.mxu0 %v1825
    %v1998 = vpop.f32.mrf.mxu0
    %v1999 = vadd.f32 0.0, %v1998
    %v2000 = vpop.f32.mrf.mxu0
    %2001 = vdwg.mxu0
    %2002 = vmatpush.bf16.msra.mxu0 %v679
    %2003 = vmatpush.bf16.msra.mxu0 %v676
    %2004 = vmatpush.bf16.msra.mxu0 %v673
    %2005 = vmatpush.bf16.msra.mxu0 %v670
    %2006 = vmatpush.bf16.msra.mxu0 %v667
    %2007 = vmatpush.bf16.msra.mxu0 %v664
    %2008 = vmatpush.bf16.msra.mxu0 %v661
    %2009 = vmatpush.bf16.msra.mxu0 %v658
    %2010 = vmatmul.bf16.gmra.mxu0 %v1825
    %v2011 = vpop.f32.mrf.mxu0
    %v2012 = vadd.f32 0.0, %v2011
    %v2013 = vpop.f32.mrf.mxu0
    %2014 = vdwg.mxu0
    %v2015 = vadd.f32 %v509, %v1986
    %v2016 = vxor.u32 %v2015, 2147483648
    %v2017 = vmul.f32 %v2016, 1.442695
    %v2018 = vpow.pop %v2017
    %v2019 = vadd.f32 %v2018, 1.0
    %v2020 = vrcp.pop %v2019
    %v2021 = vmul.f32 %v2019, %v2020
    %v2022 = vsub.f32 1.0, %v2021
    %v2023 = vmul.f32 %v2020, %v2022
    %v2024 = vadd.f32 %v2020, %v2023
    %vm2025 = vweird.f32 %v2019
    %vm2026 = vweird.f32 %v2020
    %vm2027 = vmor %vm2025, %vm2026
    %v2028 = vsel %vm2027, %v2020, %v2024
    %v2029 = vand.u32 2147483647, %v2019
    %vm2030 = vcmp.eq.f32.partialorder %v2029, 8.507059e+37
    %v2031 = vand.u32 %v2019, 2147483648
    %v2032 = vor.u32 1.1754944e-38, %v2031
    %v2033 = vsel %vm2030, %v2032, %v2028
    %v2034 = vmul.f32 1.0, %v2033
    %v2035 = vadd.f32 %v538, %v1999
    %v2036 = vxor.u32 %v2035, 2147483648
    %v2037 = vmul.f32 %v2036, 1.442695
    %v2038 = vpow.pop %v2037
    %v2039 = vadd.f32 %v2038, 1.0
    %v2040 = vrcp.pop %v2039
    %v2041 = vmul.f32 %v2039, %v2040
    %v2042 = vsub.f32 1.0, %v2041
    %v2043 = vmul.f32 %v2040, %v2042
    %v2044 = vadd.f32 %v2040, %v2043
    %vm2045 = vweird.f32 %v2039
    %vm2046 = vweird.f32 %v2040
    %vm2047 = vmor %vm2045, %vm2046
    %v2048 = vsel %vm2047, %v2040, %v2044
    %v2049 = vand.u32 2147483647, %v2039
    %vm2050 = vcmp.eq.f32.partialorder %v2049, 8.507059e+37
    %v2051 = vand.u32 %v2039, 2147483648
    %v2052 = vor.u32 1.1754944e-38, %v2051
    %v2053 = vsel %vm2050, %v2052, %v2048
    %v2054 = vmul.f32 1.0, %v2053
    %v2055 = vadd.f32 %v2012, %v344
    %v2056 = vmul.f32 %v2034, %v2055
    %v2057 = vadd.f32 %v567, %v2056
    %v2058 = vtanh.pop %v2057
    %v2059 = vsub.f32 1.0, %v2054
    %v2060 = vmul.f32 %v2059, %v2058
    %v2061 = vmul.f32 %v2054, %v1824
    %v2062 = vadd.f32 %v2060, %v2061
    %v2063 = vpack.c.bf16 %v2062, %v2062
    %v2064 = vpack.c.bf16 %v1975, %v1975
    %2065 = vmatpush.bf16.msra.mxu0 %v1013
    %2066 = vmatpush.bf16.msra.mxu0 %v1009
    %2067 = vmatpush.bf16.msra.mxu0 %v1005
    %2068 = vmatpush.bf16.msra.mxu0 %v1001
    %2069 = vmatpush.bf16.msra.mxu0 %v997
    %2070 = vmatpush.bf16.msra.mxu0 %v993
    %2071 = vmatpush.bf16.msra.mxu0 %v989
    %2072 = vmatpush.bf16.msra.mxu0 %v985
    %2073 = vmatmul.bf16.gmra.mxu0 %v2063
    %v2074 = vpop.f32.mrf.mxu0
    %v2075 = vadd.f32 %v313, %v2074
    %v2076 = vpop.f32.mrf.mxu0
    %2077 = vdwg.mxu0
    %2078 = vmatpush.bf16.msra.mxu0 %v1045
    %2079 = vmatpush.bf16.msra.mxu0 %v1041
    %2080 = vmatpush.bf16.msra.mxu0 %v1037
    %2081 = vmatpush.bf16.msra.mxu0 %v1033
    %2082 = vmatpush.bf16.msra.mxu0 %v1029
    %2083 = vmatpush.bf16.msra.mxu0 %v1025
    %2084 = vmatpush.bf16.msra.mxu0 %v1021
    %2085 = vmatpush.bf16.msra.mxu0 %v1017
    %2086 = vmatmul.bf16.gmra.mxu0 %v2064
    %v2087 = vpop.f32.mrf.mxu0
    %v2088 = vadd.f32 %v2075, %v2087
    %v2089 = vpop.f32.mrf.mxu0
    %2090 = vdwg.mxu0
    %2091 = vmatpush.bf16.msra.mxu0 %v1014
    %2092 = vmatpush.bf16.msra.mxu0 %v1010
    %2093 = vmatpush.bf16.msra.mxu0 %v1006
    %2094 = vmatpush.bf16.msra.mxu0 %v1002
    %2095 = vmatpush.bf16.msra.mxu0 %v998
    %2096 = vmatpush.bf16.msra.mxu0 %v994
    %2097 = vmatpush.bf16.msra.mxu0 %v990
    %2098 = vmatpush.bf16.msra.mxu0 %v986
    %2099 = vmatmul.bf16.gmra.mxu0 %v2063
    %v2100 = vpop.f32.mrf.mxu0
    %v2101 = vadd.f32 %v314, %v2100
    %v2102 = vpop.f32.mrf.mxu0
    %2103 = vdwg.mxu0
    %2104 = vmatpush.bf16.msra.mxu0 %v1046
    %2105 = vmatpush.bf16.msra.mxu0 %v1042
    %2106 = vmatpush.bf16.msra.mxu0 %v1038
    %2107 = vmatpush.bf16.msra.mxu0 %v1034
    %2108 = vmatpush.bf16.msra.mxu0 %v1030
    %2109 = vmatpush.bf16.msra.mxu0 %v1026
    %2110 = vmatpush.bf16.msra.mxu0 %v1022
    %2111 = vmatpush.bf16.msra.mxu0 %v1018
    %2112 = vmatmul.bf16.gmra.mxu0 %v2064
    %v2113 = vpop.f32.mrf.mxu0
    %v2114 = vadd.f32 %v2101, %v2113
    %v2115 = vpop.f32.mrf.mxu0
    %2116 = vdwg.mxu0
    %2117 = vmatpush.bf16.msra.mxu0 %v1015
    %2118 = vmatpush.bf16.msra.mxu0 %v1011
    %2119 = vmatpush.bf16.msra.mxu0 %v1007
    %2120 = vmatpush.bf16.msra.mxu0 %v1003
    %2121 = vmatpush.bf16.msra.mxu0 %v999
    %2122 = vmatpush.bf16.msra.mxu0 %v995
    %2123 = vmatpush.bf16.msra.mxu0 %v991
    %2124 = vmatpush.bf16.msra.mxu0 %v987
    %2125 = vmatmul.bf16.gmra.mxu0 %v2063
    %v2126 = vpop.f32.mrf.mxu0
    %v2127 = vadd.f32 %v315, %v2126
    %v2128 = vpop.f32.mrf.mxu0
    %2129 = vdwg.mxu0
    %2130 = vmatpush.bf16.msra.mxu0 %v1047
    %2131 = vmatpush.bf16.msra.mxu0 %v1043
    %2132 = vmatpush.bf16.msra.mxu0 %v1039
    %2133 = vmatpush.bf16.msra.mxu0 %v1035
    %2134 = vmatpush.bf16.msra.mxu0 %v1031
    %2135 = vmatpush.bf16.msra.mxu0 %v1027
    %2136 = vmatpush.bf16.msra.mxu0 %v1023
    %2137 = vmatpush.bf16.msra.mxu0 %v1019
    %2138 = vmatmul.bf16.gmra.mxu0 %v2064
    %v2139 = vpop.f32.mrf.mxu0
    %v2140 = vadd.f32 %v2127, %v2139
    %v2141 = vpop.f32.mrf.mxu0
    %2142 = vdwg.mxu0
    %2143 = vmatpush.bf16.msra.mxu0 %v1016
    %2144 = vmatpush.bf16.msra.mxu0 %v1012
    %2145 = vmatpush.bf16.msra.mxu0 %v1008
    %2146 = vmatpush.bf16.msra.mxu0 %v1004
    %2147 = vmatpush.bf16.msra.mxu0 %v1000
    %2148 = vmatpush.bf16.msra.mxu0 %v996
    %2149 = vmatpush.bf16.msra.mxu0 %v992
    %2150 = vmatpush.bf16.msra.mxu0 %v988
    %2151 = vmatmul.bf16.gmra.mxu0 %v2063
    %v2152 = vpop.f32.mrf.mxu0
    %v2153 = vadd.f32 %v316, %v2152
    %v2154 = vpop.f32.mrf.mxu0
    %2155 = vdwg.mxu0
    %2156 = vmatpush.bf16.msra.mxu0 %v1048
    %2157 = vmatpush.bf16.msra.mxu0 %v1044
    %2158 = vmatpush.bf16.msra.mxu0 %v1040
    %2159 = vmatpush.bf16.msra.mxu0 %v1036
    %2160 = vmatpush.bf16.msra.mxu0 %v1032
    %2161 = vmatpush.bf16.msra.mxu0 %v1028
    %2162 = vmatpush.bf16.msra.mxu0 %v1024
    %2163 = vmatpush.bf16.msra.mxu0 %v1020
    %2164 = vmatmul.bf16.gmra.mxu0 %v2064
    %v2165 = vpop.f32.mrf.mxu0
    %v2166 = vadd.f32 %v2153, %v2165
    %v2167 = vpop.f32.mrf.mxu0
    %2168 = vdwg.mxu0
    %v2169 = vxor.u32 %v2088, 2147483648
    %v2170 = vmul.f32 %v2169, 1.442695
    %v2171 = vpow.pop %v2170
    %v2172 = vadd.f32 %v2171, 1.0
    %v2173 = vrcp.pop %v2172
    %v2174 = vmul.f32 %v2172, %v2173
    %v2175 = vsub.f32 1.0, %v2174
    %v2176 = vmul.f32 %v2173, %v2175
    %v2177 = vadd.f32 %v2173, %v2176
    %vm2178 = vweird.f32 %v2172
    %vm2179 = vweird.f32 %v2173
    %vm2180 = vmor %vm2178, %vm2179
    %v2181 = vsel %vm2180, %v2173, %v2177
    %v2182 = vand.u32 2147483647, %v2172
    %vm2183 = vcmp.eq.f32.partialorder %v2182, 8.507059e+37
    %v2184 = vand.u32 %v2172, 2147483648
    %v2185 = vor.u32 1.1754944e-38, %v2184
    %v2186 = vsel %vm2183, %v2185, %v2181
    %v2187 = vmul.f32 1.0, %v2186
    %v2188 = vxor.u32 %v2114, 2147483648
    %v2189 = vmul.f32 %v2188, 1.442695
    %v2190 = vpow.pop %v2189
    %v2191 = vadd.f32 %v2190, 1.0
    %v2192 = vrcp.pop %v2191
    %v2193 = vmul.f32 %v2191, %v2192
    %v2194 = vsub.f32 1.0, %v2193
    %v2195 = vmul.f32 %v2192, %v2194
    %v2196 = vadd.f32 %v2192, %v2195
    %vm2197 = vweird.f32 %v2191
    %vm2198 = vweird.f32 %v2192
    %vm2199 = vmor %vm2197, %vm2198
    %v2200 = vsel %vm2199, %v2192, %v2196
    %v2201 = vand.u32 2147483647, %v2191
    %vm2202 = vcmp.eq.f32.partialorder %v2201, 8.507059e+37
    %v2203 = vand.u32 %v2191, 2147483648
    %v2204 = vor.u32 1.1754944e-38, %v2203
    %v2205 = vsel %vm2202, %v2204, %v2200
    %v2206 = vmul.f32 1.0, %v2205
    %v2207 = vmul.f32 %v2187, %v2166
    %v2208 = vadd.f32 %v2140, %v2207
    %v2209 = vtanh.pop %v2208
    %v2210 = vsub.f32 1.0, %v2206
    %v2211 = vmul.f32 %v2210, %v2209
    %v2212 = vmul.f32 %v2206, %v1975
    %v2213 = vadd.f32 %v2211, %v2212
    %2214 = vmatpush.bf16.msra.mxu0 %v677
    %2215 = vmatpush.bf16.msra.mxu0 %v674
    %2216 = vmatpush.bf16.msra.mxu0 %v671
    %2217 = vmatpush.bf16.msra.mxu0 %v668
    %2218 = vmatpush.bf16.msra.mxu0 %v665
    %2219 = vmatpush.bf16.msra.mxu0 %v662
    %2220 = vmatpush.bf16.msra.mxu0 %v659
    %2221 = vmatpush.bf16.msra.mxu0 %v656
    %2222 = vmatmul.bf16.gmra.mxu0 %v2063
    %v2223 = vpop.f32.mrf.mxu0
    %v2224 = vadd.f32 0.0, %v2223
    %v2225 = vpop.f32.mrf.mxu0
    %2226 = vdwg.mxu0
    %2227 = vmatpush.bf16.msra.mxu0 %v678
    %2228 = vmatpush.bf16.msra.mxu0 %v675
    %2229 = vmatpush.bf16.msra.mxu0 %v672
    %2230 = vmatpush.bf16.msra.mxu0 %v669
    %2231 = vmatpush.bf16.msra.mxu0 %v666
    %2232 = vmatpush.bf16.msra.mxu0 %v663
    %2233 = vmatpush.bf16.msra.mxu0 %v660
    %2234 = vmatpush.bf16.msra.mxu0 %v657
    %2235 = vmatmul.bf16.gmra.mxu0 %v2063
    %v2236 = vpop.f32.mrf.mxu0
    %v2237 = vadd.f32 0.0, %v2236
    %v2238 = vpop.f32.mrf.mxu0
    %2239 = vdwg.mxu0
    %2240 = vmatpush.bf16.msra.mxu0 %v679
    %2241 = vmatpush.bf16.msra.mxu0 %v676
    %2242 = vmatpush.bf16.msra.mxu0 %v673
    %2243 = vmatpush.bf16.msra.mxu0 %v670
    %2244 = vmatpush.bf16.msra.mxu0 %v667
    %2245 = vmatpush.bf16.msra.mxu0 %v664
    %2246 = vmatpush.bf16.msra.mxu0 %v661
    %2247 = vmatpush.bf16.msra.mxu0 %v658
    %2248 = vmatmul.bf16.gmra.mxu0 %v2063
    %v2249 = vpop.f32.mrf.mxu0
    %v2250 = vadd.f32 0.0, %v2249
    %v2251 = vpop.f32.mrf.mxu0
    %2252 = vdwg.mxu0
    %v2253 = vadd.f32 %v511, %v2224
    %v2254 = vxor.u32 %v2253, 2147483648
    %v2255 = vmul.f32 %v2254, 1.442695
    %v2256 = vpow.pop %v2255
    %v2257 = vadd.f32 %v2256, 1.0
    %v2258 = vrcp.pop %v2257
    %v2259 = vmul.f32 %v2257, %v2258
    %v2260 = vsub.f32 1.0, %v2259
    %v2261 = vmul.f32 %v2258, %v2260
    %v2262 = vadd.f32 %v2258, %v2261
    %vm2263 = vweird.f32 %v2257
    %vm2264 = vweird.f32 %v2258
    %vm2265 = vmor %vm2263, %vm2264
    %v2266 = vsel %vm2265, %v2258, %v2262
    %v2267 = vand.u32 2147483647, %v2257
    %vm2268 = vcmp.eq.f32.partialorder %v2267, 8.507059e+37
    %v2269 = vand.u32 %v2257, 2147483648
    %v2270 = vor.u32 1.1754944e-38, %v2269
    %v2271 = vsel %vm2268, %v2270, %v2266
    %v2272 = vmul.f32 1.0, %v2271
    %v2273 = vadd.f32 %v540, %v2237
    %v2274 = vxor.u32 %v2273, 2147483648
    %v2275 = vmul.f32 %v2274, 1.442695
    %v2276 = vpow.pop %v2275
    %v2277 = vadd.f32 %v2276, 1.0
    %v2278 = vrcp.pop %v2277
    %v2279 = vmul.f32 %v2277, %v2278
    %v2280 = vsub.f32 1.0, %v2279
    %v2281 = vmul.f32 %v2278, %v2280
    %v2282 = vadd.f32 %v2278, %v2281
    %vm2283 = vweird.f32 %v2277
    %vm2284 = vweird.f32 %v2278
    %vm2285 = vmor %vm2283, %vm2284
    %v2286 = vsel %vm2285, %v2278, %v2282
    %v2287 = vand.u32 2147483647, %v2277
    %vm2288 = vcmp.eq.f32.partialorder %v2287, 8.507059e+37
    %v2289 = vand.u32 %v2277, 2147483648
    %v2290 = vor.u32 1.1754944e-38, %v2289
    %v2291 = vsel %vm2288, %v2290, %v2286
    %v2292 = vmul.f32 1.0, %v2291
    %v2293 = vadd.f32 %v2250, %v344
    %v2294 = vmul.f32 %v2272, %v2293
    %v2295 = vadd.f32 %v569, %v2294
    %v2296 = vtanh.pop %v2295
    %v2297 = vsub.f32 1.0, %v2292
    %v2298 = vmul.f32 %v2297, %v2296
    %v2299 = vmul.f32 %v2292, %v2062
    %v2300 = vadd.f32 %v2298, %v2299
    %v2301 = vpack.c.bf16 %v2300, %v2300
    %v2302 = vpack.c.bf16 %v2213, %v2213
    %2303 = vmatpush.bf16.msra.mxu0 %v1013
    %2304 = vmatpush.bf16.msra.mxu0 %v1009
    %2305 = vmatpush.bf16.msra.mxu0 %v1005
    %2306 = vmatpush.bf16.msra.mxu0 %v1001
    %2307 = vmatpush.bf16.msra.mxu0 %v997
    %2308 = vmatpush.bf16.msra.mxu0 %v993
    %2309 = vmatpush.bf16.msra.mxu0 %v989
    %2310 = vmatpush.bf16.msra.mxu0 %v985
    %2311 = vmatmul.bf16.gmra.mxu0 %v2301
    %v2312 = vpop.f32.mrf.mxu0
    %v2313 = vadd.f32 %v313, %v2312
    %v2314 = vpop.f32.mrf.mxu0
    %2315 = vdwg.mxu0
    %2316 = vmatpush.bf16.msra.mxu0 %v1045
    %2317 = vmatpush.bf16.msra.mxu0 %v1041
    %2318 = vmatpush.bf16.msra.mxu0 %v1037
    %2319 = vmatpush.bf16.msra.mxu0 %v1033
    %2320 = vmatpush.bf16.msra.mxu0 %v1029
    %2321 = vmatpush.bf16.msra.mxu0 %v1025
    %2322 = vmatpush.bf16.msra.mxu0 %v1021
    %2323 = vmatpush.bf16.msra.mxu0 %v1017
    %2324 = vmatmul.bf16.gmra.mxu0 %v2302
    %v2325 = vpop.f32.mrf.mxu0
    %v2326 = vadd.f32 %v2313, %v2325
    %v2327 = vpop.f32.mrf.mxu0
    %2328 = vdwg.mxu0
    %2329 = vmatpush.bf16.msra.mxu0 %v1014
    %2330 = vmatpush.bf16.msra.mxu0 %v1010
    %2331 = vmatpush.bf16.msra.mxu0 %v1006
    %2332 = vmatpush.bf16.msra.mxu0 %v1002
    %2333 = vmatpush.bf16.msra.mxu0 %v998
    %2334 = vmatpush.bf16.msra.mxu0 %v994
    %2335 = vmatpush.bf16.msra.mxu0 %v990
    %2336 = vmatpush.bf16.msra.mxu0 %v986
    %2337 = vmatmul.bf16.gmra.mxu0 %v2301
    %v2338 = vpop.f32.mrf.mxu0
    %v2339 = vadd.f32 %v314, %v2338
    %v2340 = vpop.f32.mrf.mxu0
    %2341 = vdwg.mxu0
    %2342 = vmatpush.bf16.msra.mxu0 %v1046
    %2343 = vmatpush.bf16.msra.mxu0 %v1042
    %2344 = vmatpush.bf16.msra.mxu0 %v1038
    %2345 = vmatpush.bf16.msra.mxu0 %v1034
    %2346 = vmatpush.bf16.msra.mxu0 %v1030
    %2347 = vmatpush.bf16.msra.mxu0 %v1026
    %2348 = vmatpush.bf16.msra.mxu0 %v1022
    %2349 = vmatpush.bf16.msra.mxu0 %v1018
    %2350 = vmatmul.bf16.gmra.mxu0 %v2302
    %v2351 = vpop.f32.mrf.mxu0
    %v2352 = vadd.f32 %v2339, %v2351
    %v2353 = vpop.f32.mrf.mxu0
    %2354 = vdwg.mxu0
    %2355 = vmatpush.bf16.msra.mxu0 %v1015
    %2356 = vmatpush.bf16.msra.mxu0 %v1011
    %2357 = vmatpush.bf16.msra.mxu0 %v1007
    %2358 = vmatpush.bf16.msra.mxu0 %v1003
    %2359 = vmatpush.bf16.msra.mxu0 %v999
    %2360 = vmatpush.bf16.msra.mxu0 %v995
    %2361 = vmatpush.bf16.msra.mxu0 %v991
    %2362 = vmatpush.bf16.msra.mxu0 %v987
    %2363 = vmatmul.bf16.gmra.mxu0 %v2301
    %v2364 = vpop.f32.mrf.mxu0
    %v2365 = vadd.f32 %v315, %v2364
    %v2366 = vpop.f32.mrf.mxu0
    %2367 = vdwg.mxu0
    %2368 = vmatpush.bf16.msra.mxu0 %v1047
    %2369 = vmatpush.bf16.msra.mxu0 %v1043
    %2370 = vmatpush.bf16.msra.mxu0 %v1039
    %2371 = vmatpush.bf16.msra.mxu0 %v1035
    %2372 = vmatpush.bf16.msra.mxu0 %v1031
    %2373 = vmatpush.bf16.msra.mxu0 %v1027
    %2374 = vmatpush.bf16.msra.mxu0 %v1023
    %2375 = vmatpush.bf16.msra.mxu0 %v1019
    %2376 = vmatmul.bf16.gmra.mxu0 %v2302
    %v2377 = vpop.f32.mrf.mxu0
    %v2378 = vadd.f32 %v2365, %v2377
    %v2379 = vpop.f32.mrf.mxu0
    %2380 = vdwg.mxu0
    %2381 = vmatpush.bf16.msra.mxu0 %v1016
    %2382 = vmatpush.bf16.msra.mxu0 %v1012
    %2383 = vmatpush.bf16.msra.mxu0 %v1008
    %2384 = vmatpush.bf16.msra.mxu0 %v1004
    %2385 = vmatpush.bf16.msra.mxu0 %v1000
    %2386 = vmatpush.bf16.msra.mxu0 %v996
    %2387 = vmatpush.bf16.msra.mxu0 %v992
    %2388 = vmatpush.bf16.msra.mxu0 %v988
    %2389 = vmatmul.bf16.gmra.mxu0 %v2301
    %v2390 = vpop.f32.mrf.mxu0
    %v2391 = vadd.f32 %v316, %v2390
    %v2392 = vpop.f32.mrf.mxu0
    %2393 = vdwg.mxu0
    %2394 = vmatpush.bf16.msra.mxu0 %v1048
    %2395 = vmatpush.bf16.msra.mxu0 %v1044
    %2396 = vmatpush.bf16.msra.mxu0 %v1040
    %2397 = vmatpush.bf16.msra.mxu0 %v1036
    %2398 = vmatpush.bf16.msra.mxu0 %v1032
    %2399 = vmatpush.bf16.msra.mxu0 %v1028
    %2400 = vmatpush.bf16.msra.mxu0 %v1024
    %2401 = vmatpush.bf16.msra.mxu0 %v1020
    %2402 = vmatmul.bf16.gmra.mxu0 %v2302
    %v2403 = vpop.f32.mrf.mxu0
    %v2404 = vadd.f32 %v2391, %v2403
    %v2405 = vpop.f32.mrf.mxu0
    %2406 = vdwg.mxu0
    %v2407 = vxor.u32 %v2326, 2147483648
    %v2408 = vmul.f32 %v2407, 1.442695
    %v2409 = vpow.pop %v2408
    %v2410 = vadd.f32 %v2409, 1.0
    %v2411 = vrcp.pop %v2410
    %v2412 = vmul.f32 %v2410, %v2411
    %v2413 = vsub.f32 1.0, %v2412
    %v2414 = vmul.f32 %v2411, %v2413
    %v2415 = vadd.f32 %v2411, %v2414
    %vm2416 = vweird.f32 %v2410
    %vm2417 = vweird.f32 %v2411
    %vm2418 = vmor %vm2416, %vm2417
    %v2419 = vsel %vm2418, %v2411, %v2415
    %v2420 = vand.u32 2147483647, %v2410
    %vm2421 = vcmp.eq.f32.partialorder %v2420, 8.507059e+37
    %v2422 = vand.u32 %v2410, 2147483648
    %v2423 = vor.u32 1.1754944e-38, %v2422
    %v2424 = vsel %vm2421, %v2423, %v2419
    %v2425 = vmul.f32 1.0, %v2424
    %v2426 = vxor.u32 %v2352, 2147483648
    %v2427 = vmul.f32 %v2426, 1.442695
    %v2428 = vpow.pop %v2427
    %v2429 = vadd.f32 %v2428, 1.0
    %v2430 = vrcp.pop %v2429
    %v2431 = vmul.f32 %v2429, %v2430
    %v2432 = vsub.f32 1.0, %v2431
    %v2433 = vmul.f32 %v2430, %v2432
    %v2434 = vadd.f32 %v2430, %v2433
    %vm2435 = vweird.f32 %v2429
    %vm2436 = vweird.f32 %v2430
    %vm2437 = vmor %vm2435, %vm2436
    %v2438 = vsel %vm2437, %v2430, %v2434
    %v2439 = vand.u32 2147483647, %v2429
    %vm2440 = vcmp.eq.f32.partialorder %v2439, 8.507059e+37
    %v2441 = vand.u32 %v2429, 2147483648
    %v2442 = vor.u32 1.1754944e-38, %v2441
    %v2443 = vsel %vm2440, %v2442, %v2438
    %v2444 = vmul.f32 1.0, %v2443
    %v2445 = vmul.f32 %v2425, %v2404
    %v2446 = vadd.f32 %v2378, %v2445
    %v2447 = vtanh.pop %v2446
    %v2448 = vsub.f32 1.0, %v2444
    %v2449 = vmul.f32 %v2448, %v2447
    %v2450 = vmul.f32 %v2444, %v2213
    %v2451 = vadd.f32 %v2449, %v2450
    %2452 = vmatpush.bf16.msra.mxu0 %v677
    %2453 = vmatpush.bf16.msra.mxu0 %v674
    %2454 = vmatpush.bf16.msra.mxu0 %v671
    %2455 = vmatpush.bf16.msra.mxu0 %v668
    %2456 = vmatpush.bf16.msra.mxu0 %v665
    %2457 = vmatpush.bf16.msra.mxu0 %v662
    %2458 = vmatpush.bf16.msra.mxu0 %v659
    %2459 = vmatpush.bf16.msra.mxu0 %v656
    %2460 = vmatmul.bf16.gmra.mxu0 %v2301
    %v2461 = vpop.f32.mrf.mxu0
    %v2462 = vadd.f32 0.0, %v2461
    %v2463 = vpop.f32.mrf.mxu0
    %2464 = vdwg.mxu0
    %2465 = vmatpush.bf16.msra.mxu0 %v678
    %2466 = vmatpush.bf16.msra.mxu0 %v675
    %2467 = vmatpush.bf16.msra.mxu0 %v672
    %2468 = vmatpush.bf16.msra.mxu0 %v669
    %2469 = vmatpush.bf16.msra.mxu0 %v666
    %2470 = vmatpush.bf16.msra.mxu0 %v663
    %2471 = vmatpush.bf16.msra.mxu0 %v660
    %2472 = vmatpush.bf16.msra.mxu0 %v657
    %2473 = vmatmul.bf16.gmra.mxu0 %v2301
    %v2474 = vpop.f32.mrf.mxu0
    %v2475 = vadd.f32 0.0, %v2474
    %v2476 = vpop.f32.mrf.mxu0
    %2477 = vdwg.mxu0
    %2478 = vmatpush.bf16.msra.mxu0 %v679
    %2479 = vmatpush.bf16.msra.mxu0 %v676
    %2480 = vmatpush.bf16.msra.mxu0 %v673
    %2481 = vmatpush.bf16.msra.mxu0 %v670
    %2482 = vmatpush.bf16.msra.mxu0 %v667
    %2483 = vmatpush.bf16.msra.mxu0 %v664
    %2484 = vmatpush.bf16.msra.mxu0 %v661
    %2485 = vmatpush.bf16.msra.mxu0 %v658
    %2486 = vmatmul.bf16.gmra.mxu0 %v2301
    %v2487 = vpop.f32.mrf.mxu0
    %v2488 = vadd.f32 0.0, %v2487
    %v2489 = vpop.f32.mrf.mxu0
    %2490 = vdwg.mxu0
    %v2491 = vadd.f32 %v514, %v2462
    %v2492 = vxor.u32 %v2491, 2147483648
    %v2493 = vmul.f32 %v2492, 1.442695
    %v2494 = vpow.pop %v2493
    %v2495 = vadd.f32 %v2494, 1.0
    %v2496 = vrcp.pop %v2495
    %v2497 = vmul.f32 %v2495, %v2496
    %v2498 = vsub.f32 1.0, %v2497
    %v2499 = vmul.f32 %v2496, %v2498
    %v2500 = vadd.f32 %v2496, %v2499
    %vm2501 = vweird.f32 %v2495
    %vm2502 = vweird.f32 %v2496
    %vm2503 = vmor %vm2501, %vm2502
    %v2504 = vsel %vm2503, %v2496, %v2500
    %v2505 = vand.u32 2147483647, %v2495
    %vm2506 = vcmp.eq.f32.partialorder %v2505, 8.507059e+37
    %v2507 = vand.u32 %v2495, 2147483648
    %v2508 = vor.u32 1.1754944e-38, %v2507
    %v2509 = vsel %vm2506, %v2508, %v2504
    %v2510 = vmul.f32 1.0, %v2509
    %v2511 = vadd.f32 %v543, %v2475
    %v2512 = vxor.u32 %v2511, 2147483648
    %v2513 = vmul.f32 %v2512, 1.442695
    %v2514 = vpow.pop %v2513
    %v2515 = vadd.f32 %v2514, 1.0
    %v2516 = vrcp.pop %v2515
    %v2517 = vmul.f32 %v2515, %v2516
    %v2518 = vsub.f32 1.0, %v2517
    %v2519 = vmul.f32 %v2516, %v2518
    %v2520 = vadd.f32 %v2516, %v2519
    %vm2521 = vweird.f32 %v2515
    %vm2522 = vweird.f32 %v2516
    %vm2523 = vmor %vm2521, %vm2522
    %v2524 = vsel %vm2523, %v2516, %v2520
    %v2525 = vand.u32 2147483647, %v2515
    %vm2526 = vcmp.eq.f32.partialorder %v2525, 8.507059e+37
    %v2527 = vand.u32 %v2515, 2147483648
    %v2528 = vor.u32 1.1754944e-38, %v2527
    %v2529 = vsel %vm2526, %v2528, %v2524
    %v2530 = vmul.f32 1.0, %v2529
    %v2531 = vadd.f32 %v2488, %v344
    %v2532 = vmul.f32 %v2510, %v2531
    %v2533 = vadd.f32 %v572, %v2532
    %v2534 = vtanh.pop %v2533
    %v2535 = vsub.f32 1.0, %v2530
    %v2536 = vmul.f32 %v2535, %v2534
    %v2537 = vmul.f32 %v2530, %v2300
    %v2538 = vadd.f32 %v2536, %v2537
    %v2539 = vpack.c.bf16 %v2538, %v2538
    %v2540 = vpack.c.bf16 %v2451, %v2451
    %2541 = vmatpush.bf16.msra.mxu0 %v1013
    %2542 = vmatpush.bf16.msra.mxu0 %v1009
    %2543 = vmatpush.bf16.msra.mxu0 %v1005
    %2544 = vmatpush.bf16.msra.mxu0 %v1001
    %2545 = vmatpush.bf16.msra.mxu0 %v997
    %2546 = vmatpush.bf16.msra.mxu0 %v993
    %2547 = vmatpush.bf16.msra.mxu0 %v989
    %2548 = vmatpush.bf16.msra.mxu0 %v985
    %2549 = vmatmul.bf16.gmra.mxu0 %v2539
    %v2550 = vpop.f32.mrf.mxu0
    %v2551 = vadd.f32 %v313, %v2550
    %v2552 = vpop.f32.mrf.mxu0
    %2553 = vdwg.mxu0
    %2554 = vmatpush.bf16.msra.mxu0 %v1045
    %2555 = vmatpush.bf16.msra.mxu0 %v1041
    %2556 = vmatpush.bf16.msra.mxu0 %v1037
    %2557 = vmatpush.bf16.msra.mxu0 %v1033
    %2558 = vmatpush.bf16.msra.mxu0 %v1029
    %2559 = vmatpush.bf16.msra.mxu0 %v1025
    %2560 = vmatpush.bf16.msra.mxu0 %v1021
    %2561 = vmatpush.bf16.msra.mxu0 %v1017
    %2562 = vmatmul.bf16.gmra.mxu0 %v2540
    %v2563 = vpop.f32.mrf.mxu0
    %v2564 = vadd.f32 %v2551, %v2563
    %v2565 = vpop.f32.mrf.mxu0
    %2566 = vdwg.mxu0
    %2567 = vmatpush.bf16.msra.mxu0 %v1014
    %2568 = vmatpush.bf16.msra.mxu0 %v1010
    %2569 = vmatpush.bf16.msra.mxu0 %v1006
    %2570 = vmatpush.bf16.msra.mxu0 %v1002
    %2571 = vmatpush.bf16.msra.mxu0 %v998
    %2572 = vmatpush.bf16.msra.mxu0 %v994
    %2573 = vmatpush.bf16.msra.mxu0 %v990
    %2574 = vmatpush.bf16.msra.mxu0 %v986
    %2575 = vmatmul.bf16.gmra.mxu0 %v2539
    %v2576 = vpop.f32.mrf.mxu0
    %v2577 = vadd.f32 %v314, %v2576
    %v2578 = vpop.f32.mrf.mxu0
    %2579 = vdwg.mxu0
    %2580 = vmatpush.bf16.msra.mxu0 %v1046
    %2581 = vmatpush.bf16.msra.mxu0 %v1042
    %2582 = vmatpush.bf16.msra.mxu0 %v1038
    %2583 = vmatpush.bf16.msra.mxu0 %v1034
    %2584 = vmatpush.bf16.msra.mxu0 %v1030
    %2585 = vmatpush.bf16.msra.mxu0 %v1026
    %2586 = vmatpush.bf16.msra.mxu0 %v1022
    %2587 = vmatpush.bf16.msra.mxu0 %v1018
    %2588 = vmatmul.bf16.gmra.mxu0 %v2540
    %v2589 = vpop.f32.mrf.mxu0
    %v2590 = vadd.f32 %v2577, %v2589
    %v2591 = vpop.f32.mrf.mxu0
    %2592 = vdwg.mxu0
    %2593 = vmatpush.bf16.msra.mxu0 %v1015
    %2594 = vmatpush.bf16.msra.mxu0 %v1011
    %2595 = vmatpush.bf16.msra.mxu0 %v1007
    %2596 = vmatpush.bf16.msra.mxu0 %v1003
    %2597 = vmatpush.bf16.msra.mxu0 %v999
    %2598 = vmatpush.bf16.msra.mxu0 %v995
    %2599 = vmatpush.bf16.msra.mxu0 %v991
    %2600 = vmatpush.bf16.msra.mxu0 %v987
    %2601 = vmatmul.bf16.gmra.mxu0 %v2539
    %v2602 = vpop.f32.mrf.mxu0
    %v2603 = vadd.f32 %v315, %v2602
    %v2604 = vpop.f32.mrf.mxu0
    %2605 = vdwg.mxu0
    %2606 = vmatpush.bf16.msra.mxu0 %v1047
    %2607 = vmatpush.bf16.msra.mxu0 %v1043
    %2608 = vmatpush.bf16.msra.mxu0 %v1039
    %2609 = vmatpush.bf16.msra.mxu0 %v1035
    %2610 = vmatpush.bf16.msra.mxu0 %v1031
    %2611 = vmatpush.bf16.msra.mxu0 %v1027
    %2612 = vmatpush.bf16.msra.mxu0 %v1023
    %2613 = vmatpush.bf16.msra.mxu0 %v1019
    %2614 = vmatmul.bf16.gmra.mxu0 %v2540
    %v2615 = vpop.f32.mrf.mxu0
    %v2616 = vadd.f32 %v2603, %v2615
    %v2617 = vpop.f32.mrf.mxu0
    %2618 = vdwg.mxu0
    %2619 = vmatpush.bf16.msra.mxu0 %v1016
    %2620 = vmatpush.bf16.msra.mxu0 %v1012
    %2621 = vmatpush.bf16.msra.mxu0 %v1008
    %2622 = vmatpush.bf16.msra.mxu0 %v1004
    %2623 = vmatpush.bf16.msra.mxu0 %v1000
    %2624 = vmatpush.bf16.msra.mxu0 %v996
    %2625 = vmatpush.bf16.msra.mxu0 %v992
    %2626 = vmatpush.bf16.msra.mxu0 %v988
    %2627 = vmatmul.bf16.gmra.mxu0 %v2539
    %v2628 = vpop.f32.mrf.mxu0
    %v2629 = vadd.f32 %v316, %v2628
    %v2630 = vpop.f32.mrf.mxu0
    %2631 = vdwg.mxu0
    %2632 = vmatpush.bf16.msra.mxu0 %v1048
    %2633 = vmatpush.bf16.msra.mxu0 %v1044
    %2634 = vmatpush.bf16.msra.mxu0 %v1040
    %2635 = vmatpush.bf16.msra.mxu0 %v1036
    %2636 = vmatpush.bf16.msra.mxu0 %v1032
    %2637 = vmatpush.bf16.msra.mxu0 %v1028
    %2638 = vmatpush.bf16.msra.mxu0 %v1024
    %2639 = vmatpush.bf16.msra.mxu0 %v1020
    %2640 = vmatmul.bf16.gmra.mxu0 %v2540
    %v2641 = vpop.f32.mrf.mxu0
    %v2642 = vadd.f32 %v2629, %v2641
    %v2643 = vpop.f32.mrf.mxu0
    %2644 = vdwg.mxu0
    %v2645 = vxor.u32 %v2564, 2147483648
    %v2646 = vmul.f32 %v2645, 1.442695
    %v2647 = vpow.pop %v2646
    %v2648 = vadd.f32 %v2647, 1.0
    %v2649 = vrcp.pop %v2648
    %v2650 = vmul.f32 %v2648, %v2649
    %v2651 = vsub.f32 1.0, %v2650
    %v2652 = vmul.f32 %v2649, %v2651
    %v2653 = vadd.f32 %v2649, %v2652
    %vm2654 = vweird.f32 %v2648
    %vm2655 = vweird.f32 %v2649
    %vm2656 = vmor %vm2654, %vm2655
    %v2657 = vsel %vm2656, %v2649, %v2653
    %v2658 = vand.u32 2147483647, %v2648
    %vm2659 = vcmp.eq.f32.partialorder %v2658, 8.507059e+37
    %v2660 = vand.u32 %v2648, 2147483648
    %v2661 = vor.u32 1.1754944e-38, %v2660
    %v2662 = vsel %vm2659, %v2661, %v2657
    %v2663 = vmul.f32 1.0, %v2662
    %v2664 = vxor.u32 %v2590, 2147483648
    %v2665 = vmul.f32 %v2664, 1.442695
    %v2666 = vpow.pop %v2665
    %v2667 = vadd.f32 %v2666, 1.0
    %v2668 = vrcp.pop %v2667
    %v2669 = vmul.f32 %v2667, %v2668
    %v2670 = vsub.f32 1.0, %v2669
    %v2671 = vmul.f32 %v2668, %v2670
    %v2672 = vadd.f32 %v2668, %v2671
    %vm2673 = vweird.f32 %v2667
    %vm2674 = vweird.f32 %v2668
    %vm2675 = vmor %vm2673, %vm2674
    %v2676 = vsel %vm2675, %v2668, %v2672
    %v2677 = vand.u32 2147483647, %v2667
    %vm2678 = vcmp.eq.f32.partialorder %v2677, 8.507059e+37
    %v2679 = vand.u32 %v2667, 2147483648
    %v2680 = vor.u32 1.1754944e-38, %v2679
    %v2681 = vsel %vm2678, %v2680, %v2676
    %v2682 = vmul.f32 1.0, %v2681
    %v2683 = vmul.f32 %v2663, %v2642
    %v2684 = vadd.f32 %v2616, %v2683
    %v2685 = vtanh.pop %v2684
    %v2686 = vsub.f32 1.0, %v2682
    %v2687 = vmul.f32 %v2686, %v2685
    %v2688 = vmul.f32 %v2682, %v2451
    %v2689 = vadd.f32 %v2687, %v2688
    %2690 = vmatpush.bf16.msra.mxu0 %v677
    %2691 = vmatpush.bf16.msra.mxu0 %v674
    %2692 = vmatpush.bf16.msra.mxu0 %v671
    %2693 = vmatpush.bf16.msra.mxu0 %v668
    %2694 = vmatpush.bf16.msra.mxu0 %v665
    %2695 = vmatpush.bf16.msra.mxu0 %v662
    %2696 = vmatpush.bf16.msra.mxu0 %v659
    %2697 = vmatpush.bf16.msra.mxu0 %v656
    %2698 = vmatmul.bf16.gmra.mxu0 %v2539
    %v2699 = vpop.f32.mrf.mxu0
    %v2700 = vadd.f32 0.0, %v2699
    %v2701 = vpop.f32.mrf.mxu0
    %2702 = vdwg.mxu0
    %2703 = vmatpush.bf16.msra.mxu0 %v678
    %2704 = vmatpush.bf16.msra.mxu0 %v675
    %2705 = vmatpush.bf16.msra.mxu0 %v672
    %2706 = vmatpush.bf16.msra.mxu0 %v669
    %2707 = vmatpush.bf16.msra.mxu0 %v666
    %2708 = vmatpush.bf16.msra.mxu0 %v663
    %2709 = vmatpush.bf16.msra.mxu0 %v660
    %2710 = vmatpush.bf16.msra.mxu0 %v657
    %2711 = vmatmul.bf16.gmra.mxu0 %v2539
    %v2712 = vpop.f32.mrf.mxu0
    %v2713 = vadd.f32 0.0, %v2712
    %v2714 = vpop.f32.mrf.mxu0
    %2715 = vdwg.mxu0
    %2716 = vmatpush.bf16.msra.mxu0 %v679
    %2717 = vmatpush.bf16.msra.mxu0 %v676
    %2718 = vmatpush.bf16.msra.mxu0 %v673
    %2719 = vmatpush.bf16.msra.mxu0 %v670
    %2720 = vmatpush.bf16.msra.mxu0 %v667
    %2721 = vmatpush.bf16.msra.mxu0 %v664
    %2722 = vmatpush.bf16.msra.mxu0 %v661
    %2723 = vmatpush.bf16.msra.mxu0 %v658
    %2724 = vmatmul.bf16.gmra.mxu0 %v2539
    %v2725 = vpop.f32.mrf.mxu0
    %v2726 = vadd.f32 0.0, %v2725
    %v2727 = vpop.f32.mrf.mxu0
    %2728 = vdwg.mxu0
    %v2729 = vadd.f32 %v516, %v2700
    %v2730 = vxor.u32 %v2729, 2147483648
    %v2731 = vmul.f32 %v2730, 1.442695
    %v2732 = vpow.pop %v2731
    %v2733 = vadd.f32 %v2732, 1.0
    %v2734 = vrcp.pop %v2733
    %v2735 = vmul.f32 %v2733, %v2734
    %v2736 = vsub.f32 1.0, %v2735
    %v2737 = vmul.f32 %v2734, %v2736
    %v2738 = vadd.f32 %v2734, %v2737
    %vm2739 = vweird.f32 %v2733
    %vm2740 = vweird.f32 %v2734
    %vm2741 = vmor %vm2739, %vm2740
    %v2742 = vsel %vm2741, %v2734, %v2738
    %v2743 = vand.u32 2147483647, %v2733
    %vm2744 = vcmp.eq.f32.partialorder %v2743, 8.507059e+37
    %v2745 = vand.u32 %v2733, 2147483648
    %v2746 = vor.u32 1.1754944e-38, %v2745
    %v2747 = vsel %vm2744, %v2746, %v2742
    %v2748 = vmul.f32 1.0, %v2747
    %v2749 = vadd.f32 %v545, %v2713
    %v2750 = vxor.u32 %v2749, 2147483648
    %v2751 = vmul.f32 %v2750, 1.442695
    %v2752 = vpow.pop %v2751
    %v2753 = vadd.f32 %v2752, 1.0
    %v2754 = vrcp.pop %v2753
    %v2755 = vmul.f32 %v2753, %v2754
    %v2756 = vsub.f32 1.0, %v2755
    %v2757 = vmul.f32 %v2754, %v2756
    %v2758 = vadd.f32 %v2754, %v2757
    %vm2759 = vweird.f32 %v2753
    %vm2760 = vweird.f32 %v2754
    %vm2761 = vmor %vm2759, %vm2760
    %v2762 = vsel %vm2761, %v2754, %v2758
    %v2763 = vand.u32 2147483647, %v2753
    %vm2764 = vcmp.eq.f32.partialorder %v2763, 8.507059e+37
    %v2765 = vand.u32 %v2753, 2147483648
    %v2766 = vor.u32 1.1754944e-38, %v2765
    %v2767 = vsel %vm2764, %v2766, %v2762
    %v2768 = vmul.f32 1.0, %v2767
    %v2769 = vadd.f32 %v2726, %v344
    %v2770 = vmul.f32 %v2748, %v2769
    %v2771 = vadd.f32 %v574, %v2770
    %v2772 = vtanh.pop %v2771
    %v2773 = vsub.f32 1.0, %v2768
    %v2774 = vmul.f32 %v2773, %v2772
    %v2775 = vmul.f32 %v2768, %v2538
    %v2776 = vadd.f32 %v2774, %v2775
    %v2777 = vpack.c.bf16 %v2776, %v2776
    %v2778 = vpack.c.bf16 %v2689, %v2689
    %2779 = vmatpush.bf16.msra.mxu0 %v1013
    %2780 = vmatpush.bf16.msra.mxu0 %v1009
    %2781 = vmatpush.bf16.msra.mxu0 %v1005
    %2782 = vmatpush.bf16.msra.mxu0 %v1001
    %2783 = vmatpush.bf16.msra.mxu0 %v997
    %2784 = vmatpush.bf16.msra.mxu0 %v993
    %2785 = vmatpush.bf16.msra.mxu0 %v989
    %2786 = vmatpush.bf16.msra.mxu0 %v985
    %2787 = vmatmul.bf16.gmra.mxu0 %v2777
    %v2788 = vpop.f32.mrf.mxu0
    %v2789 = vadd.f32 %v313, %v2788
    %v2790 = vpop.f32.mrf.mxu0
    %2791 = vdwg.mxu0
    %2792 = vmatpush.bf16.msra.mxu0 %v1045
    %2793 = vmatpush.bf16.msra.mxu0 %v1041
    %2794 = vmatpush.bf16.msra.mxu0 %v1037
    %2795 = vmatpush.bf16.msra.mxu0 %v1033
    %2796 = vmatpush.bf16.msra.mxu0 %v1029
    %2797 = vmatpush.bf16.msra.mxu0 %v1025
    %2798 = vmatpush.bf16.msra.mxu0 %v1021
    %2799 = vmatpush.bf16.msra.mxu0 %v1017
    %2800 = vmatmul.bf16.gmra.mxu0 %v2778
    %v2801 = vpop.f32.mrf.mxu0
    %v2802 = vadd.f32 %v2789, %v2801
    %v2803 = vpop.f32.mrf.mxu0
    %2804 = vdwg.mxu0
    %2805 = vmatpush.bf16.msra.mxu0 %v1014
    %2806 = vmatpush.bf16.msra.mxu0 %v1010
    %2807 = vmatpush.bf16.msra.mxu0 %v1006
    %2808 = vmatpush.bf16.msra.mxu0 %v1002
    %2809 = vmatpush.bf16.msra.mxu0 %v998
    %2810 = vmatpush.bf16.msra.mxu0 %v994
    %2811 = vmatpush.bf16.msra.mxu0 %v990
    %2812 = vmatpush.bf16.msra.mxu0 %v986
    %2813 = vmatmul.bf16.gmra.mxu0 %v2777
    %v2814 = vpop.f32.mrf.mxu0
    %v2815 = vadd.f32 %v314, %v2814
    %v2816 = vpop.f32.mrf.mxu0
    %2817 = vdwg.mxu0
    %2818 = vmatpush.bf16.msra.mxu0 %v1046
    %2819 = vmatpush.bf16.msra.mxu0 %v1042
    %2820 = vmatpush.bf16.msra.mxu0 %v1038
    %2821 = vmatpush.bf16.msra.mxu0 %v1034
    %2822 = vmatpush.bf16.msra.mxu0 %v1030
    %2823 = vmatpush.bf16.msra.mxu0 %v1026
    %2824 = vmatpush.bf16.msra.mxu0 %v1022
    %2825 = vmatpush.bf16.msra.mxu0 %v1018
    %2826 = vmatmul.bf16.gmra.mxu0 %v2778
    %v2827 = vpop.f32.mrf.mxu0
    %v2828 = vadd.f32 %v2815, %v2827
    %v2829 = vpop.f32.mrf.mxu0
    %2830 = vdwg.mxu0
    %2831 = vmatpush.bf16.msra.mxu0 %v1015
    %2832 = vmatpush.bf16.msra.mxu0 %v1011
    %2833 = vmatpush.bf16.msra.mxu0 %v1007
    %2834 = vmatpush.bf16.msra.mxu0 %v1003
    %2835 = vmatpush.bf16.msra.mxu0 %v999
    %2836 = vmatpush.bf16.msra.mxu0 %v995
    %2837 = vmatpush.bf16.msra.mxu0 %v991
    %2838 = vmatpush.bf16.msra.mxu0 %v987
    %2839 = vmatmul.bf16.gmra.mxu0 %v2777
    %v2840 = vpop.f32.mrf.mxu0
    %v2841 = vadd.f32 %v315, %v2840
    %v2842 = vpop.f32.mrf.mxu0
    %2843 = vdwg.mxu0
    %2844 = vmatpush.bf16.msra.mxu0 %v1047
    %2845 = vmatpush.bf16.msra.mxu0 %v1043
    %2846 = vmatpush.bf16.msra.mxu0 %v1039
    %2847 = vmatpush.bf16.msra.mxu0 %v1035
    %2848 = vmatpush.bf16.msra.mxu0 %v1031
    %2849 = vmatpush.bf16.msra.mxu0 %v1027
    %2850 = vmatpush.bf16.msra.mxu0 %v1023
    %2851 = vmatpush.bf16.msra.mxu0 %v1019
    %2852 = vmatmul.bf16.gmra.mxu0 %v2778
    %v2853 = vpop.f32.mrf.mxu0
    %v2854 = vadd.f32 %v2841, %v2853
    %v2855 = vpop.f32.mrf.mxu0
    %2856 = vdwg.mxu0
    %2857 = vmatpush.bf16.msra.mxu0 %v1016
    %2858 = vmatpush.bf16.msra.mxu0 %v1012
    %2859 = vmatpush.bf16.msra.mxu0 %v1008
    %2860 = vmatpush.bf16.msra.mxu0 %v1004
    %2861 = vmatpush.bf16.msra.mxu0 %v1000
    %2862 = vmatpush.bf16.msra.mxu0 %v996
    %2863 = vmatpush.bf16.msra.mxu0 %v992
    %2864 = vmatpush.bf16.msra.mxu0 %v988
    %2865 = vmatmul.bf16.gmra.mxu0 %v2777
    %v2866 = vpop.f32.mrf.mxu0
    %v2867 = vadd.f32 %v316, %v2866
    %v2868 = vpop.f32.mrf.mxu0
    %2869 = vdwg.mxu0
    %2870 = vmatpush.bf16.msra.mxu0 %v1048
    %2871 = vmatpush.bf16.msra.mxu0 %v1044
    %2872 = vmatpush.bf16.msra.mxu0 %v1040
    %2873 = vmatpush.bf16.msra.mxu0 %v1036
    %2874 = vmatpush.bf16.msra.mxu0 %v1032
    %2875 = vmatpush.bf16.msra.mxu0 %v1028
    %2876 = vmatpush.bf16.msra.mxu0 %v1024
    %2877 = vmatpush.bf16.msra.mxu0 %v1020
    %2878 = vmatmul.bf16.gmra.mxu0 %v2778
    %v2879 = vpop.f32.mrf.mxu0
    %v2880 = vadd.f32 %v2867, %v2879
    %v2881 = vpop.f32.mrf.mxu0
    %2882 = vdwg.mxu0
    %v2883 = vxor.u32 %v2802, 2147483648
    %v2884 = vmul.f32 %v2883, 1.442695
    %v2885 = vpow.pop %v2884
    %v2886 = vadd.f32 %v2885, 1.0
    %v2887 = vrcp.pop %v2886
    %v2888 = vmul.f32 %v2886, %v2887
    %v2889 = vsub.f32 1.0, %v2888
    %v2890 = vmul.f32 %v2887, %v2889
    %v2891 = vadd.f32 %v2887, %v2890
    %vm2892 = vweird.f32 %v2886
    %vm2893 = vweird.f32 %v2887
    %vm2894 = vmor %vm2892, %vm2893
    %v2895 = vsel %vm2894, %v2887, %v2891
    %v2896 = vand.u32 2147483647, %v2886
    %vm2897 = vcmp.eq.f32.partialorder %v2896, 8.507059e+37
    %v2898 = vand.u32 %v2886, 2147483648
    %v2899 = vor.u32 1.1754944e-38, %v2898
    %v2900 = vsel %vm2897, %v2899, %v2895
    %v2901 = vmul.f32 1.0, %v2900
    %v2902 = vxor.u32 %v2828, 2147483648
    %v2903 = vmul.f32 %v2902, 1.442695
    %v2904 = vpow.pop %v2903
    %v2905 = vadd.f32 %v2904, 1.0
    %v2906 = vrcp.pop %v2905
    %v2907 = vmul.f32 %v2905, %v2906
    %v2908 = vsub.f32 1.0, %v2907
    %v2909 = vmul.f32 %v2906, %v2908
    %v2910 = vadd.f32 %v2906, %v2909
    %vm2911 = vweird.f32 %v2905
    %vm2912 = vweird.f32 %v2906
    %vm2913 = vmor %vm2911, %vm2912
    %v2914 = vsel %vm2913, %v2906, %v2910
    %v2915 = vand.u32 2147483647, %v2905
    %vm2916 = vcmp.eq.f32.partialorder %v2915, 8.507059e+37
    %v2917 = vand.u32 %v2905, 2147483648
    %v2918 = vor.u32 1.1754944e-38, %v2917
    %v2919 = vsel %vm2916, %v2918, %v2914
    %v2920 = vmul.f32 1.0, %v2919
    %v2921 = vmul.f32 %v2901, %v2880
    %v2922 = vadd.f32 %v2854, %v2921
    %v2923 = vtanh.pop %v2922
    %v2924 = vsub.f32 1.0, %v2920
    %v2925 = vmul.f32 %v2924, %v2923
    %v2926 = vmul.f32 %v2920, %v2689
    %v2927 = vadd.f32 %v2925, %v2926
    %2929 = vset.pattern.permute.xlu0 0
    %2930 = vperm.xlu0 %2929, %v360
    %v2931 = vpop.permute.xlu0 %2930
    %v2933 = vmul.f32 %v2931, %v346
    %v2934 = vadd.f32 %v2933, %v348
    %v2935 = vmax.f32 %v2934, 0.0
    %v2936 = vpack.c.bf16 %v2935, %v2935
    %v3001 = vunpack.c.l.b16 %v182
    %v3002 = vunpack.c.h.b16 %v182
    %v3003 = vunpack.c.l.b16 %v183
    %v3004 = vunpack.c.h.b16 %v183
    %v3005 = vunpack.c.l.b16 %v184
    %v3006 = vunpack.c.h.b16 %v184
    %v3007 = vunpack.c.l.b16 %v185
    %v3008 = vunpack.c.h.b16 %v185
    %v3009 = vunpack.c.l.b16 %v186
    %v3010 = vunpack.c.h.b16 %v186
    %v3011 = vunpack.c.l.b16 %v187
    %v3012 = vunpack.c.h.b16 %v187
    %v3013 = vunpack.c.l.b16 %v188
    %v3014 = vunpack.c.h.b16 %v188
    %v3015 = vunpack.c.l.b16 %v189
    %v3016 = vunpack.c.h.b16 %v189
    %v3017 = vunpack.c.l.b16 %v190
    %v3018 = vunpack.c.h.b16 %v190
    %v3019 = vunpack.c.l.b16 %v191
    %v3020 = vunpack.c.h.b16 %v191
    %v3021 = vunpack.c.l.b16 %v192
    %v3022 = vunpack.c.h.b16 %v192
    %v3023 = vunpack.c.l.b16 %v193
    %v3024 = vunpack.c.h.b16 %v193
    %v3025 = vunpack.c.l.b16 %v194
    %v3026 = vunpack.c.h.b16 %v194
    %v3027 = vunpack.c.l.b16 %v195
    %v3028 = vunpack.c.h.b16 %v195
    %v3029 = vunpack.c.l.b16 %v196
    %v3030 = vunpack.c.h.b16 %v196
    %v3031 = vunpack.c.l.b16 %v197
    %v3032 = vunpack.c.h.b16 %v197
    %v3033 = vunpack.c.l.b16 %v198
    %v3034 = vunpack.c.h.b16 %v198
    %v3035 = vunpack.c.l.b16 %v199
    %v3036 = vunpack.c.h.b16 %v199
    %v3037 = vunpack.c.l.b16 %v200
    %v3038 = vunpack.c.h.b16 %v200
    %v3039 = vunpack.c.l.b16 %v201
    %v3040 = vunpack.c.h.b16 %v201
    %v3041 = vunpack.c.l.b16 %v202
    %v3042 = vunpack.c.h.b16 %v202
    %v3043 = vunpack.c.l.b16 %v203
    %v3044 = vunpack.c.h.b16 %v203
    %v3045 = vunpack.c.l.b16 %v204
    %v3046 = vunpack.c.h.b16 %v204
    %v3047 = vunpack.c.l.b16 %v205
    %v3048 = vunpack.c.h.b16 %v205
    %v3049 = vunpack.c.l.b16 %v206
    %v3050 = vunpack.c.h.b16 %v206
    %v3051 = vunpack.c.l.b16 %v207
    %v3052 = vunpack.c.h.b16 %v207
    %v3053 = vunpack.c.l.b16 %v208
    %v3054 = vunpack.c.h.b16 %v208
    %v3055 = vunpack.c.l.b16 %v209
    %v3056 = vunpack.c.h.b16 %v209
    %v3057 = vunpack.c.l.b16 %v210
    %v3058 = vunpack.c.h.b16 %v210
    %v3059 = vunpack.c.l.b16 %v211
    %v3060 = vunpack.c.h.b16 %v211
    %v3061 = vunpack.c.l.b16 %v212
    %v3062 = vunpack.c.h.b16 %v212
    %v3063 = vunpack.c.l.b16 %v213
    %v3064 = vunpack.c.h.b16 %v213
    %v3065 = vunpack.c.l.b16 %v214
    %v3066 = vunpack.c.h.b16 %v214
    %v3067 = vunpack.c.l.b16 %v215
    %v3068 = vunpack.c.h.b16 %v215
    %v3069 = vunpack.c.l.b16 %v216
    %v3070 = vunpack.c.h.b16 %v216
    %v3071 = vunpack.c.l.b16 %v217
    %v3072 = vunpack.c.h.b16 %v217
    %v3073 = vunpack.c.l.b16 %v218
    %v3074 = vunpack.c.h.b16 %v218
    %v3075 = vunpack.c.l.b16 %v219
    %v3076 = vunpack.c.h.b16 %v219
    %v3077 = vunpack.c.l.b16 %v220
    %v3078 = vunpack.c.h.b16 %v220
    %v3079 = vunpack.c.l.b16 %v221
    %v3080 = vunpack.c.h.b16 %v221
    %v3081 = vunpack.c.l.b16 %v222
    %v3082 = vunpack.c.h.b16 %v222
    %v3083 = vunpack.c.l.b16 %v223
    %v3084 = vunpack.c.h.b16 %v223
    %v3085 = vunpack.c.l.b16 %v224
    %v3086 = vunpack.c.h.b16 %v224
    %v3087 = vunpack.c.l.b16 %v225
    %v3088 = vunpack.c.h.b16 %v225
    %v3089 = vunpack.c.l.b16 %v226
    %v3090 = vunpack.c.h.b16 %v226
    %v3091 = vunpack.c.l.b16 %v227
    %v3092 = vunpack.c.h.b16 %v227
    %v3093 = vunpack.c.l.b16 %v228
    %v3094 = vunpack.c.h.b16 %v228
    %v3095 = vunpack.c.l.b16 %v229
    %v3096 = vunpack.c.h.b16 %v229
    %v3097 = vunpack.c.l.b16 %v230
    %v3098 = vunpack.c.h.b16 %v230
    %v3099 = vunpack.c.l.b16 %v231
    %v3100 = vunpack.c.h.b16 %v231
    %v3101 = vunpack.c.l.b16 %v232
    %v3102 = vunpack.c.h.b16 %v232
    %v3103 = vunpack.c.l.b16 %v233
    %v3104 = vunpack.c.h.b16 %v233
    %v3105 = vunpack.c.l.b16 %v234
    %v3106 = vunpack.c.h.b16 %v234
    %v3107 = vunpack.c.l.b16 %v235
    %v3108 = vunpack.c.h.b16 %v235
    %v3109 = vunpack.c.l.b16 %v236
    %v3110 = vunpack.c.h.b16 %v236
    %v3111 = vunpack.c.l.b16 %v237
    %v3112 = vunpack.c.h.b16 %v237
    %v3113 = vunpack.c.l.b16 %v238
    %v3114 = vunpack.c.h.b16 %v238
    %v3115 = vunpack.c.l.b16 %v239
    %v3116 = vunpack.c.h.b16 %v239
    %v3117 = vunpack.c.l.b16 %v240
    %v3118 = vunpack.c.h.b16 %v240
    %v3119 = vunpack.c.l.b16 %v241
    %v3120 = vunpack.c.h.b16 %v241
    %v3121 = vunpack.c.l.b16 %v242
    %v3122 = vunpack.c.h.b16 %v242
    %v3123 = vunpack.c.l.b16 %v243
    %v3124 = vunpack.c.h.b16 %v243
    %v3125 = vunpack.c.l.b16 %v244
    %v3126 = vunpack.c.h.b16 %v244
    %v3127 = vunpack.c.l.b16 %v245
    %v3128 = vunpack.c.h.b16 %v245
    %v3129 = vpack.c.b16 %v3005, %v3001
    %v3130 = vpack.c.b16 %v3006, %v3002
    %v3131 = vpack.c.b16 %v3007, %v3003
    %v3132 = vpack.c.b16 %v3008, %v3004
    %v3133 = vpack.c.b16 %v3013, %v3009
    %v3134 = vpack.c.b16 %v3014, %v3010
    %v3135 = vpack.c.b16 %v3015, %v3011
    %v3136 = vpack.c.b16 %v3016, %v3012
    %v3137 = vpack.c.b16 %v3021, %v3017
    %v3138 = vpack.c.b16 %v3022, %v3018
    %v3139 = vpack.c.b16 %v3023, %v3019
    %v3140 = vpack.c.b16 %v3024, %v3020
    %v3141 = vpack.c.b16 %v3029, %v3025
    %v3142 = vpack.c.b16 %v3030, %v3026
    %v3143 = vpack.c.b16 %v3031, %v3027
    %v3144 = vpack.c.b16 %v3032, %v3028
    %v3145 = vpack.c.b16 %v3037, %v3033
    %v3146 = vpack.c.b16 %v3038, %v3034
    %v3147 = vpack.c.b16 %v3039, %v3035
    %v3148 = vpack.c.b16 %v3040, %v3036
    %v3149 = vpack.c.b16 %v3045, %v3041
    %v3150 = vpack.c.b16 %v3046, %v3042
    %v3151 = vpack.c.b16 %v3047, %v3043
    %v3152 = vpack.c.b16 %v3048, %v3044
    %v3153 = vpack.c.b16 %v3053, %v3049
    %v3154 = vpack.c.b16 %v3054, %v3050
    %v3155 = vpack.c.b16 %v3055, %v3051
    %v3156 = vpack.c.b16 %v3056, %v3052
    %v3157 = vpack.c.b16 %v3061, %v3057
    %v3158 = vpack.c.b16 %v3062, %v3058
    %v3159 = vpack.c.b16 %v3063, %v3059
    %v3160 = vpack.c.b16 %v3064, %v3060
    %v3161 = vpack.c.b16 %v3069, %v3065
    %v3162 = vpack.c.b16 %v3070, %v3066
    %v3163 = vpack.c.b16 %v3071, %v3067
    %v3164 = vpack.c.b16 %v3072, %v3068
    %v3165 = vpack.c.b16 %v3077, %v3073
    %v3166 = vpack.c.b16 %v3078, %v3074
    %v3167 = vpack.c.b16 %v3079, %v3075
    %v3168 = vpack.c.b16 %v3080, %v3076
    %v3169 = vpack.c.b16 %v3085, %v3081
    %v3170 = vpack.c.b16 %v3086, %v3082
    %v3171 = vpack.c.b16 %v3087, %v3083
    %v3172 = vpack.c.b16 %v3088, %v3084
    %v3173 = vpack.c.b16 %v3093, %v3089
    %v3174 = vpack.c.b16 %v3094, %v3090
    %v3175 = vpack.c.b16 %v3095, %v3091
    %v3176 = vpack.c.b16 %v3096, %v3092
    %v3177 = vpack.c.b16 %v3101, %v3097
    %v3178 = vpack.c.b16 %v3102, %v3098
    %v3179 = vpack.c.b16 %v3103, %v3099
    %v3180 = vpack.c.b16 %v3104, %v3100
    %v3181 = vpack.c.b16 %v3109, %v3105
    %v3182 = vpack.c.b16 %v3110, %v3106
    %v3183 = vpack.c.b16 %v3111, %v3107
    %v3184 = vpack.c.b16 %v3112, %v3108
    %v3185 = vpack.c.b16 %v3117, %v3113
    %v3186 = vpack.c.b16 %v3118, %v3114
    %v3187 = vpack.c.b16 %v3119, %v3115
    %v3188 = vpack.c.b16 %v3120, %v3116
    %v3189 = vpack.c.b16 %v3125, %v3121
    %v3190 = vpack.c.b16 %v3126, %v3122
    %v3191 = vpack.c.b16 %v3127, %v3123
    %v3192 = vpack.c.b16 %v3128, %v3124
    %3257 = vmatpush.bf16.msra.mxu0 %v3157
    %3258 = vmatpush.bf16.msra.mxu0 %v3153
    %3259 = vmatpush.bf16.msra.mxu0 %v3149
    %3260 = vmatpush.bf16.msra.mxu0 %v3145
    %3261 = vmatpush.bf16.msra.mxu0 %v3141
    %3262 = vmatpush.bf16.msra.mxu0 %v3137
    %3263 = vmatpush.bf16.msra.mxu0 %v3133
    %3264 = vmatpush.bf16.msra.mxu0 %v3129
    %3265 = vmatmul.bf16.gmra.mxu0 %v2936
    %v3266 = vpop.f32.mrf.mxu0
    %v3267 = vadd.f32 %v324, %v3266
    %v3268 = vpop.f32.mrf.mxu0
    %3269 = vdwg.mxu0
    %3270 = vmatpush.bf16.msra.mxu0 %v3189
    %3271 = vmatpush.bf16.msra.mxu0 %v3185
    %3272 = vmatpush.bf16.msra.mxu0 %v3181
    %3273 = vmatpush.bf16.msra.mxu0 %v3177
    %3274 = vmatpush.bf16.msra.mxu0 %v3173
    %3275 = vmatpush.bf16.msra.mxu0 %v3169
    %3276 = vmatpush.bf16.msra.mxu0 %v3165
    %3277 = vmatpush.bf16.msra.mxu0 %v3161
    %3278 = vmatmul.bf16.gmra.mxu0 %v2777
    %v3279 = vpop.f32.mrf.mxu0
    %v3280 = vadd.f32 %v3267, %v3279
    %v3281 = vpop.f32.mrf.mxu0
    %3282 = vdwg.mxu0
    %3283 = vmatpush.bf16.msra.mxu0 %v3158
    %3284 = vmatpush.bf16.msra.mxu0 %v3154
    %3285 = vmatpush.bf16.msra.mxu0 %v3150
    %3286 = vmatpush.bf16.msra.mxu0 %v3146
    %3287 = vmatpush.bf16.msra.mxu0 %v3142
    %3288 = vmatpush.bf16.msra.mxu0 %v3138
    %3289 = vmatpush.bf16.msra.mxu0 %v3134
    %3290 = vmatpush.bf16.msra.mxu0 %v3130
    %3291 = vmatmul.bf16.gmra.mxu0 %v2936
    %v3292 = vpop.f32.mrf.mxu0
    %v3293 = vadd.f32 %v325, %v3292
    %v3294 = vpop.f32.mrf.mxu0
    %3295 = vdwg.mxu0
    %3296 = vmatpush.bf16.msra.mxu0 %v3190
    %3297 = vmatpush.bf16.msra.mxu0 %v3186
    %3298 = vmatpush.bf16.msra.mxu0 %v3182
    %3299 = vmatpush.bf16.msra.mxu0 %v3178
    %3300 = vmatpush.bf16.msra.mxu0 %v3174
    %3301 = vmatpush.bf16.msra.mxu0 %v3170
    %3302 = vmatpush.bf16.msra.mxu0 %v3166
    %3303 = vmatpush.bf16.msra.mxu0 %v3162
    %3304 = vmatmul.bf16.gmra.mxu0 %v2777
    %v3305 = vpop.f32.mrf.mxu0
    %v3306 = vadd.f32 %v3293, %v3305
    %v3307 = vpop.f32.mrf.mxu0
    %3308 = vdwg.mxu0
    %3309 = vmatpush.bf16.msra.mxu0 %v3159
    %3310 = vmatpush.bf16.msra.mxu0 %v3155
    %3311 = vmatpush.bf16.msra.mxu0 %v3151
    %3312 = vmatpush.bf16.msra.mxu0 %v3147
    %3313 = vmatpush.bf16.msra.mxu0 %v3143
    %3314 = vmatpush.bf16.msra.mxu0 %v3139
    %3315 = vmatpush.bf16.msra.mxu0 %v3135
    %3316 = vmatpush.bf16.msra.mxu0 %v3131
    %3317 = vmatmul.bf16.gmra.mxu0 %v2936
    %v3318 = vpop.f32.mrf.mxu0
    %v3319 = vadd.f32 %v326, %v3318
    %v3320 = vpop.f32.mrf.mxu0
    %3321 = vdwg.mxu0
    %3322 = vmatpush.bf16.msra.mxu0 %v3191
    %3323 = vmatpush.bf16.msra.mxu0 %v3187
    %3324 = vmatpush.bf16.msra.mxu0 %v3183
    %3325 = vmatpush.bf16.msra.mxu0 %v3179
    %3326 = vmatpush.bf16.msra.mxu0 %v3175
    %3327 = vmatpush.bf16.msra.mxu0 %v3171
    %3328 = vmatpush.bf16.msra.mxu0 %v3167
    %3329 = vmatpush.bf16.msra.mxu0 %v3163
    %3330 = vmatmul.bf16.gmra.mxu0 %v2777
    %v3331 = vpop.f32.mrf.mxu0
    %v3332 = vadd.f32 %v3319, %v3331
    %v3333 = vpop.f32.mrf.mxu0
    %3334 = vdwg.mxu0
    %3335 = vmatpush.bf16.msra.mxu0 %v3160
    %3336 = vmatpush.bf16.msra.mxu0 %v3156
    %3337 = vmatpush.bf16.msra.mxu0 %v3152
    %3338 = vmatpush.bf16.msra.mxu0 %v3148
    %3339 = vmatpush.bf16.msra.mxu0 %v3144
    %3340 = vmatpush.bf16.msra.mxu0 %v3140
    %3341 = vmatpush.bf16.msra.mxu0 %v3136
    %3342 = vmatpush.bf16.msra.mxu0 %v3132
    %3343 = vmatmul.bf16.gmra.mxu0 %v2936
    %v3344 = vpop.f32.mrf.mxu0
    %v3345 = vadd.f32 %v327, %v3344
    %v3346 = vpop.f32.mrf.mxu0
    %3347 = vdwg.mxu0
    %3348 = vmatpush.bf16.msra.mxu0 %v3192
    %3349 = vmatpush.bf16.msra.mxu0 %v3188
    %3350 = vmatpush.bf16.msra.mxu0 %v3184
    %3351 = vmatpush.bf16.msra.mxu0 %v3180
    %3352 = vmatpush.bf16.msra.mxu0 %v3176
    %3353 = vmatpush.bf16.msra.mxu0 %v3172
    %3354 = vmatpush.bf16.msra.mxu0 %v3168
    %3355 = vmatpush.bf16.msra.mxu0 %v3164
    %3356 = vmatmul.bf16.gmra.mxu0 %v2777
    %v3357 = vpop.f32.mrf.mxu0
    %v3358 = vadd.f32 %v3345, %v3357
    %v3359 = vpop.f32.mrf.mxu0
    %3360 = vdwg.mxu0
    %v3361 = vxor.u32 %v3280, 2147483648
    %v3362 = vmul.f32 %v3361, 1.442695
    %v3363 = vpow.pop %v3362
    %v3364 = vadd.f32 %v3363, 1.0
    %v3365 = vrcp.pop %v3364
    %v3366 = vmul.f32 %v3364, %v3365
    %v3367 = vsub.f32 1.0, %v3366
    %v3368 = vmul.f32 %v3365, %v3367
    %v3369 = vadd.f32 %v3365, %v3368
    %vm3370 = vweird.f32 %v3364
    %vm3371 = vweird.f32 %v3365
    %vm3372 = vmor %vm3370, %vm3371
    %v3373 = vsel %vm3372, %v3365, %v3369
    %v3374 = vand.u32 2147483647, %v3364
    %vm3375 = vcmp.eq.f32.partialorder %v3374, 8.507059e+37
    %v3376 = vand.u32 %v3364, 2147483648
    %v3377 = vor.u32 1.1754944e-38, %v3376
    %v3378 = vsel %vm3375, %v3377, %v3373
    %v3379 = vmul.f32 1.0, %v3378
    %v3380 = vxor.u32 %v3306, 2147483648
    %v3381 = vmul.f32 %v3380, 1.442695
    %v3382 = vpow.pop %v3381
    %v3383 = vadd.f32 %v3382, 1.0
    %v3384 = vrcp.pop %v3383
    %v3385 = vmul.f32 %v3383, %v3384
    %v3386 = vsub.f32 1.0, %v3385
    %v3387 = vmul.f32 %v3384, %v3386
    %v3388 = vadd.f32 %v3384, %v3387
    %vm3389 = vweird.f32 %v3383
    %vm3390 = vweird.f32 %v3384
    %vm3391 = vmor %vm3389, %vm3390
    %v3392 = vsel %vm3391, %v3384, %v3388
    %v3393 = vand.u32 2147483647, %v3383
    %vm3394 = vcmp.eq.f32.partialorder %v3393, 8.507059e+37
    %v3395 = vand.u32 %v3383, 2147483648
    %v3396 = vor.u32 1.1754944e-38, %v3395
    %v3397 = vsel %vm3394, %v3396, %v3392
    %v3398 = vmul.f32 1.0, %v3397
    %v3399 = vmul.f32 %v3379, %v3358
    %v3400 = vadd.f32 %v3332, %v3399
    %v3401 = vtanh.pop %v3400
    %v3402 = vsub.f32 1.0, %v3398
    %v3403 = vmul.f32 %v3402, %v3401
    %v3404 = vmul.f32 %v3398, %v2776
    %v3405 = vadd.f32 %v3403, %v3404
    %v3406 = vpack.c.bf16 %v3405, %v3405
    %v3407 = vpack.c.bf16 %v2927, %v2927
    %v3472 = vunpack.c.l.b16 %v247
    %v3473 = vunpack.c.h.b16 %v247
    %v3474 = vunpack.c.l.b16 %v248
    %v3475 = vunpack.c.h.b16 %v248
    %v3476 = vunpack.c.l.b16 %v249
    %v3477 = vunpack.c.h.b16 %v249
    %v3478 = vunpack.c.l.b16 %v250
    %v3479 = vunpack.c.h.b16 %v250
    %v3480 = vunpack.c.l.b16 %v251
    %v3481 = vunpack.c.h.b16 %v251
    %v3482 = vunpack.c.l.b16 %v252
    %v3483 = vunpack.c.h.b16 %v252
    %v3484 = vunpack.c.l.b16 %v253
    %v3485 = vunpack.c.h.b16 %v253
    %v3486 = vunpack.c.l.b16 %v254
    %v3487 = vunpack.c.h.b16 %v254
    %v3488 = vunpack.c.l.b16 %v255
    %v3489 = vunpack.c.h.b16 %v255
    %v3490 = vunpack.c.l.b16 %v256
    %v3491 = vunpack.c.h.b16 %v256
    %v3492 = vunpack.c.l.b16 %v257
    %v3493 = vunpack.c.h.b16 %v257
    %v3494 = vunpack.c.l.b16 %v258
    %v3495 = vunpack.c.h.b16 %v258
    %v3496 = vunpack.c.l.b16 %v259
    %v3497 = vunpack.c.h.b16 %v259
    %v3498 = vunpack.c.l.b16 %v260
    %v3499 = vunpack.c.h.b16 %v260
    %v3500 = vunpack.c.l.b16 %v261
    %v3501 = vunpack.c.h.b16 %v261
    %v3502 = vunpack.c.l.b16 %v262
    %v3503 = vunpack.c.h.b16 %v262
    %v3504 = vunpack.c.l.b16 %v263
    %v3505 = vunpack.c.h.b16 %v263
    %v3506 = vunpack.c.l.b16 %v264
    %v3507 = vunpack.c.h.b16 %v264
    %v3508 = vunpack.c.l.b16 %v265
    %v3509 = vunpack.c.h.b16 %v265
    %v3510 = vunpack.c.l.b16 %v266
    %v3511 = vunpack.c.h.b16 %v266
    %v3512 = vunpack.c.l.b16 %v267
    %v3513 = vunpack.c.h.b16 %v267
    %v3514 = vunpack.c.l.b16 %v268
    %v3515 = vunpack.c.h.b16 %v268
    %v3516 = vunpack.c.l.b16 %v269
    %v3517 = vunpack.c.h.b16 %v269
    %v3518 = vunpack.c.l.b16 %v270
    %v3519 = vunpack.c.h.b16 %v270
    %v3520 = vunpack.c.l.b16 %v271
    %v3521 = vunpack.c.h.b16 %v271
    %v3522 = vunpack.c.l.b16 %v272
    %v3523 = vunpack.c.h.b16 %v272
    %v3524 = vunpack.c.l.b16 %v273
    %v3525 = vunpack.c.h.b16 %v273
    %v3526 = vunpack.c.l.b16 %v274
    %v3527 = vunpack.c.h.b16 %v274
    %v3528 = vunpack.c.l.b16 %v275
    %v3529 = vunpack.c.h.b16 %v275
    %v3530 = vunpack.c.l.b16 %v276
    %v3531 = vunpack.c.h.b16 %v276
    %v3532 = vunpack.c.l.b16 %v277
    %v3533 = vunpack.c.h.b16 %v277
    %v3534 = vunpack.c.l.b16 %v278
    %v3535 = vunpack.c.h.b16 %v278
    %v3536 = vunpack.c.l.b16 %v279
    %v3537 = vunpack.c.h.b16 %v279
    %v3538 = vunpack.c.l.b16 %v280
    %v3539 = vunpack.c.h.b16 %v280
    %v3540 = vunpack.c.l.b16 %v281
    %v3541 = vunpack.c.h.b16 %v281
    %v3542 = vunpack.c.l.b16 %v282
    %v3543 = vunpack.c.h.b16 %v282
    %v3544 = vunpack.c.l.b16 %v283
    %v3545 = vunpack.c.h.b16 %v283
    %v3546 = vunpack.c.l.b16 %v284
    %v3547 = vunpack.c.h.b16 %v284
    %v3548 = vunpack.c.l.b16 %v285
    %v3549 = vunpack.c.h.b16 %v285
    %v3550 = vunpack.c.l.b16 %v286
    %v3551 = vunpack.c.h.b16 %v286
    %v3552 = vunpack.c.l.b16 %v287
    %v3553 = vunpack.c.h.b16 %v287
    %v3554 = vunpack.c.l.b16 %v288
    %v3555 = vunpack.c.h.b16 %v288
    %v3556 = vunpack.c.l.b16 %v289
    %v3557 = vunpack.c.h.b16 %v289
    %v3558 = vunpack.c.l.b16 %v290
    %v3559 = vunpack.c.h.b16 %v290
    %v3560 = vunpack.c.l.b16 %v291
    %v3561 = vunpack.c.h.b16 %v291
    %v3562 = vunpack.c.l.b16 %v292
    %v3563 = vunpack.c.h.b16 %v292
    %v3564 = vunpack.c.l.b16 %v293
    %v3565 = vunpack.c.h.b16 %v293
    %v3566 = vunpack.c.l.b16 %v294
    %v3567 = vunpack.c.h.b16 %v294
    %v3568 = vunpack.c.l.b16 %v295
    %v3569 = vunpack.c.h.b16 %v295
    %v3570 = vunpack.c.l.b16 %v296
    %v3571 = vunpack.c.h.b16 %v296
    %v3572 = vunpack.c.l.b16 %v297
    %v3573 = vunpack.c.h.b16 %v297
    %v3574 = vunpack.c.l.b16 %v298
    %v3575 = vunpack.c.h.b16 %v298
    %v3576 = vunpack.c.l.b16 %v299
    %v3577 = vunpack.c.h.b16 %v299
    %v3578 = vunpack.c.l.b16 %v300
    %v3579 = vunpack.c.h.b16 %v300
    %v3580 = vunpack.c.l.b16 %v301
    %v3581 = vunpack.c.h.b16 %v301
    %v3582 = vunpack.c.l.b16 %v302
    %v3583 = vunpack.c.h.b16 %v302
    %v3584 = vunpack.c.l.b16 %v303
    %v3585 = vunpack.c.h.b16 %v303
    %v3586 = vunpack.c.l.b16 %v304
    %v3587 = vunpack.c.h.b16 %v304
    %v3588 = vunpack.c.l.b16 %v305
    %v3589 = vunpack.c.h.b16 %v305
    %v3590 = vunpack.c.l.b16 %v306
    %v3591 = vunpack.c.h.b16 %v306
    %v3592 = vunpack.c.l.b16 %v307
    %v3593 = vunpack.c.h.b16 %v307
    %v3594 = vunpack.c.l.b16 %v308
    %v3595 = vunpack.c.h.b16 %v308
    %v3596 = vunpack.c.l.b16 %v309
    %v3597 = vunpack.c.h.b16 %v309
    %v3598 = vunpack.c.l.b16 %v310
    %v3599 = vunpack.c.h.b16 %v310
    %v3600 = vpack.c.b16 %v3476, %v3472
    %v3601 = vpack.c.b16 %v3477, %v3473
    %v3602 = vpack.c.b16 %v3478, %v3474
    %v3603 = vpack.c.b16 %v3479, %v3475
    %v3604 = vpack.c.b16 %v3484, %v3480
    %v3605 = vpack.c.b16 %v3485, %v3481
    %v3606 = vpack.c.b16 %v3486, %v3482
    %v3607 = vpack.c.b16 %v3487, %v3483
    %v3608 = vpack.c.b16 %v3492, %v3488
    %v3609 = vpack.c.b16 %v3493, %v3489
    %v3610 = vpack.c.b16 %v3494, %v3490
    %v3611 = vpack.c.b16 %v3495, %v3491
    %v3612 = vpack.c.b16 %v3500, %v3496
    %v3613 = vpack.c.b16 %v3501, %v3497
    %v3614 = vpack.c.b16 %v3502, %v3498
    %v3615 = vpack.c.b16 %v3503, %v3499
    %v3616 = vpack.c.b16 %v3508, %v3504
    %v3617 = vpack.c.b16 %v3509, %v3505
    %v3618 = vpack.c.b16 %v3510, %v3506
    %v3619 = vpack.c.b16 %v3511, %v3507
    %v3620 = vpack.c.b16 %v3516, %v3512
    %v3621 = vpack.c.b16 %v3517, %v3513
    %v3622 = vpack.c.b16 %v3518, %v3514
    %v3623 = vpack.c.b16 %v3519, %v3515
    %v3624 = vpack.c.b16 %v3524, %v3520
    %v3625 = vpack.c.b16 %v3525, %v3521
    %v3626 = vpack.c.b16 %v3526, %v3522
    %v3627 = vpack.c.b16 %v3527, %v3523
    %v3628 = vpack.c.b16 %v3532, %v3528
    %v3629 = vpack.c.b16 %v3533, %v3529
    %v3630 = vpack.c.b16 %v3534, %v3530
    %v3631 = vpack.c.b16 %v3535, %v3531
    %v3632 = vpack.c.b16 %v3540, %v3536
    %v3633 = vpack.c.b16 %v3541, %v3537
    %v3634 = vpack.c.b16 %v3542, %v3538
    %v3635 = vpack.c.b16 %v3543, %v3539
    %v3636 = vpack.c.b16 %v3548, %v3544
    %v3637 = vpack.c.b16 %v3549, %v3545
    %v3638 = vpack.c.b16 %v3550, %v3546
    %v3639 = vpack.c.b16 %v3551, %v3547
    %v3640 = vpack.c.b16 %v3556, %v3552
    %v3641 = vpack.c.b16 %v3557, %v3553
    %v3642 = vpack.c.b16 %v3558, %v3554
    %v3643 = vpack.c.b16 %v3559, %v3555
    %v3644 = vpack.c.b16 %v3564, %v3560
    %v3645 = vpack.c.b16 %v3565, %v3561
    %v3646 = vpack.c.b16 %v3566, %v3562
    %v3647 = vpack.c.b16 %v3567, %v3563
    %v3648 = vpack.c.b16 %v3572, %v3568
    %v3649 = vpack.c.b16 %v3573, %v3569
    %v3650 = vpack.c.b16 %v3574, %v3570
    %v3651 = vpack.c.b16 %v3575, %v3571
    %v3652 = vpack.c.b16 %v3580, %v3576
    %v3653 = vpack.c.b16 %v3581, %v3577
    %v3654 = vpack.c.b16 %v3582, %v3578
    %v3655 = vpack.c.b16 %v3583, %v3579
    %v3656 = vpack.c.b16 %v3588, %v3584
    %v3657 = vpack.c.b16 %v3589, %v3585
    %v3658 = vpack.c.b16 %v3590, %v3586
    %v3659 = vpack.c.b16 %v3591, %v3587
    %v3660 = vpack.c.b16 %v3596, %v3592
    %v3661 = vpack.c.b16 %v3597, %v3593
    %v3662 = vpack.c.b16 %v3598, %v3594
    %v3663 = vpack.c.b16 %v3599, %v3595
    %3728 = vmatpush.bf16.msra.mxu0 %v3628
    %3729 = vmatpush.bf16.msra.mxu0 %v3624
    %3730 = vmatpush.bf16.msra.mxu0 %v3620
    %3731 = vmatpush.bf16.msra.mxu0 %v3616
    %3732 = vmatpush.bf16.msra.mxu0 %v3612
    %3733 = vmatpush.bf16.msra.mxu0 %v3608
    %3734 = vmatpush.bf16.msra.mxu0 %v3604
    %3735 = vmatpush.bf16.msra.mxu0 %v3600
    %3736 = vmatmul.bf16.gmra.mxu0 %v3406
    %v3737 = vpop.f32.mrf.mxu0
    %v3738 = vadd.f32 %v335, %v3737
    %v3739 = vpop.f32.mrf.mxu0
    %3740 = vdwg.mxu0
    %3741 = vmatpush.bf16.msra.mxu0 %v3660
    %3742 = vmatpush.bf16.msra.mxu0 %v3656
    %3743 = vmatpush.bf16.msra.mxu0 %v3652
    %3744 = vmatpush.bf16.msra.mxu0 %v3648
    %3745 = vmatpush.bf16.msra.mxu0 %v3644
    %3746 = vmatpush.bf16.msra.mxu0 %v3640
    %3747 = vmatpush.bf16.msra.mxu0 %v3636
    %3748 = vmatpush.bf16.msra.mxu0 %v3632
    %3749 = vmatmul.bf16.gmra.mxu0 %v3407
    %v3750 = vpop.f32.mrf.mxu0
    %v3751 = vadd.f32 %v3738, %v3750
    %v3752 = vpop.f32.mrf.mxu0
    %3753 = vdwg.mxu0
    %3754 = vmatpush.bf16.msra.mxu0 %v3629
    %3755 = vmatpush.bf16.msra.mxu0 %v3625
    %3756 = vmatpush.bf16.msra.mxu0 %v3621
    %3757 = vmatpush.bf16.msra.mxu0 %v3617
    %3758 = vmatpush.bf16.msra.mxu0 %v3613
    %3759 = vmatpush.bf16.msra.mxu0 %v3609
    %3760 = vmatpush.bf16.msra.mxu0 %v3605
    %3761 = vmatpush.bf16.msra.mxu0 %v3601
    %3762 = vmatmul.bf16.gmra.mxu0 %v3406
    %v3763 = vpop.f32.mrf.mxu0
    %v3764 = vadd.f32 %v336, %v3763
    %v3765 = vpop.f32.mrf.mxu0
    %3766 = vdwg.mxu0
    %3767 = vmatpush.bf16.msra.mxu0 %v3661
    %3768 = vmatpush.bf16.msra.mxu0 %v3657
    %3769 = vmatpush.bf16.msra.mxu0 %v3653
    %3770 = vmatpush.bf16.msra.mxu0 %v3649
    %3771 = vmatpush.bf16.msra.mxu0 %v3645
    %3772 = vmatpush.bf16.msra.mxu0 %v3641
    %3773 = vmatpush.bf16.msra.mxu0 %v3637
    %3774 = vmatpush.bf16.msra.mxu0 %v3633
    %3775 = vmatmul.bf16.gmra.mxu0 %v3407
    %v3776 = vpop.f32.mrf.mxu0
    %v3777 = vadd.f32 %v3764, %v3776
    %v3778 = vpop.f32.mrf.mxu0
    %3779 = vdwg.mxu0
    %3780 = vmatpush.bf16.msra.mxu0 %v3630
    %3781 = vmatpush.bf16.msra.mxu0 %v3626
    %3782 = vmatpush.bf16.msra.mxu0 %v3622
    %3783 = vmatpush.bf16.msra.mxu0 %v3618
    %3784 = vmatpush.bf16.msra.mxu0 %v3614
    %3785 = vmatpush.bf16.msra.mxu0 %v3610
    %3786 = vmatpush.bf16.msra.mxu0 %v3606
    %3787 = vmatpush.bf16.msra.mxu0 %v3602
    %3788 = vmatmul.bf16.gmra.mxu0 %v3406
    %v3789 = vpop.f32.mrf.mxu0
    %v3790 = vadd.f32 %v337, %v3789
    %v3791 = vpop.f32.mrf.mxu0
    %3792 = vdwg.mxu0
    %3793 = vmatpush.bf16.msra.mxu0 %v3662
    %3794 = vmatpush.bf16.msra.mxu0 %v3658
    %3795 = vmatpush.bf16.msra.mxu0 %v3654
    %3796 = vmatpush.bf16.msra.mxu0 %v3650
    %3797 = vmatpush.bf16.msra.mxu0 %v3646
    %3798 = vmatpush.bf16.msra.mxu0 %v3642
    %3799 = vmatpush.bf16.msra.mxu0 %v3638
    %3800 = vmatpush.bf16.msra.mxu0 %v3634
    %3801 = vmatmul.bf16.gmra.mxu0 %v3407
    %v3802 = vpop.f32.mrf.mxu0
    %v3803 = vadd.f32 %v3790, %v3802
    %v3804 = vpop.f32.mrf.mxu0
    %3805 = vdwg.mxu0
    %3806 = vmatpush.bf16.msra.mxu0 %v3631
    %3807 = vmatpush.bf16.msra.mxu0 %v3627
    %3808 = vmatpush.bf16.msra.mxu0 %v3623
    %3809 = vmatpush.bf16.msra.mxu0 %v3619
    %3810 = vmatpush.bf16.msra.mxu0 %v3615
    %3811 = vmatpush.bf16.msra.mxu0 %v3611
    %3812 = vmatpush.bf16.msra.mxu0 %v3607
    %3813 = vmatpush.bf16.msra.mxu0 %v3603
    %3814 = vmatmul.bf16.gmra.mxu0 %v3406
    %v3815 = vpop.f32.mrf.mxu0
    %v3816 = vadd.f32 %v338, %v3815
    %v3817 = vpop.f32.mrf.mxu0
    %3818 = vdwg.mxu0
    %3819 = vmatpush.bf16.msra.mxu0 %v3663
    %3820 = vmatpush.bf16.msra.mxu0 %v3659
    %3821 = vmatpush.bf16.msra.mxu0 %v3655
    %3822 = vmatpush.bf16.msra.mxu0 %v3651
    %3823 = vmatpush.bf16.msra.mxu0 %v3647
    %3824 = vmatpush.bf16.msra.mxu0 %v3643
    %3825 = vmatpush.bf16.msra.mxu0 %v3639
    %3826 = vmatpush.bf16.msra.mxu0 %v3635
    %3827 = vmatmul.bf16.gmra.mxu0 %v3407
    %v3828 = vpop.f32.mrf.mxu0
    %v3829 = vadd.f32 %v3816, %v3828
    %v3830 = vpop.f32.mrf.mxu0
    %3831 = vdwg.mxu0
    %v3832 = vxor.u32 %v3751, 2147483648
    %v3833 = vmul.f32 %v3832, 1.442695
    %v3834 = vpow.pop %v3833
    %v3835 = vadd.f32 %v3834, 1.0
    %v3836 = vrcp.pop %v3835
    %v3837 = vmul.f32 %v3835, %v3836
    %v3838 = vsub.f32 1.0, %v3837
    %v3839 = vmul.f32 %v3836, %v3838
    %v3840 = vadd.f32 %v3836, %v3839
    %vm3841 = vweird.f32 %v3835
    %vm3842 = vweird.f32 %v3836
    %vm3843 = vmor %vm3841, %vm3842
    %v3844 = vsel %vm3843, %v3836, %v3840
    %v3845 = vand.u32 2147483647, %v3835
    %vm3846 = vcmp.eq.f32.partialorder %v3845, 8.507059e+37
    %v3847 = vand.u32 %v3835, 2147483648
    %v3848 = vor.u32 1.1754944e-38, %v3847
    %v3849 = vsel %vm3846, %v3848, %v3844
    %v3850 = vmul.f32 1.0, %v3849
    %v3851 = vxor.u32 %v3777, 2147483648
    %v3852 = vmul.f32 %v3851, 1.442695
    %v3853 = vpow.pop %v3852
    %v3854 = vadd.f32 %v3853, 1.0
    %v3855 = vrcp.pop %v3854
    %v3856 = vmul.f32 %v3854, %v3855
    %v3857 = vsub.f32 1.0, %v3856
    %v3858 = vmul.f32 %v3855, %v3857
    %v3859 = vadd.f32 %v3855, %v3858
    %vm3860 = vweird.f32 %v3854
    %vm3861 = vweird.f32 %v3855
    %vm3862 = vmor %vm3860, %vm3861
    %v3863 = vsel %vm3862, %v3855, %v3859
    %v3864 = vand.u32 2147483647, %v3854
    %vm3865 = vcmp.eq.f32.partialorder %v3864, 8.507059e+37
    %v3866 = vand.u32 %v3854, 2147483648
    %v3867 = vor.u32 1.1754944e-38, %v3866
    %v3868 = vsel %vm3865, %v3867, %v3863
    %v3869 = vmul.f32 1.0, %v3868
    %v3870 = vmul.f32 %v3850, %v3829
    %v3871 = vadd.f32 %v3803, %v3870
    %v3872 = vtanh.pop %v3871
    %v3873 = vsub.f32 1.0, %v3869
    %v3874 = vmul.f32 %v3873, %v3872
    %v3875 = vmul.f32 %v3869, %v2927
    %v3876 = vadd.f32 %v3874, %v3875
    %v3877 = vmul.f32 %v3876, %v350
    %3878 = vadd.xlane.f32.xlu0 %v3877
    %v3879 = vpop.xlane.xlu0 %3878
    %v3880 = vadd.f32 %v3879, %v352
    %s3881 = sld [smem:[#allocation2]]
    %p3882 = scmp.eq.s32.totalorder %s3881, 1
    %v3883 = vld [vmem:[%s1] sm:$0xff]
    %s3884 = scalar_select %p3882, 1, 0
    %v3885 = vstv %s3884
    %vm3886 = vcmp.eq.s32.totalorder %v3885, 1
    %v3887 = vsel %vm3886, %v3883, %v3880
    %3889 = vset.pattern.permute.xlu0 0
    %3890 = vperm.xlu0 %3889, %v3887
    %v3891 = vpop.permute.xlu0 %3890
    %v3893 = vmul.f32 %v3891, %v346
    %v3894 = vadd.f32 %v3893, %v348
    %v3895 = vmax.f32 %v3894, 0.0
    %v3896 = vpack.c.bf16 %v3895, %v3895
    %3897 = vmatpush.bf16.msra.mxu0 %v3157
    %3898 = vmatpush.bf16.msra.mxu0 %v3153
    %3899 = vmatpush.bf16.msra.mxu0 %v3149
    %3900 = vmatpush.bf16.msra.mxu0 %v3145
    %3901 = vmatpush.bf16.msra.mxu0 %v3141
    %3902 = vmatpush.bf16.msra.mxu0 %v3137
    %3903 = vmatpush.bf16.msra.mxu0 %v3133
    %3904 = vmatpush.bf16.msra.mxu0 %v3129
    %3905 = vmatmul.bf16.gmra.mxu0 %v3896
    %v3906 = vpop.f32.mrf.mxu0
    %v3907 = vadd.f32 %v324, %v3906
    %v3908 = vpop.f32.mrf.mxu0
    %3909 = vdwg.mxu0
    %3910 = vmatpush.bf16.msra.mxu0 %v3189
    %3911 = vmatpush.bf16.msra.mxu0 %v3185
    %3912 = vmatpush.bf16.msra.mxu0 %v3181
    %3913 = vmatpush.bf16.msra.mxu0 %v3177
    %3914 = vmatpush.bf16.msra.mxu0 %v3173
    %3915 = vmatpush.bf16.msra.mxu0 %v3169
    %3916 = vmatpush.bf16.msra.mxu0 %v3165
    %3917 = vmatpush.bf16.msra.mxu0 %v3161
    %3918 = vmatmul.bf16.gmra.mxu0 %v3406
    %v3919 = vpop.f32.mrf.mxu0
    %v3920 = vadd.f32 %v3907, %v3919
    %v3921 = vpop.f32.mrf.mxu0
    %3922 = vdwg.mxu0
    %3923 = vmatpush.bf16.msra.mxu0 %v3158
    %3924 = vmatpush.bf16.msra.mxu0 %v3154
    %3925 = vmatpush.bf16.msra.mxu0 %v3150
    %3926 = vmatpush.bf16.msra.mxu0 %v3146
    %3927 = vmatpush.bf16.msra.mxu0 %v3142
    %3928 = vmatpush.bf16.msra.mxu0 %v3138
    %3929 = vmatpush.bf16.msra.mxu0 %v3134
    %3930 = vmatpush.bf16.msra.mxu0 %v3130
    %3931 = vmatmul.bf16.gmra.mxu0 %v3896
    %v3932 = vpop.f32.mrf.mxu0
    %v3933 = vadd.f32 %v325, %v3932
    %v3934 = vpop.f32.mrf.mxu0
    %3935 = vdwg.mxu0
    %3936 = vmatpush.bf16.msra.mxu0 %v3190
    %3937 = vmatpush.bf16.msra.mxu0 %v3186
    %3938 = vmatpush.bf16.msra.mxu0 %v3182
    %3939 = vmatpush.bf16.msra.mxu0 %v3178
    %3940 = vmatpush.bf16.msra.mxu0 %v3174
    %3941 = vmatpush.bf16.msra.mxu0 %v3170
    %3942 = vmatpush.bf16.msra.mxu0 %v3166
    %3943 = vmatpush.bf16.msra.mxu0 %v3162
    %3944 = vmatmul.bf16.gmra.mxu0 %v3406
    %v3945 = vpop.f32.mrf.mxu0
    %v3946 = vadd.f32 %v3933, %v3945
    %v3947 = vpop.f32.mrf.mxu0
    %3948 = vdwg.mxu0
    %3949 = vmatpush.bf16.msra.mxu0 %v3159
    %3950 = vmatpush.bf16.msra.mxu0 %v3155
    %3951 = vmatpush.bf16.msra.mxu0 %v3151
    %3952 = vmatpush.bf16.msra.mxu0 %v3147
    %3953 = vmatpush.bf16.msra.mxu0 %v3143
    %3954 = vmatpush.bf16.msra.mxu0 %v3139
    %3955 = vmatpush.bf16.msra.mxu0 %v3135
    %3956 = vmatpush.bf16.msra.mxu0 %v3131
    %3957 = vmatmul.bf16.gmra.mxu0 %v3896
    %v3958 = vpop.f32.mrf.mxu0
    %v3959 = vadd.f32 %v326, %v3958
    %v3960 = vpop.f32.mrf.mxu0
    %3961 = vdwg.mxu0
    %3962 = vmatpush.bf16.msra.mxu0 %v3191
    %3963 = vmatpush.bf16.msra.mxu0 %v3187
    %3964 = vmatpush.bf16.msra.mxu0 %v3183
    %3965 = vmatpush.bf16.msra.mxu0 %v3179
    %3966 = vmatpush.bf16.msra.mxu0 %v3175
    %3967 = vmatpush.bf16.msra.mxu0 %v3171
    %3968 = vmatpush.bf16.msra.mxu0 %v3167
    %3969 = vmatpush.bf16.msra.mxu0 %v3163
    %3970 = vmatmul.bf16.gmra.mxu0 %v3406
    %v3971 = vpop.f32.mrf.mxu0
    %v3972 = vadd.f32 %v3959, %v3971
    %v3973 = vpop.f32.mrf.mxu0
    %3974 = vdwg.mxu0
    %3975 = vmatpush.bf16.msra.mxu0 %v3160
    %3976 = vmatpush.bf16.msra.mxu0 %v3156
    %3977 = vmatpush.bf16.msra.mxu0 %v3152
    %3978 = vmatpush.bf16.msra.mxu0 %v3148
    %3979 = vmatpush.bf16.msra.mxu0 %v3144
    %3980 = vmatpush.bf16.msra.mxu0 %v3140
    %3981 = vmatpush.bf16.msra.mxu0 %v3136
    %3982 = vmatpush.bf16.msra.mxu0 %v3132
    %3983 = vmatmul.bf16.gmra.mxu0 %v3896
    %v3984 = vpop.f32.mrf.mxu0
    %v3985 = vadd.f32 %v327, %v3984
    %v3986 = vpop.f32.mrf.mxu0
    %3987 = vdwg.mxu0
    %3988 = vmatpush.bf16.msra.mxu0 %v3192
    %3989 = vmatpush.bf16.msra.mxu0 %v3188
    %3990 = vmatpush.bf16.msra.mxu0 %v3184
    %3991 = vmatpush.bf16.msra.mxu0 %v3180
    %3992 = vmatpush.bf16.msra.mxu0 %v3176
    %3993 = vmatpush.bf16.msra.mxu0 %v3172
    %3994 = vmatpush.bf16.msra.mxu0 %v3168
    %3995 = vmatpush.bf16.msra.mxu0 %v3164
    %3996 = vmatmul.bf16.gmra.mxu0 %v3406
    %v3997 = vpop.f32.mrf.mxu0
    %v3998 = vadd.f32 %v3985, %v3997
    %v3999 = vpop.f32.mrf.mxu0
    %4000 = vdwg.mxu0
    %v4001 = vxor.u32 %v3920, 2147483648
    %v4002 = vmul.f32 %v4001, 1.442695
    %v4003 = vpow.pop %v4002
    %v4004 = vadd.f32 %v4003, 1.0
    %v4005 = vrcp.pop %v4004
    %v4006 = vmul.f32 %v4004, %v4005
    %v4007 = vsub.f32 1.0, %v4006
    %v4008 = vmul.f32 %v4005, %v4007
    %v4009 = vadd.f32 %v4005, %v4008
    %vm4010 = vweird.f32 %v4004
    %vm4011 = vweird.f32 %v4005
    %vm4012 = vmor %vm4010, %vm4011
    %v4013 = vsel %vm4012, %v4005, %v4009
    %v4014 = vand.u32 2147483647, %v4004
    %vm4015 = vcmp.eq.f32.partialorder %v4014, 8.507059e+37
    %v4016 = vand.u32 %v4004, 2147483648
    %v4017 = vor.u32 1.1754944e-38, %v4016
    %v4018 = vsel %vm4015, %v4017, %v4013
    %v4019 = vmul.f32 1.0, %v4018
    %v4020 = vxor.u32 %v3946, 2147483648
    %v4021 = vmul.f32 %v4020, 1.442695
    %v4022 = vpow.pop %v4021
    %v4023 = vadd.f32 %v4022, 1.0
    %v4024 = vrcp.pop %v4023
    %v4025 = vmul.f32 %v4023, %v4024
    %v4026 = vsub.f32 1.0, %v4025
    %v4027 = vmul.f32 %v4024, %v4026
    %v4028 = vadd.f32 %v4024, %v4027
    %vm4029 = vweird.f32 %v4023
    %vm4030 = vweird.f32 %v4024
    %vm4031 = vmor %vm4029, %vm4030
    %v4032 = vsel %vm4031, %v4024, %v4028
    %v4033 = vand.u32 2147483647, %v4023
    %vm4034 = vcmp.eq.f32.partialorder %v4033, 8.507059e+37
    %v4035 = vand.u32 %v4023, 2147483648
    %v4036 = vor.u32 1.1754944e-38, %v4035
    %v4037 = vsel %vm4034, %v4036, %v4032
    %v4038 = vmul.f32 1.0, %v4037
    %v4039 = vmul.f32 %v4019, %v3998
    %v4040 = vadd.f32 %v3972, %v4039
    %v4041 = vtanh.pop %v4040
    %v4042 = vsub.f32 1.0, %v4038
    %v4043 = vmul.f32 %v4042, %v4041
    %v4044 = vmul.f32 %v4038, %v3405
    %v4045 = vadd.f32 %v4043, %v4044
    %v4046 = vpack.c.bf16 %v4045, %v4045
    %v4047 = vpack.c.bf16 %v3876, %v3876
    %4048 = vmatpush.bf16.msra.mxu0 %v3628
    %4049 = vmatpush.bf16.msra.mxu0 %v3624
    %4050 = vmatpush.bf16.msra.mxu0 %v3620
    %4051 = vmatpush.bf16.msra.mxu0 %v3616
    %4052 = vmatpush.bf16.msra.mxu0 %v3612
    %4053 = vmatpush.bf16.msra.mxu0 %v3608
    %4054 = vmatpush.bf16.msra.mxu0 %v3604
    %4055 = vmatpush.bf16.msra.mxu0 %v3600
    %4056 = vmatmul.bf16.gmra.mxu0 %v4046
    %v4057 = vpop.f32.mrf.mxu0
    %v4058 = vadd.f32 %v335, %v4057
    %v4059 = vpop.f32.mrf.mxu0
    %4060 = vdwg.mxu0
    %4061 = vmatpush.bf16.msra.mxu0 %v3660
    %4062 = vmatpush.bf16.msra.mxu0 %v3656
    %4063 = vmatpush.bf16.msra.mxu0 %v3652
    %4064 = vmatpush.bf16.msra.mxu0 %v3648
    %4065 = vmatpush.bf16.msra.mxu0 %v3644
    %4066 = vmatpush.bf16.msra.mxu0 %v3640
    %4067 = vmatpush.bf16.msra.mxu0 %v3636
    %4068 = vmatpush.bf16.msra.mxu0 %v3632
    %4069 = vmatmul.bf16.gmra.mxu0 %v4047
    %v4070 = vpop.f32.mrf.mxu0
    %v4071 = vadd.f32 %v4058, %v4070
    %v4072 = vpop.f32.mrf.mxu0
    %4073 = vdwg.mxu0
    %4074 = vmatpush.bf16.msra.mxu0 %v3629
    %4075 = vmatpush.bf16.msra.mxu0 %v3625
    %4076 = vmatpush.bf16.msra.mxu0 %v3621
    %4077 = vmatpush.bf16.msra.mxu0 %v3617
    %4078 = vmatpush.bf16.msra.mxu0 %v3613
    %4079 = vmatpush.bf16.msra.mxu0 %v3609
    %4080 = vmatpush.bf16.msra.mxu0 %v3605
    %4081 = vmatpush.bf16.msra.mxu0 %v3601
    %4082 = vmatmul.bf16.gmra.mxu0 %v4046
    %v4083 = vpop.f32.mrf.mxu0
    %v4084 = vadd.f32 %v336, %v4083
    %v4085 = vpop.f32.mrf.mxu0
    %4086 = vdwg.mxu0
    %4087 = vmatpush.bf16.msra.mxu0 %v3661
    %4088 = vmatpush.bf16.msra.mxu0 %v3657
    %4089 = vmatpush.bf16.msra.mxu0 %v3653
    %4090 = vmatpush.bf16.msra.mxu0 %v3649
    %4091 = vmatpush.bf16.msra.mxu0 %v3645
    %4092 = vmatpush.bf16.msra.mxu0 %v3641
    %4093 = vmatpush.bf16.msra.mxu0 %v3637
    %4094 = vmatpush.bf16.msra.mxu0 %v3633
    %4095 = vmatmul.bf16.gmra.mxu0 %v4047
    %v4096 = vpop.f32.mrf.mxu0
    %v4097 = vadd.f32 %v4084, %v4096
    %v4098 = vpop.f32.mrf.mxu0
    %4099 = vdwg.mxu0
    %4100 = vmatpush.bf16.msra.mxu0 %v3630
    %4101 = vmatpush.bf16.msra.mxu0 %v3626
    %4102 = vmatpush.bf16.msra.mxu0 %v3622
    %4103 = vmatpush.bf16.msra.mxu0 %v3618
    %4104 = vmatpush.bf16.msra.mxu0 %v3614
    %4105 = vmatpush.bf16.msra.mxu0 %v3610
    %4106 = vmatpush.bf16.msra.mxu0 %v3606
    %4107 = vmatpush.bf16.msra.mxu0 %v3602
    %4108 = vmatmul.bf16.gmra.mxu0 %v4046
    %v4109 = vpop.f32.mrf.mxu0
    %v4110 = vadd.f32 %v337, %v4109
    %v4111 = vpop.f32.mrf.mxu0
    %4112 = vdwg.mxu0
    %4113 = vmatpush.bf16.msra.mxu0 %v3662
    %4114 = vmatpush.bf16.msra.mxu0 %v3658
    %4115 = vmatpush.bf16.msra.mxu0 %v3654
    %4116 = vmatpush.bf16.msra.mxu0 %v3650
    %4117 = vmatpush.bf16.msra.mxu0 %v3646
    %4118 = vmatpush.bf16.msra.mxu0 %v3642
    %4119 = vmatpush.bf16.msra.mxu0 %v3638
    %4120 = vmatpush.bf16.msra.mxu0 %v3634
    %4121 = vmatmul.bf16.gmra.mxu0 %v4047
    %v4122 = vpop.f32.mrf.mxu0
    %v4123 = vadd.f32 %v4110, %v4122
    %v4124 = vpop.f32.mrf.mxu0
    %4125 = vdwg.mxu0
    %4126 = vmatpush.bf16.msra.mxu0 %v3631
    %4127 = vmatpush.bf16.msra.mxu0 %v3627
    %4128 = vmatpush.bf16.msra.mxu0 %v3623
    %4129 = vmatpush.bf16.msra.mxu0 %v3619
    %4130 = vmatpush.bf16.msra.mxu0 %v3615
    %4131 = vmatpush.bf16.msra.mxu0 %v3611
    %4132 = vmatpush.bf16.msra.mxu0 %v3607
    %4133 = vmatpush.bf16.msra.mxu0 %v3603
    %4134 = vmatmul.bf16.gmra.mxu0 %v4046
    %v4135 = vpop.f32.mrf.mxu0
    %v4136 = vadd.f32 %v338, %v4135
    %v4137 = vpop.f32.mrf.mxu0
    %4138 = vdwg.mxu0
    %4139 = vmatpush.bf16.msra.mxu0 %v3663
    %4140 = vmatpush.bf16.msra.mxu0 %v3659
    %4141 = vmatpush.bf16.msra.mxu0 %v3655
    %4142 = vmatpush.bf16.msra.mxu0 %v3651
    %4143 = vmatpush.bf16.msra.mxu0 %v3647
    %4144 = vmatpush.bf16.msra.mxu0 %v3643
    %4145 = vmatpush.bf16.msra.mxu0 %v3639
    %4146 = vmatpush.bf16.msra.mxu0 %v3635
    %4147 = vmatmul.bf16.gmra.mxu0 %v4047
    %v4148 = vpop.f32.mrf.mxu0
    %v4149 = vadd.f32 %v4136, %v4148
    %v4150 = vpop.f32.mrf.mxu0
    %4151 = vdwg.mxu0
    %v4152 = vxor.u32 %v4071, 2147483648
    %v4153 = vmul.f32 %v4152, 1.442695
    %v4154 = vpow.pop %v4153
    %v4155 = vadd.f32 %v4154, 1.0
    %v4156 = vrcp.pop %v4155
    %v4157 = vmul.f32 %v4155, %v4156
    %v4158 = vsub.f32 1.0, %v4157
    %v4159 = vmul.f32 %v4156, %v4158
    %v4160 = vadd.f32 %v4156, %v4159
    %vm4161 = vweird.f32 %v4155
    %vm4162 = vweird.f32 %v4156
    %vm4163 = vmor %vm4161, %vm4162
    %v4164 = vsel %vm4163, %v4156, %v4160
    %v4165 = vand.u32 2147483647, %v4155
    %vm4166 = vcmp.eq.f32.partialorder %v4165, 8.507059e+37
    %v4167 = vand.u32 %v4155, 2147483648
    %v4168 = vor.u32 1.1754944e-38, %v4167
    %v4169 = vsel %vm4166, %v4168, %v4164
    %v4170 = vmul.f32 1.0, %v4169
    %v4171 = vxor.u32 %v4097, 2147483648
    %v4172 = vmul.f32 %v4171, 1.442695
    %v4173 = vpow.pop %v4172
    %v4174 = vadd.f32 %v4173, 1.0
    %v4175 = vrcp.pop %v4174
    %v4176 = vmul.f32 %v4174, %v4175
    %v4177 = vsub.f32 1.0, %v4176
    %v4178 = vmul.f32 %v4175, %v4177
    %v4179 = vadd.f32 %v4175, %v4178
    %vm4180 = vweird.f32 %v4174
    %vm4181 = vweird.f32 %v4175
    %vm4182 = vmor %vm4180, %vm4181
    %v4183 = vsel %vm4182, %v4175, %v4179
    %v4184 = vand.u32 2147483647, %v4174
    %vm4185 = vcmp.eq.f32.partialorder %v4184, 8.507059e+37
    %v4186 = vand.u32 %v4174, 2147483648
    %v4187 = vor.u32 1.1754944e-38, %v4186
    %v4188 = vsel %vm4185, %v4187, %v4183
    %v4189 = vmul.f32 1.0, %v4188
    %v4190 = vmul.f32 %v4170, %v4149
    %v4191 = vadd.f32 %v4123, %v4190
    %v4192 = vtanh.pop %v4191
    %v4193 = vsub.f32 1.0, %v4189
    %v4194 = vmul.f32 %v4193, %v4192
    %v4195 = vmul.f32 %v4189, %v3876
    %v4196 = vadd.f32 %v4194, %v4195
    %v4197 = vmul.f32 %v4196, %v350
    %4198 = vadd.xlane.f32.xlu0 %v4197
    %v4199 = vpop.xlane.xlu0 %4198
    %v4200 = vadd.f32 %v4199, %v352
    %s4201 = sld [smem:[#allocation2 + $0x1]]
    %p4202 = scmp.eq.s32.totalorder %s4201, 1
    %s4203 = scalar_lea.vmem %s1, 8
    %v4204 = vld [vmem:[%s4203] sm:$0xff]
    %s4205 = scalar_select %p4202, 1, 0
    %v4206 = vstv %s4205
    %vm4207 = vcmp.eq.s32.totalorder %v4206, 1
    %v4208 = vsel %vm4207, %v4204, %v4200
    %4210 = vset.pattern.permute.xlu0 0
    %4211 = vperm.xlu0 %4210, %v4208
    %v4212 = vpop.permute.xlu0 %4211
    %v4214 = vmul.f32 %v4212, %v346
    %v4215 = vadd.f32 %v4214, %v348
    %v4216 = vmax.f32 %v4215, 0.0
    %v4217 = vpack.c.bf16 %v4216, %v4216
    %4218 = vmatpush.bf16.msra.mxu0 %v3157
    %4219 = vmatpush.bf16.msra.mxu0 %v3153
    %4220 = vmatpush.bf16.msra.mxu0 %v3149
    %4221 = vmatpush.bf16.msra.mxu0 %v3145
    %4222 = vmatpush.bf16.msra.mxu0 %v3141
    %4223 = vmatpush.bf16.msra.mxu0 %v3137
    %4224 = vmatpush.bf16.msra.mxu0 %v3133
    %4225 = vmatpush.bf16.msra.mxu0 %v3129
    %4226 = vmatmul.bf16.gmra.mxu0 %v4217
    %v4227 = vpop.f32.mrf.mxu0
    %v4228 = vadd.f32 %v324, %v4227
    %v4229 = vpop.f32.mrf.mxu0
    %4230 = vdwg.mxu0
    %4231 = vmatpush.bf16.msra.mxu0 %v3189
    %4232 = vmatpush.bf16.msra.mxu0 %v3185
    %4233 = vmatpush.bf16.msra.mxu0 %v3181
    %4234 = vmatpush.bf16.msra.mxu0 %v3177
    %4235 = vmatpush.bf16.msra.mxu0 %v3173
    %4236 = vmatpush.bf16.msra.mxu0 %v3169
    %4237 = vmatpush.bf16.msra.mxu0 %v3165
    %4238 = vmatpush.bf16.msra.mxu0 %v3161
    %4239 = vmatmul.bf16.gmra.mxu0 %v4046
    %v4240 = vpop.f32.mrf.mxu0
    %v4241 = vadd.f32 %v4228, %v4240
    %v4242 = vpop.f32.mrf.mxu0
    %4243 = vdwg.mxu0
    %4244 = vmatpush.bf16.msra.mxu0 %v3158
    %4245 = vmatpush.bf16.msra.mxu0 %v3154
    %4246 = vmatpush.bf16.msra.mxu0 %v3150
    %4247 = vmatpush.bf16.msra.mxu0 %v3146
    %4248 = vmatpush.bf16.msra.mxu0 %v3142
    %4249 = vmatpush.bf16.msra.mxu0 %v3138
    %4250 = vmatpush.bf16.msra.mxu0 %v3134
    %4251 = vmatpush.bf16.msra.mxu0 %v3130
    %4252 = vmatmul.bf16.gmra.mxu0 %v4217
    %v4253 = vpop.f32.mrf.mxu0
    %v4254 = vadd.f32 %v325, %v4253
    %v4255 = vpop.f32.mrf.mxu0
    %4256 = vdwg.mxu0
    %4257 = vmatpush.bf16.msra.mxu0 %v3190
    %4258 = vmatpush.bf16.msra.mxu0 %v3186
    %4259 = vmatpush.bf16.msra.mxu0 %v3182
    %4260 = vmatpush.bf16.msra.mxu0 %v3178
    %4261 = vmatpush.bf16.msra.mxu0 %v3174
    %4262 = vmatpush.bf16.msra.mxu0 %v3170
    %4263 = vmatpush.bf16.msra.mxu0 %v3166
    %4264 = vmatpush.bf16.msra.mxu0 %v3162
    %4265 = vmatmul.bf16.gmra.mxu0 %v4046
    %v4266 = vpop.f32.mrf.mxu0
    %v4267 = vadd.f32 %v4254, %v4266
    %v4268 = vpop.f32.mrf.mxu0
    %4269 = vdwg.mxu0
    %4270 = vmatpush.bf16.msra.mxu0 %v3159
    %4271 = vmatpush.bf16.msra.mxu0 %v3155
    %4272 = vmatpush.bf16.msra.mxu0 %v3151
    %4273 = vmatpush.bf16.msra.mxu0 %v3147
    %4274 = vmatpush.bf16.msra.mxu0 %v3143
    %4275 = vmatpush.bf16.msra.mxu0 %v3139
    %4276 = vmatpush.bf16.msra.mxu0 %v3135
    %4277 = vmatpush.bf16.msra.mxu0 %v3131
    %4278 = vmatmul.bf16.gmra.mxu0 %v4217
    %v4279 = vpop.f32.mrf.mxu0
    %v4280 = vadd.f32 %v326, %v4279
    %v4281 = vpop.f32.mrf.mxu0
    %4282 = vdwg.mxu0
    %4283 = vmatpush.bf16.msra.mxu0 %v3191
    %4284 = vmatpush.bf16.msra.mxu0 %v3187
    %4285 = vmatpush.bf16.msra.mxu0 %v3183
    %4286 = vmatpush.bf16.msra.mxu0 %v3179
    %4287 = vmatpush.bf16.msra.mxu0 %v3175
    %4288 = vmatpush.bf16.msra.mxu0 %v3171
    %4289 = vmatpush.bf16.msra.mxu0 %v3167
    %4290 = vmatpush.bf16.msra.mxu0 %v3163
    %4291 = vmatmul.bf16.gmra.mxu0 %v4046
    %v4292 = vpop.f32.mrf.mxu0
    %v4293 = vadd.f32 %v4280, %v4292
    %v4294 = vpop.f32.mrf.mxu0
    %4295 = vdwg.mxu0
    %4296 = vmatpush.bf16.msra.mxu0 %v3160
    %4297 = vmatpush.bf16.msra.mxu0 %v3156
    %4298 = vmatpush.bf16.msra.mxu0 %v3152
    %4299 = vmatpush.bf16.msra.mxu0 %v3148
    %4300 = vmatpush.bf16.msra.mxu0 %v3144
    %4301 = vmatpush.bf16.msra.mxu0 %v3140
    %4302 = vmatpush.bf16.msra.mxu0 %v3136
    %4303 = vmatpush.bf16.msra.mxu0 %v3132
    %4304 = vmatmul.bf16.gmra.mxu0 %v4217
    %v4305 = vpop.f32.mrf.mxu0
    %v4306 = vadd.f32 %v327, %v4305
    %v4307 = vpop.f32.mrf.mxu0
    %4308 = vdwg.mxu0
    %4309 = vmatpush.bf16.msra.mxu0 %v3192
    %4310 = vmatpush.bf16.msra.mxu0 %v3188
    %4311 = vmatpush.bf16.msra.mxu0 %v3184
    %4312 = vmatpush.bf16.msra.mxu0 %v3180
    %4313 = vmatpush.bf16.msra.mxu0 %v3176
    %4314 = vmatpush.bf16.msra.mxu0 %v3172
    %4315 = vmatpush.bf16.msra.mxu0 %v3168
    %4316 = vmatpush.bf16.msra.mxu0 %v3164
    %4317 = vmatmul.bf16.gmra.mxu0 %v4046
    %v4318 = vpop.f32.mrf.mxu0
    %v4319 = vadd.f32 %v4306, %v4318
    %v4320 = vpop.f32.mrf.mxu0
    %4321 = vdwg.mxu0
    %v4322 = vxor.u32 %v4241, 2147483648
    %v4323 = vmul.f32 %v4322, 1.442695
    %v4324 = vpow.pop %v4323
    %v4325 = vadd.f32 %v4324, 1.0
    %v4326 = vrcp.pop %v4325
    %v4327 = vmul.f32 %v4325, %v4326
    %v4328 = vsub.f32 1.0, %v4327
    %v4329 = vmul.f32 %v4326, %v4328
    %v4330 = vadd.f32 %v4326, %v4329
    %vm4331 = vweird.f32 %v4325
    %vm4332 = vweird.f32 %v4326
    %vm4333 = vmor %vm4331, %vm4332
    %v4334 = vsel %vm4333, %v4326, %v4330
    %v4335 = vand.u32 2147483647, %v4325
    %vm4336 = vcmp.eq.f32.partialorder %v4335, 8.507059e+37
    %v4337 = vand.u32 %v4325, 2147483648
    %v4338 = vor.u32 1.1754944e-38, %v4337
    %v4339 = vsel %vm4336, %v4338, %v4334
    %v4340 = vmul.f32 1.0, %v4339
    %v4341 = vxor.u32 %v4267, 2147483648
    %v4342 = vmul.f32 %v4341, 1.442695
    %v4343 = vpow.pop %v4342
    %v4344 = vadd.f32 %v4343, 1.0
    %v4345 = vrcp.pop %v4344
    %v4346 = vmul.f32 %v4344, %v4345
    %v4347 = vsub.f32 1.0, %v4346
    %v4348 = vmul.f32 %v4345, %v4347
    %v4349 = vadd.f32 %v4345, %v4348
    %vm4350 = vweird.f32 %v4344
    %vm4351 = vweird.f32 %v4345
    %vm4352 = vmor %vm4350, %vm4351
    %v4353 = vsel %vm4352, %v4345, %v4349
    %v4354 = vand.u32 2147483647, %v4344
    %vm4355 = vcmp.eq.f32.partialorder %v4354, 8.507059e+37
    %v4356 = vand.u32 %v4344, 2147483648
    %v4357 = vor.u32 1.1754944e-38, %v4356
    %v4358 = vsel %vm4355, %v4357, %v4353
    %v4359 = vmul.f32 1.0, %v4358
    %v4360 = vmul.f32 %v4340, %v4319
    %v4361 = vadd.f32 %v4293, %v4360
    %v4362 = vtanh.pop %v4361
    %v4363 = vsub.f32 1.0, %v4359
    %v4364 = vmul.f32 %v4363, %v4362
    %v4365 = vmul.f32 %v4359, %v4045
    %v4366 = vadd.f32 %v4364, %v4365
    %v4367 = vpack.c.bf16 %v4366, %v4366
    %v4368 = vpack.c.bf16 %v4196, %v4196
    %4369 = vmatpush.bf16.msra.mxu0 %v3628
    %4370 = vmatpush.bf16.msra.mxu0 %v3624
    %4371 = vmatpush.bf16.msra.mxu0 %v3620
    %4372 = vmatpush.bf16.msra.mxu0 %v3616
    %4373 = vmatpush.bf16.msra.mxu0 %v3612
    %4374 = vmatpush.bf16.msra.mxu0 %v3608
    %4375 = vmatpush.bf16.msra.mxu0 %v3604
    %4376 = vmatpush.bf16.msra.mxu0 %v3600
    %4377 = vmatmul.bf16.gmra.mxu0 %v4367
    %v4378 = vpop.f32.mrf.mxu0
    %v4379 = vadd.f32 %v335, %v4378
    %v4380 = vpop.f32.mrf.mxu0
    %4381 = vdwg.mxu0
    %4382 = vmatpush.bf16.msra.mxu0 %v3660
    %4383 = vmatpush.bf16.msra.mxu0 %v3656
    %4384 = vmatpush.bf16.msra.mxu0 %v3652
    %4385 = vmatpush.bf16.msra.mxu0 %v3648
    %4386 = vmatpush.bf16.msra.mxu0 %v3644
    %4387 = vmatpush.bf16.msra.mxu0 %v3640
    %4388 = vmatpush.bf16.msra.mxu0 %v3636
    %4389 = vmatpush.bf16.msra.mxu0 %v3632
    %4390 = vmatmul.bf16.gmra.mxu0 %v4368
    %v4391 = vpop.f32.mrf.mxu0
    %v4392 = vadd.f32 %v4379, %v4391
    %v4393 = vpop.f32.mrf.mxu0
    %4394 = vdwg.mxu0
    %4395 = vmatpush.bf16.msra.mxu0 %v3629
    %4396 = vmatpush.bf16.msra.mxu0 %v3625
    %4397 = vmatpush.bf16.msra.mxu0 %v3621
    %4398 = vmatpush.bf16.msra.mxu0 %v3617
    %4399 = vmatpush.bf16.msra.mxu0 %v3613
    %4400 = vmatpush.bf16.msra.mxu0 %v3609
    %4401 = vmatpush.bf16.msra.mxu0 %v3605
    %4402 = vmatpush.bf16.msra.mxu0 %v3601
    %4403 = vmatmul.bf16.gmra.mxu0 %v4367
    %v4404 = vpop.f32.mrf.mxu0
    %v4405 = vadd.f32 %v336, %v4404
    %v4406 = vpop.f32.mrf.mxu0
    %4407 = vdwg.mxu0
    %4408 = vmatpush.bf16.msra.mxu0 %v3661
    %4409 = vmatpush.bf16.msra.mxu0 %v3657
    %4410 = vmatpush.bf16.msra.mxu0 %v3653
    %4411 = vmatpush.bf16.msra.mxu0 %v3649
    %4412 = vmatpush.bf16.msra.mxu0 %v3645
    %4413 = vmatpush.bf16.msra.mxu0 %v3641
    %4414 = vmatpush.bf16.msra.mxu0 %v3637
    %4415 = vmatpush.bf16.msra.mxu0 %v3633
    %4416 = vmatmul.bf16.gmra.mxu0 %v4368
    %v4417 = vpop.f32.mrf.mxu0
    %v4418 = vadd.f32 %v4405, %v4417
    %v4419 = vpop.f32.mrf.mxu0
    %4420 = vdwg.mxu0
    %4421 = vmatpush.bf16.msra.mxu0 %v3630
    %4422 = vmatpush.bf16.msra.mxu0 %v3626
    %4423 = vmatpush.bf16.msra.mxu0 %v3622
    %4424 = vmatpush.bf16.msra.mxu0 %v3618
    %4425 = vmatpush.bf16.msra.mxu0 %v3614
    %4426 = vmatpush.bf16.msra.mxu0 %v3610
    %4427 = vmatpush.bf16.msra.mxu0 %v3606
    %4428 = vmatpush.bf16.msra.mxu0 %v3602
    %4429 = vmatmul.bf16.gmra.mxu0 %v4367
    %v4430 = vpop.f32.mrf.mxu0
    %v4431 = vadd.f32 %v337, %v4430
    %v4432 = vpop.f32.mrf.mxu0
    %4433 = vdwg.mxu0
    %4434 = vmatpush.bf16.msra.mxu0 %v3662
    %4435 = vmatpush.bf16.msra.mxu0 %v3658
    %4436 = vmatpush.bf16.msra.mxu0 %v3654
    %4437 = vmatpush.bf16.msra.mxu0 %v3650
    %4438 = vmatpush.bf16.msra.mxu0 %v3646
    %4439 = vmatpush.bf16.msra.mxu0 %v3642
    %4440 = vmatpush.bf16.msra.mxu0 %v3638
    %4441 = vmatpush.bf16.msra.mxu0 %v3634
    %4442 = vmatmul.bf16.gmra.mxu0 %v4368
    %v4443 = vpop.f32.mrf.mxu0
    %v4444 = vadd.f32 %v4431, %v4443
    %v4445 = vpop.f32.mrf.mxu0
    %4446 = vdwg.mxu0
    %4447 = vmatpush.bf16.msra.mxu0 %v3631
    %4448 = vmatpush.bf16.msra.mxu0 %v3627
    %4449 = vmatpush.bf16.msra.mxu0 %v3623
    %4450 = vmatpush.bf16.msra.mxu0 %v3619
    %4451 = vmatpush.bf16.msra.mxu0 %v3615
    %4452 = vmatpush.bf16.msra.mxu0 %v3611
    %4453 = vmatpush.bf16.msra.mxu0 %v3607
    %4454 = vmatpush.bf16.msra.mxu0 %v3603
    %4455 = vmatmul.bf16.gmra.mxu0 %v4367
    %v4456 = vpop.f32.mrf.mxu0
    %v4457 = vadd.f32 %v338, %v4456
    %v4458 = vpop.f32.mrf.mxu0
    %4459 = vdwg.mxu0
    %4460 = vmatpush.bf16.msra.mxu0 %v3663
    %4461 = vmatpush.bf16.msra.mxu0 %v3659
    %4462 = vmatpush.bf16.msra.mxu0 %v3655
    %4463 = vmatpush.bf16.msra.mxu0 %v3651
    %4464 = vmatpush.bf16.msra.mxu0 %v3647
    %4465 = vmatpush.bf16.msra.mxu0 %v3643
    %4466 = vmatpush.bf16.msra.mxu0 %v3639
    %4467 = vmatpush.bf16.msra.mxu0 %v3635
    %4468 = vmatmul.bf16.gmra.mxu0 %v4368
    %v4469 = vpop.f32.mrf.mxu0
    %v4470 = vadd.f32 %v4457, %v4469
    %v4471 = vpop.f32.mrf.mxu0
    %4472 = vdwg.mxu0
    %v4473 = vxor.u32 %v4392, 2147483648
    %v4474 = vmul.f32 %v4473, 1.442695
    %v4475 = vpow.pop %v4474
    %v4476 = vadd.f32 %v4475, 1.0
    %v4477 = vrcp.pop %v4476
    %v4478 = vmul.f32 %v4476, %v4477
    %v4479 = vsub.f32 1.0, %v4478
    %v4480 = vmul.f32 %v4477, %v4479
    %v4481 = vadd.f32 %v4477, %v4480
    %vm4482 = vweird.f32 %v4476
    %vm4483 = vweird.f32 %v4477
    %vm4484 = vmor %vm4482, %vm4483
    %v4485 = vsel %vm4484, %v4477, %v4481
    %v4486 = vand.u32 2147483647, %v4476
    %vm4487 = vcmp.eq.f32.partialorder %v4486, 8.507059e+37
    %v4488 = vand.u32 %v4476, 2147483648
    %v4489 = vor.u32 1.1754944e-38, %v4488
    %v4490 = vsel %vm4487, %v4489, %v4485
    %v4491 = vmul.f32 1.0, %v4490
    %v4492 = vxor.u32 %v4418, 2147483648
    %v4493 = vmul.f32 %v4492, 1.442695
    %v4494 = vpow.pop %v4493
    %v4495 = vadd.f32 %v4494, 1.0
    %v4496 = vrcp.pop %v4495
    %v4497 = vmul.f32 %v4495, %v4496
    %v4498 = vsub.f32 1.0, %v4497
    %v4499 = vmul.f32 %v4496, %v4498
    %v4500 = vadd.f32 %v4496, %v4499
    %vm4501 = vweird.f32 %v4495
    %vm4502 = vweird.f32 %v4496
    %vm4503 = vmor %vm4501, %vm4502
    %v4504 = vsel %vm4503, %v4496, %v4500
    %v4505 = vand.u32 2147483647, %v4495
    %vm4506 = vcmp.eq.f32.partialorder %v4505, 8.507059e+37
    %v4507 = vand.u32 %v4495, 2147483648
    %v4508 = vor.u32 1.1754944e-38, %v4507
    %v4509 = vsel %vm4506, %v4508, %v4504
    %v4510 = vmul.f32 1.0, %v4509
    %v4511 = vmul.f32 %v4491, %v4470
    %v4512 = vadd.f32 %v4444, %v4511
    %v4513 = vtanh.pop %v4512
    %v4514 = vsub.f32 1.0, %v4510
    %v4515 = vmul.f32 %v4514, %v4513
    %v4516 = vmul.f32 %v4510, %v4196
    %v4517 = vadd.f32 %v4515, %v4516
    %v4518 = vmul.f32 %v4517, %v350
    %4519 = vadd.xlane.f32.xlu0 %v4518
    %v4520 = vpop.xlane.xlu0 %4519
    %v4521 = vadd.f32 %v4520, %v352
    %s4522 = sld [smem:[#allocation2 + $0x2]]
    %p4523 = scmp.eq.s32.totalorder %s4522, 1
    %s4524 = scalar_lea.vmem %s1, 16
    %v4525 = vld [vmem:[%s4524] sm:$0xff]
    %s4526 = scalar_select %p4523, 1, 0
    %v4527 = vstv %s4526
    %vm4528 = vcmp.eq.s32.totalorder %v4527, 1
    %v4529 = vsel %vm4528, %v4525, %v4521
    %4531 = vset.pattern.permute.xlu0 0
    %4532 = vperm.xlu0 %4531, %v4529
    %v4533 = vpop.permute.xlu0 %4532
    %v4535 = vmul.f32 %v4533, %v346
    %v4536 = vadd.f32 %v4535, %v348
    %v4537 = vmax.f32 %v4536, 0.0
    %v4538 = vpack.c.bf16 %v4537, %v4537
    %4539 = vmatpush.bf16.msra.mxu0 %v3157
    %4540 = vmatpush.bf16.msra.mxu0 %v3153
    %4541 = vmatpush.bf16.msra.mxu0 %v3149
    %4542 = vmatpush.bf16.msra.mxu0 %v3145
    %4543 = vmatpush.bf16.msra.mxu0 %v3141
    %4544 = vmatpush.bf16.msra.mxu0 %v3137
    %4545 = vmatpush.bf16.msra.mxu0 %v3133
    %4546 = vmatpush.bf16.msra.mxu0 %v3129
    %4547 = vmatmul.bf16.gmra.mxu0 %v4538
    %v4548 = vpop.f32.mrf.mxu0
    %v4549 = vadd.f32 %v324, %v4548
    %v4550 = vpop.f32.mrf.mxu0
    %4551 = vdwg.mxu0
    %4552 = vmatpush.bf16.msra.mxu0 %v3189
    %4553 = vmatpush.bf16.msra.mxu0 %v3185
    %4554 = vmatpush.bf16.msra.mxu0 %v3181
    %4555 = vmatpush.bf16.msra.mxu0 %v3177
    %4556 = vmatpush.bf16.msra.mxu0 %v3173
    %4557 = vmatpush.bf16.msra.mxu0 %v3169
    %4558 = vmatpush.bf16.msra.mxu0 %v3165
    %4559 = vmatpush.bf16.msra.mxu0 %v3161
    %4560 = vmatmul.bf16.gmra.mxu0 %v4367
    %v4561 = vpop.f32.mrf.mxu0
    %v4562 = vadd.f32 %v4549, %v4561
    %v4563 = vpop.f32.mrf.mxu0
    %4564 = vdwg.mxu0
    %4565 = vmatpush.bf16.msra.mxu0 %v3158
    %4566 = vmatpush.bf16.msra.mxu0 %v3154
    %4567 = vmatpush.bf16.msra.mxu0 %v3150
    %4568 = vmatpush.bf16.msra.mxu0 %v3146
    %4569 = vmatpush.bf16.msra.mxu0 %v3142
    %4570 = vmatpush.bf16.msra.mxu0 %v3138
    %4571 = vmatpush.bf16.msra.mxu0 %v3134
    %4572 = vmatpush.bf16.msra.mxu0 %v3130
    %4573 = vmatmul.bf16.gmra.mxu0 %v4538
    %v4574 = vpop.f32.mrf.mxu0
    %v4575 = vadd.f32 %v325, %v4574
    %v4576 = vpop.f32.mrf.mxu0
    %4577 = vdwg.mxu0
    %4578 = vmatpush.bf16.msra.mxu0 %v3190
    %4579 = vmatpush.bf16.msra.mxu0 %v3186
    %4580 = vmatpush.bf16.msra.mxu0 %v3182
    %4581 = vmatpush.bf16.msra.mxu0 %v3178
    %4582 = vmatpush.bf16.msra.mxu0 %v3174
    %4583 = vmatpush.bf16.msra.mxu0 %v3170
    %4584 = vmatpush.bf16.msra.mxu0 %v3166
    %4585 = vmatpush.bf16.msra.mxu0 %v3162
    %4586 = vmatmul.bf16.gmra.mxu0 %v4367
    %v4587 = vpop.f32.mrf.mxu0
    %v4588 = vadd.f32 %v4575, %v4587
    %v4589 = vpop.f32.mrf.mxu0
    %4590 = vdwg.mxu0
    %4591 = vmatpush.bf16.msra.mxu0 %v3159
    %4592 = vmatpush.bf16.msra.mxu0 %v3155
    %4593 = vmatpush.bf16.msra.mxu0 %v3151
    %4594 = vmatpush.bf16.msra.mxu0 %v3147
    %4595 = vmatpush.bf16.msra.mxu0 %v3143
    %4596 = vmatpush.bf16.msra.mxu0 %v3139
    %4597 = vmatpush.bf16.msra.mxu0 %v3135
    %4598 = vmatpush.bf16.msra.mxu0 %v3131
    %4599 = vmatmul.bf16.gmra.mxu0 %v4538
    %v4600 = vpop.f32.mrf.mxu0
    %v4601 = vadd.f32 %v326, %v4600
    %v4602 = vpop.f32.mrf.mxu0
    %4603 = vdwg.mxu0
    %4604 = vmatpush.bf16.msra.mxu0 %v3191
    %4605 = vmatpush.bf16.msra.mxu0 %v3187
    %4606 = vmatpush.bf16.msra.mxu0 %v3183
    %4607 = vmatpush.bf16.msra.mxu0 %v3179
    %4608 = vmatpush.bf16.msra.mxu0 %v3175
    %4609 = vmatpush.bf16.msra.mxu0 %v3171
    %4610 = vmatpush.bf16.msra.mxu0 %v3167
    %4611 = vmatpush.bf16.msra.mxu0 %v3163
    %4612 = vmatmul.bf16.gmra.mxu0 %v4367
    %v4613 = vpop.f32.mrf.mxu0
    %v4614 = vadd.f32 %v4601, %v4613
    %v4615 = vpop.f32.mrf.mxu0
    %4616 = vdwg.mxu0
    %4617 = vmatpush.bf16.msra.mxu0 %v3160
    %4618 = vmatpush.bf16.msra.mxu0 %v3156
    %4619 = vmatpush.bf16.msra.mxu0 %v3152
    %4620 = vmatpush.bf16.msra.mxu0 %v3148
    %4621 = vmatpush.bf16.msra.mxu0 %v3144
    %4622 = vmatpush.bf16.msra.mxu0 %v3140
    %4623 = vmatpush.bf16.msra.mxu0 %v3136
    %4624 = vmatpush.bf16.msra.mxu0 %v3132
    %4625 = vmatmul.bf16.gmra.mxu0 %v4538
    %v4626 = vpop.f32.mrf.mxu0
    %v4627 = vadd.f32 %v327, %v4626
    %v4628 = vpop.f32.mrf.mxu0
    %4629 = vdwg.mxu0
    %4630 = vmatpush.bf16.msra.mxu0 %v3192
    %4631 = vmatpush.bf16.msra.mxu0 %v3188
    %4632 = vmatpush.bf16.msra.mxu0 %v3184
    %4633 = vmatpush.bf16.msra.mxu0 %v3180
    %4634 = vmatpush.bf16.msra.mxu0 %v3176
    %4635 = vmatpush.bf16.msra.mxu0 %v3172
    %4636 = vmatpush.bf16.msra.mxu0 %v3168
    %4637 = vmatpush.bf16.msra.mxu0 %v3164
    %4638 = vmatmul.bf16.gmra.mxu0 %v4367
    %v4639 = vpop.f32.mrf.mxu0
    %v4640 = vadd.f32 %v4627, %v4639
    %v4641 = vpop.f32.mrf.mxu0
    %4642 = vdwg.mxu0
    %v4643 = vxor.u32 %v4562, 2147483648
    %v4644 = vmul.f32 %v4643, 1.442695
    %v4645 = vpow.pop %v4644
    %v4646 = vadd.f32 %v4645, 1.0
    %v4647 = vrcp.pop %v4646
    %v4648 = vmul.f32 %v4646, %v4647
    %v4649 = vsub.f32 1.0, %v4648
    %v4650 = vmul.f32 %v4647, %v4649
    %v4651 = vadd.f32 %v4647, %v4650
    %vm4652 = vweird.f32 %v4646
    %vm4653 = vweird.f32 %v4647
    %vm4654 = vmor %vm4652, %vm4653
    %v4655 = vsel %vm4654, %v4647, %v4651
    %v4656 = vand.u32 2147483647, %v4646
    %vm4657 = vcmp.eq.f32.partialorder %v4656, 8.507059e+37
    %v4658 = vand.u32 %v4646, 2147483648
    %v4659 = vor.u32 1.1754944e-38, %v4658
    %v4660 = vsel %vm4657, %v4659, %v4655
    %v4661 = vmul.f32 1.0, %v4660
    %v4662 = vxor.u32 %v4588, 2147483648
    %v4663 = vmul.f32 %v4662, 1.442695
    %v4664 = vpow.pop %v4663
    %v4665 = vadd.f32 %v4664, 1.0
    %v4666 = vrcp.pop %v4665
    %v4667 = vmul.f32 %v4665, %v4666
    %v4668 = vsub.f32 1.0, %v4667
    %v4669 = vmul.f32 %v4666, %v4668
    %v4670 = vadd.f32 %v4666, %v4669
    %vm4671 = vweird.f32 %v4665
    %vm4672 = vweird.f32 %v4666
    %vm4673 = vmor %vm4671, %vm4672
    %v4674 = vsel %vm4673, %v4666, %v4670
    %v4675 = vand.u32 2147483647, %v4665
    %vm4676 = vcmp.eq.f32.partialorder %v4675, 8.507059e+37
    %v4677 = vand.u32 %v4665, 2147483648
    %v4678 = vor.u32 1.1754944e-38, %v4677
    %v4679 = vsel %vm4676, %v4678, %v4674
    %v4680 = vmul.f32 1.0, %v4679
    %v4681 = vmul.f32 %v4661, %v4640
    %v4682 = vadd.f32 %v4614, %v4681
    %v4683 = vtanh.pop %v4682
    %v4684 = vsub.f32 1.0, %v4680
    %v4685 = vmul.f32 %v4684, %v4683
    %v4686 = vmul.f32 %v4680, %v4366
    %v4687 = vadd.f32 %v4685, %v4686
    %v4688 = vpack.c.bf16 %v4687, %v4687
    %v4689 = vpack.c.bf16 %v4517, %v4517
    %4690 = vmatpush.bf16.msra.mxu0 %v3628
    %4691 = vmatpush.bf16.msra.mxu0 %v3624
    %4692 = vmatpush.bf16.msra.mxu0 %v3620
    %4693 = vmatpush.bf16.msra.mxu0 %v3616
    %4694 = vmatpush.bf16.msra.mxu0 %v3612
    %4695 = vmatpush.bf16.msra.mxu0 %v3608
    %4696 = vmatpush.bf16.msra.mxu0 %v3604
    %4697 = vmatpush.bf16.msra.mxu0 %v3600
    %4698 = vmatmul.bf16.gmra.mxu0 %v4688
    %v4699 = vpop.f32.mrf.mxu0
    %v4700 = vadd.f32 %v335, %v4699
    %v4701 = vpop.f32.mrf.mxu0
    %4702 = vdwg.mxu0
    %4703 = vmatpush.bf16.msra.mxu0 %v3660
    %4704 = vmatpush.bf16.msra.mxu0 %v3656
    %4705 = vmatpush.bf16.msra.mxu0 %v3652
    %4706 = vmatpush.bf16.msra.mxu0 %v3648
    %4707 = vmatpush.bf16.msra.mxu0 %v3644
    %4708 = vmatpush.bf16.msra.mxu0 %v3640
    %4709 = vmatpush.bf16.msra.mxu0 %v3636
    %4710 = vmatpush.bf16.msra.mxu0 %v3632
    %4711 = vmatmul.bf16.gmra.mxu0 %v4689
    %v4712 = vpop.f32.mrf.mxu0
    %v4713 = vadd.f32 %v4700, %v4712
    %v4714 = vpop.f32.mrf.mxu0
    %4715 = vdwg.mxu0
    %4716 = vmatpush.bf16.msra.mxu0 %v3629
    %4717 = vmatpush.bf16.msra.mxu0 %v3625
    %4718 = vmatpush.bf16.msra.mxu0 %v3621
    %4719 = vmatpush.bf16.msra.mxu0 %v3617
    %4720 = vmatpush.bf16.msra.mxu0 %v3613
    %4721 = vmatpush.bf16.msra.mxu0 %v3609
    %4722 = vmatpush.bf16.msra.mxu0 %v3605
    %4723 = vmatpush.bf16.msra.mxu0 %v3601
    %4724 = vmatmul.bf16.gmra.mxu0 %v4688
    %v4725 = vpop.f32.mrf.mxu0
    %v4726 = vadd.f32 %v336, %v4725
    %v4727 = vpop.f32.mrf.mxu0
    %4728 = vdwg.mxu0
    %4729 = vmatpush.bf16.msra.mxu0 %v3661
    %4730 = vmatpush.bf16.msra.mxu0 %v3657
    %4731 = vmatpush.bf16.msra.mxu0 %v3653
    %4732 = vmatpush.bf16.msra.mxu0 %v3649
    %4733 = vmatpush.bf16.msra.mxu0 %v3645
    %4734 = vmatpush.bf16.msra.mxu0 %v3641
    %4735 = vmatpush.bf16.msra.mxu0 %v3637
    %4736 = vmatpush.bf16.msra.mxu0 %v3633
    %4737 = vmatmul.bf16.gmra.mxu0 %v4689
    %v4738 = vpop.f32.mrf.mxu0
    %v4739 = vadd.f32 %v4726, %v4738
    %v4740 = vpop.f32.mrf.mxu0
    %4741 = vdwg.mxu0
    %4742 = vmatpush.bf16.msra.mxu0 %v3630
    %4743 = vmatpush.bf16.msra.mxu0 %v3626
    %4744 = vmatpush.bf16.msra.mxu0 %v3622
    %4745 = vmatpush.bf16.msra.mxu0 %v3618
    %4746 = vmatpush.bf16.msra.mxu0 %v3614
    %4747 = vmatpush.bf16.msra.mxu0 %v3610
    %4748 = vmatpush.bf16.msra.mxu0 %v3606
    %4749 = vmatpush.bf16.msra.mxu0 %v3602
    %4750 = vmatmul.bf16.gmra.mxu0 %v4688
    %v4751 = vpop.f32.mrf.mxu0
    %v4752 = vadd.f32 %v337, %v4751
    %v4753 = vpop.f32.mrf.mxu0
    %4754 = vdwg.mxu0
    %4755 = vmatpush.bf16.msra.mxu0 %v3662
    %4756 = vmatpush.bf16.msra.mxu0 %v3658
    %4757 = vmatpush.bf16.msra.mxu0 %v3654
    %4758 = vmatpush.bf16.msra.mxu0 %v3650
    %4759 = vmatpush.bf16.msra.mxu0 %v3646
    %4760 = vmatpush.bf16.msra.mxu0 %v3642
    %4761 = vmatpush.bf16.msra.mxu0 %v3638
    %4762 = vmatpush.bf16.msra.mxu0 %v3634
    %4763 = vmatmul.bf16.gmra.mxu0 %v4689
    %v4764 = vpop.f32.mrf.mxu0
    %v4765 = vadd.f32 %v4752, %v4764
    %v4766 = vpop.f32.mrf.mxu0
    %4767 = vdwg.mxu0
    %4768 = vmatpush.bf16.msra.mxu0 %v3631
    %4769 = vmatpush.bf16.msra.mxu0 %v3627
    %4770 = vmatpush.bf16.msra.mxu0 %v3623
    %4771 = vmatpush.bf16.msra.mxu0 %v3619
    %4772 = vmatpush.bf16.msra.mxu0 %v3615
    %4773 = vmatpush.bf16.msra.mxu0 %v3611
    %4774 = vmatpush.bf16.msra.mxu0 %v3607
    %4775 = vmatpush.bf16.msra.mxu0 %v3603
    %4776 = vmatmul.bf16.gmra.mxu0 %v4688
    %v4777 = vpop.f32.mrf.mxu0
    %v4778 = vadd.f32 %v338, %v4777
    %v4779 = vpop.f32.mrf.mxu0
    %4780 = vdwg.mxu0
    %4781 = vmatpush.bf16.msra.mxu0 %v3663
    %4782 = vmatpush.bf16.msra.mxu0 %v3659
    %4783 = vmatpush.bf16.msra.mxu0 %v3655
    %4784 = vmatpush.bf16.msra.mxu0 %v3651
    %4785 = vmatpush.bf16.msra.mxu0 %v3647
    %4786 = vmatpush.bf16.msra.mxu0 %v3643
    %4787 = vmatpush.bf16.msra.mxu0 %v3639
    %4788 = vmatpush.bf16.msra.mxu0 %v3635
    %4789 = vmatmul.bf16.gmra.mxu0 %v4689
    %v4790 = vpop.f32.mrf.mxu0
    %v4791 = vadd.f32 %v4778, %v4790
    %v4792 = vpop.f32.mrf.mxu0
    %4793 = vdwg.mxu0
    %v4794 = vxor.u32 %v4713, 2147483648
    %v4795 = vmul.f32 %v4794, 1.442695
    %v4796 = vpow.pop %v4795
    %v4797 = vadd.f32 %v4796, 1.0
    %v4798 = vrcp.pop %v4797
    %v4799 = vmul.f32 %v4797, %v4798
    %v4800 = vsub.f32 1.0, %v4799
    %v4801 = vmul.f32 %v4798, %v4800
    %v4802 = vadd.f32 %v4798, %v4801
    %vm4803 = vweird.f32 %v4797
    %vm4804 = vweird.f32 %v4798
    %vm4805 = vmor %vm4803, %vm4804
    %v4806 = vsel %vm4805, %v4798, %v4802
    %v4807 = vand.u32 2147483647, %v4797
    %vm4808 = vcmp.eq.f32.partialorder %v4807, 8.507059e+37
    %v4809 = vand.u32 %v4797, 2147483648
    %v4810 = vor.u32 1.1754944e-38, %v4809
    %v4811 = vsel %vm4808, %v4810, %v4806
    %v4812 = vmul.f32 1.0, %v4811
    %v4813 = vxor.u32 %v4739, 2147483648
    %v4814 = vmul.f32 %v4813, 1.442695
    %v4815 = vpow.pop %v4814
    %v4816 = vadd.f32 %v4815, 1.0
    %v4817 = vrcp.pop %v4816
    %v4818 = vmul.f32 %v4816, %v4817
    %v4819 = vsub.f32 1.0, %v4818
    %v4820 = vmul.f32 %v4817, %v4819
    %v4821 = vadd.f32 %v4817, %v4820
    %vm4822 = vweird.f32 %v4816
    %vm4823 = vweird.f32 %v4817
    %vm4824 = vmor %vm4822, %vm4823
    %v4825 = vsel %vm4824, %v4817, %v4821
    %v4826 = vand.u32 2147483647, %v4816
    %vm4827 = vcmp.eq.f32.partialorder %v4826, 8.507059e+37
    %v4828 = vand.u32 %v4816, 2147483648
    %v4829 = vor.u32 1.1754944e-38, %v4828
    %v4830 = vsel %vm4827, %v4829, %v4825
    %v4831 = vmul.f32 1.0, %v4830
    %v4832 = vmul.f32 %v4812, %v4791
    %v4833 = vadd.f32 %v4765, %v4832
    %v4834 = vtanh.pop %v4833
    %v4835 = vsub.f32 1.0, %v4831
    %v4836 = vmul.f32 %v4835, %v4834
    %v4837 = vmul.f32 %v4831, %v4517
    %v4838 = vadd.f32 %v4836, %v4837
    %v4839 = vmul.f32 %v4838, %v350
    %4840 = vadd.xlane.f32.xlu0 %v4839
    %v4841 = vpop.xlane.xlu0 %4840
    %v4842 = vadd.f32 %v4841, %v352
    %s4843 = sld [smem:[#allocation2 + $0x3]]
    %p4844 = scmp.eq.s32.totalorder %s4843, 1
    %s4845 = scalar_lea.vmem %s1, 24
    %v4846 = vld [vmem:[%s4845] sm:$0xff]
    %s4847 = scalar_select %p4844, 1, 0
    %v4848 = vstv %s4847
    %vm4849 = vcmp.eq.s32.totalorder %v4848, 1
    %v4850 = vsel %vm4849, %v4846, %v4842
    %4852 = vset.pattern.permute.xlu0 0
    %4853 = vperm.xlu0 %4852, %v4850
    %v4854 = vpop.permute.xlu0 %4853
    %v4856 = vmul.f32 %v4854, %v346
    %v4857 = vadd.f32 %v4856, %v348
    %v4858 = vmax.f32 %v4857, 0.0
    %v4859 = vpack.c.bf16 %v4858, %v4858
    %4860 = vmatpush.bf16.msra.mxu0 %v3157
    %4861 = vmatpush.bf16.msra.mxu0 %v3153
    %4862 = vmatpush.bf16.msra.mxu0 %v3149
    %4863 = vmatpush.bf16.msra.mxu0 %v3145
    %4864 = vmatpush.bf16.msra.mxu0 %v3141
    %4865 = vmatpush.bf16.msra.mxu0 %v3137
    %4866 = vmatpush.bf16.msra.mxu0 %v3133
    %4867 = vmatpush.bf16.msra.mxu0 %v3129
    %4868 = vmatmul.bf16.gmra.mxu0 %v4859
    %v4869 = vpop.f32.mrf.mxu0
    %v4870 = vadd.f32 %v324, %v4869
    %v4871 = vpop.f32.mrf.mxu0
    %4872 = vdwg.mxu0
    %4873 = vmatpush.bf16.msra.mxu0 %v3189
    %4874 = vmatpush.bf16.msra.mxu0 %v3185
    %4875 = vmatpush.bf16.msra.mxu0 %v3181
    %4876 = vmatpush.bf16.msra.mxu0 %v3177
    %4877 = vmatpush.bf16.msra.mxu0 %v3173
    %4878 = vmatpush.bf16.msra.mxu0 %v3169
    %4879 = vmatpush.bf16.msra.mxu0 %v3165
    %4880 = vmatpush.bf16.msra.mxu0 %v3161
    %4881 = vmatmul.bf16.gmra.mxu0 %v4688
    %v4882 = vpop.f32.mrf.mxu0
    %v4883 = vadd.f32 %v4870, %v4882
    %v4884 = vpop.f32.mrf.mxu0
    %4885 = vdwg.mxu0
    %4886 = vmatpush.bf16.msra.mxu0 %v3158
    %4887 = vmatpush.bf16.msra.mxu0 %v3154
    %4888 = vmatpush.bf16.msra.mxu0 %v3150
    %4889 = vmatpush.bf16.msra.mxu0 %v3146
    %4890 = vmatpush.bf16.msra.mxu0 %v3142
    %4891 = vmatpush.bf16.msra.mxu0 %v3138
    %4892 = vmatpush.bf16.msra.mxu0 %v3134
    %4893 = vmatpush.bf16.msra.mxu0 %v3130
    %4894 = vmatmul.bf16.gmra.mxu0 %v4859
    %v4895 = vpop.f32.mrf.mxu0
    %v4896 = vadd.f32 %v325, %v4895
    %v4897 = vpop.f32.mrf.mxu0
    %4898 = vdwg.mxu0
    %4899 = vmatpush.bf16.msra.mxu0 %v3190
    %4900 = vmatpush.bf16.msra.mxu0 %v3186
    %4901 = vmatpush.bf16.msra.mxu0 %v3182
    %4902 = vmatpush.bf16.msra.mxu0 %v3178
    %4903 = vmatpush.bf16.msra.mxu0 %v3174
    %4904 = vmatpush.bf16.msra.mxu0 %v3170
    %4905 = vmatpush.bf16.msra.mxu0 %v3166
    %4906 = vmatpush.bf16.msra.mxu0 %v3162
    %4907 = vmatmul.bf16.gmra.mxu0 %v4688
    %v4908 = vpop.f32.mrf.mxu0
    %v4909 = vadd.f32 %v4896, %v4908
    %v4910 = vpop.f32.mrf.mxu0
    %4911 = vdwg.mxu0
    %4912 = vmatpush.bf16.msra.mxu0 %v3159
    %4913 = vmatpush.bf16.msra.mxu0 %v3155
    %4914 = vmatpush.bf16.msra.mxu0 %v3151
    %4915 = vmatpush.bf16.msra.mxu0 %v3147
    %4916 = vmatpush.bf16.msra.mxu0 %v3143
    %4917 = vmatpush.bf16.msra.mxu0 %v3139
    %4918 = vmatpush.bf16.msra.mxu0 %v3135
    %4919 = vmatpush.bf16.msra.mxu0 %v3131
    %4920 = vmatmul.bf16.gmra.mxu0 %v4859
    %v4921 = vpop.f32.mrf.mxu0
    %v4922 = vadd.f32 %v326, %v4921
    %v4923 = vpop.f32.mrf.mxu0
    %4924 = vdwg.mxu0
    %4925 = vmatpush.bf16.msra.mxu0 %v3191
    %4926 = vmatpush.bf16.msra.mxu0 %v3187
    %4927 = vmatpush.bf16.msra.mxu0 %v3183
    %4928 = vmatpush.bf16.msra.mxu0 %v3179
    %4929 = vmatpush.bf16.msra.mxu0 %v3175
    %4930 = vmatpush.bf16.msra.mxu0 %v3171
    %4931 = vmatpush.bf16.msra.mxu0 %v3167
    %4932 = vmatpush.bf16.msra.mxu0 %v3163
    %4933 = vmatmul.bf16.gmra.mxu0 %v4688
    %v4934 = vpop.f32.mrf.mxu0
    %v4935 = vadd.f32 %v4922, %v4934
    %v4936 = vpop.f32.mrf.mxu0
    %4937 = vdwg.mxu0
    %4938 = vmatpush.bf16.msra.mxu0 %v3160
    %4939 = vmatpush.bf16.msra.mxu0 %v3156
    %4940 = vmatpush.bf16.msra.mxu0 %v3152
    %4941 = vmatpush.bf16.msra.mxu0 %v3148
    %4942 = vmatpush.bf16.msra.mxu0 %v3144
    %4943 = vmatpush.bf16.msra.mxu0 %v3140
    %4944 = vmatpush.bf16.msra.mxu0 %v3136
    %4945 = vmatpush.bf16.msra.mxu0 %v3132
    %4946 = vmatmul.bf16.gmra.mxu0 %v4859
    %v4947 = vpop.f32.mrf.mxu0
    %v4948 = vadd.f32 %v327, %v4947
    %v4949 = vpop.f32.mrf.mxu0
    %4950 = vdwg.mxu0
    %4951 = vmatpush.bf16.msra.mxu0 %v3192
    %4952 = vmatpush.bf16.msra.mxu0 %v3188
    %4953 = vmatpush.bf16.msra.mxu0 %v3184
    %4954 = vmatpush.bf16.msra.mxu0 %v3180
    %4955 = vmatpush.bf16.msra.mxu0 %v3176
    %4956 = vmatpush.bf16.msra.mxu0 %v3172
    %4957 = vmatpush.bf16.msra.mxu0 %v3168
    %4958 = vmatpush.bf16.msra.mxu0 %v3164
    %4959 = vmatmul.bf16.gmra.mxu0 %v4688
    %v4960 = vpop.f32.mrf.mxu0
    %v4961 = vadd.f32 %v4948, %v4960
    %v4962 = vpop.f32.mrf.mxu0
    %4963 = vdwg.mxu0
    %v4964 = vxor.u32 %v4883, 2147483648
    %v4965 = vmul.f32 %v4964, 1.442695
    %v4966 = vpow.pop %v4965
    %v4967 = vadd.f32 %v4966, 1.0
    %v4968 = vrcp.pop %v4967
    %v4969 = vmul.f32 %v4967, %v4968
    %v4970 = vsub.f32 1.0, %v4969
    %v4971 = vmul.f32 %v4968, %v4970
    %v4972 = vadd.f32 %v4968, %v4971
    %vm4973 = vweird.f32 %v4967
    %vm4974 = vweird.f32 %v4968
    %vm4975 = vmor %vm4973, %vm4974
    %v4976 = vsel %vm4975, %v4968, %v4972
    %v4977 = vand.u32 2147483647, %v4967
    %vm4978 = vcmp.eq.f32.partialorder %v4977, 8.507059e+37
    %v4979 = vand.u32 %v4967, 2147483648
    %v4980 = vor.u32 1.1754944e-38, %v4979
    %v4981 = vsel %vm4978, %v4980, %v4976
    %v4982 = vmul.f32 1.0, %v4981
    %v4983 = vxor.u32 %v4909, 2147483648
    %v4984 = vmul.f32 %v4983, 1.442695
    %v4985 = vpow.pop %v4984
    %v4986 = vadd.f32 %v4985, 1.0
    %v4987 = vrcp.pop %v4986
    %v4988 = vmul.f32 %v4986, %v4987
    %v4989 = vsub.f32 1.0, %v4988
    %v4990 = vmul.f32 %v4987, %v4989
    %v4991 = vadd.f32 %v4987, %v4990
    %vm4992 = vweird.f32 %v4986
    %vm4993 = vweird.f32 %v4987
    %vm4994 = vmor %vm4992, %vm4993
    %v4995 = vsel %vm4994, %v4987, %v4991
    %v4996 = vand.u32 2147483647, %v4986
    %vm4997 = vcmp.eq.f32.partialorder %v4996, 8.507059e+37
    %v4998 = vand.u32 %v4986, 2147483648
    %v4999 = vor.u32 1.1754944e-38, %v4998
    %v5000 = vsel %vm4997, %v4999, %v4995
    %v5001 = vmul.f32 1.0, %v5000
    %v5002 = vmul.f32 %v4982, %v4961
    %v5003 = vadd.f32 %v4935, %v5002
    %v5004 = vtanh.pop %v5003
    %v5005 = vsub.f32 1.0, %v5001
    %v5006 = vmul.f32 %v5005, %v5004
    %v5007 = vmul.f32 %v5001, %v4687
    %v5008 = vadd.f32 %v5006, %v5007
    %v5009 = vpack.c.bf16 %v5008, %v5008
    %v5010 = vpack.c.bf16 %v4838, %v4838
    %5011 = vmatpush.bf16.msra.mxu0 %v3628
    %5012 = vmatpush.bf16.msra.mxu0 %v3624
    %5013 = vmatpush.bf16.msra.mxu0 %v3620
    %5014 = vmatpush.bf16.msra.mxu0 %v3616
    %5015 = vmatpush.bf16.msra.mxu0 %v3612
    %5016 = vmatpush.bf16.msra.mxu0 %v3608
    %5017 = vmatpush.bf16.msra.mxu0 %v3604
    %5018 = vmatpush.bf16.msra.mxu0 %v3600
    %5019 = vmatmul.bf16.gmra.mxu0 %v5009
    %v5020 = vpop.f32.mrf.mxu0
    %v5021 = vadd.f32 %v335, %v5020
    %v5022 = vpop.f32.mrf.mxu0
    %5023 = vdwg.mxu0
    %5024 = vmatpush.bf16.msra.mxu0 %v3660
    %5025 = vmatpush.bf16.msra.mxu0 %v3656
    %5026 = vmatpush.bf16.msra.mxu0 %v3652
    %5027 = vmatpush.bf16.msra.mxu0 %v3648
    %5028 = vmatpush.bf16.msra.mxu0 %v3644
    %5029 = vmatpush.bf16.msra.mxu0 %v3640
    %5030 = vmatpush.bf16.msra.mxu0 %v3636
    %5031 = vmatpush.bf16.msra.mxu0 %v3632
    %5032 = vmatmul.bf16.gmra.mxu0 %v5010
    %v5033 = vpop.f32.mrf.mxu0
    %v5034 = vadd.f32 %v5021, %v5033
    %v5035 = vpop.f32.mrf.mxu0
    %5036 = vdwg.mxu0
    %5037 = vmatpush.bf16.msra.mxu0 %v3629
    %5038 = vmatpush.bf16.msra.mxu0 %v3625
    %5039 = vmatpush.bf16.msra.mxu0 %v3621
    %5040 = vmatpush.bf16.msra.mxu0 %v3617
    %5041 = vmatpush.bf16.msra.mxu0 %v3613
    %5042 = vmatpush.bf16.msra.mxu0 %v3609
    %5043 = vmatpush.bf16.msra.mxu0 %v3605
    %5044 = vmatpush.bf16.msra.mxu0 %v3601
    %5045 = vmatmul.bf16.gmra.mxu0 %v5009
    %v5046 = vpop.f32.mrf.mxu0
    %v5047 = vadd.f32 %v336, %v5046
    %v5048 = vpop.f32.mrf.mxu0
    %5049 = vdwg.mxu0
    %5050 = vmatpush.bf16.msra.mxu0 %v3661
    %5051 = vmatpush.bf16.msra.mxu0 %v3657
    %5052 = vmatpush.bf16.msra.mxu0 %v3653
    %5053 = vmatpush.bf16.msra.mxu0 %v3649
    %5054 = vmatpush.bf16.msra.mxu0 %v3645
    %5055 = vmatpush.bf16.msra.mxu0 %v3641
    %5056 = vmatpush.bf16.msra.mxu0 %v3637
    %5057 = vmatpush.bf16.msra.mxu0 %v3633
    %5058 = vmatmul.bf16.gmra.mxu0 %v5010
    %v5059 = vpop.f32.mrf.mxu0
    %v5060 = vadd.f32 %v5047, %v5059
    %v5061 = vpop.f32.mrf.mxu0
    %5062 = vdwg.mxu0
    %5063 = vmatpush.bf16.msra.mxu0 %v3630
    %5064 = vmatpush.bf16.msra.mxu0 %v3626
    %5065 = vmatpush.bf16.msra.mxu0 %v3622
    %5066 = vmatpush.bf16.msra.mxu0 %v3618
    %5067 = vmatpush.bf16.msra.mxu0 %v3614
    %5068 = vmatpush.bf16.msra.mxu0 %v3610
    %5069 = vmatpush.bf16.msra.mxu0 %v3606
    %5070 = vmatpush.bf16.msra.mxu0 %v3602
    %5071 = vmatmul.bf16.gmra.mxu0 %v5009
    %v5072 = vpop.f32.mrf.mxu0
    %v5073 = vadd.f32 %v337, %v5072
    %v5074 = vpop.f32.mrf.mxu0
    %5075 = vdwg.mxu0
    %5076 = vmatpush.bf16.msra.mxu0 %v3662
    %5077 = vmatpush.bf16.msra.mxu0 %v3658
    %5078 = vmatpush.bf16.msra.mxu0 %v3654
    %5079 = vmatpush.bf16.msra.mxu0 %v3650
    %5080 = vmatpush.bf16.msra.mxu0 %v3646
    %5081 = vmatpush.bf16.msra.mxu0 %v3642
    %5082 = vmatpush.bf16.msra.mxu0 %v3638
    %5083 = vmatpush.bf16.msra.mxu0 %v3634
    %5084 = vmatmul.bf16.gmra.mxu0 %v5010
    %v5085 = vpop.f32.mrf.mxu0
    %v5086 = vadd.f32 %v5073, %v5085
    %v5087 = vpop.f32.mrf.mxu0
    %5088 = vdwg.mxu0
    %5089 = vmatpush.bf16.msra.mxu0 %v3631
    %5090 = vmatpush.bf16.msra.mxu0 %v3627
    %5091 = vmatpush.bf16.msra.mxu0 %v3623
    %5092 = vmatpush.bf16.msra.mxu0 %v3619
    %5093 = vmatpush.bf16.msra.mxu0 %v3615
    %5094 = vmatpush.bf16.msra.mxu0 %v3611
    %5095 = vmatpush.bf16.msra.mxu0 %v3607
    %5096 = vmatpush.bf16.msra.mxu0 %v3603
    %5097 = vmatmul.bf16.gmra.mxu0 %v5009
    %v5098 = vpop.f32.mrf.mxu0
    %v5099 = vadd.f32 %v338, %v5098
    %v5100 = vpop.f32.mrf.mxu0
    %5101 = vdwg.mxu0
    %5102 = vmatpush.bf16.msra.mxu0 %v3663
    %5103 = vmatpush.bf16.msra.mxu0 %v3659
    %5104 = vmatpush.bf16.msra.mxu0 %v3655
    %5105 = vmatpush.bf16.msra.mxu0 %v3651
    %5106 = vmatpush.bf16.msra.mxu0 %v3647
    %5107 = vmatpush.bf16.msra.mxu0 %v3643
    %5108 = vmatpush.bf16.msra.mxu0 %v3639
    %5109 = vmatpush.bf16.msra.mxu0 %v3635
    %5110 = vmatmul.bf16.gmra.mxu0 %v5010
    %v5111 = vpop.f32.mrf.mxu0
    %v5112 = vadd.f32 %v5099, %v5111
    %v5113 = vpop.f32.mrf.mxu0
    %5114 = vdwg.mxu0
    %v5115 = vxor.u32 %v5034, 2147483648
    %v5116 = vmul.f32 %v5115, 1.442695
    %v5117 = vpow.pop %v5116
    %v5118 = vadd.f32 %v5117, 1.0
    %v5119 = vrcp.pop %v5118
    %v5120 = vmul.f32 %v5118, %v5119
    %v5121 = vsub.f32 1.0, %v5120
    %v5122 = vmul.f32 %v5119, %v5121
    %v5123 = vadd.f32 %v5119, %v5122
    %vm5124 = vweird.f32 %v5118
    %vm5125 = vweird.f32 %v5119
    %vm5126 = vmor %vm5124, %vm5125
    %v5127 = vsel %vm5126, %v5119, %v5123
    %v5128 = vand.u32 2147483647, %v5118
    %vm5129 = vcmp.eq.f32.partialorder %v5128, 8.507059e+37
    %v5130 = vand.u32 %v5118, 2147483648
    %v5131 = vor.u32 1.1754944e-38, %v5130
    %v5132 = vsel %vm5129, %v5131, %v5127
    %v5133 = vmul.f32 1.0, %v5132
    %v5134 = vxor.u32 %v5060, 2147483648
    %v5135 = vmul.f32 %v5134, 1.442695
    %v5136 = vpow.pop %v5135
    %v5137 = vadd.f32 %v5136, 1.0
    %v5138 = vrcp.pop %v5137
    %v5139 = vmul.f32 %v5137, %v5138
    %v5140 = vsub.f32 1.0, %v5139
    %v5141 = vmul.f32 %v5138, %v5140
    %v5142 = vadd.f32 %v5138, %v5141
    %vm5143 = vweird.f32 %v5137
    %vm5144 = vweird.f32 %v5138
    %vm5145 = vmor %vm5143, %vm5144
    %v5146 = vsel %vm5145, %v5138, %v5142
    %v5147 = vand.u32 2147483647, %v5137
    %vm5148 = vcmp.eq.f32.partialorder %v5147, 8.507059e+37
    %v5149 = vand.u32 %v5137, 2147483648
    %v5150 = vor.u32 1.1754944e-38, %v5149
    %v5151 = vsel %vm5148, %v5150, %v5146
    %v5152 = vmul.f32 1.0, %v5151
    %v5153 = vmul.f32 %v5133, %v5112
    %v5154 = vadd.f32 %v5086, %v5153
    %v5155 = vtanh.pop %v5154
    %v5156 = vsub.f32 1.0, %v5152
    %v5157 = vmul.f32 %v5156, %v5155
    %v5158 = vmul.f32 %v5152, %v4838
    %v5159 = vadd.f32 %v5157, %v5158
    %v5160 = vmul.f32 %v5159, %v350
    %5161 = vadd.xlane.f32.xlu0 %v5160
    %v5162 = vpop.xlane.xlu0 %5161
    %v5163 = vadd.f32 %v5162, %v352
    %s5164 = sld [smem:[#allocation2 + $0x4]]
    %p5165 = scmp.eq.s32.totalorder %s5164, 1
    %s5166 = scalar_lea.vmem %s1, 32
    %v5167 = vld [vmem:[%s5166] sm:$0xff]
    %s5168 = scalar_select %p5165, 1, 0
    %v5169 = vstv %s5168
    %vm5170 = vcmp.eq.s32.totalorder %v5169, 1
    %v5171 = vsel %vm5170, %v5167, %v5163
    %5173 = vset.pattern.permute.xlu0 0
    %5174 = vperm.xlu0 %5173, %v5171
    %v5175 = vpop.permute.xlu0 %5174
    %v5177 = vmul.f32 %v5175, %v346
    %v5178 = vadd.f32 %v5177, %v348
    %v5179 = vmax.f32 %v5178, 0.0
    %v5180 = vpack.c.bf16 %v5179, %v5179
    %5181 = vmatpush.bf16.msra.mxu0 %v3157
    %5182 = vmatpush.bf16.msra.mxu0 %v3153
    %5183 = vmatpush.bf16.msra.mxu0 %v3149
    %5184 = vmatpush.bf16.msra.mxu0 %v3145
    %5185 = vmatpush.bf16.msra.mxu0 %v3141
    %5186 = vmatpush.bf16.msra.mxu0 %v3137
    %5187 = vmatpush.bf16.msra.mxu0 %v3133
    %5188 = vmatpush.bf16.msra.mxu0 %v3129
    %5189 = vmatmul.bf16.gmra.mxu0 %v5180
    %v5190 = vpop.f32.mrf.mxu0
    %v5191 = vadd.f32 %v324, %v5190
    %v5192 = vpop.f32.mrf.mxu0
    %5193 = vdwg.mxu0
    %5194 = vmatpush.bf16.msra.mxu0 %v3189
    %5195 = vmatpush.bf16.msra.mxu0 %v3185
    %5196 = vmatpush.bf16.msra.mxu0 %v3181
    %5197 = vmatpush.bf16.msra.mxu0 %v3177
    %5198 = vmatpush.bf16.msra.mxu0 %v3173
    %5199 = vmatpush.bf16.msra.mxu0 %v3169
    %5200 = vmatpush.bf16.msra.mxu0 %v3165
    %5201 = vmatpush.bf16.msra.mxu0 %v3161
    %5202 = vmatmul.bf16.gmra.mxu0 %v5009
    %v5203 = vpop.f32.mrf.mxu0
    %v5204 = vadd.f32 %v5191, %v5203
    %v5205 = vpop.f32.mrf.mxu0
    %5206 = vdwg.mxu0
    %5207 = vmatpush.bf16.msra.mxu0 %v3158
    %5208 = vmatpush.bf16.msra.mxu0 %v3154
    %5209 = vmatpush.bf16.msra.mxu0 %v3150
    %5210 = vmatpush.bf16.msra.mxu0 %v3146
    %5211 = vmatpush.bf16.msra.mxu0 %v3142
    %5212 = vmatpush.bf16.msra.mxu0 %v3138
    %5213 = vmatpush.bf16.msra.mxu0 %v3134
    %5214 = vmatpush.bf16.msra.mxu0 %v3130
    %5215 = vmatmul.bf16.gmra.mxu0 %v5180
    %v5216 = vpop.f32.mrf.mxu0
    %v5217 = vadd.f32 %v325, %v5216
    %v5218 = vpop.f32.mrf.mxu0
    %5219 = vdwg.mxu0
    %5220 = vmatpush.bf16.msra.mxu0 %v3190
    %5221 = vmatpush.bf16.msra.mxu0 %v3186
    %5222 = vmatpush.bf16.msra.mxu0 %v3182
    %5223 = vmatpush.bf16.msra.mxu0 %v3178
    %5224 = vmatpush.bf16.msra.mxu0 %v3174
    %5225 = vmatpush.bf16.msra.mxu0 %v3170
    %5226 = vmatpush.bf16.msra.mxu0 %v3166
    %5227 = vmatpush.bf16.msra.mxu0 %v3162
    %5228 = vmatmul.bf16.gmra.mxu0 %v5009
    %v5229 = vpop.f32.mrf.mxu0
    %v5230 = vadd.f32 %v5217, %v5229
    %v5231 = vpop.f32.mrf.mxu0
    %5232 = vdwg.mxu0
    %5233 = vmatpush.bf16.msra.mxu0 %v3159
    %5234 = vmatpush.bf16.msra.mxu0 %v3155
    %5235 = vmatpush.bf16.msra.mxu0 %v3151
    %5236 = vmatpush.bf16.msra.mxu0 %v3147
    %5237 = vmatpush.bf16.msra.mxu0 %v3143
    %5238 = vmatpush.bf16.msra.mxu0 %v3139
    %5239 = vmatpush.bf16.msra.mxu0 %v3135
    %5240 = vmatpush.bf16.msra.mxu0 %v3131
    %5241 = vmatmul.bf16.gmra.mxu0 %v5180
    %v5242 = vpop.f32.mrf.mxu0
    %v5243 = vadd.f32 %v326, %v5242
    %v5244 = vpop.f32.mrf.mxu0
    %5245 = vdwg.mxu0
    %5246 = vmatpush.bf16.msra.mxu0 %v3191
    %5247 = vmatpush.bf16.msra.mxu0 %v3187
    %5248 = vmatpush.bf16.msra.mxu0 %v3183
    %5249 = vmatpush.bf16.msra.mxu0 %v3179
    %5250 = vmatpush.bf16.msra.mxu0 %v3175
    %5251 = vmatpush.bf16.msra.mxu0 %v3171
    %5252 = vmatpush.bf16.msra.mxu0 %v3167
    %5253 = vmatpush.bf16.msra.mxu0 %v3163
    %5254 = vmatmul.bf16.gmra.mxu0 %v5009
    %v5255 = vpop.f32.mrf.mxu0
    %v5256 = vadd.f32 %v5243, %v5255
    %v5257 = vpop.f32.mrf.mxu0
    %5258 = vdwg.mxu0
    %5259 = vmatpush.bf16.msra.mxu0 %v3160
    %5260 = vmatpush.bf16.msra.mxu0 %v3156
    %5261 = vmatpush.bf16.msra.mxu0 %v3152
    %5262 = vmatpush.bf16.msra.mxu0 %v3148
    %5263 = vmatpush.bf16.msra.mxu0 %v3144
    %5264 = vmatpush.bf16.msra.mxu0 %v3140
    %5265 = vmatpush.bf16.msra.mxu0 %v3136
    %5266 = vmatpush.bf16.msra.mxu0 %v3132
    %5267 = vmatmul.bf16.gmra.mxu0 %v5180
    %v5268 = vpop.f32.mrf.mxu0
    %v5269 = vadd.f32 %v327, %v5268
    %v5270 = vpop.f32.mrf.mxu0
    %5271 = vdwg.mxu0
    %5272 = vmatpush.bf16.msra.mxu0 %v3192
    %5273 = vmatpush.bf16.msra.mxu0 %v3188
    %5274 = vmatpush.bf16.msra.mxu0 %v3184
    %5275 = vmatpush.bf16.msra.mxu0 %v3180
    %5276 = vmatpush.bf16.msra.mxu0 %v3176
    %5277 = vmatpush.bf16.msra.mxu0 %v3172
    %5278 = vmatpush.bf16.msra.mxu0 %v3168
    %5279 = vmatpush.bf16.msra.mxu0 %v3164
    %5280 = vmatmul.bf16.gmra.mxu0 %v5009
    %v5281 = vpop.f32.mrf.mxu0
    %v5282 = vadd.f32 %v5269, %v5281
    %v5283 = vpop.f32.mrf.mxu0
    %5284 = vdwg.mxu0
    %v5285 = vxor.u32 %v5204, 2147483648
    %v5286 = vmul.f32 %v5285, 1.442695
    %v5287 = vpow.pop %v5286
    %v5288 = vadd.f32 %v5287, 1.0
    %v5289 = vrcp.pop %v5288
    %v5290 = vmul.f32 %v5288, %v5289
    %v5291 = vsub.f32 1.0, %v5290
    %v5292 = vmul.f32 %v5289, %v5291
    %v5293 = vadd.f32 %v5289, %v5292
    %vm5294 = vweird.f32 %v5288
    %vm5295 = vweird.f32 %v5289
    %vm5296 = vmor %vm5294, %vm5295
    %v5297 = vsel %vm5296, %v5289, %v5293
    %v5298 = vand.u32 2147483647, %v5288
    %vm5299 = vcmp.eq.f32.partialorder %v5298, 8.507059e+37
    %v5300 = vand.u32 %v5288, 2147483648
    %v5301 = vor.u32 1.1754944e-38, %v5300
    %v5302 = vsel %vm5299, %v5301, %v5297
    %v5303 = vmul.f32 1.0, %v5302
    %v5304 = vxor.u32 %v5230, 2147483648
    %v5305 = vmul.f32 %v5304, 1.442695
    %v5306 = vpow.pop %v5305
    %v5307 = vadd.f32 %v5306, 1.0
    %v5308 = vrcp.pop %v5307
    %v5309 = vmul.f32 %v5307, %v5308
    %v5310 = vsub.f32 1.0, %v5309
    %v5311 = vmul.f32 %v5308, %v5310
    %v5312 = vadd.f32 %v5308, %v5311
    %vm5313 = vweird.f32 %v5307
    %vm5314 = vweird.f32 %v5308
    %vm5315 = vmor %vm5313, %vm5314
    %v5316 = vsel %vm5315, %v5308, %v5312
    %v5317 = vand.u32 2147483647, %v5307
    %vm5318 = vcmp.eq.f32.partialorder %v5317, 8.507059e+37
    %v5319 = vand.u32 %v5307, 2147483648
    %v5320 = vor.u32 1.1754944e-38, %v5319
    %v5321 = vsel %vm5318, %v5320, %v5316
    %v5322 = vmul.f32 1.0, %v5321
    %v5323 = vmul.f32 %v5303, %v5282
    %v5324 = vadd.f32 %v5256, %v5323
    %v5325 = vtanh.pop %v5324
    %v5326 = vsub.f32 1.0, %v5322
    %v5327 = vmul.f32 %v5326, %v5325
    %v5328 = vmul.f32 %v5322, %v5008
    %v5329 = vadd.f32 %v5327, %v5328
    %v5330 = vpack.c.bf16 %v5329, %v5329
    %v5331 = vpack.c.bf16 %v5159, %v5159
    %5332 = vmatpush.bf16.msra.mxu0 %v3628
    %5333 = vmatpush.bf16.msra.mxu0 %v3624
    %5334 = vmatpush.bf16.msra.mxu0 %v3620
    %5335 = vmatpush.bf16.msra.mxu0 %v3616
    %5336 = vmatpush.bf16.msra.mxu0 %v3612
    %5337 = vmatpush.bf16.msra.mxu0 %v3608
    %5338 = vmatpush.bf16.msra.mxu0 %v3604
    %5339 = vmatpush.bf16.msra.mxu0 %v3600
    %5340 = vmatmul.bf16.gmra.mxu0 %v5330
    %v5341 = vpop.f32.mrf.mxu0
    %v5342 = vadd.f32 %v335, %v5341
    %v5343 = vpop.f32.mrf.mxu0
    %5344 = vdwg.mxu0
    %5345 = vmatpush.bf16.msra.mxu0 %v3660
    %5346 = vmatpush.bf16.msra.mxu0 %v3656
    %5347 = vmatpush.bf16.msra.mxu0 %v3652
    %5348 = vmatpush.bf16.msra.mxu0 %v3648
    %5349 = vmatpush.bf16.msra.mxu0 %v3644
    %5350 = vmatpush.bf16.msra.mxu0 %v3640
    %5351 = vmatpush.bf16.msra.mxu0 %v3636
    %5352 = vmatpush.bf16.msra.mxu0 %v3632
    %5353 = vmatmul.bf16.gmra.mxu0 %v5331
    %v5354 = vpop.f32.mrf.mxu0
    %v5355 = vadd.f32 %v5342, %v5354
    %v5356 = vpop.f32.mrf.mxu0
    %5357 = vdwg.mxu0
    %5358 = vmatpush.bf16.msra.mxu0 %v3629
    %5359 = vmatpush.bf16.msra.mxu0 %v3625
    %5360 = vmatpush.bf16.msra.mxu0 %v3621
    %5361 = vmatpush.bf16.msra.mxu0 %v3617
    %5362 = vmatpush.bf16.msra.mxu0 %v3613
    %5363 = vmatpush.bf16.msra.mxu0 %v3609
    %5364 = vmatpush.bf16.msra.mxu0 %v3605
    %5365 = vmatpush.bf16.msra.mxu0 %v3601
    %5366 = vmatmul.bf16.gmra.mxu0 %v5330
    %v5367 = vpop.f32.mrf.mxu0
    %v5368 = vadd.f32 %v336, %v5367
    %v5369 = vpop.f32.mrf.mxu0
    %5370 = vdwg.mxu0
    %5371 = vmatpush.bf16.msra.mxu0 %v3661
    %5372 = vmatpush.bf16.msra.mxu0 %v3657
    %5373 = vmatpush.bf16.msra.mxu0 %v3653
    %5374 = vmatpush.bf16.msra.mxu0 %v3649
    %5375 = vmatpush.bf16.msra.mxu0 %v3645
    %5376 = vmatpush.bf16.msra.mxu0 %v3641
    %5377 = vmatpush.bf16.msra.mxu0 %v3637
    %5378 = vmatpush.bf16.msra.mxu0 %v3633
    %5379 = vmatmul.bf16.gmra.mxu0 %v5331
    %v5380 = vpop.f32.mrf.mxu0
    %v5381 = vadd.f32 %v5368, %v5380
    %v5382 = vpop.f32.mrf.mxu0
    %5383 = vdwg.mxu0
    %5384 = vmatpush.bf16.msra.mxu0 %v3630
    %5385 = vmatpush.bf16.msra.mxu0 %v3626
    %5386 = vmatpush.bf16.msra.mxu0 %v3622
    %5387 = vmatpush.bf16.msra.mxu0 %v3618
    %5388 = vmatpush.bf16.msra.mxu0 %v3614
    %5389 = vmatpush.bf16.msra.mxu0 %v3610
    %5390 = vmatpush.bf16.msra.mxu0 %v3606
    %5391 = vmatpush.bf16.msra.mxu0 %v3602
    %5392 = vmatmul.bf16.gmra.mxu0 %v5330
    %v5393 = vpop.f32.mrf.mxu0
    %v5394 = vadd.f32 %v337, %v5393
    %v5395 = vpop.f32.mrf.mxu0
    %5396 = vdwg.mxu0
    %5397 = vmatpush.bf16.msra.mxu0 %v3662
    %5398 = vmatpush.bf16.msra.mxu0 %v3658
    %5399 = vmatpush.bf16.msra.mxu0 %v3654
    %5400 = vmatpush.bf16.msra.mxu0 %v3650
    %5401 = vmatpush.bf16.msra.mxu0 %v3646
    %5402 = vmatpush.bf16.msra.mxu0 %v3642
    %5403 = vmatpush.bf16.msra.mxu0 %v3638
    %5404 = vmatpush.bf16.msra.mxu0 %v3634
    %5405 = vmatmul.bf16.gmra.mxu0 %v5331
    %v5406 = vpop.f32.mrf.mxu0
    %v5407 = vadd.f32 %v5394, %v5406
    %v5408 = vpop.f32.mrf.mxu0
    %5409 = vdwg.mxu0
    %5410 = vmatpush.bf16.msra.mxu0 %v3631
    %5411 = vmatpush.bf16.msra.mxu0 %v3627
    %5412 = vmatpush.bf16.msra.mxu0 %v3623
    %5413 = vmatpush.bf16.msra.mxu0 %v3619
    %5414 = vmatpush.bf16.msra.mxu0 %v3615
    %5415 = vmatpush.bf16.msra.mxu0 %v3611
    %5416 = vmatpush.bf16.msra.mxu0 %v3607
    %5417 = vmatpush.bf16.msra.mxu0 %v3603
    %5418 = vmatmul.bf16.gmra.mxu0 %v5330
    %v5419 = vpop.f32.mrf.mxu0
    %v5420 = vadd.f32 %v338, %v5419
    %v5421 = vpop.f32.mrf.mxu0
    %5422 = vdwg.mxu0
    %5423 = vmatpush.bf16.msra.mxu0 %v3663
    %5424 = vmatpush.bf16.msra.mxu0 %v3659
    %5425 = vmatpush.bf16.msra.mxu0 %v3655
    %5426 = vmatpush.bf16.msra.mxu0 %v3651
    %5427 = vmatpush.bf16.msra.mxu0 %v3647
    %5428 = vmatpush.bf16.msra.mxu0 %v3643
    %5429 = vmatpush.bf16.msra.mxu0 %v3639
    %5430 = vmatpush.bf16.msra.mxu0 %v3635
    %5431 = vmatmul.bf16.gmra.mxu0 %v5331
    %v5432 = vpop.f32.mrf.mxu0
    %v5433 = vadd.f32 %v5420, %v5432
    %v5434 = vpop.f32.mrf.mxu0
    %5435 = vdwg.mxu0
    %v5436 = vxor.u32 %v5355, 2147483648
    %v5437 = vmul.f32 %v5436, 1.442695
    %v5438 = vpow.pop %v5437
    %v5439 = vadd.f32 %v5438, 1.0
    %v5440 = vrcp.pop %v5439
    %v5441 = vmul.f32 %v5439, %v5440
    %v5442 = vsub.f32 1.0, %v5441
    %v5443 = vmul.f32 %v5440, %v5442
    %v5444 = vadd.f32 %v5440, %v5443
    %vm5445 = vweird.f32 %v5439
    %vm5446 = vweird.f32 %v5440
    %vm5447 = vmor %vm5445, %vm5446
    %v5448 = vsel %vm5447, %v5440, %v5444
    %v5449 = vand.u32 2147483647, %v5439
    %vm5450 = vcmp.eq.f32.partialorder %v5449, 8.507059e+37
    %v5451 = vand.u32 %v5439, 2147483648
    %v5452 = vor.u32 1.1754944e-38, %v5451
    %v5453 = vsel %vm5450, %v5452, %v5448
    %v5454 = vmul.f32 1.0, %v5453
    %v5455 = vxor.u32 %v5381, 2147483648
    %v5456 = vmul.f32 %v5455, 1.442695
    %v5457 = vpow.pop %v5456
    %v5458 = vadd.f32 %v5457, 1.0
    %v5459 = vrcp.pop %v5458
    %v5460 = vmul.f32 %v5458, %v5459
    %v5461 = vsub.f32 1.0, %v5460
    %v5462 = vmul.f32 %v5459, %v5461
    %v5463 = vadd.f32 %v5459, %v5462
    %vm5464 = vweird.f32 %v5458
    %vm5465 = vweird.f32 %v5459
    %vm5466 = vmor %vm5464, %vm5465
    %v5467 = vsel %vm5466, %v5459, %v5463
    %v5468 = vand.u32 2147483647, %v5458
    %vm5469 = vcmp.eq.f32.partialorder %v5468, 8.507059e+37
    %v5470 = vand.u32 %v5458, 2147483648
    %v5471 = vor.u32 1.1754944e-38, %v5470
    %v5472 = vsel %vm5469, %v5471, %v5467
    %v5473 = vmul.f32 1.0, %v5472
    %v5474 = vmul.f32 %v5454, %v5433
    %v5475 = vadd.f32 %v5407, %v5474
    %v5476 = vtanh.pop %v5475
    %v5477 = vsub.f32 1.0, %v5473
    %v5478 = vmul.f32 %v5477, %v5476
    %v5479 = vmul.f32 %v5473, %v5159
    %v5480 = vadd.f32 %v5478, %v5479
    %v5481 = vmul.f32 %v5480, %v350
    %5482 = vadd.xlane.f32.xlu0 %v5481
    %v5483 = vpop.xlane.xlu0 %5482
    %v5484 = vadd.f32 %v5483, %v352
    %5486 = vrot.lane.b32.xlu0 %v4200, 1
    %v5487 = vpop.permute.xlu0 %5486
    %5490 = vrot.lane.b32.xlu0 %v4521, 2
    %v5491 = vpop.permute.xlu0 %5490
    %5494 = vrot.lane.b32.xlu0 %v4842, 3
    %v5495 = vpop.permute.xlu0 %5494
    %5498 = vrot.lane.b32.xlu0 %v5163, 4
    %v5499 = vpop.permute.xlu0 %5498
    %5502 = vrot.lane.b32.xlu0 %v5484, 5
    %v5503 = vpop.permute.xlu0 %5502
    %vm5505 = vcmask 7168
    %v5506 = vsel %vm5505, %v3880, %v5487
    %vm5507 = vcmask 15360
    %v5508 = vsel %vm5507, %v5506, %v5491
    %vm5509 = vcmask 23552
    %v5510 = vsel %vm5509, %v5508, %v5495
    %v5511 = vsel %vm370, %v5510, %v5499
    %vm5512 = vcmask 39936
    %v5513 = vsel %vm5512, %v5511, %v5503
    %vm5514 = vcmask 48128
    %v5515 = vsel %vm5514, %v5513, 0.0
    %5516 = vst [vmem:[#allocation9] sm:$0xff] %v5515
    // Predicated region
    $region58: #{tpu_custom_call.1} parent=1 // pred_check
      _
    $region59: #{tpu_custom_call.1} parent=1 // pred_check_branch
      %5518 = sbr.rel (0) target = $region61
    $region60: #{tpu_custom_call.1} parent=1 // pred_region
      %5520 = vsyncadd [#allocation4], 0
      %s5522 = sshll.u32 [#allocation9], 4
      %s5523 = int_to_ptr.vmem [resolvable:$true] %s5522
      %s5524 = sshll.u32 %s11, 4
      %s5525 = int_to_ptr.hbm [resolvable:$true] %s5524
      %5527 = dma.vmem_to_hbm [thread:$0]  %s5523, 128, %s5525, [#allocation4]
    $region61: #{tpu_custom_call.1} parent=1 // pred_fallthru
      _
    // Predicated region
    $region62: #{tpu_custom_call.1} parent=1 // pred_check
      _
    $region63: #{tpu_custom_call.1} parent=1 // pred_check_branch
      %5529 = sbr.rel (0) target = $region65
    $region64: #{tpu_custom_call.1} parent=1 // pred_region
      %5531 = dma.done [#allocation4], 128
    $region65: #{tpu_custom_call.1} parent=1 // pred_fallthru
      _
    %5532 = vsyncpa [#allocation3], 1
    %5533 = vsyncpa [#allocation8], 1
    %5534 = vsyncpa [#allocation4], 1
    %5535 = vsyncpa [#allocation5], 1

</llo_original>
